<compile_context>
chip_gen: v7x
topology: tpu7x:2x2x1
jax: 0.10.0
libtpu: 0.0.40
codegen_flags: <defaults>
</compile_context>

<pallas_src>
import math

import jax
import jax.numpy as jnp
from jax import lax
from jax.experimental import pallas as pl
from jax.experimental.pallas import tpu as pltpu

PAD = 0  # padding token id used by LabelSmoothingLoss


def _vmem_limit_bytes():
    """Per-generation VMEM budget: leave headroom on v7x (64 MiB physical),
    use more of the 128 MiB on v5e/v6e; safe 48 MiB fallback."""
    try:
        cap = int(pltpu.get_tpu_info().vmem_capacity_bytes)
        if cap <= 0:
            raise ValueError
    except Exception:
        return 48 * 1024 * 1024
    return int(max(32 * 1024 * 1024,
                   min(cap - 16 * 1024 * 1024, 100 * 1024 * 1024)))


# --------------------------------------------------------------------------
# Fused multi-layer LSTM kernel.
#   grid = (batch_chunks [parallel], time_blocks [arbitrary])
#   x_ref     : (Tc, Bt, H)      bf16  embedded inputs (time-major)
#   wih0_ref  : (H, 4H)          bf16  layer-0 W_ih^T (gate cols (i,f,o,g))
#   whh0_ref  : (H, 4H)          bf16  layer-0 W_hh^T
#   b0_ref    : (1, 4H)          f32   layer-0 b_ih+b_hh
#   wcat_ref  : (max(L-1,1), 2H, 4H) bf16  fused [W_ih^T; W_hh^T] layers 1..L-1
#   binner_ref: (max(L-1,1), 1, 4H)  f32   b_ih+b_hh layers 1..L-1
#   out_ref   : (Tc, Bt, H)      bf16  last layer hidden states
#   h_sc/c_sc : (L, Bt, H) f32 scratch, persistent across time blocks
#   g0_sc     : (Tc, Bt, 4H) f32 scratch, hoisted layer-0 pre-activations
# --------------------------------------------------------------------------
def lstm_stack_kernel(x_ref, wih0_ref, whh0_ref, b0_ref, wcat_ref, binner_ref,
                      out_ref, h_sc, c_sc, g0_sc):
    num_layers, Bt, H = h_sc.shape
    t_block = x_ref.shape[0]
    tblk = pl.program_id(1)

    @pl.when(tblk == 0)
    def _():
        h_sc[...] = jnp.zeros_like(h_sc)
        c_sc[...] = jnp.zeros_like(c_sc)

    # Prologue (off the serial chain): layer-0 input projection for the whole
    # time block as ONE matmul -> one MXU weight push per grid step and no
    # (T,B,4H) f32 HBM round-trip.
    x2 = x_ref[...].reshape(t_block * Bt, H)
    g0 = jnp.dot(x2, wih0_ref[...], preferred_element_type=jnp.float32)
    g0_sc[...] = (g0 + b0_ref[...]).reshape(t_block, Bt, 4 * H)

    # Hoist inner-layer bias broadcasts out of the unrolled time loop
    # (JAX does not CSE broadcast_in_dim).
    b_inner = [jnp.broadcast_to(binner_ref[l], (Bt, 4 * H))
               for l in range(num_layers - 1)]

    def cell(gates, c):
        # Gate columns pre-permuted to (i, f, o, g): one contiguous sigmoid
        # over 3H columns + one tanh over H -> fewer EUP pushes per step.
        s = jax.nn.sigmoid(gates[:, :3 * H])
        g = jnp.tanh(gates[:, 3 * H:])
        i = s[:, 0:H]
        f = s[:, H:2 * H]
        o = s[:, 2 * H:3 * H]
        c_new = f * c + i * g
        h_new = o * jnp.tanh(c_new)
        return h_new, c_new

    def step(tt, carry):
        # Layer 0: only h @ W_hh^T sits on the serial critical path.
        gates = g0_sc[tt] + jnp.dot(h_sc[0].astype(jnp.bfloat16), whh0_ref[...],
                                    preferred_element_type=jnp.float32)
        h_new, c_new = cell(gates, c_sc[0])
        h_sc[0] = h_new
        c_sc[0] = c_new
        # Layers 1..L-1: single fused K=2H matmul per layer (stacked weights).
        for l in range(1, num_layers):
            lhs = jnp.concatenate(
                [h_new.astype(jnp.bfloat16), h_sc[l].astype(jnp.bfloat16)],
                axis=-1)
            gates = jnp.dot(lhs, wcat_ref[l - 1],
                            preferred_element_type=jnp.float32) + b_inner[l - 1]
            h_new, c_new = cell(gates, c_sc[l])
            h_sc[l] = h_new
            c_sc[l] = c_new
        out_ref[tt] = h_new.astype(out_ref.dtype)
        return carry

    lax.fori_loop(0, t_block, step, 0, unroll=min(t_block, 8))


def fused_lstm(x, wih0_t, whh0_t, b0, wcat_inner, b_inner, *, hidden,
               num_layers, t_block, b_block, vmem_limit):
    """x: (T, B, H) bf16. Returns last-layer hidden states (T, B, H) bf16."""
    T, B, H = x.shape
    assert H == hidden
    L = num_layers
    Bt = b_block
    assert T % t_block == 0 and B % Bt == 0
    Lm1 = max(L - 1, 1)

    return pl.pallas_call(
        lstm_stack_kernel,
        out_shape=jax.ShapeDtypeStruct((T, B, H), jnp.bfloat16),
        grid_spec=pltpu.PrefetchScalarGridSpec(
            num_scalar_prefetch=0,
            grid=(B // Bt, T // t_block),
            in_specs=[
                pl.BlockSpec((t_block, Bt, H), lambda b, t: (t, b, 0)),
                # Grid-invariant weight/bias blocks (constant index_map ->
                # fetched once per batch chunk).
                # TODO(synk): pipeline_mode=pl.Buffered(1) would halve their
                # VMEM footprint; left at the default to stay conservative.
                pl.BlockSpec((H, 4 * H), lambda b, t: (0, 0)),
                pl.BlockSpec((H, 4 * H), lambda b, t: (0, 0)),
                pl.BlockSpec((1, 4 * H), lambda b, t: (0, 0)),
                pl.BlockSpec((Lm1, 2 * H, 4 * H), lambda b, t: (0, 0, 0)),
                pl.BlockSpec((Lm1, 1, 4 * H), lambda b, t: (0, 0, 0)),
            ],
            out_specs=pl.BlockSpec((t_block, Bt, H), lambda b, t: (t, b, 0)),
            scratch_shapes=[
                pltpu.VMEM((L, Bt, H), jnp.float32),            # h per layer
                pltpu.VMEM((L, Bt, H), jnp.float32),            # c per layer
                pltpu.VMEM((t_block, Bt, 4 * H), jnp.float32),  # layer-0 gates
            ],
        ),
        compiler_params=pltpu.CompilerParams(
            # batch chunks are independent (megacore on v7x); time is a
            # sequential recurrence.
            dimension_semantics=("parallel", "arbitrary"),
            vmem_limit_bytes=vmem_limit),
    )(x, wih0_t, whh0_t, b0, wcat_inner, b_inner)


# --------------------------------------------------------------------------
# Streaming log-sum-exp of the shared-embedding output projection.
#   grid = (N//Nt [parallel], V//Vt [arbitrary])
#   Per row tile: online max m + scaled sum-exp s across vocab tiles; the
#   per-row logZ is written at the last vocab tile.  All other label-smoothing
#   terms are closed-form O(N*H) work done outside the kernel.
# --------------------------------------------------------------------------
def logz_kernel(feat_ref, embt_ref, b_ref, logz_ref, m_sc, s_sc):
    v = pl.program_id(1)
    nv = pl.num_programs(1)

    @pl.when(v == 0)
    def _():
        m_sc[...] = jnp.full(m_sc.shape, -jnp.inf, jnp.float32)
        s_sc[...] = jnp.zeros(s_sc.shape, jnp.float32)

    # Embedding passed pre-transposed (H, Vt): plain (Nt,H)@(H,Vt), no per-tile
    # XLU transpose.
    logits = jnp.dot(feat_ref[...], embt_ref[...],
                     preferred_element_type=jnp.float32) + b_ref[...]

    m_prev = m_sc[...]
    m_new = jnp.maximum(m_prev, jnp.max(logits, axis=-1, keepdims=True))
    s_sc[...] = (s_sc[...] * jnp.exp(m_prev - m_new)
                 + jnp.sum(jnp.exp(logits - m_new), axis=-1, keepdims=True))
    m_sc[...] = m_new

    @pl.when(v == nv - 1)
    def _():
        logz_ref[...] = m_sc[...] + jnp.log(s_sc[...])


def streaming_logz(feats, emb_t_bf, out_bias, *, n_block=512, v_block=256,
                   vmem_limit):
    """feats: (N,H) bf16; emb_t_bf: (H,V) bf16; out_bias: (V,) f32 -> (N,1) f32."""
    N, H = feats.shape
    V = emb_t_bf.shape[1]
    Nt = min(n_block, N)
    if N % Nt:
        Nt = math.gcd(N, Nt)
    Vt = min(v_block, V)
    if V % Vt:
        Vt = math.gcd(V, Vt)
    assert N % Nt == 0 and V % Vt == 0 and Nt % 8 == 0
    assert (Vt % 128 == 0) or (Vt == V)
    bias2d = out_bias.reshape(1, V)

    return pl.pallas_call(
        logz_kernel,
        out_shape=jax.ShapeDtypeStruct((N, 1), jnp.float32),
        grid_spec=pltpu.PrefetchScalarGridSpec(
            num_scalar_prefetch=0,
            grid=(N // Nt, V // Vt),
            in_specs=[
                pl.BlockSpec((Nt, H), lambda n, v: (n, 0)),
                pl.BlockSpec((H, Vt), lambda n, v: (0, v)),
                pl.BlockSpec((1, Vt), lambda n, v: (0, v)),
            ],
            out_specs=pl.BlockSpec((Nt, 1), lambda n, v: (n, 0)),
            scratch_shapes=[pltpu.VMEM((Nt, 1), jnp.float32)] * 2,
        ),
        compiler_params=pltpu.CompilerParams(
            # Row tiles are independent (megacore-able); vocab is the online
            # reduction axis.
            dimension_semantics=("parallel", "arbitrary"),
            vmem_limit_bytes=vmem_limit),
        cost_estimate=pl.CostEstimate(
            flops=2 * N * H * V,
            transcendentals=N * V,
            bytes_accessed=(N // Nt) * V * H * 2 + N * H * 2 + N * 4 + V * 4),
    )(feats, emb_t_bf, bias2d)


# --------------------------------------------------------------------------
# Full RecurrentLanguageModel forward (share_embedding=True, eval-mode dropout)
# --------------------------------------------------------------------------
def recurrent_lm_forward(params, input_tokens, target_tokens):
    B, T = input_tokens.shape
    V, H = params["embedding"].shape
    L = params["num_layers"]
    smoothing = params["smoothing"]
    vmem_limit = _vmem_limit_bytes()

    # Embedding lookup directly in time-major order (transpose the tiny int
    # token matrix, not the (T,B,H) activations).
    x = jnp.take(params["emb_bf16"], input_tokens.T, axis=0)        # (T,B,H) bf16

    # Megacore: split the batch into two independent chunks (>=8 sublanes each)
    # when B allows, so v7x's two TensorCores both get LSTM work.
    b_block = B // 2 if B % 16 == 0 else B
    t_block = math.gcd(T, 16)   # amortize per-grid-step pipeline overhead

    # TODO(synk): nn.LSTM inter-layer dropout is a training-mode no-op; eval
    # semantics (identity) are implemented here.
    feats_tbh = fused_lstm(x, params["wih0_t"], params["whh0_t"], params["b0"],
                           params["wcat_inner"], params["b_inner"],
                           hidden=H, num_layers=L, t_block=t_block,
                           b_block=b_block, vmem_limit=vmem_limit)  # (T,B,H) bf16

    # Label-smoothing loss is row-permutation invariant: keep feats time-major
    # and reorder the tiny targets instead of transposing the activations.
    N = T * B
    feats = feats_tbh.reshape(N, H)
    tgt = target_tokens.T.reshape(N).astype(jnp.int32)

    # Pallas: streaming logZ over the shared-embedding projection (the only
    # part of the loss that touches the full (N,V) logits).
    logz = streaming_logz(feats, params["emb_t_bf16"], params["out_bias"],
                          vmem_limit=vmem_limit)[:, 0]               # (N,) f32

    # Closed-form label-smoothing KL pieces (O(N*H) in XLA):
    #   kl_row = const - (conf-low)*logit[tgt] - low*sum_v logit_v + logZ
    # (coefficient of logZ is (conf-low) + low*V = 1 exactly).
    feats32 = feats.astype(jnp.float32)
    bias = params["out_bias"]
    sum_logits = feats32 @ params["emb_colsum"] + params["bias_sum"]  # (N,)
    tgt_logit = (jnp.sum(feats32 * jnp.take(params["embedding"], tgt, axis=0),
                         axis=-1) + bias[tgt])                        # (N,)

    confidence = 1.0 - smoothing
    low = smoothing / (V - 1)
    const = ((confidence * math.log(confidence) if confidence > 0.0 else 0.0)
             + (smoothing * math.log(low) if smoothing > 0.0 else 0.0))
    kl_row = const - (confidence - low) * tgt_logit - low * sum_logits + logz
    valid = (tgt != PAD).astype(jnp.float32)
    loss = jnp.sum(valid * kl_row) / float(B)
    return loss, None


# --------------------------------------------------------------------------
# Deterministic parameter construction (PyTorch-shaped init, then transposed /
# gate-permuted / fused / cast to bf16 ONCE, outside the forward step).
# --------------------------------------------------------------------------
def _reorder_gates(w, axis=-1):
    """Permute PyTorch LSTM gate blocks (i, f, g, o) -> (i, f, o, g)."""
    i, f, g, o = jnp.split(w, 4, axis=axis)
    return jnp.concatenate([i, f, o, g], axis=axis)


def make_params(key, vocab_size, hidden_size, num_layers, smoothing):
    H, L = hidden_size, num_layers
    keys = jax.random.split(key, 2 + 4 * L)
    emb = jax.random.normal(keys[0], (vocab_size, H), dtype=jnp.float32)
    bound = 1.0 / math.sqrt(H)

    wih_t, whh_t, biases = [], [], []
    for l in range(L):
        kw = keys[2 + 4 * l: 2 + 4 * (l + 1)]
        w_ih = jax.random.uniform(kw[0], (4 * H, H), minval=-bound, maxval=bound,
                                  dtype=jnp.float32)
        w_hh = jax.random.uniform(kw[1], (4 * H, H), minval=-bound, maxval=bound,
                                  dtype=jnp.float32)
        b_ih = jax.random.uniform(kw[2], (4 * H,), minval=-bound, maxval=bound,
                                  dtype=jnp.float32)
        b_hh = jax.random.uniform(kw[3], (4 * H,), minval=-bound, maxval=bound,
                                  dtype=jnp.float32)
        wih_t.append(_reorder_gates(jnp.transpose(w_ih)))   # (H, 4H) f32
        whh_t.append(_reorder_gates(jnp.transpose(w_hh)))   # (H, 4H) f32
        biases.append(_reorder_gates(b_ih + b_hh))          # (4H,)  f32
    out_bias = jax.random.uniform(keys[1], (vocab_size,), minval=-bound,
                                  maxval=bound, dtype=jnp.float32)

    if L > 1:
        # Inner layers: fuse [W_ih^T; W_hh^T] into one (2H,4H) weight so each
        # layer-step issues a single K=2H matmul.
        wcat_inner = jnp.stack(
            [jnp.concatenate([wih_t[l], whh_t[l]], axis=0) for l in range(1, L)]
        ).astype(jnp.bfloat16)                               # (L-1, 2H, 4H)
        b_inner = jnp.stack([b.reshape(1, 4 * H) for b in biases[1:]])
    else:
        # TODO(synk): dummy (unused) blocks for L==1 keep the kernel signature
        # uniform; they are still DMA'd (wasted bandwidth, not incorrect).
        wcat_inner = jnp.zeros((1, 2 * H, 4 * H), jnp.bfloat16)
        b_inner = jnp.zeros((1, 1, 4 * H), jnp.float32)

    # share_embedding=True: output projection weight IS the embedding weight.
    return {
        "embedding": emb,                                      # (V, H) f32
        "emb_bf16": emb.astype(jnp.bfloat16),                  # lookup dtype
        "emb_t_bf16": jnp.transpose(emb).astype(jnp.bfloat16), # (H, V) loss rhs
        "emb_colsum": jnp.sum(emb, axis=0),                    # (H,)
        "wih0_t": wih_t[0].astype(jnp.bfloat16),               # (H, 4H)
        "whh0_t": whh_t[0].astype(jnp.bfloat16),               # (H, 4H)
        "b0": biases[0].reshape(1, 4 * H),                     # (1, 4H) f32
        "wcat_inner": wcat_inner,
        "b_inner": b_inner,
        "out_bias": out_bias,                                  # (V,) f32
        "bias_sum": jnp.sum(out_bias),
        "smoothing": smoothing,
        "num_layers": L,
    }


if __name__ == "__main__":
    VOCAB, HIDDEN, LAYERS = 512, 128, 2      # H multiple of 128 (lane-aligned)
    B, T = 8, 8                              # B >= 8 fills sublanes
    SMOOTHING = 0.1

    key = jax.random.PRNGKey(0)
    kp, ki, kt = jax.random.split(key, 3)

    params = make_params(kp, VOCAB, HIDDEN, LAYERS, SMOOTHING)

    inputs = jax.random.randint(ki, (B, T), 1, VOCAB, dtype=jnp.int32)
    targets = jax.random.randint(kt, (B, T), 0, VOCAB, dtype=jnp.int32)
    targets = targets.at[:, -1].set(PAD)     # exercise the padding mask

    loss, _ = recurrent_lm_forward(params, inputs, targets)
    jax.block_until_ready(loss)
    assert jnp.isfinite(loss)
    print("KERNEL_OK")
</pallas_src>

<mosaic_0001>
module attributes {stable_mosaic.version = 11 : i64} {
  func.func @lstm_stack_kernel(%arg0: i32, %arg1: i32, %arg2: memref<8x8x128xbf16, #tpu.memory_space<vmem>>, %arg3: memref<128x512xbf16, #tpu.memory_space<vmem>>, %arg4: memref<128x512xbf16, #tpu.memory_space<vmem>>, %arg5: memref<1x512xf32, #tpu.memory_space<vmem>>, %arg6: memref<1x256x512xbf16, #tpu.memory_space<vmem>>, %arg7: memref<1x1x512xf32, #tpu.memory_space<vmem>>, %arg8: memref<8x8x128xbf16, #tpu.memory_space<vmem>>, %arg9: memref<2x8x128xf32, #tpu.memory_space<vmem>>, %arg10: memref<2x8x128xf32, #tpu.memory_space<vmem>>, %arg11: memref<8x8x512xf32, #tpu.memory_space<vmem>>) attributes {dimension_semantics = [#tpu.dimension_semantics<parallel>, #tpu.dimension_semantics<arbitrary>], iteration_bounds = array<i64: 1, 1>, scalar_prefetch = 0 : i64, scratch_operands = 3 : i64, tpu.core_type = #tpu.core_type<tc>, window_params = [{transform_indices = @transform_0, window_bounds = array<i64: 8, 8, 128>}, {pipeline_mode = #tpu.pipeline_mode<synchronous>, transform_indices = @transform_1, window_bounds = array<i64: 128, 512>}, {pipeline_mode = #tpu.pipeline_mode<synchronous>, transform_indices = @transform_2, window_bounds = array<i64: 128, 512>}, {pipeline_mode = #tpu.pipeline_mode<synchronous>, transform_indices = @transform_3, window_bounds = array<i64: 1, 512>}, {pipeline_mode = #tpu.pipeline_mode<synchronous>, transform_indices = @transform_4, window_bounds = array<i64: 1, 256, 512>}, {pipeline_mode = #tpu.pipeline_mode<synchronous>, transform_indices = @transform_5, window_bounds = array<i64: 1, 1, 512>}, {transform_indices = @transform_6, window_bounds = array<i64: 8, 8, 128>}]} {
    %c0_i32 = arith.constant 0 : i32
    %0 = arith.cmpi eq, %arg1, %c0_i32 : i32
    %1 = arith.extui %0 : i1 to i32
    %c0_i32_0 = arith.constant 0 : i32
    %2 = arith.cmpi ne, %1, %c0_i32_0 : i32
    scf.if %2 {
      %cst_309 = arith.constant 0.000000e+00 : f32
      %584 = vector.broadcast %cst_309 : f32 to vector<2x8x128xf32>
      %c0_310 = arith.constant 0 : index
      %c0_311 = arith.constant 0 : index
      %c0_312 = arith.constant 0 : index
      %585 = vector.load %arg9[%c0_310, %c0_311, %c0_312] : memref<2x8x128xf32, #tpu.memory_space<vmem>>, vector<2x8x128xf32>
      tpu.vector_store %arg9[%c0_310, %c0_311, %c0_312], %584 {strides = array<i32>} : memref<2x8x128xf32, #tpu.memory_space<vmem>>, vector<2x8x128xf32>,
      %cst_313 = arith.constant 0.000000e+00 : f32
      %586 = vector.broadcast %cst_313 : f32 to vector<2x8x128xf32>
      %c0_314 = arith.constant 0 : index
      %c0_315 = arith.constant 0 : index
      %c0_316 = arith.constant 0 : index
      %587 = vector.load %arg10[%c0_314, %c0_315, %c0_316] : memref<2x8x128xf32, #tpu.memory_space<vmem>>, vector<2x8x128xf32>
      tpu.vector_store %arg10[%c0_314, %c0_315, %c0_316], %586 {strides = array<i32>} : memref<2x8x128xf32, #tpu.memory_space<vmem>>, vector<2x8x128xf32>,
    } else {
    }
    %c0 = arith.constant 0 : index
    %c0_1 = arith.constant 0 : index
    %c0_2 = arith.constant 0 : index
    %3 = vector.load %arg2[%c0, %c0_1, %c0_2] : memref<8x8x128xbf16, #tpu.memory_space<vmem>>, vector<8x8x128xbf16>
    %4 = vector.shape_cast %3 : vector<8x8x128xbf16> to vector<64x128xbf16>
    %c0_3 = arith.constant 0 : index
    %c0_4 = arith.constant 0 : index
    %5 = vector.load %arg3[%c0_3, %c0_4] : memref<128x512xbf16, #tpu.memory_space<vmem>>, vector<128x512xbf16>
    %cst = arith.constant dense<0.000000e+00> : vector<64x512xf32>
    %6 = tpu.matmul %4, %5, %cst {dimension_numbers = #tpu.dot_dimension_numbers<[1], [0], [0], [1], [0, 0, 1, 1], [], []>} : vector<64x128xbf16>, vector<128x512xbf16>, vector<64x512xf32> -> vector<64x512xf32>
    %c0_5 = arith.constant 0 : index
    %c0_6 = arith.constant 0 : index
    %7 = vector.load %arg5[%c0_5, %c0_6] : memref<1x512xf32, #tpu.memory_space<vmem>>, vector<1x512xf32>
    %8 = vector.broadcast %7 : vector<1x512xf32> to vector<64x512xf32>
    %9 = arith.addf %6, %8 : vector<64x512xf32>
    %10 = vector.shape_cast %9 : vector<64x512xf32> to vector<8x8x512xf32>
    %c0_7 = arith.constant 0 : index
    %c0_8 = arith.constant 0 : index
    %c0_9 = arith.constant 0 : index
    %11 = vector.load %arg11[%c0_7, %c0_8, %c0_9] : memref<8x8x512xf32, #tpu.memory_space<vmem>>, vector<8x8x512xf32>
    tpu.vector_store %arg11[%c0_7, %c0_8, %c0_9], %10 {strides = array<i32>} : memref<8x8x512xf32, #tpu.memory_space<vmem>>, vector<8x8x512xf32>,
    %c0_10 = arith.constant 0 : index
    %c0_11 = arith.constant 0 : index
    %c0_12 = arith.constant 0 : index
    %12 = vector.load %arg7[%c0_10, %c0_11, %c0_12] : memref<1x1x512xf32, #tpu.memory_space<vmem>>, vector<1x1x512xf32>
    %13 = vector.shape_cast %12 : vector<1x1x512xf32> to vector<1x512xf32>
    %14 = vector.shape_cast %13 : vector<1x512xf32> to vector<1x512xf32>
    %15 = vector.broadcast %14 : vector<1x512xf32> to vector<8x512xf32>
    %c0_i32_13 = arith.constant 0 : i32
    %16 = arith.index_cast %c0_i32_13 : i32 to index
    %c0_14 = arith.constant 0 : index
    %c0_15 = arith.constant 0 : index
    %17 = vector.load %arg11[%16, %c0_14, %c0_15] : memref<8x8x512xf32, #tpu.memory_space<vmem>>, vector<1x8x512xf32>
    %18 = vector.shape_cast %17 : vector<1x8x512xf32> to vector<8x512xf32>
    %c0_16 = arith.constant 0 : index
    %c0_17 = arith.constant 0 : index
    %c0_18 = arith.constant 0 : index
    %19 = vector.load %arg9[%c0_16, %c0_17, %c0_18] : memref<2x8x128xf32, #tpu.memory_space<vmem>>, vector<1x8x128xf32>
    %20 = vector.shape_cast %19 : vector<1x8x128xf32> to vector<8x128xf32>
    %21 = arith.truncf %20 : vector<8x128xf32> to vector<8x128xbf16>
    %c0_19 = arith.constant 0 : index
    %c0_20 = arith.constant 0 : index
    %22 = vector.load %arg4[%c0_19, %c0_20] : memref<128x512xbf16, #tpu.memory_space<vmem>>, vector<128x512xbf16>
    %cst_21 = arith.constant dense<0.000000e+00> : vector<8x512xf32>
    %23 = tpu.matmul %21, %22, %cst_21 {dimension_numbers = #tpu.dot_dimension_numbers<[1], [0], [0], [1], [0, 0, 1, 1], [], []>} : vector<8x128xbf16>, vector<128x512xbf16>, vector<8x512xf32> -> vector<8x512xf32>
    %24 = arith.addf %18, %23 : vector<8x512xf32>
    %c0_22 = arith.constant 0 : index
    %c0_23 = arith.constant 0 : index
    %c0_24 = arith.constant 0 : index
    %25 = vector.load %arg10[%c0_22, %c0_23, %c0_24] : memref<2x8x128xf32, #tpu.memory_space<vmem>>, vector<1x8x128xf32>
    %26 = vector.shape_cast %25 : vector<1x8x128xf32> to vector<8x128xf32>
    %27 = vector.extract_strided_slice %24 {offsets = [0, 0], sizes = [8, 384], strides = [1, 1]} : vector<8x512xf32> to vector<8x384xf32>
    %28 = arith.negf %27 : vector<8x384xf32>
    %29 = math.exp %28 : vector<8x384xf32>
    %cst_25 = arith.constant 1.000000e+00 : f32
    %30 = vector.broadcast %cst_25 : f32 to vector<8x384xf32>
    %31 = arith.addf %30, %29 : vector<8x384xf32>
    %32 = arith.divf %30, %31 : vector<8x384xf32>
    %33 = vector.extract_strided_slice %24 {offsets = [0, 384], sizes = [8, 128], strides = [1, 1]} : vector<8x512xf32> to vector<8x128xf32>
    %34 = math.tanh %33 : vector<8x128xf32>
    %35 = vector.extract_strided_slice %32 {offsets = [0, 0], sizes = [8, 128], strides = [1, 1]} : vector<8x384xf32> to vector<8x128xf32>
    %36 = vector.extract_strided_slice %32 {offsets = [0, 128], sizes = [8, 128], strides = [1, 1]} : vector<8x384xf32> to vector<8x128xf32>
    %37 = vector.extract_strided_slice %32 {offsets = [0, 256], sizes = [8, 128], strides = [1, 1]} : vector<8x384xf32> to vector<8x128xf32>
    %38 = arith.mulf %36, %26 : vector<8x128xf32>
    %39 = arith.mulf %35, %34 : vector<8x128xf32>
    %40 = arith.addf %38, %39 : vector<8x128xf32>
    %41 = math.tanh %40 : vector<8x128xf32>
    %42 = arith.mulf %37, %41 : vector<8x128xf32>
    %c0_26 = arith.constant 0 : index
    %c0_27 = arith.constant 0 : index
    %c0_28 = arith.constant 0 : index
    %43 = vector.load %arg9[%c0_26, %c0_27, %c0_28] : memref<2x8x128xf32, #tpu.memory_space<vmem>>, vector<1x8x128xf32>
    %44 = vector.shape_cast %43 : vector<1x8x128xf32> to vector<8x128xf32>
    %45 = vector.shape_cast %42 : vector<8x128xf32> to vector<1x8x128xf32>
    tpu.vector_store %arg9[%c0_26, %c0_27, %c0_28], %45 {strides = array<i32>} : memref<2x8x128xf32, #tpu.memory_space<vmem>>, vector<1x8x128xf32>,
    %c0_29 = arith.constant 0 : index
    %c0_30 = arith.constant 0 : index
    %c0_31 = arith.constant 0 : index
    %46 = vector.load %arg10[%c0_29, %c0_30, %c0_31] : memref<2x8x128xf32, #tpu.memory_space<vmem>>, vector<1x8x128xf32>
    %47 = vector.shape_cast %46 : vector<1x8x128xf32> to vector<8x128xf32>
    %48 = vector.shape_cast %40 : vector<8x128xf32> to vector<1x8x128xf32>
    tpu.vector_store %arg10[%c0_29, %c0_30, %c0_31], %48 {strides = array<i32>} : memref<2x8x128xf32, #tpu.memory_space<vmem>>, vector<1x8x128xf32>,
    %49 = arith.truncf %42 : vector<8x128xf32> to vector<8x128xbf16>
    %c1 = arith.constant 1 : index
    %c0_32 = arith.constant 0 : index
    %c0_33 = arith.constant 0 : index
    %50 = vector.load %arg9[%c1, %c0_32, %c0_33] : memref<2x8x128xf32, #tpu.memory_space<vmem>>, vector<1x8x128xf32>
    %51 = vector.shape_cast %50 : vector<1x8x128xf32> to vector<8x128xf32>
    %52 = arith.truncf %51 : vector<8x128xf32> to vector<8x128xbf16>
    %53 = tpu.concatenate %49, %52 in 1 : vector<8x128xbf16>, vector<8x128xbf16> -> vector<8x256xbf16>
    %c0_34 = arith.constant 0 : index
    %c0_35 = arith.constant 0 : index
    %c0_36 = arith.constant 0 : index
    %54 = vector.load %arg6[%c0_34, %c0_35, %c0_36] : memref<1x256x512xbf16, #tpu.memory_space<vmem>>, vector<1x256x512xbf16>
    %55 = vector.shape_cast %54 : vector<1x256x512xbf16> to vector<256x512xbf16>
    %cst_37 = arith.constant dense<0.000000e+00> : vector<8x512xf32>
    %56 = tpu.matmul %53, %55, %cst_37 {dimension_numbers = #tpu.dot_dimension_numbers<[1], [0], [0], [1], [0, 0, 1, 1], [], []>} : vector<8x256xbf16>, vector<256x512xbf16>, vector<8x512xf32> -> vector<8x512xf32>
    %57 = arith.addf %56, %15 : vector<8x512xf32>
    %c1_38 = arith.constant 1 : index
    %c0_39 = arith.constant 0 : index
    %c0_40 = arith.constant 0 : index
    %58 = vector.load %arg10[%c1_38, %c0_39, %c0_40] : memref<2x8x128xf32, #tpu.memory_space<vmem>>, vector<1x8x128xf32>
    %59 = vector.shape_cast %58 : vector<1x8x128xf32> to vector<8x128xf32>
    %60 = vector.extract_strided_slice %57 {offsets = [0, 0], sizes = [8, 384], strides = [1, 1]} : vector<8x512xf32> to vector<8x384xf32>
    %61 = arith.negf %60 : vector<8x384xf32>
    %62 = math.exp %61 : vector<8x384xf32>
    %cst_41 = arith.constant 1.000000e+00 : f32
    %63 = vector.broadcast %cst_41 : f32 to vector<8x384xf32>
    %64 = arith.addf %63, %62 : vector<8x384xf32>
    %65 = arith.divf %63, %64 : vector<8x384xf32>
    %66 = vector.extract_strided_slice %57 {offsets = [0, 384], sizes = [8, 128], strides = [1, 1]} : vector<8x512xf32> to vector<8x128xf32>
    %67 = math.tanh %66 : vector<8x128xf32>
    %68 = vector.extract_strided_slice %65 {offsets = [0, 0], sizes = [8, 128], strides = [1, 1]} : vector<8x384xf32> to vector<8x128xf32>
    %69 = vector.extract_strided_slice %65 {offsets = [0, 128], sizes = [8, 128], strides = [1, 1]} : vector<8x384xf32> to vector<8x128xf32>
    %70 = vector.extract_strided_slice %65 {offsets = [0, 256], sizes = [8, 128], strides = [1, 1]} : vector<8x384xf32> to vector<8x128xf32>
    %71 = arith.mulf %69, %59 : vector<8x128xf32>
    %72 = arith.mulf %68, %67 : vector<8x128xf32>
    %73 = arith.addf %71, %72 : vector<8x128xf32>
    %74 = math.tanh %73 : vector<8x128xf32>
    %75 = arith.mulf %70, %74 : vector<8x128xf32>
    %c1_42 = arith.constant 1 : index
    %c0_43 = arith.constant 0 : index
    %c0_44 = arith.constant 0 : index
    %76 = vector.load %arg9[%c1_42, %c0_43, %c0_44] : memref<2x8x128xf32, #tpu.memory_space<vmem>>, vector<1x8x128xf32>
    %77 = vector.shape_cast %76 : vector<1x8x128xf32> to vector<8x128xf32>
    %78 = vector.shape_cast %75 : vector<8x128xf32> to vector<1x8x128xf32>
    tpu.vector_store %arg9[%c1_42, %c0_43, %c0_44], %78 {strides = array<i32>} : memref<2x8x128xf32, #tpu.memory_space<vmem>>, vector<1x8x128xf32>,
    %c1_45 = arith.constant 1 : index
    %c0_46 = arith.constant 0 : index
    %c0_47 = arith.constant 0 : index
    %79 = vector.load %arg10[%c1_45, %c0_46, %c0_47] : memref<2x8x128xf32, #tpu.memory_space<vmem>>, vector<1x8x128xf32>
    %80 = vector.shape_cast %79 : vector<1x8x128xf32> to vector<8x128xf32>
    %81 = vector.shape_cast %73 : vector<8x128xf32> to vector<1x8x128xf32>
    tpu.vector_store %arg10[%c1_45, %c0_46, %c0_47], %81 {strides = array<i32>} : memref<2x8x128xf32, #tpu.memory_space<vmem>>, vector<1x8x128xf32>,
    %82 = arith.truncf %75 : vector<8x128xf32> to vector<8x128xbf16>
    %83 = arith.index_cast %c0_i32_13 : i32 to index
    %c0_48 = arith.constant 0 : index
    %c0_49 = arith.constant 0 : index
    %84 = vector.load %arg8[%83, %c0_48, %c0_49] : memref<8x8x128xbf16, #tpu.memory_space<vmem>>, vector<1x8x128xbf16>
    %85 = vector.shape_cast %84 : vector<1x8x128xbf16> to vector<8x128xbf16>
    %86 = vector.shape_cast %82 : vector<8x128xbf16> to vector<1x8x128xbf16>
    tpu.vector_store %arg8[%83, %c0_48, %c0_49], %86 {strides = array<i32>} : memref<8x8x128xbf16, #tpu.memory_space<vmem>>, vector<1x8x128xbf16>,
    %c1_i32 = arith.constant 1 : i32
    %87 = arith.index_cast %c1_i32 : i32 to index
    %c0_50 = arith.constant 0 : index
    %c0_51 = arith.constant 0 : index
    %88 = vector.load %arg11[%87, %c0_50, %c0_51] : memref<8x8x512xf32, #tpu.memory_space<vmem>>, vector<1x8x512xf32>
    %89 = vector.shape_cast %88 : vector<1x8x512xf32> to vector<8x512xf32>
    %c0_52 = arith.constant 0 : index
    %c0_53 = arith.constant 0 : index
    %c0_54 = arith.constant 0 : index
    %90 = vector.load %arg9[%c0_52, %c0_53, %c0_54] : memref<2x8x128xf32, #tpu.memory_space<vmem>>, vector<1x8x128xf32>
    %91 = vector.shape_cast %90 : vector<1x8x128xf32> to vector<8x128xf32>
    %92 = arith.truncf %91 : vector<8x128xf32> to vector<8x128xbf16>
    %c0_55 = arith.constant 0 : index
    %c0_56 = arith.constant 0 : index
    %93 = vector.load %arg4[%c0_55, %c0_56] : memref<128x512xbf16, #tpu.memory_space<vmem>>, vector<128x512xbf16>
    %cst_57 = arith.constant dense<0.000000e+00> : vector<8x512xf32>
    %94 = tpu.matmul %92, %93, %cst_57 {dimension_numbers = #tpu.dot_dimension_numbers<[1], [0], [0], [1], [0, 0, 1, 1], [], []>} : vector<8x128xbf16>, vector<128x512xbf16>, vector<8x512xf32> -> vector<8x512xf32>
    %95 = arith.addf %89, %94 : vector<8x512xf32>
    %c0_58 = arith.constant 0 : index
    %c0_59 = arith.constant 0 : index
    %c0_60 = arith.constant 0 : index
    %96 = vector.load %arg10[%c0_58, %c0_59, %c0_60] : memref<2x8x128xf32, #tpu.memory_space<vmem>>, vector<1x8x128xf32>
    %97 = vector.shape_cast %96 : vector<1x8x128xf32> to vector<8x128xf32>
    %98 = vector.extract_strided_slice %95 {offsets = [0, 0], sizes = [8, 384], strides = [1, 1]} : vector<8x512xf32> to vector<8x384xf32>
    %99 = arith.negf %98 : vector<8x384xf32>
    %100 = math.exp %99 : vector<8x384xf32>
    %cst_61 = arith.constant 1.000000e+00 : f32
    %101 = vector.broadcast %cst_61 : f32 to vector<8x384xf32>
    %102 = arith.addf %101, %100 : vector<8x384xf32>
    %103 = arith.divf %101, %102 : vector<8x384xf32>
    %104 = vector.extract_strided_slice %95 {offsets = [0, 384], sizes = [8, 128], strides = [1, 1]} : vector<8x512xf32> to vector<8x128xf32>
    %105 = math.tanh %104 : vector<8x128xf32>
    %106 = vector.extract_strided_slice %103 {offsets = [0, 0], sizes = [8, 128], strides = [1, 1]} : vector<8x384xf32> to vector<8x128xf32>
    %107 = vector.extract_strided_slice %103 {offsets = [0, 128], sizes = [8, 128], strides = [1, 1]} : vector<8x384xf32> to vector<8x128xf32>
    %108 = vector.extract_strided_slice %103 {offsets = [0, 256], sizes = [8, 128], strides = [1, 1]} : vector<8x384xf32> to vector<8x128xf32>
    %109 = arith.mulf %107, %97 : vector<8x128xf32>
    %110 = arith.mulf %106, %105 : vector<8x128xf32>
    %111 = arith.addf %109, %110 : vector<8x128xf32>
    %112 = math.tanh %111 : vector<8x128xf32>
    %113 = arith.mulf %108, %112 : vector<8x128xf32>
    %c0_62 = arith.constant 0 : index
    %c0_63 = arith.constant 0 : index
    %c0_64 = arith.constant 0 : index
    %114 = vector.load %arg9[%c0_62, %c0_63, %c0_64] : memref<2x8x128xf32, #tpu.memory_space<vmem>>, vector<1x8x128xf32>
    %115 = vector.shape_cast %114 : vector<1x8x128xf32> to vector<8x128xf32>
    %116 = vector.shape_cast %113 : vector<8x128xf32> to vector<1x8x128xf32>
    tpu.vector_store %arg9[%c0_62, %c0_63, %c0_64], %116 {strides = array<i32>} : memref<2x8x128xf32, #tpu.memory_space<vmem>>, vector<1x8x128xf32>,
    %c0_65 = arith.constant 0 : index
    %c0_66 = arith.constant 0 : index
    %c0_67 = arith.constant 0 : index
    %117 = vector.load %arg10[%c0_65, %c0_66, %c0_67] : memref<2x8x128xf32, #tpu.memory_space<vmem>>, vector<1x8x128xf32>
    %118 = vector.shape_cast %117 : vector<1x8x128xf32> to vector<8x128xf32>
    %119 = vector.shape_cast %111 : vector<8x128xf32> to vector<1x8x128xf32>
    tpu.vector_store %arg10[%c0_65, %c0_66, %c0_67], %119 {strides = array<i32>} : memref<2x8x128xf32, #tpu.memory_space<vmem>>, vector<1x8x128xf32>,
    %120 = arith.truncf %113 : vector<8x128xf32> to vector<8x128xbf16>
    %c1_68 = arith.constant 1 : index
    %c0_69 = arith.constant 0 : index
    %c0_70 = arith.constant 0 : index
    %121 = vector.load %arg9[%c1_68, %c0_69, %c0_70] : memref<2x8x128xf32, #tpu.memory_space<vmem>>, vector<1x8x128xf32>
    %122 = vector.shape_cast %121 : vector<1x8x128xf32> to vector<8x128xf32>
    %123 = arith.truncf %122 : vector<8x128xf32> to vector<8x128xbf16>
    %124 = tpu.concatenate %120, %123 in 1 : vector<8x128xbf16>, vector<8x128xbf16> -> vector<8x256xbf16>
    %c0_71 = arith.constant 0 : index
    %c0_72 = arith.constant 0 : index
    %c0_73 = arith.constant 0 : index
    %125 = vector.load %arg6[%c0_71, %c0_72, %c0_73] : memref<1x256x512xbf16, #tpu.memory_space<vmem>>, vector<1x256x512xbf16>
    %126 = vector.shape_cast %125 : vector<1x256x512xbf16> to vector<256x512xbf16>
    %cst_74 = arith.constant dense<0.000000e+00> : vector<8x512xf32>
    %127 = tpu.matmul %124, %126, %cst_74 {dimension_numbers = #tpu.dot_dimension_numbers<[1], [0], [0], [1], [0, 0, 1, 1], [], []>} : vector<8x256xbf16>, vector<256x512xbf16>, vector<8x512xf32> -> vector<8x512xf32>
    %128 = arith.addf %127, %15 : vector<8x512xf32>
    %c1_75 = arith.constant 1 : index
    %c0_76 = arith.constant 0 : index
    %c0_77 = arith.constant 0 : index
    %129 = vector.load %arg10[%c1_75, %c0_76, %c0_77] : memref<2x8x128xf32, #tpu.memory_space<vmem>>, vector<1x8x128xf32>
    %130 = vector.shape_cast %129 : vector<1x8x128xf32> to vector<8x128xf32>
    %131 = vector.extract_strided_slice %128 {offsets = [0, 0], sizes = [8, 384], strides = [1, 1]} : vector<8x512xf32> to vector<8x384xf32>
    %132 = arith.negf %131 : vector<8x384xf32>
    %133 = math.exp %132 : vector<8x384xf32>
    %cst_78 = arith.constant 1.000000e+00 : f32
    %134 = vector.broadcast %cst_78 : f32 to vector<8x384xf32>
    %135 = arith.addf %134, %133 : vector<8x384xf32>
    %136 = arith.divf %134, %135 : vector<8x384xf32>
    %137 = vector.extract_strided_slice %128 {offsets = [0, 384], sizes = [8, 128], strides = [1, 1]} : vector<8x512xf32> to vector<8x128xf32>
    %138 = math.tanh %137 : vector<8x128xf32>
    %139 = vector.extract_strided_slice %136 {offsets = [0, 0], sizes = [8, 128], strides = [1, 1]} : vector<8x384xf32> to vector<8x128xf32>
    %140 = vector.extract_strided_slice %136 {offsets = [0, 128], sizes = [8, 128], strides = [1, 1]} : vector<8x384xf32> to vector<8x128xf32>
    %141 = vector.extract_strided_slice %136 {offsets = [0, 256], sizes = [8, 128], strides = [1, 1]} : vector<8x384xf32> to vector<8x128xf32>
    %142 = arith.mulf %140, %130 : vector<8x128xf32>
    %143 = arith.mulf %139, %138 : vector<8x128xf32>
    %144 = arith.addf %142, %143 : vector<8x128xf32>
    %145 = math.tanh %144 : vector<8x128xf32>
    %146 = arith.mulf %141, %145 : vector<8x128xf32>
    %c1_79 = arith.constant 1 : index
    %c0_80 = arith.constant 0 : index
    %c0_81 = arith.constant 0 : index
    %147 = vector.load %arg9[%c1_79, %c0_80, %c0_81] : memref<2x8x128xf32, #tpu.memory_space<vmem>>, vector<1x8x128xf32>
    %148 = vector.shape_cast %147 : vector<1x8x128xf32> to vector<8x128xf32>
    %149 = vector.shape_cast %146 : vector<8x128xf32> to vector<1x8x128xf32>
    tpu.vector_store %arg9[%c1_79, %c0_80, %c0_81], %149 {strides = array<i32>} : memref<2x8x128xf32, #tpu.memory_space<vmem>>, vector<1x8x128xf32>,
    %c1_82 = arith.constant 1 : index
    %c0_83 = arith.constant 0 : index
    %c0_84 = arith.constant 0 : index
    %150 = vector.load %arg10[%c1_82, %c0_83, %c0_84] : memref<2x8x128xf32, #tpu.memory_space<vmem>>, vector<1x8x128xf32>
    %151 = vector.shape_cast %150 : vector<1x8x128xf32> to vector<8x128xf32>
    %152 = vector.shape_cast %144 : vector<8x128xf32> to vector<1x8x128xf32>
    tpu.vector_store %arg10[%c1_82, %c0_83, %c0_84], %152 {strides = array<i32>} : memref<2x8x128xf32, #tpu.memory_space<vmem>>, vector<1x8x128xf32>,
    %153 = arith.truncf %146 : vector<8x128xf32> to vector<8x128xbf16>
    %154 = arith.index_cast %c1_i32 : i32 to index
    %c0_85 = arith.constant 0 : index
    %c0_86 = arith.constant 0 : index
    %155 = vector.load %arg8[%154, %c0_85, %c0_86] : memref<8x8x128xbf16, #tpu.memory_space<vmem>>, vector<1x8x128xbf16>
    %156 = vector.shape_cast %155 : vector<1x8x128xbf16> to vector<8x128xbf16>
    %157 = vector.shape_cast %153 : vector<8x128xbf16> to vector<1x8x128xbf16>
    tpu.vector_store %arg8[%154, %c0_85, %c0_86], %157 {strides = array<i32>} : memref<8x8x128xbf16, #tpu.memory_space<vmem>>, vector<1x8x128xbf16>,
    %c2_i32 = arith.constant 2 : i32
    %158 = arith.index_cast %c2_i32 : i32 to index
    %c0_87 = arith.constant 0 : index
    %c0_88 = arith.constant 0 : index
    %159 = vector.load %arg11[%158, %c0_87, %c0_88] : memref<8x8x512xf32, #tpu.memory_space<vmem>>, vector<1x8x512xf32>
    %160 = vector.shape_cast %159 : vector<1x8x512xf32> to vector<8x512xf32>
    %c0_89 = arith.constant 0 : index
    %c0_90 = arith.constant 0 : index
    %c0_91 = arith.constant 0 : index
    %161 = vector.load %arg9[%c0_89, %c0_90, %c0_91] : memref<2x8x128xf32, #tpu.memory_space<vmem>>, vector<1x8x128xf32>
    %162 = vector.shape_cast %161 : vector<1x8x128xf32> to vector<8x128xf32>
    %163 = arith.truncf %162 : vector<8x128xf32> to vector<8x128xbf16>
    %c0_92 = arith.constant 0 : index
    %c0_93 = arith.constant 0 : index
    %164 = vector.load %arg4[%c0_92, %c0_93] : memref<128x512xbf16, #tpu.memory_space<vmem>>, vector<128x512xbf16>
    %cst_94 = arith.constant dense<0.000000e+00> : vector<8x512xf32>
    %165 = tpu.matmul %163, %164, %cst_94 {dimension_numbers = #tpu.dot_dimension_numbers<[1], [0], [0], [1], [0, 0, 1, 1], [], []>} : vector<8x128xbf16>, vector<128x512xbf16>, vector<8x512xf32> -> vector<8x512xf32>
    %166 = arith.addf %160, %165 : vector<8x512xf32>
    %c0_95 = arith.constant 0 : index
    %c0_96 = arith.constant 0 : index
    %c0_97 = arith.constant 0 : index
    %167 = vector.load %arg10[%c0_95, %c0_96, %c0_97] : memref<2x8x128xf32, #tpu.memory_space<vmem>>, vector<1x8x128xf32>
    %168 = vector.shape_cast %167 : vector<1x8x128xf32> to vector<8x128xf32>
    %169 = vector.extract_strided_slice %166 {offsets = [0, 0], sizes = [8, 384], strides = [1, 1]} : vector<8x512xf32> to vector<8x384xf32>
    %170 = arith.negf %169 : vector<8x384xf32>
    %171 = math.exp %170 : vector<8x384xf32>
    %cst_98 = arith.constant 1.000000e+00 : f32
    %172 = vector.broadcast %cst_98 : f32 to vector<8x384xf32>
    %173 = arith.addf %172, %171 : vector<8x384xf32>
    %174 = arith.divf %172, %173 : vector<8x384xf32>
    %175 = vector.extract_strided_slice %166 {offsets = [0, 384], sizes = [8, 128], strides = [1, 1]} : vector<8x512xf32> to vector<8x128xf32>
    %176 = math.tanh %175 : vector<8x128xf32>
    %177 = vector.extract_strided_slice %174 {offsets = [0, 0], sizes = [8, 128], strides = [1, 1]} : vector<8x384xf32> to vector<8x128xf32>
    %178 = vector.extract_strided_slice %174 {offsets = [0, 128], sizes = [8, 128], strides = [1, 1]} : vector<8x384xf32> to vector<8x128xf32>
    %179 = vector.extract_strided_slice %174 {offsets = [0, 256], sizes = [8, 128], strides = [1, 1]} : vector<8x384xf32> to vector<8x128xf32>
    %180 = arith.mulf %178, %168 : vector<8x128xf32>
    %181 = arith.mulf %177, %176 : vector<8x128xf32>
    %182 = arith.addf %180, %181 : vector<8x128xf32>
    %183 = math.tanh %182 : vector<8x128xf32>
    %184 = arith.mulf %179, %183 : vector<8x128xf32>
    %c0_99 = arith.constant 0 : index
    %c0_100 = arith.constant 0 : index
    %c0_101 = arith.constant 0 : index
    %185 = vector.load %arg9[%c0_99, %c0_100, %c0_101] : memref<2x8x128xf32, #tpu.memory_space<vmem>>, vector<1x8x128xf32>
    %186 = vector.shape_cast %185 : vector<1x8x128xf32> to vector<8x128xf32>
    %187 = vector.shape_cast %184 : vector<8x128xf32> to vector<1x8x128xf32>
    tpu.vector_store %arg9[%c0_99, %c0_100, %c0_101], %187 {strides = array<i32>} : memref<2x8x128xf32, #tpu.memory_space<vmem>>, vector<1x8x128xf32>,
    %c0_102 = arith.constant 0 : index
    %c0_103 = arith.constant 0 : index
    %c0_104 = arith.constant 0 : index
    %188 = vector.load %arg10[%c0_102, %c0_103, %c0_104] : memref<2x8x128xf32, #tpu.memory_space<vmem>>, vector<1x8x128xf32>
    %189 = vector.shape_cast %188 : vector<1x8x128xf32> to vector<8x128xf32>
    %190 = vector.shape_cast %182 : vector<8x128xf32> to vector<1x8x128xf32>
    tpu.vector_store %arg10[%c0_102, %c0_103, %c0_104], %190 {strides = array<i32>} : memref<2x8x128xf32, #tpu.memory_space<vmem>>, vector<1x8x128xf32>,
    %191 = arith.truncf %184 : vector<8x128xf32> to vector<8x128xbf16>
    %c1_105 = arith.constant 1 : index
    %c0_106 = arith.constant 0 : index
    %c0_107 = arith.constant 0 : index
    %192 = vector.load %arg9[%c1_105, %c0_106, %c0_107] : memref<2x8x128xf32, #tpu.memory_space<vmem>>, vector<1x8x128xf32>
    %193 = vector.shape_cast %192 : vector<1x8x128xf32> to vector<8x128xf32>
    %194 = arith.truncf %193 : vector<8x128xf32> to vector<8x128xbf16>
    %195 = tpu.concatenate %191, %194 in 1 : vector<8x128xbf16>, vector<8x128xbf16> -> vector<8x256xbf16>
    %c0_108 = arith.constant 0 : index
    %c0_109 = arith.constant 0 : index
    %c0_110 = arith.constant 0 : index
    %196 = vector.load %arg6[%c0_108, %c0_109, %c0_110] : memref<1x256x512xbf16, #tpu.memory_space<vmem>>, vector<1x256x512xbf16>
    %197 = vector.shape_cast %196 : vector<1x256x512xbf16> to vector<256x512xbf16>
    %cst_111 = arith.constant dense<0.000000e+00> : vector<8x512xf32>
    %198 = tpu.matmul %195, %197, %cst_111 {dimension_numbers = #tpu.dot_dimension_numbers<[1], [0], [0], [1], [0, 0, 1, 1], [], []>} : vector<8x256xbf16>, vector<256x512xbf16>, vector<8x512xf32> -> vector<8x512xf32>
    %199 = arith.addf %198, %15 : vector<8x512xf32>
    %c1_112 = arith.constant 1 : index
    %c0_113 = arith.constant 0 : index
    %c0_114 = arith.constant 0 : index
    %200 = vector.load %arg10[%c1_112, %c0_113, %c0_114] : memref<2x8x128xf32, #tpu.memory_space<vmem>>, vector<1x8x128xf32>
    %201 = vector.shape_cast %200 : vector<1x8x128xf32> to vector<8x128xf32>
    %202 = vector.extract_strided_slice %199 {offsets = [0, 0], sizes = [8, 384], strides = [1, 1]} : vector<8x512xf32> to vector<8x384xf32>
    %203 = arith.negf %202 : vector<8x384xf32>
    %204 = math.exp %203 : vector<8x384xf32>
    %cst_115 = arith.constant 1.000000e+00 : f32
    %205 = vector.broadcast %cst_115 : f32 to vector<8x384xf32>
    %206 = arith.addf %205, %204 : vector<8x384xf32>
    %207 = arith.divf %205, %206 : vector<8x384xf32>
    %208 = vector.extract_strided_slice %199 {offsets = [0, 384], sizes = [8, 128], strides = [1, 1]} : vector<8x512xf32> to vector<8x128xf32>
    %209 = math.tanh %208 : vector<8x128xf32>
    %210 = vector.extract_strided_slice %207 {offsets = [0, 0], sizes = [8, 128], strides = [1, 1]} : vector<8x384xf32> to vector<8x128xf32>
    %211 = vector.extract_strided_slice %207 {offsets = [0, 128], sizes = [8, 128], strides = [1, 1]} : vector<8x384xf32> to vector<8x128xf32>
    %212 = vector.extract_strided_slice %207 {offsets = [0, 256], sizes = [8, 128], strides = [1, 1]} : vector<8x384xf32> to vector<8x128xf32>
    %213 = arith.mulf %211, %201 : vector<8x128xf32>
    %214 = arith.mulf %210, %209 : vector<8x128xf32>
    %215 = arith.addf %213, %214 : vector<8x128xf32>
    %216 = math.tanh %215 : vector<8x128xf32>
    %217 = arith.mulf %212, %216 : vector<8x128xf32>
    %c1_116 = arith.constant 1 : index
    %c0_117 = arith.constant 0 : index
    %c0_118 = arith.constant 0 : index
    %218 = vector.load %arg9[%c1_116, %c0_117, %c0_118] : memref<2x8x128xf32, #tpu.memory_space<vmem>>, vector<1x8x128xf32>
    %219 = vector.shape_cast %218 : vector<1x8x128xf32> to vector<8x128xf32>
    %220 = vector.shape_cast %217 : vector<8x128xf32> to vector<1x8x128xf32>
    tpu.vector_store %arg9[%c1_116, %c0_117, %c0_118], %220 {strides = array<i32>} : memref<2x8x128xf32, #tpu.memory_space<vmem>>, vector<1x8x128xf32>,
    %c1_119 = arith.constant 1 : index
    %c0_120 = arith.constant 0 : index
    %c0_121 = arith.constant 0 : index
    %221 = vector.load %arg10[%c1_119, %c0_120, %c0_121] : memref<2x8x128xf32, #tpu.memory_space<vmem>>, vector<1x8x128xf32>
    %222 = vector.shape_cast %221 : vector<1x8x128xf32> to vector<8x128xf32>
    %223 = vector.shape_cast %215 : vector<8x128xf32> to vector<1x8x128xf32>
    tpu.vector_store %arg10[%c1_119, %c0_120, %c0_121], %223 {strides = array<i32>} : memref<2x8x128xf32, #tpu.memory_space<vmem>>, vector<1x8x128xf32>,
    %224 = arith.truncf %217 : vector<8x128xf32> to vector<8x128xbf16>
    %225 = arith.index_cast %c2_i32 : i32 to index
    %c0_122 = arith.constant 0 : index
    %c0_123 = arith.constant 0 : index
    %226 = vector.load %arg8[%225, %c0_122, %c0_123] : memref<8x8x128xbf16, #tpu.memory_space<vmem>>, vector<1x8x128xbf16>
    %227 = vector.shape_cast %226 : vector<1x8x128xbf16> to vector<8x128xbf16>
    %228 = vector.shape_cast %224 : vector<8x128xbf16> to vector<1x8x128xbf16>
    tpu.vector_store %arg8[%225, %c0_122, %c0_123], %228 {strides = array<i32>} : memref<8x8x128xbf16, #tpu.memory_space<vmem>>, vector<1x8x128xbf16>,
    %c3_i32 = arith.constant 3 : i32
    %229 = arith.index_cast %c3_i32 : i32 to index
    %c0_124 = arith.constant 0 : index
    %c0_125 = arith.constant 0 : index
    %230 = vector.load %arg11[%229, %c0_124, %c0_125] : memref<8x8x512xf32, #tpu.memory_space<vmem>>, vector<1x8x512xf32>
    %231 = vector.shape_cast %230 : vector<1x8x512xf32> to vector<8x512xf32>
    %c0_126 = arith.constant 0 : index
    %c0_127 = arith.constant 0 : index
    %c0_128 = arith.constant 0 : index
    %232 = vector.load %arg9[%c0_126, %c0_127, %c0_128] : memref<2x8x128xf32, #tpu.memory_space<vmem>>, vector<1x8x128xf32>
    %233 = vector.shape_cast %232 : vector<1x8x128xf32> to vector<8x128xf32>
    %234 = arith.truncf %233 : vector<8x128xf32> to vector<8x128xbf16>
    %c0_129 = arith.constant 0 : index
    %c0_130 = arith.constant 0 : index
    %235 = vector.load %arg4[%c0_129, %c0_130] : memref<128x512xbf16, #tpu.memory_space<vmem>>, vector<128x512xbf16>
    %cst_131 = arith.constant dense<0.000000e+00> : vector<8x512xf32>
    %236 = tpu.matmul %234, %235, %cst_131 {dimension_numbers = #tpu.dot_dimension_numbers<[1], [0], [0], [1], [0, 0, 1, 1], [], []>} : vector<8x128xbf16>, vector<128x512xbf16>, vector<8x512xf32> -> vector<8x512xf32>
    %237 = arith.addf %231, %236 : vector<8x512xf32>
    %c0_132 = arith.constant 0 : index
    %c0_133 = arith.constant 0 : index
    %c0_134 = arith.constant 0 : index
    %238 = vector.load %arg10[%c0_132, %c0_133, %c0_134] : memref<2x8x128xf32, #tpu.memory_space<vmem>>, vector<1x8x128xf32>
    %239 = vector.shape_cast %238 : vector<1x8x128xf32> to vector<8x128xf32>
    %240 = vector.extract_strided_slice %237 {offsets = [0, 0], sizes = [8, 384], strides = [1, 1]} : vector<8x512xf32> to vector<8x384xf32>
    %241 = arith.negf %240 : vector<8x384xf32>
    %242 = math.exp %241 : vector<8x384xf32>
    %cst_135 = arith.constant 1.000000e+00 : f32
    %243 = vector.broadcast %cst_135 : f32 to vector<8x384xf32>
    %244 = arith.addf %243, %242 : vector<8x384xf32>
    %245 = arith.divf %243, %244 : vector<8x384xf32>
    %246 = vector.extract_strided_slice %237 {offsets = [0, 384], sizes = [8, 128], strides = [1, 1]} : vector<8x512xf32> to vector<8x128xf32>
    %247 = math.tanh %246 : vector<8x128xf32>
    %248 = vector.extract_strided_slice %245 {offsets = [0, 0], sizes = [8, 128], strides = [1, 1]} : vector<8x384xf32> to vector<8x128xf32>
    %249 = vector.extract_strided_slice %245 {offsets = [0, 128], sizes = [8, 128], strides = [1, 1]} : vector<8x384xf32> to vector<8x128xf32>
    %250 = vector.extract_strided_slice %245 {offsets = [0, 256], sizes = [8, 128], strides = [1, 1]} : vector<8x384xf32> to vector<8x128xf32>
    %251 = arith.mulf %249, %239 : vector<8x128xf32>
    %252 = arith.mulf %248, %247 : vector<8x128xf32>
    %253 = arith.addf %251, %252 : vector<8x128xf32>
    %254 = math.tanh %253 : vector<8x128xf32>
    %255 = arith.mulf %250, %254 : vector<8x128xf32>
    %c0_136 = arith.constant 0 : index
    %c0_137 = arith.constant 0 : index
    %c0_138 = arith.constant 0 : index
    %256 = vector.load %arg9[%c0_136, %c0_137, %c0_138] : memref<2x8x128xf32, #tpu.memory_space<vmem>>, vector<1x8x128xf32>
    %257 = vector.shape_cast %256 : vector<1x8x128xf32> to vector<8x128xf32>
    %258 = vector.shape_cast %255 : vector<8x128xf32> to vector<1x8x128xf32>
    tpu.vector_store %arg9[%c0_136, %c0_137, %c0_138], %258 {strides = array<i32>} : memref<2x8x128xf32, #tpu.memory_space<vmem>>, vector<1x8x128xf32>,
    %c0_139 = arith.constant 0 : index
    %c0_140 = arith.constant 0 : index
    %c0_141 = arith.constant 0 : index
    %259 = vector.load %arg10[%c0_139, %c0_140, %c0_141] : memref<2x8x128xf32, #tpu.memory_space<vmem>>, vector<1x8x128xf32>
    %260 = vector.shape_cast %259 : vector<1x8x128xf32> to vector<8x128xf32>
    %261 = vector.shape_cast %253 : vector<8x128xf32> to vector<1x8x128xf32>
    tpu.vector_store %arg10[%c0_139, %c0_140, %c0_141], %261 {strides = array<i32>} : memref<2x8x128xf32, #tpu.memory_space<vmem>>, vector<1x8x128xf32>,
    %262 = arith.truncf %255 : vector<8x128xf32> to vector<8x128xbf16>
    %c1_142 = arith.constant 1 : index
    %c0_143 = arith.constant 0 : index
    %c0_144 = arith.constant 0 : index
    %263 = vector.load %arg9[%c1_142, %c0_143, %c0_144] : memref<2x8x128xf32, #tpu.memory_space<vmem>>, vector<1x8x128xf32>
    %264 = vector.shape_cast %263 : vector<1x8x128xf32> to vector<8x128xf32>
    %265 = arith.truncf %264 : vector<8x128xf32> to vector<8x128xbf16>
    %266 = tpu.concatenate %262, %265 in 1 : vector<8x128xbf16>, vector<8x128xbf16> -> vector<8x256xbf16>
    %c0_145 = arith.constant 0 : index
    %c0_146 = arith.constant 0 : index
    %c0_147 = arith.constant 0 : index
    %267 = vector.load %arg6[%c0_145, %c0_146, %c0_147] : memref<1x256x512xbf16, #tpu.memory_space<vmem>>, vector<1x256x512xbf16>
    %268 = vector.shape_cast %267 : vector<1x256x512xbf16> to vector<256x512xbf16>
    %cst_148 = arith.constant dense<0.000000e+00> : vector<8x512xf32>
    %269 = tpu.matmul %266, %268, %cst_148 {dimension_numbers = #tpu.dot_dimension_numbers<[1], [0], [0], [1], [0, 0, 1, 1], [], []>} : vector<8x256xbf16>, vector<256x512xbf16>, vector<8x512xf32> -> vector<8x512xf32>
    %270 = arith.addf %269, %15 : vector<8x512xf32>
    %c1_149 = arith.constant 1 : index
    %c0_150 = arith.constant 0 : index
    %c0_151 = arith.constant 0 : index
    %271 = vector.load %arg10[%c1_149, %c0_150, %c0_151] : memref<2x8x128xf32, #tpu.memory_space<vmem>>, vector<1x8x128xf32>
    %272 = vector.shape_cast %271 : vector<1x8x128xf32> to vector<8x128xf32>
    %273 = vector.extract_strided_slice %270 {offsets = [0, 0], sizes = [8, 384], strides = [1, 1]} : vector<8x512xf32> to vector<8x384xf32>
    %274 = arith.negf %273 : vector<8x384xf32>
    %275 = math.exp %274 : vector<8x384xf32>
    %cst_152 = arith.constant 1.000000e+00 : f32
    %276 = vector.broadcast %cst_152 : f32 to vector<8x384xf32>
    %277 = arith.addf %276, %275 : vector<8x384xf32>
    %278 = arith.divf %276, %277 : vector<8x384xf32>
    %279 = vector.extract_strided_slice %270 {offsets = [0, 384], sizes = [8, 128], strides = [1, 1]} : vector<8x512xf32> to vector<8x128xf32>
    %280 = math.tanh %279 : vector<8x128xf32>
    %281 = vector.extract_strided_slice %278 {offsets = [0, 0], sizes = [8, 128], strides = [1, 1]} : vector<8x384xf32> to vector<8x128xf32>
    %282 = vector.extract_strided_slice %278 {offsets = [0, 128], sizes = [8, 128], strides = [1, 1]} : vector<8x384xf32> to vector<8x128xf32>
    %283 = vector.extract_strided_slice %278 {offsets = [0, 256], sizes = [8, 128], strides = [1, 1]} : vector<8x384xf32> to vector<8x128xf32>
    %284 = arith.mulf %282, %272 : vector<8x128xf32>
    %285 = arith.mulf %281, %280 : vector<8x128xf32>
    %286 = arith.addf %284, %285 : vector<8x128xf32>
    %287 = math.tanh %286 : vector<8x128xf32>
    %288 = arith.mulf %283, %287 : vector<8x128xf32>
    %c1_153 = arith.constant 1 : index
    %c0_154 = arith.constant 0 : index
    %c0_155 = arith.constant 0 : index
    %289 = vector.load %arg9[%c1_153, %c0_154, %c0_155] : memref<2x8x128xf32, #tpu.memory_space<vmem>>, vector<1x8x128xf32>
    %290 = vector.shape_cast %289 : vector<1x8x128xf32> to vector<8x128xf32>
    %291 = vector.shape_cast %288 : vector<8x128xf32> to vector<1x8x128xf32>
    tpu.vector_store %arg9[%c1_153, %c0_154, %c0_155], %291 {strides = array<i32>} : memref<2x8x128xf32, #tpu.memory_space<vmem>>, vector<1x8x128xf32>,
    %c1_156 = arith.constant 1 : index
    %c0_157 = arith.constant 0 : index
    %c0_158 = arith.constant 0 : index
    %292 = vector.load %arg10[%c1_156, %c0_157, %c0_158] : memref<2x8x128xf32, #tpu.memory_space<vmem>>, vector<1x8x128xf32>
    %293 = vector.shape_cast %292 : vector<1x8x128xf32> to vector<8x128xf32>
    %294 = vector.shape_cast %286 : vector<8x128xf32> to vector<1x8x128xf32>
    tpu.vector_store %arg10[%c1_156, %c0_157, %c0_158], %294 {strides = array<i32>} : memref<2x8x128xf32, #tpu.memory_space<vmem>>, vector<1x8x128xf32>,
    %295 = arith.truncf %288 : vector<8x128xf32> to vector<8x128xbf16>
    %296 = arith.index_cast %c3_i32 : i32 to index
    %c0_159 = arith.constant 0 : index
    %c0_160 = arith.constant 0 : index
    %297 = vector.load %arg8[%296, %c0_159, %c0_160] : memref<8x8x128xbf16, #tpu.memory_space<vmem>>, vector<1x8x128xbf16>
    %298 = vector.shape_cast %297 : vector<1x8x128xbf16> to vector<8x128xbf16>
    %299 = vector.shape_cast %295 : vector<8x128xbf16> to vector<1x8x128xbf16>
    tpu.vector_store %arg8[%296, %c0_159, %c0_160], %299 {strides = array<i32>} : memref<8x8x128xbf16, #tpu.memory_space<vmem>>, vector<1x8x128xbf16>,
    %c4_i32 = arith.constant 4 : i32
    %300 = arith.index_cast %c4_i32 : i32 to index
    %c0_161 = arith.constant 0 : index
    %c0_162 = arith.constant 0 : index
    %301 = vector.load %arg11[%300, %c0_161, %c0_162] : memref<8x8x512xf32, #tpu.memory_space<vmem>>, vector<1x8x512xf32>
    %302 = vector.shape_cast %301 : vector<1x8x512xf32> to vector<8x512xf32>
    %c0_163 = arith.constant 0 : index
    %c0_164 = arith.constant 0 : index
    %c0_165 = arith.constant 0 : index
    %303 = vector.load %arg9[%c0_163, %c0_164, %c0_165] : memref<2x8x128xf32, #tpu.memory_space<vmem>>, vector<1x8x128xf32>
    %304 = vector.shape_cast %303 : vector<1x8x128xf32> to vector<8x128xf32>
    %305 = arith.truncf %304 : vector<8x128xf32> to vector<8x128xbf16>
    %c0_166 = arith.constant 0 : index
    %c0_167 = arith.constant 0 : index
    %306 = vector.load %arg4[%c0_166, %c0_167] : memref<128x512xbf16, #tpu.memory_space<vmem>>, vector<128x512xbf16>
    %cst_168 = arith.constant dense<0.000000e+00> : vector<8x512xf32>
    %307 = tpu.matmul %305, %306, %cst_168 {dimension_numbers = #tpu.dot_dimension_numbers<[1], [0], [0], [1], [0, 0, 1, 1], [], []>} : vector<8x128xbf16>, vector<128x512xbf16>, vector<8x512xf32> -> vector<8x512xf32>
    %308 = arith.addf %302, %307 : vector<8x512xf32>
    %c0_169 = arith.constant 0 : index
    %c0_170 = arith.constant 0 : index
    %c0_171 = arith.constant 0 : index
    %309 = vector.load %arg10[%c0_169, %c0_170, %c0_171] : memref<2x8x128xf32, #tpu.memory_space<vmem>>, vector<1x8x128xf32>
    %310 = vector.shape_cast %309 : vector<1x8x128xf32> to vector<8x128xf32>
    %311 = vector.extract_strided_slice %308 {offsets = [0, 0], sizes = [8, 384], strides = [1, 1]} : vector<8x512xf32> to vector<8x384xf32>
    %312 = arith.negf %311 : vector<8x384xf32>
    %313 = math.exp %312 : vector<8x384xf32>
    %cst_172 = arith.constant 1.000000e+00 : f32
    %314 = vector.broadcast %cst_172 : f32 to vector<8x384xf32>
    %315 = arith.addf %314, %313 : vector<8x384xf32>
    %316 = arith.divf %314, %315 : vector<8x384xf32>
    %317 = vector.extract_strided_slice %308 {offsets = [0, 384], sizes = [8, 128], strides = [1, 1]} : vector<8x512xf32> to vector<8x128xf32>
    %318 = math.tanh %317 : vector<8x128xf32>
    %319 = vector.extract_strided_slice %316 {offsets = [0, 0], sizes = [8, 128], strides = [1, 1]} : vector<8x384xf32> to vector<8x128xf32>
    %320 = vector.extract_strided_slice %316 {offsets = [0, 128], sizes = [8, 128], strides = [1, 1]} : vector<8x384xf32> to vector<8x128xf32>
    %321 = vector.extract_strided_slice %316 {offsets = [0, 256], sizes = [8, 128], strides = [1, 1]} : vector<8x384xf32> to vector<8x128xf32>
    %322 = arith.mulf %320, %310 : vector<8x128xf32>
    %323 = arith.mulf %319, %318 : vector<8x128xf32>
    %324 = arith.addf %322, %323 : vector<8x128xf32>
    %325 = math.tanh %324 : vector<8x128xf32>
    %326 = arith.mulf %321, %325 : vector<8x128xf32>
    %c0_173 = arith.constant 0 : index
    %c0_174 = arith.constant 0 : index
    %c0_175 = arith.constant 0 : index
    %327 = vector.load %arg9[%c0_173, %c0_174, %c0_175] : memref<2x8x128xf32, #tpu.memory_space<vmem>>, vector<1x8x128xf32>
    %328 = vector.shape_cast %327 : vector<1x8x128xf32> to vector<8x128xf32>
    %329 = vector.shape_cast %326 : vector<8x128xf32> to vector<1x8x128xf32>
    tpu.vector_store %arg9[%c0_173, %c0_174, %c0_175], %329 {strides = array<i32>} : memref<2x8x128xf32, #tpu.memory_space<vmem>>, vector<1x8x128xf32>,
    %c0_176 = arith.constant 0 : index
    %c0_177 = arith.constant 0 : index
    %c0_178 = arith.constant 0 : index
    %330 = vector.load %arg10[%c0_176, %c0_177, %c0_178] : memref<2x8x128xf32, #tpu.memory_space<vmem>>, vector<1x8x128xf32>
    %331 = vector.shape_cast %330 : vector<1x8x128xf32> to vector<8x128xf32>
    %332 = vector.shape_cast %324 : vector<8x128xf32> to vector<1x8x128xf32>
    tpu.vector_store %arg10[%c0_176, %c0_177, %c0_178], %332 {strides = array<i32>} : memref<2x8x128xf32, #tpu.memory_space<vmem>>, vector<1x8x128xf32>,
    %333 = arith.truncf %326 : vector<8x128xf32> to vector<8x128xbf16>
    %c1_179 = arith.constant 1 : index
    %c0_180 = arith.constant 0 : index
    %c0_181 = arith.constant 0 : index
    %334 = vector.load %arg9[%c1_179, %c0_180, %c0_181] : memref<2x8x128xf32, #tpu.memory_space<vmem>>, vector<1x8x128xf32>
    %335 = vector.shape_cast %334 : vector<1x8x128xf32> to vector<8x128xf32>
    %336 = arith.truncf %335 : vector<8x128xf32> to vector<8x128xbf16>
    %337 = tpu.concatenate %333, %336 in 1 : vector<8x128xbf16>, vector<8x128xbf16> -> vector<8x256xbf16>
    %c0_182 = arith.constant 0 : index
    %c0_183 = arith.constant 0 : index
    %c0_184 = arith.constant 0 : index
    %338 = vector.load %arg6[%c0_182, %c0_183, %c0_184] : memref<1x256x512xbf16, #tpu.memory_space<vmem>>, vector<1x256x512xbf16>
    %339 = vector.shape_cast %338 : vector<1x256x512xbf16> to vector<256x512xbf16>
    %cst_185 = arith.constant dense<0.000000e+00> : vector<8x512xf32>
    %340 = tpu.matmul %337, %339, %cst_185 {dimension_numbers = #tpu.dot_dimension_numbers<[1], [0], [0], [1], [0, 0, 1, 1], [], []>} : vector<8x256xbf16>, vector<256x512xbf16>, vector<8x512xf32> -> vector<8x512xf32>
    %341 = arith.addf %340, %15 : vector<8x512xf32>
    %c1_186 = arith.constant 1 : index
    %c0_187 = arith.constant 0 : index
    %c0_188 = arith.constant 0 : index
    %342 = vector.load %arg10[%c1_186, %c0_187, %c0_188] : memref<2x8x128xf32, #tpu.memory_space<vmem>>, vector<1x8x128xf32>
    %343 = vector.shape_cast %342 : vector<1x8x128xf32> to vector<8x128xf32>
    %344 = vector.extract_strided_slice %341 {offsets = [0, 0], sizes = [8, 384], strides = [1, 1]} : vector<8x512xf32> to vector<8x384xf32>
    %345 = arith.negf %344 : vector<8x384xf32>
    %346 = math.exp %345 : vector<8x384xf32>
    %cst_189 = arith.constant 1.000000e+00 : f32
    %347 = vector.broadcast %cst_189 : f32 to vector<8x384xf32>
    %348 = arith.addf %347, %346 : vector<8x384xf32>
    %349 = arith.divf %347, %348 : vector<8x384xf32>
    %350 = vector.extract_strided_slice %341 {offsets = [0, 384], sizes = [8, 128], strides = [1, 1]} : vector<8x512xf32> to vector<8x128xf32>
    %351 = math.tanh %350 : vector<8x128xf32>
    %352 = vector.extract_strided_slice %349 {offsets = [0, 0], sizes = [8, 128], strides = [1, 1]} : vector<8x384xf32> to vector<8x128xf32>
    %353 = vector.extract_strided_slice %349 {offsets = [0, 128], sizes = [8, 128], strides = [1, 1]} : vector<8x384xf32> to vector<8x128xf32>
    %354 = vector.extract_strided_slice %349 {offsets = [0, 256], sizes = [8, 128], strides = [1, 1]} : vector<8x384xf32> to vector<8x128xf32>
    %355 = arith.mulf %353, %343 : vector<8x128xf32>
    %356 = arith.mulf %352, %351 : vector<8x128xf32>
    %357 = arith.addf %355, %356 : vector<8x128xf32>
    %358 = math.tanh %357 : vector<8x128xf32>
    %359 = arith.mulf %354, %358 : vector<8x128xf32>
    %c1_190 = arith.constant 1 : index
    %c0_191 = arith.constant 0 : index
    %c0_192 = arith.constant 0 : index
    %360 = vector.load %arg9[%c1_190, %c0_191, %c0_192] : memref<2x8x128xf32, #tpu.memory_space<vmem>>, vector<1x8x128xf32>
    %361 = vector.shape_cast %360 : vector<1x8x128xf32> to vector<8x128xf32>
    %362 = vector.shape_cast %359 : vector<8x128xf32> to vector<1x8x128xf32>
    tpu.vector_store %arg9[%c1_190, %c0_191, %c0_192], %362 {strides = array<i32>} : memref<2x8x128xf32, #tpu.memory_space<vmem>>, vector<1x8x128xf32>,
    %c1_193 = arith.constant 1 : index
    %c0_194 = arith.constant 0 : index
    %c0_195 = arith.constant 0 : index
    %363 = vector.load %arg10[%c1_193, %c0_194, %c0_195] : memref<2x8x128xf32, #tpu.memory_space<vmem>>, vector<1x8x128xf32>
    %364 = vector.shape_cast %363 : vector<1x8x128xf32> to vector<8x128xf32>
    %365 = vector.shape_cast %357 : vector<8x128xf32> to vector<1x8x128xf32>
    tpu.vector_store %arg10[%c1_193, %c0_194, %c0_195], %365 {strides = array<i32>} : memref<2x8x128xf32, #tpu.memory_space<vmem>>, vector<1x8x128xf32>,
    %366 = arith.truncf %359 : vector<8x128xf32> to vector<8x128xbf16>
    %367 = arith.index_cast %c4_i32 : i32 to index
    %c0_196 = arith.constant 0 : index
    %c0_197 = arith.constant 0 : index
    %368 = vector.load %arg8[%367, %c0_196, %c0_197] : memref<8x8x128xbf16, #tpu.memory_space<vmem>>, vector<1x8x128xbf16>
    %369 = vector.shape_cast %368 : vector<1x8x128xbf16> to vector<8x128xbf16>
    %370 = vector.shape_cast %366 : vector<8x128xbf16> to vector<1x8x128xbf16>
    tpu.vector_store %arg8[%367, %c0_196, %c0_197], %370 {strides = array<i32>} : memref<8x8x128xbf16, #tpu.memory_space<vmem>>, vector<1x8x128xbf16>,
    %c5_i32 = arith.constant 5 : i32
    %371 = arith.index_cast %c5_i32 : i32 to index
    %c0_198 = arith.constant 0 : index
    %c0_199 = arith.constant 0 : index
    %372 = vector.load %arg11[%371, %c0_198, %c0_199] : memref<8x8x512xf32, #tpu.memory_space<vmem>>, vector<1x8x512xf32>
    %373 = vector.shape_cast %372 : vector<1x8x512xf32> to vector<8x512xf32>
    %c0_200 = arith.constant 0 : index
    %c0_201 = arith.constant 0 : index
    %c0_202 = arith.constant 0 : index
    %374 = vector.load %arg9[%c0_200, %c0_201, %c0_202] : memref<2x8x128xf32, #tpu.memory_space<vmem>>, vector<1x8x128xf32>
    %375 = vector.shape_cast %374 : vector<1x8x128xf32> to vector<8x128xf32>
    %376 = arith.truncf %375 : vector<8x128xf32> to vector<8x128xbf16>
    %c0_203 = arith.constant 0 : index
    %c0_204 = arith.constant 0 : index
    %377 = vector.load %arg4[%c0_203, %c0_204] : memref<128x512xbf16, #tpu.memory_space<vmem>>, vector<128x512xbf16>
    %cst_205 = arith.constant dense<0.000000e+00> : vector<8x512xf32>
    %378 = tpu.matmul %376, %377, %cst_205 {dimension_numbers = #tpu.dot_dimension_numbers<[1], [0], [0], [1], [0, 0, 1, 1], [], []>} : vector<8x128xbf16>, vector<128x512xbf16>, vector<8x512xf32> -> vector<8x512xf32>
    %379 = arith.addf %373, %378 : vector<8x512xf32>
    %c0_206 = arith.constant 0 : index
    %c0_207 = arith.constant 0 : index
    %c0_208 = arith.constant 0 : index
    %380 = vector.load %arg10[%c0_206, %c0_207, %c0_208] : memref<2x8x128xf32, #tpu.memory_space<vmem>>, vector<1x8x128xf32>
    %381 = vector.shape_cast %380 : vector<1x8x128xf32> to vector<8x128xf32>
    %382 = vector.extract_strided_slice %379 {offsets = [0, 0], sizes = [8, 384], strides = [1, 1]} : vector<8x512xf32> to vector<8x384xf32>
    %383 = arith.negf %382 : vector<8x384xf32>
    %384 = math.exp %383 : vector<8x384xf32>
    %cst_209 = arith.constant 1.000000e+00 : f32
    %385 = vector.broadcast %cst_209 : f32 to vector<8x384xf32>
    %386 = arith.addf %385, %384 : vector<8x384xf32>
    %387 = arith.divf %385, %386 : vector<8x384xf32>
    %388 = vector.extract_strided_slice %379 {offsets = [0, 384], sizes = [8, 128], strides = [1, 1]} : vector<8x512xf32> to vector<8x128xf32>
    %389 = math.tanh %388 : vector<8x128xf32>
    %390 = vector.extract_strided_slice %387 {offsets = [0, 0], sizes = [8, 128], strides = [1, 1]} : vector<8x384xf32> to vector<8x128xf32>
    %391 = vector.extract_strided_slice %387 {offsets = [0, 128], sizes = [8, 128], strides = [1, 1]} : vector<8x384xf32> to vector<8x128xf32>
    %392 = vector.extract_strided_slice %387 {offsets = [0, 256], sizes = [8, 128], strides = [1, 1]} : vector<8x384xf32> to vector<8x128xf32>
    %393 = arith.mulf %391, %381 : vector<8x128xf32>
    %394 = arith.mulf %390, %389 : vector<8x128xf32>
    %395 = arith.addf %393, %394 : vector<8x128xf32>
    %396 = math.tanh %395 : vector<8x128xf32>
    %397 = arith.mulf %392, %396 : vector<8x128xf32>
    %c0_210 = arith.constant 0 : index
    %c0_211 = arith.constant 0 : index
    %c0_212 = arith.constant 0 : index
    %398 = vector.load %arg9[%c0_210, %c0_211, %c0_212] : memref<2x8x128xf32, #tpu.memory_space<vmem>>, vector<1x8x128xf32>
    %399 = vector.shape_cast %398 : vector<1x8x128xf32> to vector<8x128xf32>
    %400 = vector.shape_cast %397 : vector<8x128xf32> to vector<1x8x128xf32>
    tpu.vector_store %arg9[%c0_210, %c0_211, %c0_212], %400 {strides = array<i32>} : memref<2x8x128xf32, #tpu.memory_space<vmem>>, vector<1x8x128xf32>,
    %c0_213 = arith.constant 0 : index
    %c0_214 = arith.constant 0 : index
    %c0_215 = arith.constant 0 : index
    %401 = vector.load %arg10[%c0_213, %c0_214, %c0_215] : memref<2x8x128xf32, #tpu.memory_space<vmem>>, vector<1x8x128xf32>
    %402 = vector.shape_cast %401 : vector<1x8x128xf32> to vector<8x128xf32>
    %403 = vector.shape_cast %395 : vector<8x128xf32> to vector<1x8x128xf32>
    tpu.vector_store %arg10[%c0_213, %c0_214, %c0_215], %403 {strides = array<i32>} : memref<2x8x128xf32, #tpu.memory_space<vmem>>, vector<1x8x128xf32>,
    %404 = arith.truncf %397 : vector<8x128xf32> to vector<8x128xbf16>
    %c1_216 = arith.constant 1 : index
    %c0_217 = arith.constant 0 : index
    %c0_218 = arith.constant 0 : index
    %405 = vector.load %arg9[%c1_216, %c0_217, %c0_218] : memref<2x8x128xf32, #tpu.memory_space<vmem>>, vector<1x8x128xf32>
    %406 = vector.shape_cast %405 : vector<1x8x128xf32> to vector<8x128xf32>
    %407 = arith.truncf %406 : vector<8x128xf32> to vector<8x128xbf16>
    %408 = tpu.concatenate %404, %407 in 1 : vector<8x128xbf16>, vector<8x128xbf16> -> vector<8x256xbf16>
    %c0_219 = arith.constant 0 : index
    %c0_220 = arith.constant 0 : index
    %c0_221 = arith.constant 0 : index
    %409 = vector.load %arg6[%c0_219, %c0_220, %c0_221] : memref<1x256x512xbf16, #tpu.memory_space<vmem>>, vector<1x256x512xbf16>
    %410 = vector.shape_cast %409 : vector<1x256x512xbf16> to vector<256x512xbf16>
    %cst_222 = arith.constant dense<0.000000e+00> : vector<8x512xf32>
    %411 = tpu.matmul %408, %410, %cst_222 {dimension_numbers = #tpu.dot_dimension_numbers<[1], [0], [0], [1], [0, 0, 1, 1], [], []>} : vector<8x256xbf16>, vector<256x512xbf16>, vector<8x512xf32> -> vector<8x512xf32>
    %412 = arith.addf %411, %15 : vector<8x512xf32>
    %c1_223 = arith.constant 1 : index
    %c0_224 = arith.constant 0 : index
    %c0_225 = arith.constant 0 : index
    %413 = vector.load %arg10[%c1_223, %c0_224, %c0_225] : memref<2x8x128xf32, #tpu.memory_space<vmem>>, vector<1x8x128xf32>
    %414 = vector.shape_cast %413 : vector<1x8x128xf32> to vector<8x128xf32>
    %415 = vector.extract_strided_slice %412 {offsets = [0, 0], sizes = [8, 384], strides = [1, 1]} : vector<8x512xf32> to vector<8x384xf32>
    %416 = arith.negf %415 : vector<8x384xf32>
    %417 = math.exp %416 : vector<8x384xf32>
    %cst_226 = arith.constant 1.000000e+00 : f32
    %418 = vector.broadcast %cst_226 : f32 to vector<8x384xf32>
    %419 = arith.addf %418, %417 : vector<8x384xf32>
    %420 = arith.divf %418, %419 : vector<8x384xf32>
    %421 = vector.extract_strided_slice %412 {offsets = [0, 384], sizes = [8, 128], strides = [1, 1]} : vector<8x512xf32> to vector<8x128xf32>
    %422 = math.tanh %421 : vector<8x128xf32>
    %423 = vector.extract_strided_slice %420 {offsets = [0, 0], sizes = [8, 128], strides = [1, 1]} : vector<8x384xf32> to vector<8x128xf32>
    %424 = vector.extract_strided_slice %420 {offsets = [0, 128], sizes = [8, 128], strides = [1, 1]} : vector<8x384xf32> to vector<8x128xf32>
    %425 = vector.extract_strided_slice %420 {offsets = [0, 256], sizes = [8, 128], strides = [1, 1]} : vector<8x384xf32> to vector<8x128xf32>
    %426 = arith.mulf %424, %414 : vector<8x128xf32>
    %427 = arith.mulf %423, %422 : vector<8x128xf32>
    %428 = arith.addf %426, %427 : vector<8x128xf32>
    %429 = math.tanh %428 : vector<8x128xf32>
    %430 = arith.mulf %425, %429 : vector<8x128xf32>
    %c1_227 = arith.constant 1 : index
    %c0_228 = arith.constant 0 : index
    %c0_229 = arith.constant 0 : index
    %431 = vector.load %arg9[%c1_227, %c0_228, %c0_229] : memref<2x8x128xf32, #tpu.memory_space<vmem>>, vector<1x8x128xf32>
    %432 = vector.shape_cast %431 : vector<1x8x128xf32> to vector<8x128xf32>
    %433 = vector.shape_cast %430 : vector<8x128xf32> to vector<1x8x128xf32>
    tpu.vector_store %arg9[%c1_227, %c0_228, %c0_229], %433 {strides = array<i32>} : memref<2x8x128xf32, #tpu.memory_space<vmem>>, vector<1x8x128xf32>,
    %c1_230 = arith.constant 1 : index
    %c0_231 = arith.constant 0 : index
    %c0_232 = arith.constant 0 : index
    %434 = vector.load %arg10[%c1_230, %c0_231, %c0_232] : memref<2x8x128xf32, #tpu.memory_space<vmem>>, vector<1x8x128xf32>
    %435 = vector.shape_cast %434 : vector<1x8x128xf32> to vector<8x128xf32>
    %436 = vector.shape_cast %428 : vector<8x128xf32> to vector<1x8x128xf32>
    tpu.vector_store %arg10[%c1_230, %c0_231, %c0_232], %436 {strides = array<i32>} : memref<2x8x128xf32, #tpu.memory_space<vmem>>, vector<1x8x128xf32>,
    %437 = arith.truncf %430 : vector<8x128xf32> to vector<8x128xbf16>
    %438 = arith.index_cast %c5_i32 : i32 to index
    %c0_233 = arith.constant 0 : index
    %c0_234 = arith.constant 0 : index
    %439 = vector.load %arg8[%438, %c0_233, %c0_234] : memref<8x8x128xbf16, #tpu.memory_space<vmem>>, vector<1x8x128xbf16>
    %440 = vector.shape_cast %439 : vector<1x8x128xbf16> to vector<8x128xbf16>
    %441 = vector.shape_cast %437 : vector<8x128xbf16> to vector<1x8x128xbf16>
    tpu.vector_store %arg8[%438, %c0_233, %c0_234], %441 {strides = array<i32>} : memref<8x8x128xbf16, #tpu.memory_space<vmem>>, vector<1x8x128xbf16>,
    %c6_i32 = arith.constant 6 : i32
    %442 = arith.index_cast %c6_i32 : i32 to index
    %c0_235 = arith.constant 0 : index
    %c0_236 = arith.constant 0 : index
    %443 = vector.load %arg11[%442, %c0_235, %c0_236] : memref<8x8x512xf32, #tpu.memory_space<vmem>>, vector<1x8x512xf32>
    %444 = vector.shape_cast %443 : vector<1x8x512xf32> to vector<8x512xf32>
    %c0_237 = arith.constant 0 : index
    %c0_238 = arith.constant 0 : index
    %c0_239 = arith.constant 0 : index
    %445 = vector.load %arg9[%c0_237, %c0_238, %c0_239] : memref<2x8x128xf32, #tpu.memory_space<vmem>>, vector<1x8x128xf32>
    %446 = vector.shape_cast %445 : vector<1x8x128xf32> to vector<8x128xf32>
    %447 = arith.truncf %446 : vector<8x128xf32> to vector<8x128xbf16>
    %c0_240 = arith.constant 0 : index
    %c0_241 = arith.constant 0 : index
    %448 = vector.load %arg4[%c0_240, %c0_241] : memref<128x512xbf16, #tpu.memory_space<vmem>>, vector<128x512xbf16>
    %cst_242 = arith.constant dense<0.000000e+00> : vector<8x512xf32>
    %449 = tpu.matmul %447, %448, %cst_242 {dimension_numbers = #tpu.dot_dimension_numbers<[1], [0], [0], [1], [0, 0, 1, 1], [], []>} : vector<8x128xbf16>, vector<128x512xbf16>, vector<8x512xf32> -> vector<8x512xf32>
    %450 = arith.addf %444, %449 : vector<8x512xf32>
    %c0_243 = arith.constant 0 : index
    %c0_244 = arith.constant 0 : index
    %c0_245 = arith.constant 0 : index
    %451 = vector.load %arg10[%c0_243, %c0_244, %c0_245] : memref<2x8x128xf32, #tpu.memory_space<vmem>>, vector<1x8x128xf32>
    %452 = vector.shape_cast %451 : vector<1x8x128xf32> to vector<8x128xf32>
    %453 = vector.extract_strided_slice %450 {offsets = [0, 0], sizes = [8, 384], strides = [1, 1]} : vector<8x512xf32> to vector<8x384xf32>
    %454 = arith.negf %453 : vector<8x384xf32>
    %455 = math.exp %454 : vector<8x384xf32>
    %cst_246 = arith.constant 1.000000e+00 : f32
    %456 = vector.broadcast %cst_246 : f32 to vector<8x384xf32>
    %457 = arith.addf %456, %455 : vector<8x384xf32>
    %458 = arith.divf %456, %457 : vector<8x384xf32>
    %459 = vector.extract_strided_slice %450 {offsets = [0, 384], sizes = [8, 128], strides = [1, 1]} : vector<8x512xf32> to vector<8x128xf32>
    %460 = math.tanh %459 : vector<8x128xf32>
    %461 = vector.extract_strided_slice %458 {offsets = [0, 0], sizes = [8, 128], strides = [1, 1]} : vector<8x384xf32> to vector<8x128xf32>
    %462 = vector.extract_strided_slice %458 {offsets = [0, 128], sizes = [8, 128], strides = [1, 1]} : vector<8x384xf32> to vector<8x128xf32>
    %463 = vector.extract_strided_slice %458 {offsets = [0, 256], sizes = [8, 128], strides = [1, 1]} : vector<8x384xf32> to vector<8x128xf32>
    %464 = arith.mulf %462, %452 : vector<8x128xf32>
    %465 = arith.mulf %461, %460 : vector<8x128xf32>
    %466 = arith.addf %464, %465 : vector<8x128xf32>
    %467 = math.tanh %466 : vector<8x128xf32>
    %468 = arith.mulf %463, %467 : vector<8x128xf32>
    %c0_247 = arith.constant 0 : index
    %c0_248 = arith.constant 0 : index
    %c0_249 = arith.constant 0 : index
    %469 = vector.load %arg9[%c0_247, %c0_248, %c0_249] : memref<2x8x128xf32, #tpu.memory_space<vmem>>, vector<1x8x128xf32>
    %470 = vector.shape_cast %469 : vector<1x8x128xf32> to vector<8x128xf32>
    %471 = vector.shape_cast %468 : vector<8x128xf32> to vector<1x8x128xf32>
    tpu.vector_store %arg9[%c0_247, %c0_248, %c0_249], %471 {strides = array<i32>} : memref<2x8x128xf32, #tpu.memory_space<vmem>>, vector<1x8x128xf32>,
    %c0_250 = arith.constant 0 : index
    %c0_251 = arith.constant 0 : index
    %c0_252 = arith.constant 0 : index
    %472 = vector.load %arg10[%c0_250, %c0_251, %c0_252] : memref<2x8x128xf32, #tpu.memory_space<vmem>>, vector<1x8x128xf32>
    %473 = vector.shape_cast %472 : vector<1x8x128xf32> to vector<8x128xf32>
    %474 = vector.shape_cast %466 : vector<8x128xf32> to vector<1x8x128xf32>
    tpu.vector_store %arg10[%c0_250, %c0_251, %c0_252], %474 {strides = array<i32>} : memref<2x8x128xf32, #tpu.memory_space<vmem>>, vector<1x8x128xf32>,
    %475 = arith.truncf %468 : vector<8x128xf32> to vector<8x128xbf16>
    %c1_253 = arith.constant 1 : index
    %c0_254 = arith.constant 0 : index
    %c0_255 = arith.constant 0 : index
    %476 = vector.load %arg9[%c1_253, %c0_254, %c0_255] : memref<2x8x128xf32, #tpu.memory_space<vmem>>, vector<1x8x128xf32>
    %477 = vector.shape_cast %476 : vector<1x8x128xf32> to vector<8x128xf32>
    %478 = arith.truncf %477 : vector<8x128xf32> to vector<8x128xbf16>
    %479 = tpu.concatenate %475, %478 in 1 : vector<8x128xbf16>, vector<8x128xbf16> -> vector<8x256xbf16>
    %c0_256 = arith.constant 0 : index
    %c0_257 = arith.constant 0 : index
    %c0_258 = arith.constant 0 : index
    %480 = vector.load %arg6[%c0_256, %c0_257, %c0_258] : memref<1x256x512xbf16, #tpu.memory_space<vmem>>, vector<1x256x512xbf16>
    %481 = vector.shape_cast %480 : vector<1x256x512xbf16> to vector<256x512xbf16>
    %cst_259 = arith.constant dense<0.000000e+00> : vector<8x512xf32>
    %482 = tpu.matmul %479, %481, %cst_259 {dimension_numbers = #tpu.dot_dimension_numbers<[1], [0], [0], [1], [0, 0, 1, 1], [], []>} : vector<8x256xbf16>, vector<256x512xbf16>, vector<8x512xf32> -> vector<8x512xf32>
    %483 = arith.addf %482, %15 : vector<8x512xf32>
    %c1_260 = arith.constant 1 : index
    %c0_261 = arith.constant 0 : index
    %c0_262 = arith.constant 0 : index
    %484 = vector.load %arg10[%c1_260, %c0_261, %c0_262] : memref<2x8x128xf32, #tpu.memory_space<vmem>>, vector<1x8x128xf32>
    %485 = vector.shape_cast %484 : vector<1x8x128xf32> to vector<8x128xf32>
    %486 = vector.extract_strided_slice %483 {offsets = [0, 0], sizes = [8, 384], strides = [1, 1]} : vector<8x512xf32> to vector<8x384xf32>
    %487 = arith.negf %486 : vector<8x384xf32>
    %488 = math.exp %487 : vector<8x384xf32>
    %cst_263 = arith.constant 1.000000e+00 : f32
    %489 = vector.broadcast %cst_263 : f32 to vector<8x384xf32>
    %490 = arith.addf %489, %488 : vector<8x384xf32>
    %491 = arith.divf %489, %490 : vector<8x384xf32>
    %492 = vector.extract_strided_slice %483 {offsets = [0, 384], sizes = [8, 128], strides = [1, 1]} : vector<8x512xf32> to vector<8x128xf32>
    %493 = math.tanh %492 : vector<8x128xf32>
    %494 = vector.extract_strided_slice %491 {offsets = [0, 0], sizes = [8, 128], strides = [1, 1]} : vector<8x384xf32> to vector<8x128xf32>
    %495 = vector.extract_strided_slice %491 {offsets = [0, 128], sizes = [8, 128], strides = [1, 1]} : vector<8x384xf32> to vector<8x128xf32>
    %496 = vector.extract_strided_slice %491 {offsets = [0, 256], sizes = [8, 128], strides = [1, 1]} : vector<8x384xf32> to vector<8x128xf32>
    %497 = arith.mulf %495, %485 : vector<8x128xf32>
    %498 = arith.mulf %494, %493 : vector<8x128xf32>
    %499 = arith.addf %497, %498 : vector<8x128xf32>
    %500 = math.tanh %499 : vector<8x128xf32>
    %501 = arith.mulf %496, %500 : vector<8x128xf32>
    %c1_264 = arith.constant 1 : index
    %c0_265 = arith.constant 0 : index
    %c0_266 = arith.constant 0 : index
    %502 = vector.load %arg9[%c1_264, %c0_265, %c0_266] : memref<2x8x128xf32, #tpu.memory_space<vmem>>, vector<1x8x128xf32>
    %503 = vector.shape_cast %502 : vector<1x8x128xf32> to vector<8x128xf32>
    %504 = vector.shape_cast %501 : vector<8x128xf32> to vector<1x8x128xf32>
    tpu.vector_store %arg9[%c1_264, %c0_265, %c0_266], %504 {strides = array<i32>} : memref<2x8x128xf32, #tpu.memory_space<vmem>>, vector<1x8x128xf32>,
    %c1_267 = arith.constant 1 : index
    %c0_268 = arith.constant 0 : index
    %c0_269 = arith.constant 0 : index
    %505 = vector.load %arg10[%c1_267, %c0_268, %c0_269] : memref<2x8x128xf32, #tpu.memory_space<vmem>>, vector<1x8x128xf32>
    %506 = vector.shape_cast %505 : vector<1x8x128xf32> to vector<8x128xf32>
    %507 = vector.shape_cast %499 : vector<8x128xf32> to vector<1x8x128xf32>
    tpu.vector_store %arg10[%c1_267, %c0_268, %c0_269], %507 {strides = array<i32>} : memref<2x8x128xf32, #tpu.memory_space<vmem>>, vector<1x8x128xf32>,
    %508 = arith.truncf %501 : vector<8x128xf32> to vector<8x128xbf16>
    %509 = arith.index_cast %c6_i32 : i32 to index
    %c0_270 = arith.constant 0 : index
    %c0_271 = arith.constant 0 : index
    %510 = vector.load %arg8[%509, %c0_270, %c0_271] : memref<8x8x128xbf16, #tpu.memory_space<vmem>>, vector<1x8x128xbf16>
    %511 = vector.shape_cast %510 : vector<1x8x128xbf16> to vector<8x128xbf16>
    %512 = vector.shape_cast %508 : vector<8x128xbf16> to vector<1x8x128xbf16>
    tpu.vector_store %arg8[%509, %c0_270, %c0_271], %512 {strides = array<i32>} : memref<8x8x128xbf16, #tpu.memory_space<vmem>>, vector<1x8x128xbf16>,
    %c7_i32 = arith.constant 7 : i32
    %513 = arith.index_cast %c7_i32 : i32 to index
    %c0_272 = arith.constant 0 : index
    %c0_273 = arith.constant 0 : index
    %514 = vector.load %arg11[%513, %c0_272, %c0_273] : memref<8x8x512xf32, #tpu.memory_space<vmem>>, vector<1x8x512xf32>
    %515 = vector.shape_cast %514 : vector<1x8x512xf32> to vector<8x512xf32>
    %c0_274 = arith.constant 0 : index
    %c0_275 = arith.constant 0 : index
    %c0_276 = arith.constant 0 : index
    %516 = vector.load %arg9[%c0_274, %c0_275, %c0_276] : memref<2x8x128xf32, #tpu.memory_space<vmem>>, vector<1x8x128xf32>
    %517 = vector.shape_cast %516 : vector<1x8x128xf32> to vector<8x128xf32>
    %518 = arith.truncf %517 : vector<8x128xf32> to vector<8x128xbf16>
    %c0_277 = arith.constant 0 : index
    %c0_278 = arith.constant 0 : index
    %519 = vector.load %arg4[%c0_277, %c0_278] : memref<128x512xbf16, #tpu.memory_space<vmem>>, vector<128x512xbf16>
    %cst_279 = arith.constant dense<0.000000e+00> : vector<8x512xf32>
    %520 = tpu.matmul %518, %519, %cst_279 {dimension_numbers = #tpu.dot_dimension_numbers<[1], [0], [0], [1], [0, 0, 1, 1], [], []>} : vector<8x128xbf16>, vector<128x512xbf16>, vector<8x512xf32> -> vector<8x512xf32>
    %521 = arith.addf %515, %520 : vector<8x512xf32>
    %c0_280 = arith.constant 0 : index
    %c0_281 = arith.constant 0 : index
    %c0_282 = arith.constant 0 : index
    %522 = vector.load %arg10[%c0_280, %c0_281, %c0_282] : memref<2x8x128xf32, #tpu.memory_space<vmem>>, vector<1x8x128xf32>
    %523 = vector.shape_cast %522 : vector<1x8x128xf32> to vector<8x128xf32>
    %524 = vector.extract_strided_slice %521 {offsets = [0, 0], sizes = [8, 384], strides = [1, 1]} : vector<8x512xf32> to vector<8x384xf32>
    %525 = arith.negf %524 : vector<8x384xf32>
    %526 = math.exp %525 : vector<8x384xf32>
    %cst_283 = arith.constant 1.000000e+00 : f32
    %527 = vector.broadcast %cst_283 : f32 to vector<8x384xf32>
    %528 = arith.addf %527, %526 : vector<8x384xf32>
    %529 = arith.divf %527, %528 : vector<8x384xf32>
    %530 = vector.extract_strided_slice %521 {offsets = [0, 384], sizes = [8, 128], strides = [1, 1]} : vector<8x512xf32> to vector<8x128xf32>
    %531 = math.tanh %530 : vector<8x128xf32>
    %532 = vector.extract_strided_slice %529 {offsets = [0, 0], sizes = [8, 128], strides = [1, 1]} : vector<8x384xf32> to vector<8x128xf32>
    %533 = vector.extract_strided_slice %529 {offsets = [0, 128], sizes = [8, 128], strides = [1, 1]} : vector<8x384xf32> to vector<8x128xf32>
    %534 = vector.extract_strided_slice %529 {offsets = [0, 256], sizes = [8, 128], strides = [1, 1]} : vector<8x384xf32> to vector<8x128xf32>
    %535 = arith.mulf %533, %523 : vector<8x128xf32>
    %536 = arith.mulf %532, %531 : vector<8x128xf32>
    %537 = arith.addf %535, %536 : vector<8x128xf32>
    %538 = math.tanh %537 : vector<8x128xf32>
    %539 = arith.mulf %534, %538 : vector<8x128xf32>
    %c0_284 = arith.constant 0 : index
    %c0_285 = arith.constant 0 : index
    %c0_286 = arith.constant 0 : index
    %540 = vector.load %arg9[%c0_284, %c0_285, %c0_286] : memref<2x8x128xf32, #tpu.memory_space<vmem>>, vector<1x8x128xf32>
    %541 = vector.shape_cast %540 : vector<1x8x128xf32> to vector<8x128xf32>
    %542 = vector.shape_cast %539 : vector<8x128xf32> to vector<1x8x128xf32>
    tpu.vector_store %arg9[%c0_284, %c0_285, %c0_286], %542 {strides = array<i32>} : memref<2x8x128xf32, #tpu.memory_space<vmem>>, vector<1x8x128xf32>,
    %c0_287 = arith.constant 0 : index
    %c0_288 = arith.constant 0 : index
    %c0_289 = arith.constant 0 : index
    %543 = vector.load %arg10[%c0_287, %c0_288, %c0_289] : memref<2x8x128xf32, #tpu.memory_space<vmem>>, vector<1x8x128xf32>
    %544 = vector.shape_cast %543 : vector<1x8x128xf32> to vector<8x128xf32>
    %545 = vector.shape_cast %537 : vector<8x128xf32> to vector<1x8x128xf32>
    tpu.vector_store %arg10[%c0_287, %c0_288, %c0_289], %545 {strides = array<i32>} : memref<2x8x128xf32, #tpu.memory_space<vmem>>, vector<1x8x128xf32>,
    %546 = arith.truncf %539 : vector<8x128xf32> to vector<8x128xbf16>
    %c1_290 = arith.constant 1 : index
    %c0_291 = arith.constant 0 : index
    %c0_292 = arith.constant 0 : index
    %547 = vector.load %arg9[%c1_290, %c0_291, %c0_292] : memref<2x8x128xf32, #tpu.memory_space<vmem>>, vector<1x8x128xf32>
    %548 = vector.shape_cast %547 : vector<1x8x128xf32> to vector<8x128xf32>
    %549 = arith.truncf %548 : vector<8x128xf32> to vector<8x128xbf16>
    %550 = tpu.concatenate %546, %549 in 1 : vector<8x128xbf16>, vector<8x128xbf16> -> vector<8x256xbf16>
    %c0_293 = arith.constant 0 : index
    %c0_294 = arith.constant 0 : index
    %c0_295 = arith.constant 0 : index
    %551 = vector.load %arg6[%c0_293, %c0_294, %c0_295] : memref<1x256x512xbf16, #tpu.memory_space<vmem>>, vector<1x256x512xbf16>
    %552 = vector.shape_cast %551 : vector<1x256x512xbf16> to vector<256x512xbf16>
    %cst_296 = arith.constant dense<0.000000e+00> : vector<8x512xf32>
    %553 = tpu.matmul %550, %552, %cst_296 {dimension_numbers = #tpu.dot_dimension_numbers<[1], [0], [0], [1], [0, 0, 1, 1], [], []>} : vector<8x256xbf16>, vector<256x512xbf16>, vector<8x512xf32> -> vector<8x512xf32>
    %554 = arith.addf %553, %15 : vector<8x512xf32>
    %c1_297 = arith.constant 1 : index
    %c0_298 = arith.constant 0 : index
    %c0_299 = arith.constant 0 : index
    %555 = vector.load %arg10[%c1_297, %c0_298, %c0_299] : memref<2x8x128xf32, #tpu.memory_space<vmem>>, vector<1x8x128xf32>
    %556 = vector.shape_cast %555 : vector<1x8x128xf32> to vector<8x128xf32>
    %557 = vector.extract_strided_slice %554 {offsets = [0, 0], sizes = [8, 384], strides = [1, 1]} : vector<8x512xf32> to vector<8x384xf32>
    %558 = arith.negf %557 : vector<8x384xf32>
    %559 = math.exp %558 : vector<8x384xf32>
    %cst_300 = arith.constant 1.000000e+00 : f32
    %560 = vector.broadcast %cst_300 : f32 to vector<8x384xf32>
    %561 = arith.addf %560, %559 : vector<8x384xf32>
    %562 = arith.divf %560, %561 : vector<8x384xf32>
    %563 = vector.extract_strided_slice %554 {offsets = [0, 384], sizes = [8, 128], strides = [1, 1]} : vector<8x512xf32> to vector<8x128xf32>
    %564 = math.tanh %563 : vector<8x128xf32>
    %565 = vector.extract_strided_slice %562 {offsets = [0, 0], sizes = [8, 128], strides = [1, 1]} : vector<8x384xf32> to vector<8x128xf32>
    %566 = vector.extract_strided_slice %562 {offsets = [0, 128], sizes = [8, 128], strides = [1, 1]} : vector<8x384xf32> to vector<8x128xf32>
    %567 = vector.extract_strided_slice %562 {offsets = [0, 256], sizes = [8, 128], strides = [1, 1]} : vector<8x384xf32> to vector<8x128xf32>
    %568 = arith.mulf %566, %556 : vector<8x128xf32>
    %569 = arith.mulf %565, %564 : vector<8x128xf32>
    %570 = arith.addf %568, %569 : vector<8x128xf32>
    %571 = math.tanh %570 : vector<8x128xf32>
    %572 = arith.mulf %567, %571 : vector<8x128xf32>
    %c1_301 = arith.constant 1 : index
    %c0_302 = arith.constant 0 : index
    %c0_303 = arith.constant 0 : index
    %573 = vector.load %arg9[%c1_301, %c0_302, %c0_303] : memref<2x8x128xf32, #tpu.memory_space<vmem>>, vector<1x8x128xf32>
    %574 = vector.shape_cast %573 : vector<1x8x128xf32> to vector<8x128xf32>
    %575 = vector.shape_cast %572 : vector<8x128xf32> to vector<1x8x128xf32>
    tpu.vector_store %arg9[%c1_301, %c0_302, %c0_303], %575 {strides = array<i32>} : memref<2x8x128xf32, #tpu.memory_space<vmem>>, vector<1x8x128xf32>,
    %c1_304 = arith.constant 1 : index
    %c0_305 = arith.constant 0 : index
    %c0_306 = arith.constant 0 : index
    %576 = vector.load %arg10[%c1_304, %c0_305, %c0_306] : memref<2x8x128xf32, #tpu.memory_space<vmem>>, vector<1x8x128xf32>
    %577 = vector.shape_cast %576 : vector<1x8x128xf32> to vector<8x128xf32>
    %578 = vector.shape_cast %570 : vector<8x128xf32> to vector<1x8x128xf32>
    tpu.vector_store %arg10[%c1_304, %c0_305, %c0_306], %578 {strides = array<i32>} : memref<2x8x128xf32, #tpu.memory_space<vmem>>, vector<1x8x128xf32>,
    %579 = arith.truncf %572 : vector<8x128xf32> to vector<8x128xbf16>
    %580 = arith.index_cast %c7_i32 : i32 to index
    %c0_307 = arith.constant 0 : index
    %c0_308 = arith.constant 0 : index
    %581 = vector.load %arg8[%580, %c0_307, %c0_308] : memref<8x8x128xbf16, #tpu.memory_space<vmem>>, vector<1x8x128xbf16>
    %582 = vector.shape_cast %581 : vector<1x8x128xbf16> to vector<8x128xbf16>
    %583 = vector.shape_cast %579 : vector<8x128xbf16> to vector<1x8x128xbf16>
    tpu.vector_store %arg8[%580, %c0_307, %c0_308], %583 {strides = array<i32>} : memref<8x8x128xbf16, #tpu.memory_space<vmem>>, vector<1x8x128xbf16>,
    %c8_i32 = arith.constant 8 : i32
    return
  }
  func.func @transform_0(%arg0: i32, %arg1: i32) -> (i32, i32, i32) {
    %c0_i32 = arith.constant 0 : i32
    %c0_i32_0 = arith.constant 0 : i32
    return %arg1, %arg0, %c0_i32 : i32, i32, i32
  }
  func.func @transform_1(%arg0: i32, %arg1: i32) -> (i32, i32) {
    %c0_i32 = arith.constant 0 : i32
    %c0_i32_0 = arith.constant 0 : i32
    %c0_i32_1 = arith.constant 0 : i32
    return %c0_i32, %c0_i32_0 : i32, i32
  }
  func.func @transform_2(%arg0: i32, %arg1: i32) -> (i32, i32) {
    %c0_i32 = arith.constant 0 : i32
    %c0_i32_0 = arith.constant 0 : i32
    %c0_i32_1 = arith.constant 0 : i32
    return %c0_i32, %c0_i32_0 : i32, i32
  }
  func.func @transform_3(%arg0: i32, %arg1: i32) -> (i32, i32) {
    %c0_i32 = arith.constant 0 : i32
    %c0_i32_0 = arith.constant 0 : i32
    %c0_i32_1 = arith.constant 0 : i32
    return %c0_i32, %c0_i32_0 : i32, i32
  }
  func.func @transform_4(%arg0: i32, %arg1: i32) -> (i32, i32, i32) {
    %c0_i32 = arith.constant 0 : i32
    %c0_i32_0 = arith.constant 0 : i32
    %c0_i32_1 = arith.constant 0 : i32
    %c0_i32_2 = arith.constant 0 : i32
    return %c0_i32, %c0_i32_0, %c0_i32_1 : i32, i32, i32
  }
  func.func @transform_5(%arg0: i32, %arg1: i32) -> (i32, i32, i32) {
    %c0_i32 = arith.constant 0 : i32
    %c0_i32_0 = arith.constant 0 : i32
    %c0_i32_1 = arith.constant 0 : i32
    %c0_i32_2 = arith.constant 0 : i32
    return %c0_i32, %c0_i32_0, %c0_i32_1 : i32, i32, i32
  }
  func.func @transform_6(%arg0: i32, %arg1: i32) -> (i32, i32, i32) {
    %c0_i32 = arith.constant 0 : i32
    %c0_i32_0 = arith.constant 0 : i32
    return %arg1, %arg0, %c0_i32 : i32, i32, i32
  }
}

</mosaic_0001>

<llo_original>
// kernel: tpu_custom_call.1
$region0: #{tpu_custom_call.1}
  #allocation0 [shape = 'u32[]', space=smem, size = 0x4, offset = 0x4, fixed_abs, tag = 'smem constant byte address 0x4 - core index']
  #allocation1 [shape = 'u32[144,128]{1,0:T(1,128)}', space=vmem, size = 0x12000, scoped, tag = 'internal scratch']
  #allocation2 [shape = 'f32[2,8,128]{2,1,0:T(8,128)}', space=vmem, size = 0x2000, scoped, tag = 'scratch operand']
  #allocation3 [shape = 'f32[2,8,128]{2,1,0:T(8,128)}', space=vmem, size = 0x2000, scoped, tag = 'scratch operand']
  #allocation4 [shape = 'f32[8,8,512]{2,1,0:T(8,128)}', space=vmem, size = 0x20000, scoped, tag = 'scratch operand']
  %s0 = inlined_call_operand.hbm [shape: bf16[8,8,128], index: 0, kind: input, shape index: {}]
  %s1 = inlined_call_operand.hbm [shape: bf16[128,512], index: 1, kind: input, shape index: {}]
  %s2 = inlined_call_operand.hbm [shape: bf16[128,512], index: 2, kind: input, shape index: {}]
  %s3 = inlined_call_operand.vmem [shape: f32[1,512], index: 3, kind: input, shape index: {}]
  %s4 = inlined_call_operand.hbm [shape: bf16[1,256,512], index: 4, kind: input, shape index: {}]
  %s5 = inlined_call_operand.vmem [shape: f32[1,1,512], index: 5, kind: input, shape index: {}]
  %s6 = inlined_call_operand.hbm [shape: bf16[8,8,128], index: 6, kind: output, shape index: {}]
  %s7 = sld [smem:[#allocation0]]
  $region54: #{tpu_custom_call.1} parent=0
    _
  %s9 = ssub.s32 1, %s7
  %s10 = scalar_select 0, %s9, %s7
  $region1: #{tpu_custom_call.1} parent=0
    #allocation5 [shape = 'u8[16384]{0}', space=vmem, size = 0x4000, scoped, tag = 'input window, operand 0, single buffered']
    #allocation6 [shape = 's32[1]{0}', space=sflag, size = 0x4, scoped, tag = 'scoped memory for tpu_custom_call.1']
    #allocation7 [shape = 's32[1]{0}', space=sflag, size = 0x4, scoped, tag = 'scoped memory for tpu_custom_call.1']
    #allocation8 [shape = 'u8[131072]{0}', space=vmem, size = 0x20000, scoped, tag = 'input window, operand 1, single buffered']
    #allocation9 [shape = 's32[1]{0}', space=sflag, size = 0x4, scoped, tag = 'scoped memory for tpu_custom_call.1']
    #allocation10 [shape = 'u8[131072]{0}', space=vmem, size = 0x20000, scoped, tag = 'input window, operand 2, single buffered']
    #allocation11 [shape = 'u8[262144]{0}', space=vmem, size = 0x40000, scoped, tag = 'input window, operand 4, single buffered']
    #allocation12 [shape = 's32[1]{0}', space=sflag, size = 0x4, scoped, tag = 'scoped memory for tpu_custom_call.1']
    #allocation13 [shape = 'u8[16384]{0}', space=vmem, size = 0x4000, scoped, tag = 'output window, operand 0, single buffered']
    %11 = vsyncpa [#allocation6], 0
    %12 = vsyncpa [#allocation9], 0
    %13 = vsyncpa [#allocation12], 0
    %14 = vsyncpa [#allocation7], 0
    // Predicated region
    $region2: #{tpu_custom_call.1} parent=1 // pred_check
      _
    $region3: #{tpu_custom_call.1} parent=1 // pred_check_branch
      %16 = sbr.rel (0) target = $region5
    $region4: #{tpu_custom_call.1} parent=1 // pred_region
      %s18 = ssub.s32 512, 512
      %19 = vsyncadd [#allocation6], %s18
      %s20 = sshll.u32 [#allocation5], 4
      %s21 = int_to_ptr.vmem [resolvable:$true] %s20
      %26 = dma.hbm_to_vmem [thread:$0]  %s0, 512, %s21, [#allocation6], 64, 64, 4
    $region5: #{tpu_custom_call.1} parent=1 // pred_fallthru
      _
    // Predicated region
    $region6: #{tpu_custom_call.1} parent=1 // pred_check
      _
    $region7: #{tpu_custom_call.1} parent=1 // pred_check_branch
      %28 = sbr.rel (0) target = $region9
    $region8: #{tpu_custom_call.1} parent=1 // pred_region
      %s30 = ssub.s32 4096, 4096
      %31 = vsyncadd [#allocation9], %s30
      %s32 = sshll.u32 [#allocation8], 4
      %s33 = int_to_ptr.vmem [resolvable:$true] %s32
      %38 = dma.hbm_to_vmem [thread:$0]  %s1, 4096, %s33, [#allocation9], 256, 256, 16
    $region9: #{tpu_custom_call.1} parent=1 // pred_fallthru
      _
    // Predicated region
    $region10: #{tpu_custom_call.1} parent=1 // pred_check
      _
    $region11: #{tpu_custom_call.1} parent=1 // pred_check_branch
      %40 = sbr.rel (0) target = $region13
    $region12: #{tpu_custom_call.1} parent=1 // pred_region
      %s42 = ssub.s32 4096, 4096
      %43 = vsyncadd [#allocation9], %s42
      %s44 = sshll.u32 [#allocation10], 4
      %s45 = int_to_ptr.vmem [resolvable:$true] %s44
      %50 = dma.hbm_to_vmem [thread:$0]  %s2, 4096, %s45, [#allocation9], 256, 256, 16
    $region13: #{tpu_custom_call.1} parent=1 // pred_fallthru
      _
    // Predicated region
    $region14: #{tpu_custom_call.1} parent=1 // pred_check
      _
    $region15: #{tpu_custom_call.1} parent=1 // pred_check_branch
      %52 = sbr.rel (0) target = $region17
    $region16: #{tpu_custom_call.1} parent=1 // pred_region
      _
    $region17: #{tpu_custom_call.1} parent=1 // pred_fallthru
      _
    // Predicated region
    $region18: #{tpu_custom_call.1} parent=1 // pred_check
      _
    $region19: #{tpu_custom_call.1} parent=1 // pred_check_branch
      %54 = sbr.rel (0) target = $region21
    $region20: #{tpu_custom_call.1} parent=1 // pred_region
      %s56 = ssub.s32 8192, 8192
      %57 = vsyncadd [#allocation12], %s56
      %s58 = sshll.u32 [#allocation11], 4
      %s59 = int_to_ptr.vmem [resolvable:$true] %s58
      %64 = dma.hbm_to_vmem [thread:$0]  %s4, 8192, %s59, [#allocation12], 256, 256, 16
    $region21: #{tpu_custom_call.1} parent=1 // pred_fallthru
      _
    // Predicated region
    $region22: #{tpu_custom_call.1} parent=1 // pred_check
      _
    $region23: #{tpu_custom_call.1} parent=1 // pred_check_branch
      %66 = sbr.rel (0) target = $region25
    $region24: #{tpu_custom_call.1} parent=1 // pred_region
      _
    $region25: #{tpu_custom_call.1} parent=1 // pred_fallthru
      _
    // Predicated region
    $region26: #{tpu_custom_call.1} parent=1 // pred_check
      _
    $region27: #{tpu_custom_call.1} parent=1 // pred_check_branch
      %68 = sbr.rel (0) target = $region29
    $region28: #{tpu_custom_call.1} parent=1 // pred_region
      %69 = dma.done [#allocation6], 512
    $region29: #{tpu_custom_call.1} parent=1 // pred_fallthru
      _
    // Predicated region
    $region30: #{tpu_custom_call.1} parent=1 // pred_check
      _
    $region31: #{tpu_custom_call.1} parent=1 // pred_check_branch
      %71 = sbr.rel (0) target = $region33
    $region32: #{tpu_custom_call.1} parent=1 // pred_region
      %72 = dma.done [#allocation9], 4096
    $region33: #{tpu_custom_call.1} parent=1 // pred_fallthru
      _
    // Predicated region
    $region34: #{tpu_custom_call.1} parent=1 // pred_check
      _
    $region35: #{tpu_custom_call.1} parent=1 // pred_check_branch
      %74 = sbr.rel (0) target = $region37
    $region36: #{tpu_custom_call.1} parent=1 // pred_region
      %75 = dma.done [#allocation9], 4096
    $region37: #{tpu_custom_call.1} parent=1 // pred_fallthru
      _
    // Predicated region
    $region38: #{tpu_custom_call.1} parent=1 // pred_check
      _
    $region39: #{tpu_custom_call.1} parent=1 // pred_check_branch
      %77 = sbr.rel (0) target = $region41
    $region40: #{tpu_custom_call.1} parent=1 // pred_region
      %78 = dma.done [#allocation12], 8192
    $region41: #{tpu_custom_call.1} parent=1 // pred_fallthru
      _
    %p80 = scmp.eq.s32.totalorder 0, 0
    // Predicated region
    $region42: #{tpu_custom_call.1} parent=1 // pred_check
      %p81 = pneg %p80
    $region43: #{tpu_custom_call.1} parent=1 // pred_check_branch
      %83 = sbr.rel (%p81) target = $region45
    $region44: #{tpu_custom_call.1} parent=1 // pred_region
      %84 = vst [vmem:[#allocation2] sm:$0xff] 0.0
      %85 = vst [vmem:[#allocation2 + $0x8] sm:$0xff] 0.0
      %86 = vst [vmem:[#allocation3] sm:$0xff] 0.0
      %87 = vst [vmem:[#allocation3 + $0x8] sm:$0xff] 0.0
    $region45: #{tpu_custom_call.1} parent=1 // pred_fallthru
      _
    %v88 = vld [vmem:[#allocation5] sm:$0xf]
    %v89 = vld [vmem:[#allocation5 + $0x4] sm:$0xf]
    %v90 = vld [vmem:[#allocation5 + $0x8] sm:$0xf]
    %v91 = vld [vmem:[#allocation5 + $0xc] sm:$0xf]
    %v92 = vld [vmem:[#allocation5 + $0x10] sm:$0xf]
    %v93 = vld [vmem:[#allocation5 + $0x14] sm:$0xf]
    %v94 = vld [vmem:[#allocation5 + $0x18] sm:$0xf]
    %v95 = vld [vmem:[#allocation5 + $0x1c] sm:$0xf]
    %v96 = vld [vmem:[#allocation8] sm:$0xff]
    %v97 = vld [vmem:[#allocation8 + $0x8] sm:$0xff]
    %v98 = vld [vmem:[#allocation8 + $0x10] sm:$0xff]
    %v99 = vld [vmem:[#allocation8 + $0x18] sm:$0xff]
    %v100 = vld [vmem:[#allocation8 + $0x20] sm:$0xff]
    %v101 = vld [vmem:[#allocation8 + $0x28] sm:$0xff]
    %v102 = vld [vmem:[#allocation8 + $0x30] sm:$0xff]
    %v103 = vld [vmem:[#allocation8 + $0x38] sm:$0xff]
    %v104 = vld [vmem:[#allocation8 + $0x40] sm:$0xff]
    %v105 = vld [vmem:[#allocation8 + $0x48] sm:$0xff]
    %v106 = vld [vmem:[#allocation8 + $0x50] sm:$0xff]
    %v107 = vld [vmem:[#allocation8 + $0x58] sm:$0xff]
    %v108 = vld [vmem:[#allocation8 + $0x60] sm:$0xff]
    %v109 = vld [vmem:[#allocation8 + $0x68] sm:$0xff]
    %v110 = vld [vmem:[#allocation8 + $0x70] sm:$0xff]
    %v111 = vld [vmem:[#allocation8 + $0x78] sm:$0xff]
    %v112 = vld [vmem:[#allocation8 + $0x80] sm:$0xff]
    %v113 = vld [vmem:[#allocation8 + $0x88] sm:$0xff]
    %v114 = vld [vmem:[#allocation8 + $0x90] sm:$0xff]
    %v115 = vld [vmem:[#allocation8 + $0x98] sm:$0xff]
    %v116 = vld [vmem:[#allocation8 + $0xa0] sm:$0xff]
    %v117 = vld [vmem:[#allocation8 + $0xa8] sm:$0xff]
    %v118 = vld [vmem:[#allocation8 + $0xb0] sm:$0xff]
    %v119 = vld [vmem:[#allocation8 + $0xb8] sm:$0xff]
    %v120 = vld [vmem:[#allocation8 + $0xc0] sm:$0xff]
    %v121 = vld [vmem:[#allocation8 + $0xc8] sm:$0xff]
    %v122 = vld [vmem:[#allocation8 + $0xd0] sm:$0xff]
    %v123 = vld [vmem:[#allocation8 + $0xd8] sm:$0xff]
    %v124 = vld [vmem:[#allocation8 + $0xe0] sm:$0xff]
    %v125 = vld [vmem:[#allocation8 + $0xe8] sm:$0xff]
    %v126 = vld [vmem:[#allocation8 + $0xf0] sm:$0xff]
    %v127 = vld [vmem:[#allocation8 + $0xf8] sm:$0xff]
    %v128 = vld [vmem:[%s3] sm:$0xf]
    %v130 = vlaneseq
    %v131 = vshrl.u32 %v130, 7
    %v132 = vsub.s32 0, %v131
    %v133 = vrot.slane %v128, %v132
    %v134 = vlaneseq
    %v135 = vshrl.u32 %v134, 7
    %v136 = vsub.s32 1, %v135
    %v137 = vrot.slane %v128, %v136
    %v138 = vlaneseq
    %v139 = vshrl.u32 %v138, 7
    %v140 = vsub.s32 2, %v139
    %v141 = vrot.slane %v128, %v140
    %v142 = vlaneseq
    %v143 = vshrl.u32 %v142, 7
    %v144 = vsub.s32 3, %v143
    %v145 = vrot.slane %v128, %v144
    %v158 = vunpack.c.l.b16 %v88
    %v159 = vunpack.c.l.b16 %v89
    %v160 = vunpack.c.l.b16 %v90
    %v161 = vunpack.c.l.b16 %v91
    %v162 = vunpack.c.l.b16 %v92
    %v163 = vunpack.c.l.b16 %v93
    %v164 = vunpack.c.l.b16 %v94
    %v165 = vunpack.c.l.b16 %v95
    %v166 = vpack.c.b16 %v159, %v158
    %v167 = vpack.c.b16 %v161, %v160
    %v168 = vpack.c.b16 %v163, %v162
    %v169 = vpack.c.b16 %v165, %v164
    %v206 = vunpack.c.l.b16 %v96
    %v207 = vunpack.c.h.b16 %v96
    %v208 = vunpack.c.l.b16 %v97
    %v209 = vunpack.c.h.b16 %v97
    %v210 = vunpack.c.l.b16 %v98
    %v211 = vunpack.c.h.b16 %v98
    %v212 = vunpack.c.l.b16 %v99
    %v213 = vunpack.c.h.b16 %v99
    %v214 = vunpack.c.l.b16 %v100
    %v215 = vunpack.c.h.b16 %v100
    %v216 = vunpack.c.l.b16 %v101
    %v217 = vunpack.c.h.b16 %v101
    %v218 = vunpack.c.l.b16 %v102
    %v219 = vunpack.c.h.b16 %v102
    %v220 = vunpack.c.l.b16 %v103
    %v221 = vunpack.c.h.b16 %v103
    %v222 = vunpack.c.l.b16 %v104
    %v223 = vunpack.c.h.b16 %v104
    %v224 = vunpack.c.l.b16 %v105
    %v225 = vunpack.c.h.b16 %v105
    %v226 = vunpack.c.l.b16 %v106
    %v227 = vunpack.c.h.b16 %v106
    %v228 = vunpack.c.l.b16 %v107
    %v229 = vunpack.c.h.b16 %v107
    %v230 = vunpack.c.l.b16 %v108
    %v231 = vunpack.c.h.b16 %v108
    %v232 = vunpack.c.l.b16 %v109
    %v233 = vunpack.c.h.b16 %v109
    %v234 = vunpack.c.l.b16 %v110
    %v235 = vunpack.c.h.b16 %v110
    %v236 = vunpack.c.l.b16 %v111
    %v237 = vunpack.c.h.b16 %v111
    %v238 = vunpack.c.l.b16 %v112
    %v239 = vunpack.c.h.b16 %v112
    %v240 = vunpack.c.l.b16 %v113
    %v241 = vunpack.c.h.b16 %v113
    %v242 = vunpack.c.l.b16 %v114
    %v243 = vunpack.c.h.b16 %v114
    %v244 = vunpack.c.l.b16 %v115
    %v245 = vunpack.c.h.b16 %v115
    %v246 = vunpack.c.l.b16 %v116
    %v247 = vunpack.c.h.b16 %v116
    %v248 = vunpack.c.l.b16 %v117
    %v249 = vunpack.c.h.b16 %v117
    %v250 = vunpack.c.l.b16 %v118
    %v251 = vunpack.c.h.b16 %v118
    %v252 = vunpack.c.l.b16 %v119
    %v253 = vunpack.c.h.b16 %v119
    %v254 = vunpack.c.l.b16 %v120
    %v255 = vunpack.c.h.b16 %v120
    %v256 = vunpack.c.l.b16 %v121
    %v257 = vunpack.c.h.b16 %v121
    %v258 = vunpack.c.l.b16 %v122
    %v259 = vunpack.c.h.b16 %v122
    %v260 = vunpack.c.l.b16 %v123
    %v261 = vunpack.c.h.b16 %v123
    %v262 = vunpack.c.l.b16 %v124
    %v263 = vunpack.c.h.b16 %v124
    %v264 = vunpack.c.l.b16 %v125
    %v265 = vunpack.c.h.b16 %v125
    %v266 = vunpack.c.l.b16 %v126
    %v267 = vunpack.c.h.b16 %v126
    %v268 = vunpack.c.l.b16 %v127
    %v269 = vunpack.c.h.b16 %v127
    %v270 = vpack.c.b16 %v210, %v206
    %v271 = vpack.c.b16 %v211, %v207
    %v272 = vpack.c.b16 %v212, %v208
    %v273 = vpack.c.b16 %v213, %v209
    %v274 = vpack.c.b16 %v218, %v214
    %v275 = vpack.c.b16 %v219, %v215
    %v276 = vpack.c.b16 %v220, %v216
    %v277 = vpack.c.b16 %v221, %v217
    %v278 = vpack.c.b16 %v226, %v222
    %v279 = vpack.c.b16 %v227, %v223
    %v280 = vpack.c.b16 %v228, %v224
    %v281 = vpack.c.b16 %v229, %v225
    %v282 = vpack.c.b16 %v234, %v230
    %v283 = vpack.c.b16 %v235, %v231
    %v284 = vpack.c.b16 %v236, %v232
    %v285 = vpack.c.b16 %v237, %v233
    %v286 = vpack.c.b16 %v242, %v238
    %v287 = vpack.c.b16 %v243, %v239
    %v288 = vpack.c.b16 %v244, %v240
    %v289 = vpack.c.b16 %v245, %v241
    %v290 = vpack.c.b16 %v250, %v246
    %v291 = vpack.c.b16 %v251, %v247
    %v292 = vpack.c.b16 %v252, %v248
    %v293 = vpack.c.b16 %v253, %v249
    %v294 = vpack.c.b16 %v258, %v254
    %v295 = vpack.c.b16 %v259, %v255
    %v296 = vpack.c.b16 %v260, %v256
    %v297 = vpack.c.b16 %v261, %v257
    %v298 = vpack.c.b16 %v266, %v262
    %v299 = vpack.c.b16 %v267, %v263
    %v300 = vpack.c.b16 %v268, %v264
    %v301 = vpack.c.b16 %v269, %v265
    %334 = vmatprep.subr.bf16.mxu0 %v271
    %335 = vmatpush1.bf16.msra.mxu0 %v270
    %336 = vmatprep.subr.bf16.mxu0 %v275
    %337 = vmatpush1.bf16.msra.mxu0 %v274
    %338 = vmatprep.subr.bf16.mxu0 %v279
    %339 = vmatpush1.bf16.msra.mxu0 %v278
    %340 = vmatprep.subr.bf16.mxu0 %v283
    %341 = vmatpush1.bf16.msra.mxu0 %v282
    %342 = vmatprep.subr.bf16.mxu0 %v287
    %343 = vmatpush1.bf16.msra.mxu0 %v286
    %344 = vmatprep.subr.bf16.mxu0 %v291
    %345 = vmatpush1.bf16.msra.mxu0 %v290
    %346 = vmatprep.subr.bf16.mxu0 %v295
    %347 = vmatpush1.bf16.msra.mxu0 %v294
    %348 = vmatprep.subr.bf16.mxu0 %v299
    %349 = vmatpush1.bf16.msra.mxu0 %v298
    %350 = vmatprep.subr.bf16.mxu0 0
    %351 = vmatpush1.bf16.msra.mxu0 0
    %352 = vmatprep.subr.bf16.mxu0 0
    %353 = vmatpush1.bf16.msra.mxu0 0
    %354 = vmatprep.subr.bf16.mxu0 0
    %355 = vmatpush1.bf16.msra.mxu0 0
    %356 = vmatprep.subr.bf16.mxu0 0
    %357 = vmatpush1.bf16.msra.mxu0 0
    %358 = vmatprep.subr.bf16.mxu0 0
    %359 = vmatpush1.bf16.msra.mxu0 0
    %360 = vmatprep.subr.bf16.mxu0 0
    %361 = vmatpush1.bf16.msra.mxu0 0
    %362 = vmatprep.subr.bf16.mxu0 0
    %363 = vmatpush1.bf16.msra.mxu0 0
    %364 = vmatprep.subr.bf16.mxu0 0
    %365 = vmatpush1.bf16.msra.mxu0 0
    %366 = vmatprep.mubr.bf16.mxu0 0
    %367 = vmatmul.mubr.bf16.gmra.mrb[0].mxu0 %v166
    %v368 = vpop.f32.mrb[0].mxu0
    %v369 = vadd.f32 %v133, %v368
    %v370 = vpop.f32.mrb[0].mxu0
    %v371 = vadd.f32 %v137, %v370
    %v372 = vpop.f32.mrb[0].mxu0
    %v373 = vadd.f32 %v133, %v372
    %v374 = vpop.f32.mrb[0].mxu0
    %v375 = vadd.f32 %v137, %v374
    %376 = vmatprep.mubr.bf16.mxu0 0
    %377 = vmatmul.mubr.bf16.gmra.mrb[0].mxu0 %v167
    %v378 = vpop.f32.mrb[0].mxu0
    %v379 = vadd.f32 %v133, %v378
    %v380 = vpop.f32.mrb[0].mxu0
    %v381 = vadd.f32 %v137, %v380
    %v382 = vpop.f32.mrb[0].mxu0
    %v383 = vadd.f32 %v133, %v382
    %v384 = vpop.f32.mrb[0].mxu0
    %v385 = vadd.f32 %v137, %v384
    %386 = vmatprep.mubr.bf16.mxu0 0
    %387 = vmatmul.mubr.bf16.gmra.mrb[0].mxu0 %v168
    %v388 = vpop.f32.mrb[0].mxu0
    %v389 = vadd.f32 %v133, %v388
    %v390 = vpop.f32.mrb[0].mxu0
    %v391 = vadd.f32 %v137, %v390
    %v392 = vpop.f32.mrb[0].mxu0
    %v393 = vadd.f32 %v133, %v392
    %v394 = vpop.f32.mrb[0].mxu0
    %v395 = vadd.f32 %v137, %v394
    %396 = vmatprep.mubr.bf16.mxu0 0
    %397 = vmatmul.mubr.bf16.gmra.mrb[0].mxu0 %v169
    %v398 = vpop.f32.mrb[0].mxu0
    %v399 = vadd.f32 %v133, %v398
    %v400 = vpop.f32.mrb[0].mxu0
    %v401 = vadd.f32 %v137, %v400
    %v402 = vpop.f32.mrb[0].mxu0
    %v403 = vadd.f32 %v133, %v402
    %v404 = vpop.f32.mrb[0].mxu0
    %v405 = vadd.f32 %v137, %v404
    %406 = vdwg.mxu0
    %407 = vmatprep.subr.bf16.mxu0 %v273
    %408 = vmatpush1.bf16.msra.mxu0 %v272
    %409 = vmatprep.subr.bf16.mxu0 %v277
    %410 = vmatpush1.bf16.msra.mxu0 %v276
    %411 = vmatprep.subr.bf16.mxu0 %v281
    %412 = vmatpush1.bf16.msra.mxu0 %v280
    %413 = vmatprep.subr.bf16.mxu0 %v285
    %414 = vmatpush1.bf16.msra.mxu0 %v284
    %415 = vmatprep.subr.bf16.mxu0 %v289
    %416 = vmatpush1.bf16.msra.mxu0 %v288
    %417 = vmatprep.subr.bf16.mxu0 %v293
    %418 = vmatpush1.bf16.msra.mxu0 %v292
    %419 = vmatprep.subr.bf16.mxu0 %v297
    %420 = vmatpush1.bf16.msra.mxu0 %v296
    %421 = vmatprep.subr.bf16.mxu0 %v301
    %422 = vmatpush1.bf16.msra.mxu0 %v300
    %423 = vmatprep.subr.bf16.mxu0 0
    %424 = vmatpush1.bf16.msra.mxu0 0
    %425 = vmatprep.subr.bf16.mxu0 0
    %426 = vmatpush1.bf16.msra.mxu0 0
    %427 = vmatprep.subr.bf16.mxu0 0
    %428 = vmatpush1.bf16.msra.mxu0 0
    %429 = vmatprep.subr.bf16.mxu0 0
    %430 = vmatpush1.bf16.msra.mxu0 0
    %431 = vmatprep.subr.bf16.mxu0 0
    %432 = vmatpush1.bf16.msra.mxu0 0
    %433 = vmatprep.subr.bf16.mxu0 0
    %434 = vmatpush1.bf16.msra.mxu0 0
    %435 = vmatprep.subr.bf16.mxu0 0
    %436 = vmatpush1.bf16.msra.mxu0 0
    %437 = vmatprep.subr.bf16.mxu0 0
    %438 = vmatpush1.bf16.msra.mxu0 0
    %439 = vmatprep.mubr.bf16.mxu0 0
    %440 = vmatmul.mubr.bf16.gmra.mrb[0].mxu0 %v166
    %v441 = vpop.f32.mrb[0].mxu0
    %v442 = vadd.f32 %v141, %v441
    %v443 = vpop.f32.mrb[0].mxu0
    %v444 = vadd.f32 %v145, %v443
    %v445 = vpop.f32.mrb[0].mxu0
    %v446 = vadd.f32 %v141, %v445
    %v447 = vpop.f32.mrb[0].mxu0
    %v448 = vadd.f32 %v145, %v447
    %449 = vmatprep.mubr.bf16.mxu0 0
    %450 = vmatmul.mubr.bf16.gmra.mrb[0].mxu0 %v167
    %v451 = vpop.f32.mrb[0].mxu0
    %v452 = vadd.f32 %v141, %v451
    %v453 = vpop.f32.mrb[0].mxu0
    %v454 = vadd.f32 %v145, %v453
    %v455 = vpop.f32.mrb[0].mxu0
    %v456 = vadd.f32 %v141, %v455
    %v457 = vpop.f32.mrb[0].mxu0
    %v458 = vadd.f32 %v145, %v457
    %459 = vmatprep.mubr.bf16.mxu0 0
    %460 = vmatmul.mubr.bf16.gmra.mrb[0].mxu0 %v168
    %v461 = vpop.f32.mrb[0].mxu0
    %v462 = vadd.f32 %v141, %v461
    %v463 = vpop.f32.mrb[0].mxu0
    %v464 = vadd.f32 %v145, %v463
    %v465 = vpop.f32.mrb[0].mxu0
    %v466 = vadd.f32 %v141, %v465
    %v467 = vpop.f32.mrb[0].mxu0
    %v468 = vadd.f32 %v145, %v467
    %469 = vmatprep.mubr.bf16.mxu0 0
    %470 = vmatmul.mubr.bf16.gmra.mrb[0].mxu0 %v169
    %v471 = vpop.f32.mrb[0].mxu0
    %v472 = vadd.f32 %v141, %v471
    %v473 = vpop.f32.mrb[0].mxu0
    %v474 = vadd.f32 %v145, %v473
    %v475 = vpop.f32.mrb[0].mxu0
    %v476 = vadd.f32 %v141, %v475
    %v477 = vpop.f32.mrb[0].mxu0
    %v478 = vadd.f32 %v145, %v477
    %479 = vdwg.mxu0
    %480 = vst [vmem:[#allocation4] sm:$0xff] %v369
    %481 = vst [vmem:[#allocation4 + $0x8] sm:$0xff] %v371
    %482 = vst [vmem:[#allocation4 + $0x10] sm:$0xff] %v442
    %483 = vst [vmem:[#allocation4 + $0x18] sm:$0xff] %v444
    %484 = vst [vmem:[#allocation4 + $0x20] sm:$0xff] %v373
    %485 = vst [vmem:[#allocation4 + $0x28] sm:$0xff] %v375
    %486 = vst [vmem:[#allocation4 + $0x30] sm:$0xff] %v446
    %487 = vst [vmem:[#allocation4 + $0x38] sm:$0xff] %v448
    %488 = vst [vmem:[#allocation4 + $0x40] sm:$0xff] %v379
    %489 = vst [vmem:[#allocation4 + $0x48] sm:$0xff] %v381
    %490 = vst [vmem:[#allocation4 + $0x50] sm:$0xff] %v452
    %491 = vst [vmem:[#allocation4 + $0x58] sm:$0xff] %v454
    %492 = vst [vmem:[#allocation4 + $0x60] sm:$0xff] %v383
    %493 = vst [vmem:[#allocation4 + $0x68] sm:$0xff] %v385
    %494 = vst [vmem:[#allocation4 + $0x70] sm:$0xff] %v456
    %495 = vst [vmem:[#allocation4 + $0x78] sm:$0xff] %v458
    %496 = vst [vmem:[#allocation4 + $0x80] sm:$0xff] %v389
    %497 = vst [vmem:[#allocation4 + $0x88] sm:$0xff] %v391
    %498 = vst [vmem:[#allocation4 + $0x90] sm:$0xff] %v462
    %499 = vst [vmem:[#allocation4 + $0x98] sm:$0xff] %v464
    %500 = vst [vmem:[#allocation4 + $0xa0] sm:$0xff] %v393
    %501 = vst [vmem:[#allocation4 + $0xa8] sm:$0xff] %v395
    %502 = vst [vmem:[#allocation4 + $0xb0] sm:$0xff] %v466
    %503 = vst [vmem:[#allocation4 + $0xb8] sm:$0xff] %v468
    %504 = vst [vmem:[#allocation4 + $0xc0] sm:$0xff] %v399
    %505 = vst [vmem:[#allocation4 + $0xc8] sm:$0xff] %v401
    %506 = vst [vmem:[#allocation4 + $0xd0] sm:$0xff] %v472
    %507 = vst [vmem:[#allocation4 + $0xd8] sm:$0xff] %v474
    %508 = vst [vmem:[#allocation4 + $0xe0] sm:$0xff] %v403
    %509 = vst [vmem:[#allocation4 + $0xe8] sm:$0xff] %v405
    %510 = vst [vmem:[#allocation4 + $0xf0] sm:$0xff] %v476
    %511 = vst [vmem:[#allocation4 + $0xf8] sm:$0xff] %v478
    %v512 = vld [vmem:[%s5] sm:$0xf]
    %v514 = vlaneseq
    %v515 = vshrl.u32 %v514, 7
    %v516 = vsub.s32 0, %v515
    %v517 = vrot.slane %v512, %v516
    %v518 = vlaneseq
    %v519 = vshrl.u32 %v518, 7
    %v520 = vsub.s32 1, %v519
    %v521 = vrot.slane %v512, %v520
    %v522 = vlaneseq
    %v523 = vshrl.u32 %v522, 7
    %v524 = vsub.s32 2, %v523
    %v525 = vrot.slane %v512, %v524
    %v526 = vlaneseq
    %v527 = vshrl.u32 %v526, 7
    %v528 = vsub.s32 3, %v527
    %v529 = vrot.slane %v512, %v528
    %v534 = vld [vmem:[#allocation4] sm:$0xff]
    %v535 = vld [vmem:[#allocation4 + $0x8] sm:$0xff]
    %v536 = vld [vmem:[#allocation4 + $0x10] sm:$0xff]
    %v537 = vld [vmem:[#allocation4 + $0x18] sm:$0xff]
    %v538 = vld [vmem:[#allocation2] sm:$0xff]
    %v539 = vpack.c.bf16 %v538, %v538
    %v540 = vld [vmem:[#allocation10] sm:$0xff]
    %v541 = vld [vmem:[#allocation10 + $0x8] sm:$0xff]
    %v542 = vld [vmem:[#allocation10 + $0x10] sm:$0xff]
    %v543 = vld [vmem:[#allocation10 + $0x18] sm:$0xff]
    %v544 = vld [vmem:[#allocation10 + $0x20] sm:$0xff]
    %v545 = vld [vmem:[#allocation10 + $0x28] sm:$0xff]
    %v546 = vld [vmem:[#allocation10 + $0x30] sm:$0xff]
    %v547 = vld [vmem:[#allocation10 + $0x38] sm:$0xff]
    %v548 = vld [vmem:[#allocation10 + $0x40] sm:$0xff]
    %v549 = vld [vmem:[#allocation10 + $0x48] sm:$0xff]
    %v550 = vld [vmem:[#allocation10 + $0x50] sm:$0xff]
    %v551 = vld [vmem:[#allocation10 + $0x58] sm:$0xff]
    %v552 = vld [vmem:[#allocation10 + $0x60] sm:$0xff]
    %v553 = vld [vmem:[#allocation10 + $0x68] sm:$0xff]
    %v554 = vld [vmem:[#allocation10 + $0x70] sm:$0xff]
    %v555 = vld [vmem:[#allocation10 + $0x78] sm:$0xff]
    %v556 = vld [vmem:[#allocation10 + $0x80] sm:$0xff]
    %v557 = vld [vmem:[#allocation10 + $0x88] sm:$0xff]
    %v558 = vld [vmem:[#allocation10 + $0x90] sm:$0xff]
    %v559 = vld [vmem:[#allocation10 + $0x98] sm:$0xff]
    %v560 = vld [vmem:[#allocation10 + $0xa0] sm:$0xff]
    %v561 = vld [vmem:[#allocation10 + $0xa8] sm:$0xff]
    %v562 = vld [vmem:[#allocation10 + $0xb0] sm:$0xff]
    %v563 = vld [vmem:[#allocation10 + $0xb8] sm:$0xff]
    %v564 = vld [vmem:[#allocation10 + $0xc0] sm:$0xff]
    %v565 = vld [vmem:[#allocation10 + $0xc8] sm:$0xff]
    %v566 = vld [vmem:[#allocation10 + $0xd0] sm:$0xff]
    %v567 = vld [vmem:[#allocation10 + $0xd8] sm:$0xff]
    %v568 = vld [vmem:[#allocation10 + $0xe0] sm:$0xff]
    %v569 = vld [vmem:[#allocation10 + $0xe8] sm:$0xff]
    %v570 = vld [vmem:[#allocation10 + $0xf0] sm:$0xff]
    %v571 = vld [vmem:[#allocation10 + $0xf8] sm:$0xff]
    %v604 = vunpack.c.l.b16 %v540
    %v605 = vunpack.c.h.b16 %v540
    %v606 = vunpack.c.l.b16 %v541
    %v607 = vunpack.c.h.b16 %v541
    %v608 = vunpack.c.l.b16 %v542
    %v609 = vunpack.c.h.b16 %v542
    %v610 = vunpack.c.l.b16 %v543
    %v611 = vunpack.c.h.b16 %v543
    %v612 = vunpack.c.l.b16 %v544
    %v613 = vunpack.c.h.b16 %v544
    %v614 = vunpack.c.l.b16 %v545
    %v615 = vunpack.c.h.b16 %v545
    %v616 = vunpack.c.l.b16 %v546
    %v617 = vunpack.c.h.b16 %v546
    %v618 = vunpack.c.l.b16 %v547
    %v619 = vunpack.c.h.b16 %v547
    %v620 = vunpack.c.l.b16 %v548
    %v621 = vunpack.c.h.b16 %v548
    %v622 = vunpack.c.l.b16 %v549
    %v623 = vunpack.c.h.b16 %v549
    %v624 = vunpack.c.l.b16 %v550
    %v625 = vunpack.c.h.b16 %v550
    %v626 = vunpack.c.l.b16 %v551
    %v627 = vunpack.c.h.b16 %v551
    %v628 = vunpack.c.l.b16 %v552
    %v629 = vunpack.c.h.b16 %v552
    %v630 = vunpack.c.l.b16 %v553
    %v631 = vunpack.c.h.b16 %v553
    %v632 = vunpack.c.l.b16 %v554
    %v633 = vunpack.c.h.b16 %v554
    %v634 = vunpack.c.l.b16 %v555
    %v635 = vunpack.c.h.b16 %v555
    %v636 = vunpack.c.l.b16 %v556
    %v637 = vunpack.c.h.b16 %v556
    %v638 = vunpack.c.l.b16 %v557
    %v639 = vunpack.c.h.b16 %v557
    %v640 = vunpack.c.l.b16 %v558
    %v641 = vunpack.c.h.b16 %v558
    %v642 = vunpack.c.l.b16 %v559
    %v643 = vunpack.c.h.b16 %v559
    %v644 = vunpack.c.l.b16 %v560
    %v645 = vunpack.c.h.b16 %v560
    %v646 = vunpack.c.l.b16 %v561
    %v647 = vunpack.c.h.b16 %v561
    %v648 = vunpack.c.l.b16 %v562
    %v649 = vunpack.c.h.b16 %v562
    %v650 = vunpack.c.l.b16 %v563
    %v651 = vunpack.c.h.b16 %v563
    %v652 = vunpack.c.l.b16 %v564
    %v653 = vunpack.c.h.b16 %v564
    %v654 = vunpack.c.l.b16 %v565
    %v655 = vunpack.c.h.b16 %v565
    %v656 = vunpack.c.l.b16 %v566
    %v657 = vunpack.c.h.b16 %v566
    %v658 = vunpack.c.l.b16 %v567
    %v659 = vunpack.c.h.b16 %v567
    %v660 = vunpack.c.l.b16 %v568
    %v661 = vunpack.c.h.b16 %v568
    %v662 = vunpack.c.l.b16 %v569
    %v663 = vunpack.c.h.b16 %v569
    %v664 = vunpack.c.l.b16 %v570
    %v665 = vunpack.c.h.b16 %v570
    %v666 = vunpack.c.l.b16 %v571
    %v667 = vunpack.c.h.b16 %v571
    %v668 = vpack.c.b16 %v608, %v604
    %v669 = vpack.c.b16 %v609, %v605
    %v670 = vpack.c.b16 %v610, %v606
    %v671 = vpack.c.b16 %v611, %v607
    %v672 = vpack.c.b16 %v616, %v612
    %v673 = vpack.c.b16 %v617, %v613
    %v674 = vpack.c.b16 %v618, %v614
    %v675 = vpack.c.b16 %v619, %v615
    %v676 = vpack.c.b16 %v624, %v620
    %v677 = vpack.c.b16 %v625, %v621
    %v678 = vpack.c.b16 %v626, %v622
    %v679 = vpack.c.b16 %v627, %v623
    %v680 = vpack.c.b16 %v632, %v628
    %v681 = vpack.c.b16 %v633, %v629
    %v682 = vpack.c.b16 %v634, %v630
    %v683 = vpack.c.b16 %v635, %v631
    %v684 = vpack.c.b16 %v640, %v636
    %v685 = vpack.c.b16 %v641, %v637
    %v686 = vpack.c.b16 %v642, %v638
    %v687 = vpack.c.b16 %v643, %v639
    %v688 = vpack.c.b16 %v648, %v644
    %v689 = vpack.c.b16 %v649, %v645
    %v690 = vpack.c.b16 %v650, %v646
    %v691 = vpack.c.b16 %v651, %v647
    %v692 = vpack.c.b16 %v656, %v652
    %v693 = vpack.c.b16 %v657, %v653
    %v694 = vpack.c.b16 %v658, %v654
    %v695 = vpack.c.b16 %v659, %v655
    %v696 = vpack.c.b16 %v664, %v660
    %v697 = vpack.c.b16 %v665, %v661
    %v698 = vpack.c.b16 %v666, %v662
    %v699 = vpack.c.b16 %v667, %v663
    %732 = vmatprep.subr.bf16.mxu0 %v669
    %733 = vmatpush1.bf16.msra.mxu0 %v668
    %734 = vmatprep.subr.bf16.mxu0 %v673
    %735 = vmatpush1.bf16.msra.mxu0 %v672
    %736 = vmatprep.subr.bf16.mxu0 %v677
    %737 = vmatpush1.bf16.msra.mxu0 %v676
    %738 = vmatprep.subr.bf16.mxu0 %v681
    %739 = vmatpush1.bf16.msra.mxu0 %v680
    %740 = vmatprep.subr.bf16.mxu0 %v685
    %741 = vmatpush1.bf16.msra.mxu0 %v684
    %742 = vmatprep.subr.bf16.mxu0 %v689
    %743 = vmatpush1.bf16.msra.mxu0 %v688
    %744 = vmatprep.subr.bf16.mxu0 %v693
    %745 = vmatpush1.bf16.msra.mxu0 %v692
    %746 = vmatprep.subr.bf16.mxu0 %v697
    %747 = vmatpush1.bf16.msra.mxu0 %v696
    %748 = vmatprep.subr.bf16.mxu0 0
    %749 = vmatpush1.bf16.msra.mxu0 0
    %750 = vmatprep.subr.bf16.mxu0 0
    %751 = vmatpush1.bf16.msra.mxu0 0
    %752 = vmatprep.subr.bf16.mxu0 0
    %753 = vmatpush1.bf16.msra.mxu0 0
    %754 = vmatprep.subr.bf16.mxu0 0
    %755 = vmatpush1.bf16.msra.mxu0 0
    %756 = vmatprep.subr.bf16.mxu0 0
    %757 = vmatpush1.bf16.msra.mxu0 0
    %758 = vmatprep.subr.bf16.mxu0 0
    %759 = vmatpush1.bf16.msra.mxu0 0
    %760 = vmatprep.subr.bf16.mxu0 0
    %761 = vmatpush1.bf16.msra.mxu0 0
    %762 = vmatprep.subr.bf16.mxu0 0
    %763 = vmatpush1.bf16.msra.mxu0 0
    %764 = vmatprep.mubr.bf16.mxu0 0
    %765 = vmatmul.mubr.bf16.gmra.mrb[0].mxu0 %v539
    %v766 = vpop.f32.mrb[0].mxu0
    %v767 = vadd.f32 0.0, %v766
    %v768 = vpop.f32.mrb[0].mxu0
    %v769 = vadd.f32 0.0, %v768
    %v770 = vpop.f32.mrb[0].mxu0
    %v771 = vpop.f32.mrb[0].mxu0
    %772 = vdwg.mxu0
    %773 = vmatprep.subr.bf16.mxu0 %v671
    %774 = vmatpush1.bf16.msra.mxu0 %v670
    %775 = vmatprep.subr.bf16.mxu0 %v675
    %776 = vmatpush1.bf16.msra.mxu0 %v674
    %777 = vmatprep.subr.bf16.mxu0 %v679
    %778 = vmatpush1.bf16.msra.mxu0 %v678
    %779 = vmatprep.subr.bf16.mxu0 %v683
    %780 = vmatpush1.bf16.msra.mxu0 %v682
    %781 = vmatprep.subr.bf16.mxu0 %v687
    %782 = vmatpush1.bf16.msra.mxu0 %v686
    %783 = vmatprep.subr.bf16.mxu0 %v691
    %784 = vmatpush1.bf16.msra.mxu0 %v690
    %785 = vmatprep.subr.bf16.mxu0 %v695
    %786 = vmatpush1.bf16.msra.mxu0 %v694
    %787 = vmatprep.subr.bf16.mxu0 %v699
    %788 = vmatpush1.bf16.msra.mxu0 %v698
    %789 = vmatprep.subr.bf16.mxu0 0
    %790 = vmatpush1.bf16.msra.mxu0 0
    %791 = vmatprep.subr.bf16.mxu0 0
    %792 = vmatpush1.bf16.msra.mxu0 0
    %793 = vmatprep.subr.bf16.mxu0 0
    %794 = vmatpush1.bf16.msra.mxu0 0
    %795 = vmatprep.subr.bf16.mxu0 0
    %796 = vmatpush1.bf16.msra.mxu0 0
    %797 = vmatprep.subr.bf16.mxu0 0
    %798 = vmatpush1.bf16.msra.mxu0 0
    %799 = vmatprep.subr.bf16.mxu0 0
    %800 = vmatpush1.bf16.msra.mxu0 0
    %801 = vmatprep.subr.bf16.mxu0 0
    %802 = vmatpush1.bf16.msra.mxu0 0
    %803 = vmatprep.subr.bf16.mxu0 0
    %804 = vmatpush1.bf16.msra.mxu0 0
    %805 = vmatprep.mubr.bf16.mxu0 0
    %806 = vmatmul.mubr.bf16.gmra.mrb[0].mxu0 %v539
    %v807 = vpop.f32.mrb[0].mxu0
    %v808 = vadd.f32 0.0, %v807
    %v809 = vpop.f32.mrb[0].mxu0
    %v810 = vadd.f32 0.0, %v809
    %v811 = vpop.f32.mrb[0].mxu0
    %v812 = vpop.f32.mrb[0].mxu0
    %813 = vdwg.mxu0
    %v814 = vadd.f32 %v534, %v767
    %v815 = vadd.f32 %v535, %v769
    %v816 = vadd.f32 %v536, %v808
    %v817 = vadd.f32 %v537, %v810
    %v818 = vld [vmem:[#allocation3] sm:$0xff]
    %v819 = vxor.u32 %v814, 2147483648
    %v820 = vxor.u32 %v815, 2147483648
    %v821 = vxor.u32 %v816, 2147483648
    %v822 = vmul.f32 %v819, 1.442695
    %v823 = vpow.pop %v822
    %v824 = vmul.f32 %v820, 1.442695
    %v825 = vpow.pop %v824
    %v826 = vmul.f32 %v821, 1.442695
    %v827 = vpow.pop %v826
    %v828 = vadd.f32 %v823, 1.0
    %v829 = vadd.f32 %v825, 1.0
    %v830 = vadd.f32 %v827, 1.0
    %v831 = vrcp.pop %v828
    %v832 = vmul.f32 1.0, %v831
    %v833 = vrcp.pop %v829
    %v834 = vmul.f32 1.0, %v833
    %v835 = vrcp.pop %v830
    %v836 = vmul.f32 1.0, %v835
    %v837 = vtanh.pop %v817
    %v838 = vmul.f32 %v834, %v818
    %v839 = vmul.f32 %v832, %v837
    %v840 = vadd.f32 %v838, %v839
    %v841 = vtanh.pop %v840
    %v842 = vmul.f32 %v836, %v841
    %843 = vst [vmem:[#allocation2] sm:$0xff] %v842
    %844 = vst [vmem:[#allocation3] sm:$0xff] %v840
    %v845 = vpack.c.bf16 %v842, %v842
    %s846 = scalar_lea.vmem [#allocation2], 8
    %v847 = vld [vmem:[%s846] sm:$0xff]
    %v848 = vpack.c.bf16 %v847, %v847
    %v849 = vld [vmem:[#allocation11] sm:$0xff]
    %v850 = vld [vmem:[#allocation11 + $0x8] sm:$0xff]
    %v851 = vld [vmem:[#allocation11 + $0x10] sm:$0xff]
    %v852 = vld [vmem:[#allocation11 + $0x18] sm:$0xff]
    %v853 = vld [vmem:[#allocation11 + $0x20] sm:$0xff]
    %v854 = vld [vmem:[#allocation11 + $0x28] sm:$0xff]
    %v855 = vld [vmem:[#allocation11 + $0x30] sm:$0xff]
    %v856 = vld [vmem:[#allocation11 + $0x38] sm:$0xff]
    %v857 = vld [vmem:[#allocation11 + $0x40] sm:$0xff]
    %v858 = vld [vmem:[#allocation11 + $0x48] sm:$0xff]
    %v859 = vld [vmem:[#allocation11 + $0x50] sm:$0xff]
    %v860 = vld [vmem:[#allocation11 + $0x58] sm:$0xff]
    %v861 = vld [vmem:[#allocation11 + $0x60] sm:$0xff]
    %v862 = vld [vmem:[#allocation11 + $0x68] sm:$0xff]
    %v863 = vld [vmem:[#allocation11 + $0x70] sm:$0xff]
    %v864 = vld [vmem:[#allocation11 + $0x78] sm:$0xff]
    %v865 = vld [vmem:[#allocation11 + $0x80] sm:$0xff]
    %v866 = vld [vmem:[#allocation11 + $0x88] sm:$0xff]
    %v867 = vld [vmem:[#allocation11 + $0x90] sm:$0xff]
    %v868 = vld [vmem:[#allocation11 + $0x98] sm:$0xff]
    %v869 = vld [vmem:[#allocation11 + $0xa0] sm:$0xff]
    %v870 = vld [vmem:[#allocation11 + $0xa8] sm:$0xff]
    %v871 = vld [vmem:[#allocation11 + $0xb0] sm:$0xff]
    %v872 = vld [vmem:[#allocation11 + $0xb8] sm:$0xff]
    %v873 = vld [vmem:[#allocation11 + $0xc0] sm:$0xff]
    %v874 = vld [vmem:[#allocation11 + $0xc8] sm:$0xff]
    %v875 = vld [vmem:[#allocation11 + $0xd0] sm:$0xff]
    %v876 = vld [vmem:[#allocation11 + $0xd8] sm:$0xff]
    %v877 = vld [vmem:[#allocation11 + $0xe0] sm:$0xff]
    %v878 = vld [vmem:[#allocation11 + $0xe8] sm:$0xff]
    %v879 = vld [vmem:[#allocation11 + $0xf0] sm:$0xff]
    %v880 = vld [vmem:[#allocation11 + $0xf8] sm:$0xff]
    %v881 = vld [vmem:[#allocation11 + $0x100] sm:$0xff]
    %v882 = vld [vmem:[#allocation11 + $0x108] sm:$0xff]
    %v883 = vld [vmem:[#allocation11 + $0x110] sm:$0xff]
    %v884 = vld [vmem:[#allocation11 + $0x118] sm:$0xff]
    %v885 = vld [vmem:[#allocation11 + $0x120] sm:$0xff]
    %v886 = vld [vmem:[#allocation11 + $0x128] sm:$0xff]
    %v887 = vld [vmem:[#allocation11 + $0x130] sm:$0xff]
    %v888 = vld [vmem:[#allocation11 + $0x138] sm:$0xff]
    %v889 = vld [vmem:[#allocation11 + $0x140] sm:$0xff]
    %v890 = vld [vmem:[#allocation11 + $0x148] sm:$0xff]
    %v891 = vld [vmem:[#allocation11 + $0x150] sm:$0xff]
    %v892 = vld [vmem:[#allocation11 + $0x158] sm:$0xff]
    %v893 = vld [vmem:[#allocation11 + $0x160] sm:$0xff]
    %v894 = vld [vmem:[#allocation11 + $0x168] sm:$0xff]
    %v895 = vld [vmem:[#allocation11 + $0x170] sm:$0xff]
    %v896 = vld [vmem:[#allocation11 + $0x178] sm:$0xff]
    %v897 = vld [vmem:[#allocation11 + $0x180] sm:$0xff]
    %v898 = vld [vmem:[#allocation11 + $0x188] sm:$0xff]
    %v899 = vld [vmem:[#allocation11 + $0x190] sm:$0xff]
    %v900 = vld [vmem:[#allocation11 + $0x198] sm:$0xff]
    %v901 = vld [vmem:[#allocation11 + $0x1a0] sm:$0xff]
    %v902 = vld [vmem:[#allocation11 + $0x1a8] sm:$0xff]
    %v903 = vld [vmem:[#allocation11 + $0x1b0] sm:$0xff]
    %v904 = vld [vmem:[#allocation11 + $0x1b8] sm:$0xff]
    %v905 = vld [vmem:[#allocation11 + $0x1c0] sm:$0xff]
    %v906 = vld [vmem:[#allocation11 + $0x1c8] sm:$0xff]
    %v907 = vld [vmem:[#allocation11 + $0x1d0] sm:$0xff]
    %v908 = vld [vmem:[#allocation11 + $0x1d8] sm:$0xff]
    %v909 = vld [vmem:[#allocation11 + $0x1e0] sm:$0xff]
    %v910 = vld [vmem:[#allocation11 + $0x1e8] sm:$0xff]
    %v911 = vld [vmem:[#allocation11 + $0x1f0] sm:$0xff]
    %v912 = vld [vmem:[#allocation11 + $0x1f8] sm:$0xff]
    %v977 = vunpack.c.l.b16 %v849
    %v978 = vunpack.c.h.b16 %v849
    %v979 = vunpack.c.l.b16 %v850
    %v980 = vunpack.c.h.b16 %v850
    %v981 = vunpack.c.l.b16 %v851
    %v982 = vunpack.c.h.b16 %v851
    %v983 = vunpack.c.l.b16 %v852
    %v984 = vunpack.c.h.b16 %v852
    %v985 = vunpack.c.l.b16 %v853
    %v986 = vunpack.c.h.b16 %v853
    %v987 = vunpack.c.l.b16 %v854
    %v988 = vunpack.c.h.b16 %v854
    %v989 = vunpack.c.l.b16 %v855
    %v990 = vunpack.c.h.b16 %v855
    %v991 = vunpack.c.l.b16 %v856
    %v992 = vunpack.c.h.b16 %v856
    %v993 = vunpack.c.l.b16 %v857
    %v994 = vunpack.c.h.b16 %v857
    %v995 = vunpack.c.l.b16 %v858
    %v996 = vunpack.c.h.b16 %v858
    %v997 = vunpack.c.l.b16 %v859
    %v998 = vunpack.c.h.b16 %v859
    %v999 = vunpack.c.l.b16 %v860
    %v1000 = vunpack.c.h.b16 %v860
    %v1001 = vunpack.c.l.b16 %v861
    %v1002 = vunpack.c.h.b16 %v861
    %v1003 = vunpack.c.l.b16 %v862
    %v1004 = vunpack.c.h.b16 %v862
    %v1005 = vunpack.c.l.b16 %v863
    %v1006 = vunpack.c.h.b16 %v863
    %v1007 = vunpack.c.l.b16 %v864
    %v1008 = vunpack.c.h.b16 %v864
    %v1009 = vunpack.c.l.b16 %v865
    %v1010 = vunpack.c.h.b16 %v865
    %v1011 = vunpack.c.l.b16 %v866
    %v1012 = vunpack.c.h.b16 %v866
    %v1013 = vunpack.c.l.b16 %v867
    %v1014 = vunpack.c.h.b16 %v867
    %v1015 = vunpack.c.l.b16 %v868
    %v1016 = vunpack.c.h.b16 %v868
    %v1017 = vunpack.c.l.b16 %v869
    %v1018 = vunpack.c.h.b16 %v869
    %v1019 = vunpack.c.l.b16 %v870
    %v1020 = vunpack.c.h.b16 %v870
    %v1021 = vunpack.c.l.b16 %v871
    %v1022 = vunpack.c.h.b16 %v871
    %v1023 = vunpack.c.l.b16 %v872
    %v1024 = vunpack.c.h.b16 %v872
    %v1025 = vunpack.c.l.b16 %v873
    %v1026 = vunpack.c.h.b16 %v873
    %v1027 = vunpack.c.l.b16 %v874
    %v1028 = vunpack.c.h.b16 %v874
    %v1029 = vunpack.c.l.b16 %v875
    %v1030 = vunpack.c.h.b16 %v875
    %v1031 = vunpack.c.l.b16 %v876
    %v1032 = vunpack.c.h.b16 %v876
    %v1033 = vunpack.c.l.b16 %v877
    %v1034 = vunpack.c.h.b16 %v877
    %v1035 = vunpack.c.l.b16 %v878
    %v1036 = vunpack.c.h.b16 %v878
    %v1037 = vunpack.c.l.b16 %v879
    %v1038 = vunpack.c.h.b16 %v879
    %v1039 = vunpack.c.l.b16 %v880
    %v1040 = vunpack.c.h.b16 %v880
    %v1041 = vunpack.c.l.b16 %v881
    %v1042 = vunpack.c.h.b16 %v881
    %v1043 = vunpack.c.l.b16 %v882
    %v1044 = vunpack.c.h.b16 %v882
    %v1045 = vunpack.c.l.b16 %v883
    %v1046 = vunpack.c.h.b16 %v883
    %v1047 = vunpack.c.l.b16 %v884
    %v1048 = vunpack.c.h.b16 %v884
    %v1049 = vunpack.c.l.b16 %v885
    %v1050 = vunpack.c.h.b16 %v885
    %v1051 = vunpack.c.l.b16 %v886
    %v1052 = vunpack.c.h.b16 %v886
    %v1053 = vunpack.c.l.b16 %v887
    %v1054 = vunpack.c.h.b16 %v887
    %v1055 = vunpack.c.l.b16 %v888
    %v1056 = vunpack.c.h.b16 %v888
    %v1057 = vunpack.c.l.b16 %v889
    %v1058 = vunpack.c.h.b16 %v889
    %v1059 = vunpack.c.l.b16 %v890
    %v1060 = vunpack.c.h.b16 %v890
    %v1061 = vunpack.c.l.b16 %v891
    %v1062 = vunpack.c.h.b16 %v891
    %v1063 = vunpack.c.l.b16 %v892
    %v1064 = vunpack.c.h.b16 %v892
    %v1065 = vunpack.c.l.b16 %v893
    %v1066 = vunpack.c.h.b16 %v893
    %v1067 = vunpack.c.l.b16 %v894
    %v1068 = vunpack.c.h.b16 %v894
    %v1069 = vunpack.c.l.b16 %v895
    %v1070 = vunpack.c.h.b16 %v895
    %v1071 = vunpack.c.l.b16 %v896
    %v1072 = vunpack.c.h.b16 %v896
    %v1073 = vunpack.c.l.b16 %v897
    %v1074 = vunpack.c.h.b16 %v897
    %v1075 = vunpack.c.l.b16 %v898
    %v1076 = vunpack.c.h.b16 %v898
    %v1077 = vunpack.c.l.b16 %v899
    %v1078 = vunpack.c.h.b16 %v899
    %v1079 = vunpack.c.l.b16 %v900
    %v1080 = vunpack.c.h.b16 %v900
    %v1081 = vunpack.c.l.b16 %v901
    %v1082 = vunpack.c.h.b16 %v901
    %v1083 = vunpack.c.l.b16 %v902
    %v1084 = vunpack.c.h.b16 %v902
    %v1085 = vunpack.c.l.b16 %v903
    %v1086 = vunpack.c.h.b16 %v903
    %v1087 = vunpack.c.l.b16 %v904
    %v1088 = vunpack.c.h.b16 %v904
    %v1089 = vunpack.c.l.b16 %v905
    %v1090 = vunpack.c.h.b16 %v905
    %v1091 = vunpack.c.l.b16 %v906
    %v1092 = vunpack.c.h.b16 %v906
    %v1093 = vunpack.c.l.b16 %v907
    %v1094 = vunpack.c.h.b16 %v907
    %v1095 = vunpack.c.l.b16 %v908
    %v1096 = vunpack.c.h.b16 %v908
    %v1097 = vunpack.c.l.b16 %v909
    %v1098 = vunpack.c.h.b16 %v909
    %v1099 = vunpack.c.l.b16 %v910
    %v1100 = vunpack.c.h.b16 %v910
    %v1101 = vunpack.c.l.b16 %v911
    %v1102 = vunpack.c.h.b16 %v911
    %v1103 = vunpack.c.l.b16 %v912
    %v1104 = vunpack.c.h.b16 %v912
    %v1105 = vpack.c.b16 %v981, %v977
    %v1106 = vpack.c.b16 %v982, %v978
    %v1107 = vpack.c.b16 %v983, %v979
    %v1108 = vpack.c.b16 %v984, %v980
    %v1109 = vpack.c.b16 %v989, %v985
    %v1110 = vpack.c.b16 %v990, %v986
    %v1111 = vpack.c.b16 %v991, %v987
    %v1112 = vpack.c.b16 %v992, %v988
    %v1113 = vpack.c.b16 %v997, %v993
    %v1114 = vpack.c.b16 %v998, %v994
    %v1115 = vpack.c.b16 %v999, %v995
    %v1116 = vpack.c.b16 %v1000, %v996
    %v1117 = vpack.c.b16 %v1005, %v1001
    %v1118 = vpack.c.b16 %v1006, %v1002
    %v1119 = vpack.c.b16 %v1007, %v1003
    %v1120 = vpack.c.b16 %v1008, %v1004
    %v1121 = vpack.c.b16 %v1013, %v1009
    %v1122 = vpack.c.b16 %v1014, %v1010
    %v1123 = vpack.c.b16 %v1015, %v1011
    %v1124 = vpack.c.b16 %v1016, %v1012
    %v1125 = vpack.c.b16 %v1021, %v1017
    %v1126 = vpack.c.b16 %v1022, %v1018
    %v1127 = vpack.c.b16 %v1023, %v1019
    %v1128 = vpack.c.b16 %v1024, %v1020
    %v1129 = vpack.c.b16 %v1029, %v1025
    %v1130 = vpack.c.b16 %v1030, %v1026
    %v1131 = vpack.c.b16 %v1031, %v1027
    %v1132 = vpack.c.b16 %v1032, %v1028
    %v1133 = vpack.c.b16 %v1037, %v1033
    %v1134 = vpack.c.b16 %v1038, %v1034
    %v1135 = vpack.c.b16 %v1039, %v1035
    %v1136 = vpack.c.b16 %v1040, %v1036
    %v1137 = vpack.c.b16 %v1045, %v1041
    %v1138 = vpack.c.b16 %v1046, %v1042
    %v1139 = vpack.c.b16 %v1047, %v1043
    %v1140 = vpack.c.b16 %v1048, %v1044
    %v1141 = vpack.c.b16 %v1053, %v1049
    %v1142 = vpack.c.b16 %v1054, %v1050
    %v1143 = vpack.c.b16 %v1055, %v1051
    %v1144 = vpack.c.b16 %v1056, %v1052
    %v1145 = vpack.c.b16 %v1061, %v1057
    %v1146 = vpack.c.b16 %v1062, %v1058
    %v1147 = vpack.c.b16 %v1063, %v1059
    %v1148 = vpack.c.b16 %v1064, %v1060
    %v1149 = vpack.c.b16 %v1069, %v1065
    %v1150 = vpack.c.b16 %v1070, %v1066
    %v1151 = vpack.c.b16 %v1071, %v1067
    %v1152 = vpack.c.b16 %v1072, %v1068
    %v1153 = vpack.c.b16 %v1077, %v1073
    %v1154 = vpack.c.b16 %v1078, %v1074
    %v1155 = vpack.c.b16 %v1079, %v1075
    %v1156 = vpack.c.b16 %v1080, %v1076
    %v1157 = vpack.c.b16 %v1085, %v1081
    %v1158 = vpack.c.b16 %v1086, %v1082
    %v1159 = vpack.c.b16 %v1087, %v1083
    %v1160 = vpack.c.b16 %v1088, %v1084
    %v1161 = vpack.c.b16 %v1093, %v1089
    %v1162 = vpack.c.b16 %v1094, %v1090
    %v1163 = vpack.c.b16 %v1095, %v1091
    %v1164 = vpack.c.b16 %v1096, %v1092
    %v1165 = vpack.c.b16 %v1101, %v1097
    %v1166 = vpack.c.b16 %v1102, %v1098
    %v1167 = vpack.c.b16 %v1103, %v1099
    %v1168 = vpack.c.b16 %v1104, %v1100
    %1233 = vmatprep.subr.bf16.mxu0 %v1106
    %1234 = vmatpush1.bf16.msra.mxu0 %v1105
    %1235 = vmatprep.subr.bf16.mxu0 %v1110
    %1236 = vmatpush1.bf16.msra.mxu0 %v1109
    %1237 = vmatprep.subr.bf16.mxu0 %v1114
    %1238 = vmatpush1.bf16.msra.mxu0 %v1113
    %1239 = vmatprep.subr.bf16.mxu0 %v1118
    %1240 = vmatpush1.bf16.msra.mxu0 %v1117
    %1241 = vmatprep.subr.bf16.mxu0 %v1122
    %1242 = vmatpush1.bf16.msra.mxu0 %v1121
    %1243 = vmatprep.subr.bf16.mxu0 %v1126
    %1244 = vmatpush1.bf16.msra.mxu0 %v1125
    %1245 = vmatprep.subr.bf16.mxu0 %v1130
    %1246 = vmatpush1.bf16.msra.mxu0 %v1129
    %1247 = vmatprep.subr.bf16.mxu0 %v1134
    %1248 = vmatpush1.bf16.msra.mxu0 %v1133
    %1249 = vmatprep.subr.bf16.mxu0 %v1138
    %1250 = vmatpush1.bf16.msra.mxu0 %v1137
    %1251 = vmatprep.subr.bf16.mxu0 %v1142
    %1252 = vmatpush1.bf16.msra.mxu0 %v1141
    %1253 = vmatprep.subr.bf16.mxu0 %v1146
    %1254 = vmatpush1.bf16.msra.mxu0 %v1145
    %1255 = vmatprep.subr.bf16.mxu0 %v1150
    %1256 = vmatpush1.bf16.msra.mxu0 %v1149
    %1257 = vmatprep.subr.bf16.mxu0 %v1154
    %1258 = vmatpush1.bf16.msra.mxu0 %v1153
    %1259 = vmatprep.subr.bf16.mxu0 %v1158
    %1260 = vmatpush1.bf16.msra.mxu0 %v1157
    %1261 = vmatprep.subr.bf16.mxu0 %v1162
    %1262 = vmatpush1.bf16.msra.mxu0 %v1161
    %1263 = vmatprep.subr.bf16.mxu0 %v1166
    %1264 = vmatpush1.bf16.msra.mxu0 %v1165
    %1265 = vmatprep.mubr.bf16.mxu0 %v848
    %1266 = vmatmul.mubr.bf16.gmra.mrb[0].mxu0 %v845
    %v1267 = vpop.f32.mrb[0].mxu0
    %v1268 = vadd.f32 %v517, %v1267
    %v1269 = vpop.f32.mrb[0].mxu0
    %v1270 = vadd.f32 %v521, %v1269
    %v1271 = vpop.f32.mrb[0].mxu0
    %v1272 = vpop.f32.mrb[0].mxu0
    %1273 = vdwg.mxu0
    %1274 = vmatprep.subr.bf16.mxu0 %v1108
    %1275 = vmatpush1.bf16.msra.mxu0 %v1107
    %1276 = vmatprep.subr.bf16.mxu0 %v1112
    %1277 = vmatpush1.bf16.msra.mxu0 %v1111
    %1278 = vmatprep.subr.bf16.mxu0 %v1116
    %1279 = vmatpush1.bf16.msra.mxu0 %v1115
    %1280 = vmatprep.subr.bf16.mxu0 %v1120
    %1281 = vmatpush1.bf16.msra.mxu0 %v1119
    %1282 = vmatprep.subr.bf16.mxu0 %v1124
    %1283 = vmatpush1.bf16.msra.mxu0 %v1123
    %1284 = vmatprep.subr.bf16.mxu0 %v1128
    %1285 = vmatpush1.bf16.msra.mxu0 %v1127
    %1286 = vmatprep.subr.bf16.mxu0 %v1132
    %1287 = vmatpush1.bf16.msra.mxu0 %v1131
    %1288 = vmatprep.subr.bf16.mxu0 %v1136
    %1289 = vmatpush1.bf16.msra.mxu0 %v1135
    %1290 = vmatprep.subr.bf16.mxu0 %v1140
    %1291 = vmatpush1.bf16.msra.mxu0 %v1139
    %1292 = vmatprep.subr.bf16.mxu0 %v1144
    %1293 = vmatpush1.bf16.msra.mxu0 %v1143
    %1294 = vmatprep.subr.bf16.mxu0 %v1148
    %1295 = vmatpush1.bf16.msra.mxu0 %v1147
    %1296 = vmatprep.subr.bf16.mxu0 %v1152
    %1297 = vmatpush1.bf16.msra.mxu0 %v1151
    %1298 = vmatprep.subr.bf16.mxu0 %v1156
    %1299 = vmatpush1.bf16.msra.mxu0 %v1155
    %1300 = vmatprep.subr.bf16.mxu0 %v1160
    %1301 = vmatpush1.bf16.msra.mxu0 %v1159
    %1302 = vmatprep.subr.bf16.mxu0 %v1164
    %1303 = vmatpush1.bf16.msra.mxu0 %v1163
    %1304 = vmatprep.subr.bf16.mxu0 %v1168
    %1305 = vmatpush1.bf16.msra.mxu0 %v1167
    %1306 = vmatprep.mubr.bf16.mxu0 %v848
    %1307 = vmatmul.mubr.bf16.gmra.mrb[0].mxu0 %v845
    %v1308 = vpop.f32.mrb[0].mxu0
    %v1309 = vadd.f32 %v525, %v1308
    %v1310 = vpop.f32.mrb[0].mxu0
    %v1311 = vadd.f32 %v529, %v1310
    %v1312 = vpop.f32.mrb[0].mxu0
    %v1313 = vpop.f32.mrb[0].mxu0
    %1314 = vdwg.mxu0
    %s1315 = scalar_lea.vmem [#allocation3], 8
    %v1316 = vld [vmem:[%s1315] sm:$0xff]
    %v1317 = vxor.u32 %v1268, 2147483648
    %v1318 = vxor.u32 %v1270, 2147483648
    %v1319 = vxor.u32 %v1309, 2147483648
    %v1320 = vmul.f32 %v1317, 1.442695
    %v1321 = vpow.pop %v1320
    %v1322 = vmul.f32 %v1318, 1.442695
    %v1323 = vpow.pop %v1322
    %v1324 = vmul.f32 %v1319, 1.442695
    %v1325 = vpow.pop %v1324
    %v1326 = vadd.f32 %v1321, 1.0
    %v1327 = vadd.f32 %v1323, 1.0
    %v1328 = vadd.f32 %v1325, 1.0
    %v1329 = vrcp.pop %v1326
    %v1330 = vmul.f32 1.0, %v1329
    %v1331 = vrcp.pop %v1327
    %v1332 = vmul.f32 1.0, %v1331
    %v1333 = vrcp.pop %v1328
    %v1334 = vmul.f32 1.0, %v1333
    %v1335 = vtanh.pop %v1311
    %v1336 = vmul.f32 %v1332, %v1316
    %v1337 = vmul.f32 %v1330, %v1335
    %v1338 = vadd.f32 %v1336, %v1337
    %v1339 = vtanh.pop %v1338
    %v1340 = vmul.f32 %v1334, %v1339
    %1341 = vst [vmem:[%s846] sm:$0xff] %v1340
    %1342 = vst [vmem:[%s1315] sm:$0xff] %v1338
    %v1343 = vpack.c.bf16 %v1340, %v1340
    %1344 = vst [vmem:[#allocation13] sm:$0xf] %v1343
    %s1345 = scalar_lea.vmem [#allocation4], 32
    %v1346 = vld [vmem:[%s1345] sm:$0xff]
    %v1347 = vld [vmem:[%s1345 + $0x8] sm:$0xff]
    %v1348 = vld [vmem:[%s1345 + $0x10] sm:$0xff]
    %v1349 = vld [vmem:[%s1345 + $0x18] sm:$0xff]
    %v1350 = vld [vmem:[#allocation2] sm:$0xff]
    %v1351 = vpack.c.bf16 %v1350, %v1350
    %v1352 = vld [vmem:[#allocation10] sm:$0xff]
    %v1353 = vld [vmem:[#allocation10 + $0x8] sm:$0xff]
    %v1354 = vld [vmem:[#allocation10 + $0x10] sm:$0xff]
    %v1355 = vld [vmem:[#allocation10 + $0x18] sm:$0xff]
    %v1356 = vld [vmem:[#allocation10 + $0x20] sm:$0xff]
    %v1357 = vld [vmem:[#allocation10 + $0x28] sm:$0xff]
    %v1358 = vld [vmem:[#allocation10 + $0x30] sm:$0xff]
    %v1359 = vld [vmem:[#allocation10 + $0x38] sm:$0xff]
    %v1360 = vld [vmem:[#allocation10 + $0x40] sm:$0xff]
    %v1361 = vld [vmem:[#allocation10 + $0x48] sm:$0xff]
    %v1362 = vld [vmem:[#allocation10 + $0x50] sm:$0xff]
    %v1363 = vld [vmem:[#allocation10 + $0x58] sm:$0xff]
    %v1364 = vld [vmem:[#allocation10 + $0x60] sm:$0xff]
    %v1365 = vld [vmem:[#allocation10 + $0x68] sm:$0xff]
    %v1366 = vld [vmem:[#allocation10 + $0x70] sm:$0xff]
    %v1367 = vld [vmem:[#allocation10 + $0x78] sm:$0xff]
    %v1368 = vld [vmem:[#allocation10 + $0x80] sm:$0xff]
    %v1369 = vld [vmem:[#allocation10 + $0x88] sm:$0xff]
    %v1370 = vld [vmem:[#allocation10 + $0x90] sm:$0xff]
    %v1371 = vld [vmem:[#allocation10 + $0x98] sm:$0xff]
    %v1372 = vld [vmem:[#allocation10 + $0xa0] sm:$0xff]
    %v1373 = vld [vmem:[#allocation10 + $0xa8] sm:$0xff]
    %v1374 = vld [vmem:[#allocation10 + $0xb0] sm:$0xff]
    %v1375 = vld [vmem:[#allocation10 + $0xb8] sm:$0xff]
    %v1376 = vld [vmem:[#allocation10 + $0xc0] sm:$0xff]
    %v1377 = vld [vmem:[#allocation10 + $0xc8] sm:$0xff]
    %v1378 = vld [vmem:[#allocation10 + $0xd0] sm:$0xff]
    %v1379 = vld [vmem:[#allocation10 + $0xd8] sm:$0xff]
    %v1380 = vld [vmem:[#allocation10 + $0xe0] sm:$0xff]
    %v1381 = vld [vmem:[#allocation10 + $0xe8] sm:$0xff]
    %v1382 = vld [vmem:[#allocation10 + $0xf0] sm:$0xff]
    %v1383 = vld [vmem:[#allocation10 + $0xf8] sm:$0xff]
    %v1416 = vunpack.c.l.b16 %v1352
    %v1417 = vunpack.c.h.b16 %v1352
    %v1418 = vunpack.c.l.b16 %v1353
    %v1419 = vunpack.c.h.b16 %v1353
    %v1420 = vunpack.c.l.b16 %v1354
    %v1421 = vunpack.c.h.b16 %v1354
    %v1422 = vunpack.c.l.b16 %v1355
    %v1423 = vunpack.c.h.b16 %v1355
    %v1424 = vunpack.c.l.b16 %v1356
    %v1425 = vunpack.c.h.b16 %v1356
    %v1426 = vunpack.c.l.b16 %v1357
    %v1427 = vunpack.c.h.b16 %v1357
    %v1428 = vunpack.c.l.b16 %v1358
    %v1429 = vunpack.c.h.b16 %v1358
    %v1430 = vunpack.c.l.b16 %v1359
    %v1431 = vunpack.c.h.b16 %v1359
    %v1432 = vunpack.c.l.b16 %v1360
    %v1433 = vunpack.c.h.b16 %v1360
    %v1434 = vunpack.c.l.b16 %v1361
    %v1435 = vunpack.c.h.b16 %v1361
    %v1436 = vunpack.c.l.b16 %v1362
    %v1437 = vunpack.c.h.b16 %v1362
    %v1438 = vunpack.c.l.b16 %v1363
    %v1439 = vunpack.c.h.b16 %v1363
    %v1440 = vunpack.c.l.b16 %v1364
    %v1441 = vunpack.c.h.b16 %v1364
    %v1442 = vunpack.c.l.b16 %v1365
    %v1443 = vunpack.c.h.b16 %v1365
    %v1444 = vunpack.c.l.b16 %v1366
    %v1445 = vunpack.c.h.b16 %v1366
    %v1446 = vunpack.c.l.b16 %v1367
    %v1447 = vunpack.c.h.b16 %v1367
    %v1448 = vunpack.c.l.b16 %v1368
    %v1449 = vunpack.c.h.b16 %v1368
    %v1450 = vunpack.c.l.b16 %v1369
    %v1451 = vunpack.c.h.b16 %v1369
    %v1452 = vunpack.c.l.b16 %v1370
    %v1453 = vunpack.c.h.b16 %v1370
    %v1454 = vunpack.c.l.b16 %v1371
    %v1455 = vunpack.c.h.b16 %v1371
    %v1456 = vunpack.c.l.b16 %v1372
    %v1457 = vunpack.c.h.b16 %v1372
    %v1458 = vunpack.c.l.b16 %v1373
    %v1459 = vunpack.c.h.b16 %v1373
    %v1460 = vunpack.c.l.b16 %v1374
    %v1461 = vunpack.c.h.b16 %v1374
    %v1462 = vunpack.c.l.b16 %v1375
    %v1463 = vunpack.c.h.b16 %v1375
    %v1464 = vunpack.c.l.b16 %v1376
    %v1465 = vunpack.c.h.b16 %v1376
    %v1466 = vunpack.c.l.b16 %v1377
    %v1467 = vunpack.c.h.b16 %v1377
    %v1468 = vunpack.c.l.b16 %v1378
    %v1469 = vunpack.c.h.b16 %v1378
    %v1470 = vunpack.c.l.b16 %v1379
    %v1471 = vunpack.c.h.b16 %v1379
    %v1472 = vunpack.c.l.b16 %v1380
    %v1473 = vunpack.c.h.b16 %v1380
    %v1474 = vunpack.c.l.b16 %v1381
    %v1475 = vunpack.c.h.b16 %v1381
    %v1476 = vunpack.c.l.b16 %v1382
    %v1477 = vunpack.c.h.b16 %v1382
    %v1478 = vunpack.c.l.b16 %v1383
    %v1479 = vunpack.c.h.b16 %v1383
    %v1480 = vpack.c.b16 %v1420, %v1416
    %v1481 = vpack.c.b16 %v1421, %v1417
    %v1482 = vpack.c.b16 %v1422, %v1418
    %v1483 = vpack.c.b16 %v1423, %v1419
    %v1484 = vpack.c.b16 %v1428, %v1424
    %v1485 = vpack.c.b16 %v1429, %v1425
    %v1486 = vpack.c.b16 %v1430, %v1426
    %v1487 = vpack.c.b16 %v1431, %v1427
    %v1488 = vpack.c.b16 %v1436, %v1432
    %v1489 = vpack.c.b16 %v1437, %v1433
    %v1490 = vpack.c.b16 %v1438, %v1434
    %v1491 = vpack.c.b16 %v1439, %v1435
    %v1492 = vpack.c.b16 %v1444, %v1440
    %v1493 = vpack.c.b16 %v1445, %v1441
    %v1494 = vpack.c.b16 %v1446, %v1442
    %v1495 = vpack.c.b16 %v1447, %v1443
    %v1496 = vpack.c.b16 %v1452, %v1448
    %v1497 = vpack.c.b16 %v1453, %v1449
    %v1498 = vpack.c.b16 %v1454, %v1450
    %v1499 = vpack.c.b16 %v1455, %v1451
    %v1500 = vpack.c.b16 %v1460, %v1456
    %v1501 = vpack.c.b16 %v1461, %v1457
    %v1502 = vpack.c.b16 %v1462, %v1458
    %v1503 = vpack.c.b16 %v1463, %v1459
    %v1504 = vpack.c.b16 %v1468, %v1464
    %v1505 = vpack.c.b16 %v1469, %v1465
    %v1506 = vpack.c.b16 %v1470, %v1466
    %v1507 = vpack.c.b16 %v1471, %v1467
    %v1508 = vpack.c.b16 %v1476, %v1472
    %v1509 = vpack.c.b16 %v1477, %v1473
    %v1510 = vpack.c.b16 %v1478, %v1474
    %v1511 = vpack.c.b16 %v1479, %v1475
    %1544 = vmatprep.subr.bf16.mxu0 %v1481
    %1545 = vmatpush1.bf16.msra.mxu0 %v1480
    %1546 = vmatprep.subr.bf16.mxu0 %v1485
    %1547 = vmatpush1.bf16.msra.mxu0 %v1484
    %1548 = vmatprep.subr.bf16.mxu0 %v1489
    %1549 = vmatpush1.bf16.msra.mxu0 %v1488
    %1550 = vmatprep.subr.bf16.mxu0 %v1493
    %1551 = vmatpush1.bf16.msra.mxu0 %v1492
    %1552 = vmatprep.subr.bf16.mxu0 %v1497
    %1553 = vmatpush1.bf16.msra.mxu0 %v1496
    %1554 = vmatprep.subr.bf16.mxu0 %v1501
    %1555 = vmatpush1.bf16.msra.mxu0 %v1500
    %1556 = vmatprep.subr.bf16.mxu0 %v1505
    %1557 = vmatpush1.bf16.msra.mxu0 %v1504
    %1558 = vmatprep.subr.bf16.mxu0 %v1509
    %1559 = vmatpush1.bf16.msra.mxu0 %v1508
    %1560 = vmatprep.subr.bf16.mxu0 0
    %1561 = vmatpush1.bf16.msra.mxu0 0
    %1562 = vmatprep.subr.bf16.mxu0 0
    %1563 = vmatpush1.bf16.msra.mxu0 0
    %1564 = vmatprep.subr.bf16.mxu0 0
    %1565 = vmatpush1.bf16.msra.mxu0 0
    %1566 = vmatprep.subr.bf16.mxu0 0
    %1567 = vmatpush1.bf16.msra.mxu0 0
    %1568 = vmatprep.subr.bf16.mxu0 0
    %1569 = vmatpush1.bf16.msra.mxu0 0
    %1570 = vmatprep.subr.bf16.mxu0 0
    %1571 = vmatpush1.bf16.msra.mxu0 0
    %1572 = vmatprep.subr.bf16.mxu0 0
    %1573 = vmatpush1.bf16.msra.mxu0 0
    %1574 = vmatprep.subr.bf16.mxu0 0
    %1575 = vmatpush1.bf16.msra.mxu0 0
    %1576 = vmatprep.mubr.bf16.mxu0 0
    %1577 = vmatmul.mubr.bf16.gmra.mrb[0].mxu0 %v1351
    %v1578 = vpop.f32.mrb[0].mxu0
    %v1579 = vadd.f32 0.0, %v1578
    %v1580 = vpop.f32.mrb[0].mxu0
    %v1581 = vadd.f32 0.0, %v1580
    %v1582 = vpop.f32.mrb[0].mxu0
    %v1583 = vpop.f32.mrb[0].mxu0
    %1584 = vdwg.mxu0
    %1585 = vmatprep.subr.bf16.mxu0 %v1483
    %1586 = vmatpush1.bf16.msra.mxu0 %v1482
    %1587 = vmatprep.subr.bf16.mxu0 %v1487
    %1588 = vmatpush1.bf16.msra.mxu0 %v1486
    %1589 = vmatprep.subr.bf16.mxu0 %v1491
    %1590 = vmatpush1.bf16.msra.mxu0 %v1490
    %1591 = vmatprep.subr.bf16.mxu0 %v1495
    %1592 = vmatpush1.bf16.msra.mxu0 %v1494
    %1593 = vmatprep.subr.bf16.mxu0 %v1499
    %1594 = vmatpush1.bf16.msra.mxu0 %v1498
    %1595 = vmatprep.subr.bf16.mxu0 %v1503
    %1596 = vmatpush1.bf16.msra.mxu0 %v1502
    %1597 = vmatprep.subr.bf16.mxu0 %v1507
    %1598 = vmatpush1.bf16.msra.mxu0 %v1506
    %1599 = vmatprep.subr.bf16.mxu0 %v1511
    %1600 = vmatpush1.bf16.msra.mxu0 %v1510
    %1601 = vmatprep.subr.bf16.mxu0 0
    %1602 = vmatpush1.bf16.msra.mxu0 0
    %1603 = vmatprep.subr.bf16.mxu0 0
    %1604 = vmatpush1.bf16.msra.mxu0 0
    %1605 = vmatprep.subr.bf16.mxu0 0
    %1606 = vmatpush1.bf16.msra.mxu0 0
    %1607 = vmatprep.subr.bf16.mxu0 0
    %1608 = vmatpush1.bf16.msra.mxu0 0
    %1609 = vmatprep.subr.bf16.mxu0 0
    %1610 = vmatpush1.bf16.msra.mxu0 0
    %1611 = vmatprep.subr.bf16.mxu0 0
    %1612 = vmatpush1.bf16.msra.mxu0 0
    %1613 = vmatprep.subr.bf16.mxu0 0
    %1614 = vmatpush1.bf16.msra.mxu0 0
    %1615 = vmatprep.subr.bf16.mxu0 0
    %1616 = vmatpush1.bf16.msra.mxu0 0
    %1617 = vmatprep.mubr.bf16.mxu0 0
    %1618 = vmatmul.mubr.bf16.gmra.mrb[0].mxu0 %v1351
    %v1619 = vpop.f32.mrb[0].mxu0
    %v1620 = vadd.f32 0.0, %v1619
    %v1621 = vpop.f32.mrb[0].mxu0
    %v1622 = vadd.f32 0.0, %v1621
    %v1623 = vpop.f32.mrb[0].mxu0
    %v1624 = vpop.f32.mrb[0].mxu0
    %1625 = vdwg.mxu0
    %v1626 = vadd.f32 %v1346, %v1579
    %v1627 = vadd.f32 %v1347, %v1581
    %v1628 = vadd.f32 %v1348, %v1620
    %v1629 = vadd.f32 %v1349, %v1622
    %v1630 = vld [vmem:[#allocation3] sm:$0xff]
    %v1631 = vxor.u32 %v1626, 2147483648
    %v1632 = vxor.u32 %v1627, 2147483648
    %v1633 = vxor.u32 %v1628, 2147483648
    %v1634 = vmul.f32 %v1631, 1.442695
    %v1635 = vpow.pop %v1634
    %v1636 = vmul.f32 %v1632, 1.442695
    %v1637 = vpow.pop %v1636
    %v1638 = vmul.f32 %v1633, 1.442695
    %v1639 = vpow.pop %v1638
    %v1640 = vadd.f32 %v1635, 1.0
    %v1641 = vadd.f32 %v1637, 1.0
    %v1642 = vadd.f32 %v1639, 1.0
    %v1643 = vrcp.pop %v1640
    %v1644 = vmul.f32 1.0, %v1643
    %v1645 = vrcp.pop %v1641
    %v1646 = vmul.f32 1.0, %v1645
    %v1647 = vrcp.pop %v1642
    %v1648 = vmul.f32 1.0, %v1647
    %v1649 = vtanh.pop %v1629
    %v1650 = vmul.f32 %v1646, %v1630
    %v1651 = vmul.f32 %v1644, %v1649
    %v1652 = vadd.f32 %v1650, %v1651
    %v1653 = vtanh.pop %v1652
    %v1654 = vmul.f32 %v1648, %v1653
    %1655 = vst [vmem:[#allocation2] sm:$0xff] %v1654
    %1656 = vst [vmem:[#allocation3] sm:$0xff] %v1652
    %v1657 = vpack.c.bf16 %v1654, %v1654
    %v1658 = vld [vmem:[%s846] sm:$0xff]
    %v1659 = vpack.c.bf16 %v1658, %v1658
    %v1660 = vld [vmem:[#allocation11] sm:$0xff]
    %v1661 = vld [vmem:[#allocation11 + $0x8] sm:$0xff]
    %v1662 = vld [vmem:[#allocation11 + $0x10] sm:$0xff]
    %v1663 = vld [vmem:[#allocation11 + $0x18] sm:$0xff]
    %v1664 = vld [vmem:[#allocation11 + $0x20] sm:$0xff]
    %v1665 = vld [vmem:[#allocation11 + $0x28] sm:$0xff]
    %v1666 = vld [vmem:[#allocation11 + $0x30] sm:$0xff]
    %v1667 = vld [vmem:[#allocation11 + $0x38] sm:$0xff]
    %v1668 = vld [vmem:[#allocation11 + $0x40] sm:$0xff]
    %v1669 = vld [vmem:[#allocation11 + $0x48] sm:$0xff]
    %v1670 = vld [vmem:[#allocation11 + $0x50] sm:$0xff]
    %v1671 = vld [vmem:[#allocation11 + $0x58] sm:$0xff]
    %v1672 = vld [vmem:[#allocation11 + $0x60] sm:$0xff]
    %v1673 = vld [vmem:[#allocation11 + $0x68] sm:$0xff]
    %v1674 = vld [vmem:[#allocation11 + $0x70] sm:$0xff]
    %v1675 = vld [vmem:[#allocation11 + $0x78] sm:$0xff]
    %v1676 = vld [vmem:[#allocation11 + $0x80] sm:$0xff]
    %v1677 = vld [vmem:[#allocation11 + $0x88] sm:$0xff]
    %v1678 = vld [vmem:[#allocation11 + $0x90] sm:$0xff]
    %v1679 = vld [vmem:[#allocation11 + $0x98] sm:$0xff]
    %v1680 = vld [vmem:[#allocation11 + $0xa0] sm:$0xff]
    %v1681 = vld [vmem:[#allocation11 + $0xa8] sm:$0xff]
    %v1682 = vld [vmem:[#allocation11 + $0xb0] sm:$0xff]
    %v1683 = vld [vmem:[#allocation11 + $0xb8] sm:$0xff]
    %v1684 = vld [vmem:[#allocation11 + $0xc0] sm:$0xff]
    %v1685 = vld [vmem:[#allocation11 + $0xc8] sm:$0xff]
    %v1686 = vld [vmem:[#allocation11 + $0xd0] sm:$0xff]
    %v1687 = vld [vmem:[#allocation11 + $0xd8] sm:$0xff]
    %v1688 = vld [vmem:[#allocation11 + $0xe0] sm:$0xff]
    %v1689 = vld [vmem:[#allocation11 + $0xe8] sm:$0xff]
    %v1690 = vld [vmem:[#allocation11 + $0xf0] sm:$0xff]
    %v1691 = vld [vmem:[#allocation11 + $0xf8] sm:$0xff]
    %v1692 = vld [vmem:[#allocation11 + $0x100] sm:$0xff]
    %v1693 = vld [vmem:[#allocation11 + $0x108] sm:$0xff]
    %v1694 = vld [vmem:[#allocation11 + $0x110] sm:$0xff]
    %v1695 = vld [vmem:[#allocation11 + $0x118] sm:$0xff]
    %v1696 = vld [vmem:[#allocation11 + $0x120] sm:$0xff]
    %v1697 = vld [vmem:[#allocation11 + $0x128] sm:$0xff]
    %v1698 = vld [vmem:[#allocation11 + $0x130] sm:$0xff]
    %v1699 = vld [vmem:[#allocation11 + $0x138] sm:$0xff]
    %v1700 = vld [vmem:[#allocation11 + $0x140] sm:$0xff]
    %v1701 = vld [vmem:[#allocation11 + $0x148] sm:$0xff]
    %v1702 = vld [vmem:[#allocation11 + $0x150] sm:$0xff]
    %v1703 = vld [vmem:[#allocation11 + $0x158] sm:$0xff]
    %v1704 = vld [vmem:[#allocation11 + $0x160] sm:$0xff]
    %v1705 = vld [vmem:[#allocation11 + $0x168] sm:$0xff]
    %v1706 = vld [vmem:[#allocation11 + $0x170] sm:$0xff]
    %v1707 = vld [vmem:[#allocation11 + $0x178] sm:$0xff]
    %v1708 = vld [vmem:[#allocation11 + $0x180] sm:$0xff]
    %v1709 = vld [vmem:[#allocation11 + $0x188] sm:$0xff]
    %v1710 = vld [vmem:[#allocation11 + $0x190] sm:$0xff]
    %v1711 = vld [vmem:[#allocation11 + $0x198] sm:$0xff]
    %v1712 = vld [vmem:[#allocation11 + $0x1a0] sm:$0xff]
    %v1713 = vld [vmem:[#allocation11 + $0x1a8] sm:$0xff]
    %v1714 = vld [vmem:[#allocation11 + $0x1b0] sm:$0xff]
    %v1715 = vld [vmem:[#allocation11 + $0x1b8] sm:$0xff]
    %v1716 = vld [vmem:[#allocation11 + $0x1c0] sm:$0xff]
    %v1717 = vld [vmem:[#allocation11 + $0x1c8] sm:$0xff]
    %v1718 = vld [vmem:[#allocation11 + $0x1d0] sm:$0xff]
    %v1719 = vld [vmem:[#allocation11 + $0x1d8] sm:$0xff]
    %v1720 = vld [vmem:[#allocation11 + $0x1e0] sm:$0xff]
    %v1721 = vld [vmem:[#allocation11 + $0x1e8] sm:$0xff]
    %v1722 = vld [vmem:[#allocation11 + $0x1f0] sm:$0xff]
    %v1723 = vld [vmem:[#allocation11 + $0x1f8] sm:$0xff]
    %v1788 = vunpack.c.l.b16 %v1660
    %v1789 = vunpack.c.h.b16 %v1660
    %v1790 = vunpack.c.l.b16 %v1661
    %v1791 = vunpack.c.h.b16 %v1661
    %v1792 = vunpack.c.l.b16 %v1662
    %v1793 = vunpack.c.h.b16 %v1662
    %v1794 = vunpack.c.l.b16 %v1663
    %v1795 = vunpack.c.h.b16 %v1663
    %v1796 = vunpack.c.l.b16 %v1664
    %v1797 = vunpack.c.h.b16 %v1664
    %v1798 = vunpack.c.l.b16 %v1665
    %v1799 = vunpack.c.h.b16 %v1665
    %v1800 = vunpack.c.l.b16 %v1666
    %v1801 = vunpack.c.h.b16 %v1666
    %v1802 = vunpack.c.l.b16 %v1667
    %v1803 = vunpack.c.h.b16 %v1667
    %v1804 = vunpack.c.l.b16 %v1668
    %v1805 = vunpack.c.h.b16 %v1668
    %v1806 = vunpack.c.l.b16 %v1669
    %v1807 = vunpack.c.h.b16 %v1669
    %v1808 = vunpack.c.l.b16 %v1670
    %v1809 = vunpack.c.h.b16 %v1670
    %v1810 = vunpack.c.l.b16 %v1671
    %v1811 = vunpack.c.h.b16 %v1671
    %v1812 = vunpack.c.l.b16 %v1672
    %v1813 = vunpack.c.h.b16 %v1672
    %v1814 = vunpack.c.l.b16 %v1673
    %v1815 = vunpack.c.h.b16 %v1673
    %v1816 = vunpack.c.l.b16 %v1674
    %v1817 = vunpack.c.h.b16 %v1674
    %v1818 = vunpack.c.l.b16 %v1675
    %v1819 = vunpack.c.h.b16 %v1675
    %v1820 = vunpack.c.l.b16 %v1676
    %v1821 = vunpack.c.h.b16 %v1676
    %v1822 = vunpack.c.l.b16 %v1677
    %v1823 = vunpack.c.h.b16 %v1677
    %v1824 = vunpack.c.l.b16 %v1678
    %v1825 = vunpack.c.h.b16 %v1678
    %v1826 = vunpack.c.l.b16 %v1679
    %v1827 = vunpack.c.h.b16 %v1679
    %v1828 = vunpack.c.l.b16 %v1680
    %v1829 = vunpack.c.h.b16 %v1680
    %v1830 = vunpack.c.l.b16 %v1681
    %v1831 = vunpack.c.h.b16 %v1681
    %v1832 = vunpack.c.l.b16 %v1682
    %v1833 = vunpack.c.h.b16 %v1682
    %v1834 = vunpack.c.l.b16 %v1683
    %v1835 = vunpack.c.h.b16 %v1683
    %v1836 = vunpack.c.l.b16 %v1684
    %v1837 = vunpack.c.h.b16 %v1684
    %v1838 = vunpack.c.l.b16 %v1685
    %v1839 = vunpack.c.h.b16 %v1685
    %v1840 = vunpack.c.l.b16 %v1686
    %v1841 = vunpack.c.h.b16 %v1686
    %v1842 = vunpack.c.l.b16 %v1687
    %v1843 = vunpack.c.h.b16 %v1687
    %v1844 = vunpack.c.l.b16 %v1688
    %v1845 = vunpack.c.h.b16 %v1688
    %v1846 = vunpack.c.l.b16 %v1689
    %v1847 = vunpack.c.h.b16 %v1689
    %v1848 = vunpack.c.l.b16 %v1690
    %v1849 = vunpack.c.h.b16 %v1690
    %v1850 = vunpack.c.l.b16 %v1691
    %v1851 = vunpack.c.h.b16 %v1691
    %v1852 = vunpack.c.l.b16 %v1692
    %v1853 = vunpack.c.h.b16 %v1692
    %v1854 = vunpack.c.l.b16 %v1693
    %v1855 = vunpack.c.h.b16 %v1693
    %v1856 = vunpack.c.l.b16 %v1694
    %v1857 = vunpack.c.h.b16 %v1694
    %v1858 = vunpack.c.l.b16 %v1695
    %v1859 = vunpack.c.h.b16 %v1695
    %v1860 = vunpack.c.l.b16 %v1696
    %v1861 = vunpack.c.h.b16 %v1696
    %v1862 = vunpack.c.l.b16 %v1697
    %v1863 = vunpack.c.h.b16 %v1697
    %v1864 = vunpack.c.l.b16 %v1698
    %v1865 = vunpack.c.h.b16 %v1698
    %v1866 = vunpack.c.l.b16 %v1699
    %v1867 = vunpack.c.h.b16 %v1699
    %v1868 = vunpack.c.l.b16 %v1700
    %v1869 = vunpack.c.h.b16 %v1700
    %v1870 = vunpack.c.l.b16 %v1701
    %v1871 = vunpack.c.h.b16 %v1701
    %v1872 = vunpack.c.l.b16 %v1702
    %v1873 = vunpack.c.h.b16 %v1702
    %v1874 = vunpack.c.l.b16 %v1703
    %v1875 = vunpack.c.h.b16 %v1703
    %v1876 = vunpack.c.l.b16 %v1704
    %v1877 = vunpack.c.h.b16 %v1704
    %v1878 = vunpack.c.l.b16 %v1705
    %v1879 = vunpack.c.h.b16 %v1705
    %v1880 = vunpack.c.l.b16 %v1706
    %v1881 = vunpack.c.h.b16 %v1706
    %v1882 = vunpack.c.l.b16 %v1707
    %v1883 = vunpack.c.h.b16 %v1707
    %v1884 = vunpack.c.l.b16 %v1708
    %v1885 = vunpack.c.h.b16 %v1708
    %v1886 = vunpack.c.l.b16 %v1709
    %v1887 = vunpack.c.h.b16 %v1709
    %v1888 = vunpack.c.l.b16 %v1710
    %v1889 = vunpack.c.h.b16 %v1710
    %v1890 = vunpack.c.l.b16 %v1711
    %v1891 = vunpack.c.h.b16 %v1711
    %v1892 = vunpack.c.l.b16 %v1712
    %v1893 = vunpack.c.h.b16 %v1712
    %v1894 = vunpack.c.l.b16 %v1713
    %v1895 = vunpack.c.h.b16 %v1713
    %v1896 = vunpack.c.l.b16 %v1714
    %v1897 = vunpack.c.h.b16 %v1714
    %v1898 = vunpack.c.l.b16 %v1715
    %v1899 = vunpack.c.h.b16 %v1715
    %v1900 = vunpack.c.l.b16 %v1716
    %v1901 = vunpack.c.h.b16 %v1716
    %v1902 = vunpack.c.l.b16 %v1717
    %v1903 = vunpack.c.h.b16 %v1717
    %v1904 = vunpack.c.l.b16 %v1718
    %v1905 = vunpack.c.h.b16 %v1718
    %v1906 = vunpack.c.l.b16 %v1719
    %v1907 = vunpack.c.h.b16 %v1719
    %v1908 = vunpack.c.l.b16 %v1720
    %v1909 = vunpack.c.h.b16 %v1720
    %v1910 = vunpack.c.l.b16 %v1721
    %v1911 = vunpack.c.h.b16 %v1721
    %v1912 = vunpack.c.l.b16 %v1722
    %v1913 = vunpack.c.h.b16 %v1722
    %v1914 = vunpack.c.l.b16 %v1723
    %v1915 = vunpack.c.h.b16 %v1723
    %v1916 = vpack.c.b16 %v1792, %v1788
    %v1917 = vpack.c.b16 %v1793, %v1789
    %v1918 = vpack.c.b16 %v1794, %v1790
    %v1919 = vpack.c.b16 %v1795, %v1791
    %v1920 = vpack.c.b16 %v1800, %v1796
    %v1921 = vpack.c.b16 %v1801, %v1797
    %v1922 = vpack.c.b16 %v1802, %v1798
    %v1923 = vpack.c.b16 %v1803, %v1799
    %v1924 = vpack.c.b16 %v1808, %v1804
    %v1925 = vpack.c.b16 %v1809, %v1805
    %v1926 = vpack.c.b16 %v1810, %v1806
    %v1927 = vpack.c.b16 %v1811, %v1807
    %v1928 = vpack.c.b16 %v1816, %v1812
    %v1929 = vpack.c.b16 %v1817, %v1813
    %v1930 = vpack.c.b16 %v1818, %v1814
    %v1931 = vpack.c.b16 %v1819, %v1815
    %v1932 = vpack.c.b16 %v1824, %v1820
    %v1933 = vpack.c.b16 %v1825, %v1821
    %v1934 = vpack.c.b16 %v1826, %v1822
    %v1935 = vpack.c.b16 %v1827, %v1823
    %v1936 = vpack.c.b16 %v1832, %v1828
    %v1937 = vpack.c.b16 %v1833, %v1829
    %v1938 = vpack.c.b16 %v1834, %v1830
    %v1939 = vpack.c.b16 %v1835, %v1831
    %v1940 = vpack.c.b16 %v1840, %v1836
    %v1941 = vpack.c.b16 %v1841, %v1837
    %v1942 = vpack.c.b16 %v1842, %v1838
    %v1943 = vpack.c.b16 %v1843, %v1839
    %v1944 = vpack.c.b16 %v1848, %v1844
    %v1945 = vpack.c.b16 %v1849, %v1845
    %v1946 = vpack.c.b16 %v1850, %v1846
    %v1947 = vpack.c.b16 %v1851, %v1847
    %v1948 = vpack.c.b16 %v1856, %v1852
    %v1949 = vpack.c.b16 %v1857, %v1853
    %v1950 = vpack.c.b16 %v1858, %v1854
    %v1951 = vpack.c.b16 %v1859, %v1855
    %v1952 = vpack.c.b16 %v1864, %v1860
    %v1953 = vpack.c.b16 %v1865, %v1861
    %v1954 = vpack.c.b16 %v1866, %v1862
    %v1955 = vpack.c.b16 %v1867, %v1863
    %v1956 = vpack.c.b16 %v1872, %v1868
    %v1957 = vpack.c.b16 %v1873, %v1869
    %v1958 = vpack.c.b16 %v1874, %v1870
    %v1959 = vpack.c.b16 %v1875, %v1871
    %v1960 = vpack.c.b16 %v1880, %v1876
    %v1961 = vpack.c.b16 %v1881, %v1877
    %v1962 = vpack.c.b16 %v1882, %v1878
    %v1963 = vpack.c.b16 %v1883, %v1879
    %v1964 = vpack.c.b16 %v1888, %v1884
    %v1965 = vpack.c.b16 %v1889, %v1885
    %v1966 = vpack.c.b16 %v1890, %v1886
    %v1967 = vpack.c.b16 %v1891, %v1887
    %v1968 = vpack.c.b16 %v1896, %v1892
    %v1969 = vpack.c.b16 %v1897, %v1893
    %v1970 = vpack.c.b16 %v1898, %v1894
    %v1971 = vpack.c.b16 %v1899, %v1895
    %v1972 = vpack.c.b16 %v1904, %v1900
    %v1973 = vpack.c.b16 %v1905, %v1901
    %v1974 = vpack.c.b16 %v1906, %v1902
    %v1975 = vpack.c.b16 %v1907, %v1903
    %v1976 = vpack.c.b16 %v1912, %v1908
    %v1977 = vpack.c.b16 %v1913, %v1909
    %v1978 = vpack.c.b16 %v1914, %v1910
    %v1979 = vpack.c.b16 %v1915, %v1911
    %2044 = vmatprep.subr.bf16.mxu0 %v1917
    %2045 = vmatpush1.bf16.msra.mxu0 %v1916
    %2046 = vmatprep.subr.bf16.mxu0 %v1921
    %2047 = vmatpush1.bf16.msra.mxu0 %v1920
    %2048 = vmatprep.subr.bf16.mxu0 %v1925
    %2049 = vmatpush1.bf16.msra.mxu0 %v1924
    %2050 = vmatprep.subr.bf16.mxu0 %v1929
    %2051 = vmatpush1.bf16.msra.mxu0 %v1928
    %2052 = vmatprep.subr.bf16.mxu0 %v1933
    %2053 = vmatpush1.bf16.msra.mxu0 %v1932
    %2054 = vmatprep.subr.bf16.mxu0 %v1937
    %2055 = vmatpush1.bf16.msra.mxu0 %v1936
    %2056 = vmatprep.subr.bf16.mxu0 %v1941
    %2057 = vmatpush1.bf16.msra.mxu0 %v1940
    %2058 = vmatprep.subr.bf16.mxu0 %v1945
    %2059 = vmatpush1.bf16.msra.mxu0 %v1944
    %2060 = vmatprep.subr.bf16.mxu0 %v1949
    %2061 = vmatpush1.bf16.msra.mxu0 %v1948
    %2062 = vmatprep.subr.bf16.mxu0 %v1953
    %2063 = vmatpush1.bf16.msra.mxu0 %v1952
    %2064 = vmatprep.subr.bf16.mxu0 %v1957
    %2065 = vmatpush1.bf16.msra.mxu0 %v1956
    %2066 = vmatprep.subr.bf16.mxu0 %v1961
    %2067 = vmatpush1.bf16.msra.mxu0 %v1960
    %2068 = vmatprep.subr.bf16.mxu0 %v1965
    %2069 = vmatpush1.bf16.msra.mxu0 %v1964
    %2070 = vmatprep.subr.bf16.mxu0 %v1969
    %2071 = vmatpush1.bf16.msra.mxu0 %v1968
    %2072 = vmatprep.subr.bf16.mxu0 %v1973
    %2073 = vmatpush1.bf16.msra.mxu0 %v1972
    %2074 = vmatprep.subr.bf16.mxu0 %v1977
    %2075 = vmatpush1.bf16.msra.mxu0 %v1976
    %2076 = vmatprep.mubr.bf16.mxu0 %v1659
    %2077 = vmatmul.mubr.bf16.gmra.mrb[0].mxu0 %v1657
    %v2078 = vpop.f32.mrb[0].mxu0
    %v2079 = vadd.f32 %v517, %v2078
    %v2080 = vpop.f32.mrb[0].mxu0
    %v2081 = vadd.f32 %v521, %v2080
    %v2082 = vpop.f32.mrb[0].mxu0
    %v2083 = vpop.f32.mrb[0].mxu0
    %2084 = vdwg.mxu0
    %2085 = vmatprep.subr.bf16.mxu0 %v1919
    %2086 = vmatpush1.bf16.msra.mxu0 %v1918
    %2087 = vmatprep.subr.bf16.mxu0 %v1923
    %2088 = vmatpush1.bf16.msra.mxu0 %v1922
    %2089 = vmatprep.subr.bf16.mxu0 %v1927
    %2090 = vmatpush1.bf16.msra.mxu0 %v1926
    %2091 = vmatprep.subr.bf16.mxu0 %v1931
    %2092 = vmatpush1.bf16.msra.mxu0 %v1930
    %2093 = vmatprep.subr.bf16.mxu0 %v1935
    %2094 = vmatpush1.bf16.msra.mxu0 %v1934
    %2095 = vmatprep.subr.bf16.mxu0 %v1939
    %2096 = vmatpush1.bf16.msra.mxu0 %v1938
    %2097 = vmatprep.subr.bf16.mxu0 %v1943
    %2098 = vmatpush1.bf16.msra.mxu0 %v1942
    %2099 = vmatprep.subr.bf16.mxu0 %v1947
    %2100 = vmatpush1.bf16.msra.mxu0 %v1946
    %2101 = vmatprep.subr.bf16.mxu0 %v1951
    %2102 = vmatpush1.bf16.msra.mxu0 %v1950
    %2103 = vmatprep.subr.bf16.mxu0 %v1955
    %2104 = vmatpush1.bf16.msra.mxu0 %v1954
    %2105 = vmatprep.subr.bf16.mxu0 %v1959
    %2106 = vmatpush1.bf16.msra.mxu0 %v1958
    %2107 = vmatprep.subr.bf16.mxu0 %v1963
    %2108 = vmatpush1.bf16.msra.mxu0 %v1962
    %2109 = vmatprep.subr.bf16.mxu0 %v1967
    %2110 = vmatpush1.bf16.msra.mxu0 %v1966
    %2111 = vmatprep.subr.bf16.mxu0 %v1971
    %2112 = vmatpush1.bf16.msra.mxu0 %v1970
    %2113 = vmatprep.subr.bf16.mxu0 %v1975
    %2114 = vmatpush1.bf16.msra.mxu0 %v1974
    %2115 = vmatprep.subr.bf16.mxu0 %v1979
    %2116 = vmatpush1.bf16.msra.mxu0 %v1978
    %2117 = vmatprep.mubr.bf16.mxu0 %v1659
    %2118 = vmatmul.mubr.bf16.gmra.mrb[0].mxu0 %v1657
    %v2119 = vpop.f32.mrb[0].mxu0
    %v2120 = vadd.f32 %v525, %v2119
    %v2121 = vpop.f32.mrb[0].mxu0
    %v2122 = vadd.f32 %v529, %v2121
    %v2123 = vpop.f32.mrb[0].mxu0
    %v2124 = vpop.f32.mrb[0].mxu0
    %2125 = vdwg.mxu0
    %v2126 = vld [vmem:[%s1315] sm:$0xff]
    %v2127 = vxor.u32 %v2079, 2147483648
    %v2128 = vxor.u32 %v2081, 2147483648
    %v2129 = vxor.u32 %v2120, 2147483648
    %v2130 = vmul.f32 %v2127, 1.442695
    %v2131 = vpow.pop %v2130
    %v2132 = vmul.f32 %v2128, 1.442695
    %v2133 = vpow.pop %v2132
    %v2134 = vmul.f32 %v2129, 1.442695
    %v2135 = vpow.pop %v2134
    %v2136 = vadd.f32 %v2131, 1.0
    %v2137 = vadd.f32 %v2133, 1.0
    %v2138 = vadd.f32 %v2135, 1.0
    %v2139 = vrcp.pop %v2136
    %v2140 = vmul.f32 1.0, %v2139
    %v2141 = vrcp.pop %v2137
    %v2142 = vmul.f32 1.0, %v2141
    %v2143 = vrcp.pop %v2138
    %v2144 = vmul.f32 1.0, %v2143
    %v2145 = vtanh.pop %v2122
    %v2146 = vmul.f32 %v2142, %v2126
    %v2147 = vmul.f32 %v2140, %v2145
    %v2148 = vadd.f32 %v2146, %v2147
    %v2149 = vtanh.pop %v2148
    %v2150 = vmul.f32 %v2144, %v2149
    %2151 = vst [vmem:[%s846] sm:$0xff] %v2150
    %2152 = vst [vmem:[%s1315] sm:$0xff] %v2148
    %v2153 = vpack.c.bf16 %v2150, %v2150
    %s2154 = scalar_lea.vmem [#allocation13], 4
    %2155 = vst [vmem:[%s2154] sm:$0xf] %v2153
    %s2156 = scalar_lea.vmem [#allocation4], 64
    %v2157 = vld [vmem:[%s2156] sm:$0xff]
    %v2158 = vld [vmem:[%s2156 + $0x8] sm:$0xff]
    %v2159 = vld [vmem:[%s2156 + $0x10] sm:$0xff]
    %v2160 = vld [vmem:[%s2156 + $0x18] sm:$0xff]
    %v2161 = vld [vmem:[#allocation2] sm:$0xff]
    %v2162 = vpack.c.bf16 %v2161, %v2161
    %v2163 = vld [vmem:[#allocation10] sm:$0xff]
    %v2164 = vld [vmem:[#allocation10 + $0x8] sm:$0xff]
    %v2165 = vld [vmem:[#allocation10 + $0x10] sm:$0xff]
    %v2166 = vld [vmem:[#allocation10 + $0x18] sm:$0xff]
    %v2167 = vld [vmem:[#allocation10 + $0x20] sm:$0xff]
    %v2168 = vld [vmem:[#allocation10 + $0x28] sm:$0xff]
    %v2169 = vld [vmem:[#allocation10 + $0x30] sm:$0xff]
    %v2170 = vld [vmem:[#allocation10 + $0x38] sm:$0xff]
    %v2171 = vld [vmem:[#allocation10 + $0x40] sm:$0xff]
    %v2172 = vld [vmem:[#allocation10 + $0x48] sm:$0xff]
    %v2173 = vld [vmem:[#allocation10 + $0x50] sm:$0xff]
    %v2174 = vld [vmem:[#allocation10 + $0x58] sm:$0xff]
    %v2175 = vld [vmem:[#allocation10 + $0x60] sm:$0xff]
    %v2176 = vld [vmem:[#allocation10 + $0x68] sm:$0xff]
    %v2177 = vld [vmem:[#allocation10 + $0x70] sm:$0xff]
    %v2178 = vld [vmem:[#allocation10 + $0x78] sm:$0xff]
    %v2179 = vld [vmem:[#allocation10 + $0x80] sm:$0xff]
    %v2180 = vld [vmem:[#allocation10 + $0x88] sm:$0xff]
    %v2181 = vld [vmem:[#allocation10 + $0x90] sm:$0xff]
    %v2182 = vld [vmem:[#allocation10 + $0x98] sm:$0xff]
    %v2183 = vld [vmem:[#allocation10 + $0xa0] sm:$0xff]
    %v2184 = vld [vmem:[#allocation10 + $0xa8] sm:$0xff]
    %v2185 = vld [vmem:[#allocation10 + $0xb0] sm:$0xff]
    %v2186 = vld [vmem:[#allocation10 + $0xb8] sm:$0xff]
    %v2187 = vld [vmem:[#allocation10 + $0xc0] sm:$0xff]
    %v2188 = vld [vmem:[#allocation10 + $0xc8] sm:$0xff]
    %v2189 = vld [vmem:[#allocation10 + $0xd0] sm:$0xff]
    %v2190 = vld [vmem:[#allocation10 + $0xd8] sm:$0xff]
    %v2191 = vld [vmem:[#allocation10 + $0xe0] sm:$0xff]
    %v2192 = vld [vmem:[#allocation10 + $0xe8] sm:$0xff]
    %v2193 = vld [vmem:[#allocation10 + $0xf0] sm:$0xff]
    %v2194 = vld [vmem:[#allocation10 + $0xf8] sm:$0xff]
    %v2227 = vunpack.c.l.b16 %v2163
    %v2228 = vunpack.c.h.b16 %v2163
    %v2229 = vunpack.c.l.b16 %v2164
    %v2230 = vunpack.c.h.b16 %v2164
    %v2231 = vunpack.c.l.b16 %v2165
    %v2232 = vunpack.c.h.b16 %v2165
    %v2233 = vunpack.c.l.b16 %v2166
    %v2234 = vunpack.c.h.b16 %v2166
    %v2235 = vunpack.c.l.b16 %v2167
    %v2236 = vunpack.c.h.b16 %v2167
    %v2237 = vunpack.c.l.b16 %v2168
    %v2238 = vunpack.c.h.b16 %v2168
    %v2239 = vunpack.c.l.b16 %v2169
    %v2240 = vunpack.c.h.b16 %v2169
    %v2241 = vunpack.c.l.b16 %v2170
    %v2242 = vunpack.c.h.b16 %v2170
    %v2243 = vunpack.c.l.b16 %v2171
    %v2244 = vunpack.c.h.b16 %v2171
    %v2245 = vunpack.c.l.b16 %v2172
    %v2246 = vunpack.c.h.b16 %v2172
    %v2247 = vunpack.c.l.b16 %v2173
    %v2248 = vunpack.c.h.b16 %v2173
    %v2249 = vunpack.c.l.b16 %v2174
    %v2250 = vunpack.c.h.b16 %v2174
    %v2251 = vunpack.c.l.b16 %v2175
    %v2252 = vunpack.c.h.b16 %v2175
    %v2253 = vunpack.c.l.b16 %v2176
    %v2254 = vunpack.c.h.b16 %v2176
    %v2255 = vunpack.c.l.b16 %v2177
    %v2256 = vunpack.c.h.b16 %v2177
    %v2257 = vunpack.c.l.b16 %v2178
    %v2258 = vunpack.c.h.b16 %v2178
    %v2259 = vunpack.c.l.b16 %v2179
    %v2260 = vunpack.c.h.b16 %v2179
    %v2261 = vunpack.c.l.b16 %v2180
    %v2262 = vunpack.c.h.b16 %v2180
    %v2263 = vunpack.c.l.b16 %v2181
    %v2264 = vunpack.c.h.b16 %v2181
    %v2265 = vunpack.c.l.b16 %v2182
    %v2266 = vunpack.c.h.b16 %v2182
    %v2267 = vunpack.c.l.b16 %v2183
    %v2268 = vunpack.c.h.b16 %v2183
    %v2269 = vunpack.c.l.b16 %v2184
    %v2270 = vunpack.c.h.b16 %v2184
    %v2271 = vunpack.c.l.b16 %v2185
    %v2272 = vunpack.c.h.b16 %v2185
    %v2273 = vunpack.c.l.b16 %v2186
    %v2274 = vunpack.c.h.b16 %v2186
    %v2275 = vunpack.c.l.b16 %v2187
    %v2276 = vunpack.c.h.b16 %v2187
    %v2277 = vunpack.c.l.b16 %v2188
    %v2278 = vunpack.c.h.b16 %v2188
    %v2279 = vunpack.c.l.b16 %v2189
    %v2280 = vunpack.c.h.b16 %v2189
    %v2281 = vunpack.c.l.b16 %v2190
    %v2282 = vunpack.c.h.b16 %v2190
    %v2283 = vunpack.c.l.b16 %v2191
    %v2284 = vunpack.c.h.b16 %v2191
    %v2285 = vunpack.c.l.b16 %v2192
    %v2286 = vunpack.c.h.b16 %v2192
    %v2287 = vunpack.c.l.b16 %v2193
    %v2288 = vunpack.c.h.b16 %v2193
    %v2289 = vunpack.c.l.b16 %v2194
    %v2290 = vunpack.c.h.b16 %v2194
    %v2291 = vpack.c.b16 %v2231, %v2227
    %v2292 = vpack.c.b16 %v2232, %v2228
    %v2293 = vpack.c.b16 %v2233, %v2229
    %v2294 = vpack.c.b16 %v2234, %v2230
    %v2295 = vpack.c.b16 %v2239, %v2235
    %v2296 = vpack.c.b16 %v2240, %v2236
    %v2297 = vpack.c.b16 %v2241, %v2237
    %v2298 = vpack.c.b16 %v2242, %v2238
    %v2299 = vpack.c.b16 %v2247, %v2243
    %v2300 = vpack.c.b16 %v2248, %v2244
    %v2301 = vpack.c.b16 %v2249, %v2245
    %v2302 = vpack.c.b16 %v2250, %v2246
    %v2303 = vpack.c.b16 %v2255, %v2251
    %v2304 = vpack.c.b16 %v2256, %v2252
    %v2305 = vpack.c.b16 %v2257, %v2253
    %v2306 = vpack.c.b16 %v2258, %v2254
    %v2307 = vpack.c.b16 %v2263, %v2259
    %v2308 = vpack.c.b16 %v2264, %v2260
    %v2309 = vpack.c.b16 %v2265, %v2261
    %v2310 = vpack.c.b16 %v2266, %v2262
    %v2311 = vpack.c.b16 %v2271, %v2267
    %v2312 = vpack.c.b16 %v2272, %v2268
    %v2313 = vpack.c.b16 %v2273, %v2269
    %v2314 = vpack.c.b16 %v2274, %v2270
    %v2315 = vpack.c.b16 %v2279, %v2275
    %v2316 = vpack.c.b16 %v2280, %v2276
    %v2317 = vpack.c.b16 %v2281, %v2277
    %v2318 = vpack.c.b16 %v2282, %v2278
    %v2319 = vpack.c.b16 %v2287, %v2283
    %v2320 = vpack.c.b16 %v2288, %v2284
    %v2321 = vpack.c.b16 %v2289, %v2285
    %v2322 = vpack.c.b16 %v2290, %v2286
    %2355 = vmatprep.subr.bf16.mxu0 %v2292
    %2356 = vmatpush1.bf16.msra.mxu0 %v2291
    %2357 = vmatprep.subr.bf16.mxu0 %v2296
    %2358 = vmatpush1.bf16.msra.mxu0 %v2295
    %2359 = vmatprep.subr.bf16.mxu0 %v2300
    %2360 = vmatpush1.bf16.msra.mxu0 %v2299
    %2361 = vmatprep.subr.bf16.mxu0 %v2304
    %2362 = vmatpush1.bf16.msra.mxu0 %v2303
    %2363 = vmatprep.subr.bf16.mxu0 %v2308
    %2364 = vmatpush1.bf16.msra.mxu0 %v2307
    %2365 = vmatprep.subr.bf16.mxu0 %v2312
    %2366 = vmatpush1.bf16.msra.mxu0 %v2311
    %2367 = vmatprep.subr.bf16.mxu0 %v2316
    %2368 = vmatpush1.bf16.msra.mxu0 %v2315
    %2369 = vmatprep.subr.bf16.mxu0 %v2320
    %2370 = vmatpush1.bf16.msra.mxu0 %v2319
    %2371 = vmatprep.subr.bf16.mxu0 0
    %2372 = vmatpush1.bf16.msra.mxu0 0
    %2373 = vmatprep.subr.bf16.mxu0 0
    %2374 = vmatpush1.bf16.msra.mxu0 0
    %2375 = vmatprep.subr.bf16.mxu0 0
    %2376 = vmatpush1.bf16.msra.mxu0 0
    %2377 = vmatprep.subr.bf16.mxu0 0
    %2378 = vmatpush1.bf16.msra.mxu0 0
    %2379 = vmatprep.subr.bf16.mxu0 0
    %2380 = vmatpush1.bf16.msra.mxu0 0
    %2381 = vmatprep.subr.bf16.mxu0 0
    %2382 = vmatpush1.bf16.msra.mxu0 0
    %2383 = vmatprep.subr.bf16.mxu0 0
    %2384 = vmatpush1.bf16.msra.mxu0 0
    %2385 = vmatprep.subr.bf16.mxu0 0
    %2386 = vmatpush1.bf16.msra.mxu0 0
    %2387 = vmatprep.mubr.bf16.mxu0 0
    %2388 = vmatmul.mubr.bf16.gmra.mrb[0].mxu0 %v2162
    %v2389 = vpop.f32.mrb[0].mxu0
    %v2390 = vadd.f32 0.0, %v2389
    %v2391 = vpop.f32.mrb[0].mxu0
    %v2392 = vadd.f32 0.0, %v2391
    %v2393 = vpop.f32.mrb[0].mxu0
    %v2394 = vpop.f32.mrb[0].mxu0
    %2395 = vdwg.mxu0
    %2396 = vmatprep.subr.bf16.mxu0 %v2294
    %2397 = vmatpush1.bf16.msra.mxu0 %v2293
    %2398 = vmatprep.subr.bf16.mxu0 %v2298
    %2399 = vmatpush1.bf16.msra.mxu0 %v2297
    %2400 = vmatprep.subr.bf16.mxu0 %v2302
    %2401 = vmatpush1.bf16.msra.mxu0 %v2301
    %2402 = vmatprep.subr.bf16.mxu0 %v2306
    %2403 = vmatpush1.bf16.msra.mxu0 %v2305
    %2404 = vmatprep.subr.bf16.mxu0 %v2310
    %2405 = vmatpush1.bf16.msra.mxu0 %v2309
    %2406 = vmatprep.subr.bf16.mxu0 %v2314
    %2407 = vmatpush1.bf16.msra.mxu0 %v2313
    %2408 = vmatprep.subr.bf16.mxu0 %v2318
    %2409 = vmatpush1.bf16.msra.mxu0 %v2317
    %2410 = vmatprep.subr.bf16.mxu0 %v2322
    %2411 = vmatpush1.bf16.msra.mxu0 %v2321
    %2412 = vmatprep.subr.bf16.mxu0 0
    %2413 = vmatpush1.bf16.msra.mxu0 0
    %2414 = vmatprep.subr.bf16.mxu0 0
    %2415 = vmatpush1.bf16.msra.mxu0 0
    %2416 = vmatprep.subr.bf16.mxu0 0
    %2417 = vmatpush1.bf16.msra.mxu0 0
    %2418 = vmatprep.subr.bf16.mxu0 0
    %2419 = vmatpush1.bf16.msra.mxu0 0
    %2420 = vmatprep.subr.bf16.mxu0 0
    %2421 = vmatpush1.bf16.msra.mxu0 0
    %2422 = vmatprep.subr.bf16.mxu0 0
    %2423 = vmatpush1.bf16.msra.mxu0 0
    %2424 = vmatprep.subr.bf16.mxu0 0
    %2425 = vmatpush1.bf16.msra.mxu0 0
    %2426 = vmatprep.subr.bf16.mxu0 0
    %2427 = vmatpush1.bf16.msra.mxu0 0
    %2428 = vmatprep.mubr.bf16.mxu0 0
    %2429 = vmatmul.mubr.bf16.gmra.mrb[0].mxu0 %v2162
    %v2430 = vpop.f32.mrb[0].mxu0
    %v2431 = vadd.f32 0.0, %v2430
    %v2432 = vpop.f32.mrb[0].mxu0
    %v2433 = vadd.f32 0.0, %v2432
    %v2434 = vpop.f32.mrb[0].mxu0
    %v2435 = vpop.f32.mrb[0].mxu0
    %2436 = vdwg.mxu0
    %v2437 = vadd.f32 %v2157, %v2390
    %v2438 = vadd.f32 %v2158, %v2392
    %v2439 = vadd.f32 %v2159, %v2431
    %v2440 = vadd.f32 %v2160, %v2433
    %v2441 = vld [vmem:[#allocation3] sm:$0xff]
    %v2442 = vxor.u32 %v2437, 2147483648
    %v2443 = vxor.u32 %v2438, 2147483648
    %v2444 = vxor.u32 %v2439, 2147483648
    %v2445 = vmul.f32 %v2442, 1.442695
    %v2446 = vpow.pop %v2445
    %v2447 = vmul.f32 %v2443, 1.442695
    %v2448 = vpow.pop %v2447
    %v2449 = vmul.f32 %v2444, 1.442695
    %v2450 = vpow.pop %v2449
    %v2451 = vadd.f32 %v2446, 1.0
    %v2452 = vadd.f32 %v2448, 1.0
    %v2453 = vadd.f32 %v2450, 1.0
    %v2454 = vrcp.pop %v2451
    %v2455 = vmul.f32 1.0, %v2454
    %v2456 = vrcp.pop %v2452
    %v2457 = vmul.f32 1.0, %v2456
    %v2458 = vrcp.pop %v2453
    %v2459 = vmul.f32 1.0, %v2458
    %v2460 = vtanh.pop %v2440
    %v2461 = vmul.f32 %v2457, %v2441
    %v2462 = vmul.f32 %v2455, %v2460
    %v2463 = vadd.f32 %v2461, %v2462
    %v2464 = vtanh.pop %v2463
    %v2465 = vmul.f32 %v2459, %v2464
    %2466 = vst [vmem:[#allocation2] sm:$0xff] %v2465
    %2467 = vst [vmem:[#allocation3] sm:$0xff] %v2463
    %v2468 = vpack.c.bf16 %v2465, %v2465
    %v2469 = vld [vmem:[%s846] sm:$0xff]
    %v2470 = vpack.c.bf16 %v2469, %v2469
    %v2471 = vld [vmem:[#allocation11] sm:$0xff]
    %v2472 = vld [vmem:[#allocation11 + $0x8] sm:$0xff]
    %v2473 = vld [vmem:[#allocation11 + $0x10] sm:$0xff]
    %v2474 = vld [vmem:[#allocation11 + $0x18] sm:$0xff]
    %v2475 = vld [vmem:[#allocation11 + $0x20] sm:$0xff]
    %v2476 = vld [vmem:[#allocation11 + $0x28] sm:$0xff]
    %v2477 = vld [vmem:[#allocation11 + $0x30] sm:$0xff]
    %v2478 = vld [vmem:[#allocation11 + $0x38] sm:$0xff]
    %v2479 = vld [vmem:[#allocation11 + $0x40] sm:$0xff]
    %v2480 = vld [vmem:[#allocation11 + $0x48] sm:$0xff]
    %v2481 = vld [vmem:[#allocation11 + $0x50] sm:$0xff]
    %v2482 = vld [vmem:[#allocation11 + $0x58] sm:$0xff]
    %v2483 = vld [vmem:[#allocation11 + $0x60] sm:$0xff]
    %v2484 = vld [vmem:[#allocation11 + $0x68] sm:$0xff]
    %v2485 = vld [vmem:[#allocation11 + $0x70] sm:$0xff]
    %v2486 = vld [vmem:[#allocation11 + $0x78] sm:$0xff]
    %v2487 = vld [vmem:[#allocation11 + $0x80] sm:$0xff]
    %v2488 = vld [vmem:[#allocation11 + $0x88] sm:$0xff]
    %v2489 = vld [vmem:[#allocation11 + $0x90] sm:$0xff]
    %v2490 = vld [vmem:[#allocation11 + $0x98] sm:$0xff]
    %v2491 = vld [vmem:[#allocation11 + $0xa0] sm:$0xff]
    %v2492 = vld [vmem:[#allocation11 + $0xa8] sm:$0xff]
    %v2493 = vld [vmem:[#allocation11 + $0xb0] sm:$0xff]
    %v2494 = vld [vmem:[#allocation11 + $0xb8] sm:$0xff]
    %v2495 = vld [vmem:[#allocation11 + $0xc0] sm:$0xff]
    %v2496 = vld [vmem:[#allocation11 + $0xc8] sm:$0xff]
    %v2497 = vld [vmem:[#allocation11 + $0xd0] sm:$0xff]
    %v2498 = vld [vmem:[#allocation11 + $0xd8] sm:$0xff]
    %v2499 = vld [vmem:[#allocation11 + $0xe0] sm:$0xff]
    %v2500 = vld [vmem:[#allocation11 + $0xe8] sm:$0xff]
    %v2501 = vld [vmem:[#allocation11 + $0xf0] sm:$0xff]
    %v2502 = vld [vmem:[#allocation11 + $0xf8] sm:$0xff]
    %v2503 = vld [vmem:[#allocation11 + $0x100] sm:$0xff]
    %v2504 = vld [vmem:[#allocation11 + $0x108] sm:$0xff]
    %v2505 = vld [vmem:[#allocation11 + $0x110] sm:$0xff]
    %v2506 = vld [vmem:[#allocation11 + $0x118] sm:$0xff]
    %v2507 = vld [vmem:[#allocation11 + $0x120] sm:$0xff]
    %v2508 = vld [vmem:[#allocation11 + $0x128] sm:$0xff]
    %v2509 = vld [vmem:[#allocation11 + $0x130] sm:$0xff]
    %v2510 = vld [vmem:[#allocation11 + $0x138] sm:$0xff]
    %v2511 = vld [vmem:[#allocation11 + $0x140] sm:$0xff]
    %v2512 = vld [vmem:[#allocation11 + $0x148] sm:$0xff]
    %v2513 = vld [vmem:[#allocation11 + $0x150] sm:$0xff]
    %v2514 = vld [vmem:[#allocation11 + $0x158] sm:$0xff]
    %v2515 = vld [vmem:[#allocation11 + $0x160] sm:$0xff]
    %v2516 = vld [vmem:[#allocation11 + $0x168] sm:$0xff]
    %v2517 = vld [vmem:[#allocation11 + $0x170] sm:$0xff]
    %v2518 = vld [vmem:[#allocation11 + $0x178] sm:$0xff]
    %v2519 = vld [vmem:[#allocation11 + $0x180] sm:$0xff]
    %v2520 = vld [vmem:[#allocation11 + $0x188] sm:$0xff]
    %v2521 = vld [vmem:[#allocation11 + $0x190] sm:$0xff]
    %v2522 = vld [vmem:[#allocation11 + $0x198] sm:$0xff]
    %v2523 = vld [vmem:[#allocation11 + $0x1a0] sm:$0xff]
    %v2524 = vld [vmem:[#allocation11 + $0x1a8] sm:$0xff]
    %v2525 = vld [vmem:[#allocation11 + $0x1b0] sm:$0xff]
    %v2526 = vld [vmem:[#allocation11 + $0x1b8] sm:$0xff]
    %v2527 = vld [vmem:[#allocation11 + $0x1c0] sm:$0xff]
    %v2528 = vld [vmem:[#allocation11 + $0x1c8] sm:$0xff]
    %v2529 = vld [vmem:[#allocation11 + $0x1d0] sm:$0xff]
    %v2530 = vld [vmem:[#allocation11 + $0x1d8] sm:$0xff]
    %v2531 = vld [vmem:[#allocation11 + $0x1e0] sm:$0xff]
    %v2532 = vld [vmem:[#allocation11 + $0x1e8] sm:$0xff]
    %v2533 = vld [vmem:[#allocation11 + $0x1f0] sm:$0xff]
    %v2534 = vld [vmem:[#allocation11 + $0x1f8] sm:$0xff]
    %v2599 = vunpack.c.l.b16 %v2471
    %v2600 = vunpack.c.h.b16 %v2471
    %v2601 = vunpack.c.l.b16 %v2472
    %v2602 = vunpack.c.h.b16 %v2472
    %v2603 = vunpack.c.l.b16 %v2473
    %v2604 = vunpack.c.h.b16 %v2473
    %v2605 = vunpack.c.l.b16 %v2474
    %v2606 = vunpack.c.h.b16 %v2474
    %v2607 = vunpack.c.l.b16 %v2475
    %v2608 = vunpack.c.h.b16 %v2475
    %v2609 = vunpack.c.l.b16 %v2476
    %v2610 = vunpack.c.h.b16 %v2476
    %v2611 = vunpack.c.l.b16 %v2477
    %v2612 = vunpack.c.h.b16 %v2477
    %v2613 = vunpack.c.l.b16 %v2478
    %v2614 = vunpack.c.h.b16 %v2478
    %v2615 = vunpack.c.l.b16 %v2479
    %v2616 = vunpack.c.h.b16 %v2479
    %v2617 = vunpack.c.l.b16 %v2480
    %v2618 = vunpack.c.h.b16 %v2480
    %v2619 = vunpack.c.l.b16 %v2481
    %v2620 = vunpack.c.h.b16 %v2481
    %v2621 = vunpack.c.l.b16 %v2482
    %v2622 = vunpack.c.h.b16 %v2482
    %v2623 = vunpack.c.l.b16 %v2483
    %v2624 = vunpack.c.h.b16 %v2483
    %v2625 = vunpack.c.l.b16 %v2484
    %v2626 = vunpack.c.h.b16 %v2484
    %v2627 = vunpack.c.l.b16 %v2485
    %v2628 = vunpack.c.h.b16 %v2485
    %v2629 = vunpack.c.l.b16 %v2486
    %v2630 = vunpack.c.h.b16 %v2486
    %v2631 = vunpack.c.l.b16 %v2487
    %v2632 = vunpack.c.h.b16 %v2487
    %v2633 = vunpack.c.l.b16 %v2488
    %v2634 = vunpack.c.h.b16 %v2488
    %v2635 = vunpack.c.l.b16 %v2489
    %v2636 = vunpack.c.h.b16 %v2489
    %v2637 = vunpack.c.l.b16 %v2490
    %v2638 = vunpack.c.h.b16 %v2490
    %v2639 = vunpack.c.l.b16 %v2491
    %v2640 = vunpack.c.h.b16 %v2491
    %v2641 = vunpack.c.l.b16 %v2492
    %v2642 = vunpack.c.h.b16 %v2492
    %v2643 = vunpack.c.l.b16 %v2493
    %v2644 = vunpack.c.h.b16 %v2493
    %v2645 = vunpack.c.l.b16 %v2494
    %v2646 = vunpack.c.h.b16 %v2494
    %v2647 = vunpack.c.l.b16 %v2495
    %v2648 = vunpack.c.h.b16 %v2495
    %v2649 = vunpack.c.l.b16 %v2496
    %v2650 = vunpack.c.h.b16 %v2496
    %v2651 = vunpack.c.l.b16 %v2497
    %v2652 = vunpack.c.h.b16 %v2497
    %v2653 = vunpack.c.l.b16 %v2498
    %v2654 = vunpack.c.h.b16 %v2498
    %v2655 = vunpack.c.l.b16 %v2499
    %v2656 = vunpack.c.h.b16 %v2499
    %v2657 = vunpack.c.l.b16 %v2500
    %v2658 = vunpack.c.h.b16 %v2500
    %v2659 = vunpack.c.l.b16 %v2501
    %v2660 = vunpack.c.h.b16 %v2501
    %v2661 = vunpack.c.l.b16 %v2502
    %v2662 = vunpack.c.h.b16 %v2502
    %v2663 = vunpack.c.l.b16 %v2503
    %v2664 = vunpack.c.h.b16 %v2503
    %v2665 = vunpack.c.l.b16 %v2504
    %v2666 = vunpack.c.h.b16 %v2504
    %v2667 = vunpack.c.l.b16 %v2505
    %v2668 = vunpack.c.h.b16 %v2505
    %v2669 = vunpack.c.l.b16 %v2506
    %v2670 = vunpack.c.h.b16 %v2506
    %v2671 = vunpack.c.l.b16 %v2507
    %v2672 = vunpack.c.h.b16 %v2507
    %v2673 = vunpack.c.l.b16 %v2508
    %v2674 = vunpack.c.h.b16 %v2508
    %v2675 = vunpack.c.l.b16 %v2509
    %v2676 = vunpack.c.h.b16 %v2509
    %v2677 = vunpack.c.l.b16 %v2510
    %v2678 = vunpack.c.h.b16 %v2510
    %v2679 = vunpack.c.l.b16 %v2511
    %v2680 = vunpack.c.h.b16 %v2511
    %v2681 = vunpack.c.l.b16 %v2512
    %v2682 = vunpack.c.h.b16 %v2512
    %v2683 = vunpack.c.l.b16 %v2513
    %v2684 = vunpack.c.h.b16 %v2513
    %v2685 = vunpack.c.l.b16 %v2514
    %v2686 = vunpack.c.h.b16 %v2514
    %v2687 = vunpack.c.l.b16 %v2515
    %v2688 = vunpack.c.h.b16 %v2515
    %v2689 = vunpack.c.l.b16 %v2516
    %v2690 = vunpack.c.h.b16 %v2516
    %v2691 = vunpack.c.l.b16 %v2517
    %v2692 = vunpack.c.h.b16 %v2517
    %v2693 = vunpack.c.l.b16 %v2518
    %v2694 = vunpack.c.h.b16 %v2518
    %v2695 = vunpack.c.l.b16 %v2519
    %v2696 = vunpack.c.h.b16 %v2519
    %v2697 = vunpack.c.l.b16 %v2520
    %v2698 = vunpack.c.h.b16 %v2520
    %v2699 = vunpack.c.l.b16 %v2521
    %v2700 = vunpack.c.h.b16 %v2521
    %v2701 = vunpack.c.l.b16 %v2522
    %v2702 = vunpack.c.h.b16 %v2522
    %v2703 = vunpack.c.l.b16 %v2523
    %v2704 = vunpack.c.h.b16 %v2523
    %v2705 = vunpack.c.l.b16 %v2524
    %v2706 = vunpack.c.h.b16 %v2524
    %v2707 = vunpack.c.l.b16 %v2525
    %v2708 = vunpack.c.h.b16 %v2525
    %v2709 = vunpack.c.l.b16 %v2526
    %v2710 = vunpack.c.h.b16 %v2526
    %v2711 = vunpack.c.l.b16 %v2527
    %v2712 = vunpack.c.h.b16 %v2527
    %v2713 = vunpack.c.l.b16 %v2528
    %v2714 = vunpack.c.h.b16 %v2528
    %v2715 = vunpack.c.l.b16 %v2529
    %v2716 = vunpack.c.h.b16 %v2529
    %v2717 = vunpack.c.l.b16 %v2530
    %v2718 = vunpack.c.h.b16 %v2530
    %v2719 = vunpack.c.l.b16 %v2531
    %v2720 = vunpack.c.h.b16 %v2531
    %v2721 = vunpack.c.l.b16 %v2532
    %v2722 = vunpack.c.h.b16 %v2532
    %v2723 = vunpack.c.l.b16 %v2533
    %v2724 = vunpack.c.h.b16 %v2533
    %v2725 = vunpack.c.l.b16 %v2534
    %v2726 = vunpack.c.h.b16 %v2534
    %v2727 = vpack.c.b16 %v2603, %v2599
    %v2728 = vpack.c.b16 %v2604, %v2600
    %v2729 = vpack.c.b16 %v2605, %v2601
    %v2730 = vpack.c.b16 %v2606, %v2602
    %v2731 = vpack.c.b16 %v2611, %v2607
    %v2732 = vpack.c.b16 %v2612, %v2608
    %v2733 = vpack.c.b16 %v2613, %v2609
    %v2734 = vpack.c.b16 %v2614, %v2610
    %v2735 = vpack.c.b16 %v2619, %v2615
    %v2736 = vpack.c.b16 %v2620, %v2616
    %v2737 = vpack.c.b16 %v2621, %v2617
    %v2738 = vpack.c.b16 %v2622, %v2618
    %v2739 = vpack.c.b16 %v2627, %v2623
    %v2740 = vpack.c.b16 %v2628, %v2624
    %v2741 = vpack.c.b16 %v2629, %v2625
    %v2742 = vpack.c.b16 %v2630, %v2626
    %v2743 = vpack.c.b16 %v2635, %v2631
    %v2744 = vpack.c.b16 %v2636, %v2632
    %v2745 = vpack.c.b16 %v2637, %v2633
    %v2746 = vpack.c.b16 %v2638, %v2634
    %v2747 = vpack.c.b16 %v2643, %v2639
    %v2748 = vpack.c.b16 %v2644, %v2640
    %v2749 = vpack.c.b16 %v2645, %v2641
    %v2750 = vpack.c.b16 %v2646, %v2642
    %v2751 = vpack.c.b16 %v2651, %v2647
    %v2752 = vpack.c.b16 %v2652, %v2648
    %v2753 = vpack.c.b16 %v2653, %v2649
    %v2754 = vpack.c.b16 %v2654, %v2650
    %v2755 = vpack.c.b16 %v2659, %v2655
    %v2756 = vpack.c.b16 %v2660, %v2656
    %v2757 = vpack.c.b16 %v2661, %v2657
    %v2758 = vpack.c.b16 %v2662, %v2658
    %v2759 = vpack.c.b16 %v2667, %v2663
    %v2760 = vpack.c.b16 %v2668, %v2664
    %v2761 = vpack.c.b16 %v2669, %v2665
    %v2762 = vpack.c.b16 %v2670, %v2666
    %v2763 = vpack.c.b16 %v2675, %v2671
    %v2764 = vpack.c.b16 %v2676, %v2672
    %v2765 = vpack.c.b16 %v2677, %v2673
    %v2766 = vpack.c.b16 %v2678, %v2674
    %v2767 = vpack.c.b16 %v2683, %v2679
    %v2768 = vpack.c.b16 %v2684, %v2680
    %v2769 = vpack.c.b16 %v2685, %v2681
    %v2770 = vpack.c.b16 %v2686, %v2682
    %v2771 = vpack.c.b16 %v2691, %v2687
    %v2772 = vpack.c.b16 %v2692, %v2688
    %v2773 = vpack.c.b16 %v2693, %v2689
    %v2774 = vpack.c.b16 %v2694, %v2690
    %v2775 = vpack.c.b16 %v2699, %v2695
    %v2776 = vpack.c.b16 %v2700, %v2696
    %v2777 = vpack.c.b16 %v2701, %v2697
    %v2778 = vpack.c.b16 %v2702, %v2698
    %v2779 = vpack.c.b16 %v2707, %v2703
    %v2780 = vpack.c.b16 %v2708, %v2704
    %v2781 = vpack.c.b16 %v2709, %v2705
    %v2782 = vpack.c.b16 %v2710, %v2706
    %v2783 = vpack.c.b16 %v2715, %v2711
    %v2784 = vpack.c.b16 %v2716, %v2712
    %v2785 = vpack.c.b16 %v2717, %v2713
    %v2786 = vpack.c.b16 %v2718, %v2714
    %v2787 = vpack.c.b16 %v2723, %v2719
    %v2788 = vpack.c.b16 %v2724, %v2720
    %v2789 = vpack.c.b16 %v2725, %v2721
    %v2790 = vpack.c.b16 %v2726, %v2722
    %2855 = vmatprep.subr.bf16.mxu0 %v2728
    %2856 = vmatpush1.bf16.msra.mxu0 %v2727
    %2857 = vmatprep.subr.bf16.mxu0 %v2732
    %2858 = vmatpush1.bf16.msra.mxu0 %v2731
    %2859 = vmatprep.subr.bf16.mxu0 %v2736
    %2860 = vmatpush1.bf16.msra.mxu0 %v2735
    %2861 = vmatprep.subr.bf16.mxu0 %v2740
    %2862 = vmatpush1.bf16.msra.mxu0 %v2739
    %2863 = vmatprep.subr.bf16.mxu0 %v2744
    %2864 = vmatpush1.bf16.msra.mxu0 %v2743
    %2865 = vmatprep.subr.bf16.mxu0 %v2748
    %2866 = vmatpush1.bf16.msra.mxu0 %v2747
    %2867 = vmatprep.subr.bf16.mxu0 %v2752
    %2868 = vmatpush1.bf16.msra.mxu0 %v2751
    %2869 = vmatprep.subr.bf16.mxu0 %v2756
    %2870 = vmatpush1.bf16.msra.mxu0 %v2755
    %2871 = vmatprep.subr.bf16.mxu0 %v2760
    %2872 = vmatpush1.bf16.msra.mxu0 %v2759
    %2873 = vmatprep.subr.bf16.mxu0 %v2764
    %2874 = vmatpush1.bf16.msra.mxu0 %v2763
    %2875 = vmatprep.subr.bf16.mxu0 %v2768
    %2876 = vmatpush1.bf16.msra.mxu0 %v2767
    %2877 = vmatprep.subr.bf16.mxu0 %v2772
    %2878 = vmatpush1.bf16.msra.mxu0 %v2771
    %2879 = vmatprep.subr.bf16.mxu0 %v2776
    %2880 = vmatpush1.bf16.msra.mxu0 %v2775
    %2881 = vmatprep.subr.bf16.mxu0 %v2780
    %2882 = vmatpush1.bf16.msra.mxu0 %v2779
    %2883 = vmatprep.subr.bf16.mxu0 %v2784
    %2884 = vmatpush1.bf16.msra.mxu0 %v2783
    %2885 = vmatprep.subr.bf16.mxu0 %v2788
    %2886 = vmatpush1.bf16.msra.mxu0 %v2787
    %2887 = vmatprep.mubr.bf16.mxu0 %v2470
    %2888 = vmatmul.mubr.bf16.gmra.mrb[0].mxu0 %v2468
    %v2889 = vpop.f32.mrb[0].mxu0
    %v2890 = vadd.f32 %v517, %v2889
    %v2891 = vpop.f32.mrb[0].mxu0
    %v2892 = vadd.f32 %v521, %v2891
    %v2893 = vpop.f32.mrb[0].mxu0
    %v2894 = vpop.f32.mrb[0].mxu0
    %2895 = vdwg.mxu0
    %2896 = vmatprep.subr.bf16.mxu0 %v2730
    %2897 = vmatpush1.bf16.msra.mxu0 %v2729
    %2898 = vmatprep.subr.bf16.mxu0 %v2734
    %2899 = vmatpush1.bf16.msra.mxu0 %v2733
    %2900 = vmatprep.subr.bf16.mxu0 %v2738
    %2901 = vmatpush1.bf16.msra.mxu0 %v2737
    %2902 = vmatprep.subr.bf16.mxu0 %v2742
    %2903 = vmatpush1.bf16.msra.mxu0 %v2741
    %2904 = vmatprep.subr.bf16.mxu0 %v2746
    %2905 = vmatpush1.bf16.msra.mxu0 %v2745
    %2906 = vmatprep.subr.bf16.mxu0 %v2750
    %2907 = vmatpush1.bf16.msra.mxu0 %v2749
    %2908 = vmatprep.subr.bf16.mxu0 %v2754
    %2909 = vmatpush1.bf16.msra.mxu0 %v2753
    %2910 = vmatprep.subr.bf16.mxu0 %v2758
    %2911 = vmatpush1.bf16.msra.mxu0 %v2757
    %2912 = vmatprep.subr.bf16.mxu0 %v2762
    %2913 = vmatpush1.bf16.msra.mxu0 %v2761
    %2914 = vmatprep.subr.bf16.mxu0 %v2766
    %2915 = vmatpush1.bf16.msra.mxu0 %v2765
    %2916 = vmatprep.subr.bf16.mxu0 %v2770
    %2917 = vmatpush1.bf16.msra.mxu0 %v2769
    %2918 = vmatprep.subr.bf16.mxu0 %v2774
    %2919 = vmatpush1.bf16.msra.mxu0 %v2773
    %2920 = vmatprep.subr.bf16.mxu0 %v2778
    %2921 = vmatpush1.bf16.msra.mxu0 %v2777
    %2922 = vmatprep.subr.bf16.mxu0 %v2782
    %2923 = vmatpush1.bf16.msra.mxu0 %v2781
    %2924 = vmatprep.subr.bf16.mxu0 %v2786
    %2925 = vmatpush1.bf16.msra.mxu0 %v2785
    %2926 = vmatprep.subr.bf16.mxu0 %v2790
    %2927 = vmatpush1.bf16.msra.mxu0 %v2789
    %2928 = vmatprep.mubr.bf16.mxu0 %v2470
    %2929 = vmatmul.mubr.bf16.gmra.mrb[0].mxu0 %v2468
    %v2930 = vpop.f32.mrb[0].mxu0
    %v2931 = vadd.f32 %v525, %v2930
    %v2932 = vpop.f32.mrb[0].mxu0
    %v2933 = vadd.f32 %v529, %v2932
    %v2934 = vpop.f32.mrb[0].mxu0
    %v2935 = vpop.f32.mrb[0].mxu0
    %2936 = vdwg.mxu0
    %v2937 = vld [vmem:[%s1315] sm:$0xff]
    %v2938 = vxor.u32 %v2890, 2147483648
    %v2939 = vxor.u32 %v2892, 2147483648
    %v2940 = vxor.u32 %v2931, 2147483648
    %v2941 = vmul.f32 %v2938, 1.442695
    %v2942 = vpow.pop %v2941
    %v2943 = vmul.f32 %v2939, 1.442695
    %v2944 = vpow.pop %v2943
    %v2945 = vmul.f32 %v2940, 1.442695
    %v2946 = vpow.pop %v2945
    %v2947 = vadd.f32 %v2942, 1.0
    %v2948 = vadd.f32 %v2944, 1.0
    %v2949 = vadd.f32 %v2946, 1.0
    %v2950 = vrcp.pop %v2947
    %v2951 = vmul.f32 1.0, %v2950
    %v2952 = vrcp.pop %v2948
    %v2953 = vmul.f32 1.0, %v2952
    %v2954 = vrcp.pop %v2949
    %v2955 = vmul.f32 1.0, %v2954
    %v2956 = vtanh.pop %v2933
    %v2957 = vmul.f32 %v2953, %v2937
    %v2958 = vmul.f32 %v2951, %v2956
    %v2959 = vadd.f32 %v2957, %v2958
    %v2960 = vtanh.pop %v2959
    %v2961 = vmul.f32 %v2955, %v2960
    %2962 = vst [vmem:[%s846] sm:$0xff] %v2961
    %2963 = vst [vmem:[%s1315] sm:$0xff] %v2959
    %v2964 = vpack.c.bf16 %v2961, %v2961
    %s2965 = scalar_lea.vmem [#allocation13], 8
    %2966 = vst [vmem:[%s2965] sm:$0xf] %v2964
    %s2967 = scalar_lea.vmem [#allocation4], 96
    %v2968 = vld [vmem:[%s2967] sm:$0xff]
    %v2969 = vld [vmem:[%s2967 + $0x8] sm:$0xff]
    %v2970 = vld [vmem:[%s2967 + $0x10] sm:$0xff]
    %v2971 = vld [vmem:[%s2967 + $0x18] sm:$0xff]
    %v2972 = vld [vmem:[#allocation2] sm:$0xff]
    %v2973 = vpack.c.bf16 %v2972, %v2972
    %v2974 = vld [vmem:[#allocation10] sm:$0xff]
    %v2975 = vld [vmem:[#allocation10 + $0x8] sm:$0xff]
    %v2976 = vld [vmem:[#allocation10 + $0x10] sm:$0xff]
    %v2977 = vld [vmem:[#allocation10 + $0x18] sm:$0xff]
    %v2978 = vld [vmem:[#allocation10 + $0x20] sm:$0xff]
    %v2979 = vld [vmem:[#allocation10 + $0x28] sm:$0xff]
    %v2980 = vld [vmem:[#allocation10 + $0x30] sm:$0xff]
    %v2981 = vld [vmem:[#allocation10 + $0x38] sm:$0xff]
    %v2982 = vld [vmem:[#allocation10 + $0x40] sm:$0xff]
    %v2983 = vld [vmem:[#allocation10 + $0x48] sm:$0xff]
    %v2984 = vld [vmem:[#allocation10 + $0x50] sm:$0xff]
    %v2985 = vld [vmem:[#allocation10 + $0x58] sm:$0xff]
    %v2986 = vld [vmem:[#allocation10 + $0x60] sm:$0xff]
    %v2987 = vld [vmem:[#allocation10 + $0x68] sm:$0xff]
    %v2988 = vld [vmem:[#allocation10 + $0x70] sm:$0xff]
    %v2989 = vld [vmem:[#allocation10 + $0x78] sm:$0xff]
    %v2990 = vld [vmem:[#allocation10 + $0x80] sm:$0xff]
    %v2991 = vld [vmem:[#allocation10 + $0x88] sm:$0xff]
    %v2992 = vld [vmem:[#allocation10 + $0x90] sm:$0xff]
    %v2993 = vld [vmem:[#allocation10 + $0x98] sm:$0xff]
    %v2994 = vld [vmem:[#allocation10 + $0xa0] sm:$0xff]
    %v2995 = vld [vmem:[#allocation10 + $0xa8] sm:$0xff]
    %v2996 = vld [vmem:[#allocation10 + $0xb0] sm:$0xff]
    %v2997 = vld [vmem:[#allocation10 + $0xb8] sm:$0xff]
    %v2998 = vld [vmem:[#allocation10 + $0xc0] sm:$0xff]
    %v2999 = vld [vmem:[#allocation10 + $0xc8] sm:$0xff]
    %v3000 = vld [vmem:[#allocation10 + $0xd0] sm:$0xff]
    %v3001 = vld [vmem:[#allocation10 + $0xd8] sm:$0xff]
    %v3002 = vld [vmem:[#allocation10 + $0xe0] sm:$0xff]
    %v3003 = vld [vmem:[#allocation10 + $0xe8] sm:$0xff]
    %v3004 = vld [vmem:[#allocation10 + $0xf0] sm:$0xff]
    %v3005 = vld [vmem:[#allocation10 + $0xf8] sm:$0xff]
    %v3038 = vunpack.c.l.b16 %v2974
    %v3039 = vunpack.c.h.b16 %v2974
    %v3040 = vunpack.c.l.b16 %v2975
    %v3041 = vunpack.c.h.b16 %v2975
    %v3042 = vunpack.c.l.b16 %v2976
    %v3043 = vunpack.c.h.b16 %v2976
    %v3044 = vunpack.c.l.b16 %v2977
    %v3045 = vunpack.c.h.b16 %v2977
    %v3046 = vunpack.c.l.b16 %v2978
    %v3047 = vunpack.c.h.b16 %v2978
    %v3048 = vunpack.c.l.b16 %v2979
    %v3049 = vunpack.c.h.b16 %v2979
    %v3050 = vunpack.c.l.b16 %v2980
    %v3051 = vunpack.c.h.b16 %v2980
    %v3052 = vunpack.c.l.b16 %v2981
    %v3053 = vunpack.c.h.b16 %v2981
    %v3054 = vunpack.c.l.b16 %v2982
    %v3055 = vunpack.c.h.b16 %v2982
    %v3056 = vunpack.c.l.b16 %v2983
    %v3057 = vunpack.c.h.b16 %v2983
    %v3058 = vunpack.c.l.b16 %v2984
    %v3059 = vunpack.c.h.b16 %v2984
    %v3060 = vunpack.c.l.b16 %v2985
    %v3061 = vunpack.c.h.b16 %v2985
    %v3062 = vunpack.c.l.b16 %v2986
    %v3063 = vunpack.c.h.b16 %v2986
    %v3064 = vunpack.c.l.b16 %v2987
    %v3065 = vunpack.c.h.b16 %v2987
    %v3066 = vunpack.c.l.b16 %v2988
    %v3067 = vunpack.c.h.b16 %v2988
    %v3068 = vunpack.c.l.b16 %v2989
    %v3069 = vunpack.c.h.b16 %v2989
    %v3070 = vunpack.c.l.b16 %v2990
    %v3071 = vunpack.c.h.b16 %v2990
    %v3072 = vunpack.c.l.b16 %v2991
    %v3073 = vunpack.c.h.b16 %v2991
    %v3074 = vunpack.c.l.b16 %v2992
    %v3075 = vunpack.c.h.b16 %v2992
    %v3076 = vunpack.c.l.b16 %v2993
    %v3077 = vunpack.c.h.b16 %v2993
    %v3078 = vunpack.c.l.b16 %v2994
    %v3079 = vunpack.c.h.b16 %v2994
    %v3080 = vunpack.c.l.b16 %v2995
    %v3081 = vunpack.c.h.b16 %v2995
    %v3082 = vunpack.c.l.b16 %v2996
    %v3083 = vunpack.c.h.b16 %v2996
    %v3084 = vunpack.c.l.b16 %v2997
    %v3085 = vunpack.c.h.b16 %v2997
    %v3086 = vunpack.c.l.b16 %v2998
    %v3087 = vunpack.c.h.b16 %v2998
    %v3088 = vunpack.c.l.b16 %v2999
    %v3089 = vunpack.c.h.b16 %v2999
    %v3090 = vunpack.c.l.b16 %v3000
    %v3091 = vunpack.c.h.b16 %v3000
    %v3092 = vunpack.c.l.b16 %v3001
    %v3093 = vunpack.c.h.b16 %v3001
    %v3094 = vunpack.c.l.b16 %v3002
    %v3095 = vunpack.c.h.b16 %v3002
    %v3096 = vunpack.c.l.b16 %v3003
    %v3097 = vunpack.c.h.b16 %v3003
    %v3098 = vunpack.c.l.b16 %v3004
    %v3099 = vunpack.c.h.b16 %v3004
    %v3100 = vunpack.c.l.b16 %v3005
    %v3101 = vunpack.c.h.b16 %v3005
    %v3102 = vpack.c.b16 %v3042, %v3038
    %v3103 = vpack.c.b16 %v3043, %v3039
    %v3104 = vpack.c.b16 %v3044, %v3040
    %v3105 = vpack.c.b16 %v3045, %v3041
    %v3106 = vpack.c.b16 %v3050, %v3046
    %v3107 = vpack.c.b16 %v3051, %v3047
    %v3108 = vpack.c.b16 %v3052, %v3048
    %v3109 = vpack.c.b16 %v3053, %v3049
    %v3110 = vpack.c.b16 %v3058, %v3054
    %v3111 = vpack.c.b16 %v3059, %v3055
    %v3112 = vpack.c.b16 %v3060, %v3056
    %v3113 = vpack.c.b16 %v3061, %v3057
    %v3114 = vpack.c.b16 %v3066, %v3062
    %v3115 = vpack.c.b16 %v3067, %v3063
    %v3116 = vpack.c.b16 %v3068, %v3064
    %v3117 = vpack.c.b16 %v3069, %v3065
    %v3118 = vpack.c.b16 %v3074, %v3070
    %v3119 = vpack.c.b16 %v3075, %v3071
    %v3120 = vpack.c.b16 %v3076, %v3072
    %v3121 = vpack.c.b16 %v3077, %v3073
    %v3122 = vpack.c.b16 %v3082, %v3078
    %v3123 = vpack.c.b16 %v3083, %v3079
    %v3124 = vpack.c.b16 %v3084, %v3080
    %v3125 = vpack.c.b16 %v3085, %v3081
    %v3126 = vpack.c.b16 %v3090, %v3086
    %v3127 = vpack.c.b16 %v3091, %v3087
    %v3128 = vpack.c.b16 %v3092, %v3088
    %v3129 = vpack.c.b16 %v3093, %v3089
    %v3130 = vpack.c.b16 %v3098, %v3094
    %v3131 = vpack.c.b16 %v3099, %v3095
    %v3132 = vpack.c.b16 %v3100, %v3096
    %v3133 = vpack.c.b16 %v3101, %v3097
    %3166 = vmatprep.subr.bf16.mxu0 %v3103
    %3167 = vmatpush1.bf16.msra.mxu0 %v3102
    %3168 = vmatprep.subr.bf16.mxu0 %v3107
    %3169 = vmatpush1.bf16.msra.mxu0 %v3106
    %3170 = vmatprep.subr.bf16.mxu0 %v3111
    %3171 = vmatpush1.bf16.msra.mxu0 %v3110
    %3172 = vmatprep.subr.bf16.mxu0 %v3115
    %3173 = vmatpush1.bf16.msra.mxu0 %v3114
    %3174 = vmatprep.subr.bf16.mxu0 %v3119
    %3175 = vmatpush1.bf16.msra.mxu0 %v3118
    %3176 = vmatprep.subr.bf16.mxu0 %v3123
    %3177 = vmatpush1.bf16.msra.mxu0 %v3122
    %3178 = vmatprep.subr.bf16.mxu0 %v3127
    %3179 = vmatpush1.bf16.msra.mxu0 %v3126
    %3180 = vmatprep.subr.bf16.mxu0 %v3131
    %3181 = vmatpush1.bf16.msra.mxu0 %v3130
    %3182 = vmatprep.subr.bf16.mxu0 0
    %3183 = vmatpush1.bf16.msra.mxu0 0
    %3184 = vmatprep.subr.bf16.mxu0 0
    %3185 = vmatpush1.bf16.msra.mxu0 0
    %3186 = vmatprep.subr.bf16.mxu0 0
    %3187 = vmatpush1.bf16.msra.mxu0 0
    %3188 = vmatprep.subr.bf16.mxu0 0
    %3189 = vmatpush1.bf16.msra.mxu0 0
    %3190 = vmatprep.subr.bf16.mxu0 0
    %3191 = vmatpush1.bf16.msra.mxu0 0
    %3192 = vmatprep.subr.bf16.mxu0 0
    %3193 = vmatpush1.bf16.msra.mxu0 0
    %3194 = vmatprep.subr.bf16.mxu0 0
    %3195 = vmatpush1.bf16.msra.mxu0 0
    %3196 = vmatprep.subr.bf16.mxu0 0
    %3197 = vmatpush1.bf16.msra.mxu0 0
    %3198 = vmatprep.mubr.bf16.mxu0 0
    %3199 = vmatmul.mubr.bf16.gmra.mrb[0].mxu0 %v2973
    %v3200 = vpop.f32.mrb[0].mxu0
    %v3201 = vadd.f32 0.0, %v3200
    %v3202 = vpop.f32.mrb[0].mxu0
    %v3203 = vadd.f32 0.0, %v3202
    %v3204 = vpop.f32.mrb[0].mxu0
    %v3205 = vpop.f32.mrb[0].mxu0
    %3206 = vdwg.mxu0
    %3207 = vmatprep.subr.bf16.mxu0 %v3105
    %3208 = vmatpush1.bf16.msra.mxu0 %v3104
    %3209 = vmatprep.subr.bf16.mxu0 %v3109
    %3210 = vmatpush1.bf16.msra.mxu0 %v3108
    %3211 = vmatprep.subr.bf16.mxu0 %v3113
    %3212 = vmatpush1.bf16.msra.mxu0 %v3112
    %3213 = vmatprep.subr.bf16.mxu0 %v3117
    %3214 = vmatpush1.bf16.msra.mxu0 %v3116
    %3215 = vmatprep.subr.bf16.mxu0 %v3121
    %3216 = vmatpush1.bf16.msra.mxu0 %v3120
    %3217 = vmatprep.subr.bf16.mxu0 %v3125
    %3218 = vmatpush1.bf16.msra.mxu0 %v3124
    %3219 = vmatprep.subr.bf16.mxu0 %v3129
    %3220 = vmatpush1.bf16.msra.mxu0 %v3128
    %3221 = vmatprep.subr.bf16.mxu0 %v3133
    %3222 = vmatpush1.bf16.msra.mxu0 %v3132
    %3223 = vmatprep.subr.bf16.mxu0 0
    %3224 = vmatpush1.bf16.msra.mxu0 0
    %3225 = vmatprep.subr.bf16.mxu0 0
    %3226 = vmatpush1.bf16.msra.mxu0 0
    %3227 = vmatprep.subr.bf16.mxu0 0
    %3228 = vmatpush1.bf16.msra.mxu0 0
    %3229 = vmatprep.subr.bf16.mxu0 0
    %3230 = vmatpush1.bf16.msra.mxu0 0
    %3231 = vmatprep.subr.bf16.mxu0 0
    %3232 = vmatpush1.bf16.msra.mxu0 0
    %3233 = vmatprep.subr.bf16.mxu0 0
    %3234 = vmatpush1.bf16.msra.mxu0 0
    %3235 = vmatprep.subr.bf16.mxu0 0
    %3236 = vmatpush1.bf16.msra.mxu0 0
    %3237 = vmatprep.subr.bf16.mxu0 0
    %3238 = vmatpush1.bf16.msra.mxu0 0
    %3239 = vmatprep.mubr.bf16.mxu0 0
    %3240 = vmatmul.mubr.bf16.gmra.mrb[0].mxu0 %v2973
    %v3241 = vpop.f32.mrb[0].mxu0
    %v3242 = vadd.f32 0.0, %v3241
    %v3243 = vpop.f32.mrb[0].mxu0
    %v3244 = vadd.f32 0.0, %v3243
    %v3245 = vpop.f32.mrb[0].mxu0
    %v3246 = vpop.f32.mrb[0].mxu0
    %3247 = vdwg.mxu0
    %v3248 = vadd.f32 %v2968, %v3201
    %v3249 = vadd.f32 %v2969, %v3203
    %v3250 = vadd.f32 %v2970, %v3242
    %v3251 = vadd.f32 %v2971, %v3244
    %v3252 = vld [vmem:[#allocation3] sm:$0xff]
    %v3253 = vxor.u32 %v3248, 2147483648
    %v3254 = vxor.u32 %v3249, 2147483648
    %v3255 = vxor.u32 %v3250, 2147483648
    %v3256 = vmul.f32 %v3253, 1.442695
    %v3257 = vpow.pop %v3256
    %v3258 = vmul.f32 %v3254, 1.442695
    %v3259 = vpow.pop %v3258
    %v3260 = vmul.f32 %v3255, 1.442695
    %v3261 = vpow.pop %v3260
    %v3262 = vadd.f32 %v3257, 1.0
    %v3263 = vadd.f32 %v3259, 1.0
    %v3264 = vadd.f32 %v3261, 1.0
    %v3265 = vrcp.pop %v3262
    %v3266 = vmul.f32 1.0, %v3265
    %v3267 = vrcp.pop %v3263
    %v3268 = vmul.f32 1.0, %v3267
    %v3269 = vrcp.pop %v3264
    %v3270 = vmul.f32 1.0, %v3269
    %v3271 = vtanh.pop %v3251
    %v3272 = vmul.f32 %v3268, %v3252
    %v3273 = vmul.f32 %v3266, %v3271
    %v3274 = vadd.f32 %v3272, %v3273
    %v3275 = vtanh.pop %v3274
    %v3276 = vmul.f32 %v3270, %v3275
    %3277 = vst [vmem:[#allocation2] sm:$0xff] %v3276
    %3278 = vst [vmem:[#allocation3] sm:$0xff] %v3274
    %v3279 = vpack.c.bf16 %v3276, %v3276
    %v3280 = vld [vmem:[%s846] sm:$0xff]
    %v3281 = vpack.c.bf16 %v3280, %v3280
    %v3282 = vld [vmem:[#allocation11] sm:$0xff]
    %v3283 = vld [vmem:[#allocation11 + $0x8] sm:$0xff]
    %v3284 = vld [vmem:[#allocation11 + $0x10] sm:$0xff]
    %v3285 = vld [vmem:[#allocation11 + $0x18] sm:$0xff]
    %v3286 = vld [vmem:[#allocation11 + $0x20] sm:$0xff]
    %v3287 = vld [vmem:[#allocation11 + $0x28] sm:$0xff]
    %v3288 = vld [vmem:[#allocation11 + $0x30] sm:$0xff]
    %v3289 = vld [vmem:[#allocation11 + $0x38] sm:$0xff]
    %v3290 = vld [vmem:[#allocation11 + $0x40] sm:$0xff]
    %v3291 = vld [vmem:[#allocation11 + $0x48] sm:$0xff]
    %v3292 = vld [vmem:[#allocation11 + $0x50] sm:$0xff]
    %v3293 = vld [vmem:[#allocation11 + $0x58] sm:$0xff]
    %v3294 = vld [vmem:[#allocation11 + $0x60] sm:$0xff]
    %v3295 = vld [vmem:[#allocation11 + $0x68] sm:$0xff]
    %v3296 = vld [vmem:[#allocation11 + $0x70] sm:$0xff]
    %v3297 = vld [vmem:[#allocation11 + $0x78] sm:$0xff]
    %v3298 = vld [vmem:[#allocation11 + $0x80] sm:$0xff]
    %v3299 = vld [vmem:[#allocation11 + $0x88] sm:$0xff]
    %v3300 = vld [vmem:[#allocation11 + $0x90] sm:$0xff]
    %v3301 = vld [vmem:[#allocation11 + $0x98] sm:$0xff]
    %v3302 = vld [vmem:[#allocation11 + $0xa0] sm:$0xff]
    %v3303 = vld [vmem:[#allocation11 + $0xa8] sm:$0xff]
    %v3304 = vld [vmem:[#allocation11 + $0xb0] sm:$0xff]
    %v3305 = vld [vmem:[#allocation11 + $0xb8] sm:$0xff]
    %v3306 = vld [vmem:[#allocation11 + $0xc0] sm:$0xff]
    %v3307 = vld [vmem:[#allocation11 + $0xc8] sm:$0xff]
    %v3308 = vld [vmem:[#allocation11 + $0xd0] sm:$0xff]
    %v3309 = vld [vmem:[#allocation11 + $0xd8] sm:$0xff]
    %v3310 = vld [vmem:[#allocation11 + $0xe0] sm:$0xff]
    %v3311 = vld [vmem:[#allocation11 + $0xe8] sm:$0xff]
    %v3312 = vld [vmem:[#allocation11 + $0xf0] sm:$0xff]
    %v3313 = vld [vmem:[#allocation11 + $0xf8] sm:$0xff]
    %v3314 = vld [vmem:[#allocation11 + $0x100] sm:$0xff]
    %v3315 = vld [vmem:[#allocation11 + $0x108] sm:$0xff]
    %v3316 = vld [vmem:[#allocation11 + $0x110] sm:$0xff]
    %v3317 = vld [vmem:[#allocation11 + $0x118] sm:$0xff]
    %v3318 = vld [vmem:[#allocation11 + $0x120] sm:$0xff]
    %v3319 = vld [vmem:[#allocation11 + $0x128] sm:$0xff]
    %v3320 = vld [vmem:[#allocation11 + $0x130] sm:$0xff]
    %v3321 = vld [vmem:[#allocation11 + $0x138] sm:$0xff]
    %v3322 = vld [vmem:[#allocation11 + $0x140] sm:$0xff]
    %v3323 = vld [vmem:[#allocation11 + $0x148] sm:$0xff]
    %v3324 = vld [vmem:[#allocation11 + $0x150] sm:$0xff]
    %v3325 = vld [vmem:[#allocation11 + $0x158] sm:$0xff]
    %v3326 = vld [vmem:[#allocation11 + $0x160] sm:$0xff]
    %v3327 = vld [vmem:[#allocation11 + $0x168] sm:$0xff]
    %v3328 = vld [vmem:[#allocation11 + $0x170] sm:$0xff]
    %v3329 = vld [vmem:[#allocation11 + $0x178] sm:$0xff]
    %v3330 = vld [vmem:[#allocation11 + $0x180] sm:$0xff]
    %v3331 = vld [vmem:[#allocation11 + $0x188] sm:$0xff]
    %v3332 = vld [vmem:[#allocation11 + $0x190] sm:$0xff]
    %v3333 = vld [vmem:[#allocation11 + $0x198] sm:$0xff]
    %v3334 = vld [vmem:[#allocation11 + $0x1a0] sm:$0xff]
    %v3335 = vld [vmem:[#allocation11 + $0x1a8] sm:$0xff]
    %v3336 = vld [vmem:[#allocation11 + $0x1b0] sm:$0xff]
    %v3337 = vld [vmem:[#allocation11 + $0x1b8] sm:$0xff]
    %v3338 = vld [vmem:[#allocation11 + $0x1c0] sm:$0xff]
    %v3339 = vld [vmem:[#allocation11 + $0x1c8] sm:$0xff]
    %v3340 = vld [vmem:[#allocation11 + $0x1d0] sm:$0xff]
    %v3341 = vld [vmem:[#allocation11 + $0x1d8] sm:$0xff]
    %v3342 = vld [vmem:[#allocation11 + $0x1e0] sm:$0xff]
    %v3343 = vld [vmem:[#allocation11 + $0x1e8] sm:$0xff]
    %v3344 = vld [vmem:[#allocation11 + $0x1f0] sm:$0xff]
    %v3345 = vld [vmem:[#allocation11 + $0x1f8] sm:$0xff]
    %v3410 = vunpack.c.l.b16 %v3282
    %v3411 = vunpack.c.h.b16 %v3282
    %v3412 = vunpack.c.l.b16 %v3283
    %v3413 = vunpack.c.h.b16 %v3283
    %v3414 = vunpack.c.l.b16 %v3284
    %v3415 = vunpack.c.h.b16 %v3284
    %v3416 = vunpack.c.l.b16 %v3285
    %v3417 = vunpack.c.h.b16 %v3285
    %v3418 = vunpack.c.l.b16 %v3286
    %v3419 = vunpack.c.h.b16 %v3286
    %v3420 = vunpack.c.l.b16 %v3287
    %v3421 = vunpack.c.h.b16 %v3287
    %v3422 = vunpack.c.l.b16 %v3288
    %v3423 = vunpack.c.h.b16 %v3288
    %v3424 = vunpack.c.l.b16 %v3289
    %v3425 = vunpack.c.h.b16 %v3289
    %v3426 = vunpack.c.l.b16 %v3290
    %v3427 = vunpack.c.h.b16 %v3290
    %v3428 = vunpack.c.l.b16 %v3291
    %v3429 = vunpack.c.h.b16 %v3291
    %v3430 = vunpack.c.l.b16 %v3292
    %v3431 = vunpack.c.h.b16 %v3292
    %v3432 = vunpack.c.l.b16 %v3293
    %v3433 = vunpack.c.h.b16 %v3293
    %v3434 = vunpack.c.l.b16 %v3294
    %v3435 = vunpack.c.h.b16 %v3294
    %v3436 = vunpack.c.l.b16 %v3295
    %v3437 = vunpack.c.h.b16 %v3295
    %v3438 = vunpack.c.l.b16 %v3296
    %v3439 = vunpack.c.h.b16 %v3296
    %v3440 = vunpack.c.l.b16 %v3297
    %v3441 = vunpack.c.h.b16 %v3297
    %v3442 = vunpack.c.l.b16 %v3298
    %v3443 = vunpack.c.h.b16 %v3298
    %v3444 = vunpack.c.l.b16 %v3299
    %v3445 = vunpack.c.h.b16 %v3299
    %v3446 = vunpack.c.l.b16 %v3300
    %v3447 = vunpack.c.h.b16 %v3300
    %v3448 = vunpack.c.l.b16 %v3301
    %v3449 = vunpack.c.h.b16 %v3301
    %v3450 = vunpack.c.l.b16 %v3302
    %v3451 = vunpack.c.h.b16 %v3302
    %v3452 = vunpack.c.l.b16 %v3303
    %v3453 = vunpack.c.h.b16 %v3303
    %v3454 = vunpack.c.l.b16 %v3304
    %v3455 = vunpack.c.h.b16 %v3304
    %v3456 = vunpack.c.l.b16 %v3305
    %v3457 = vunpack.c.h.b16 %v3305
    %v3458 = vunpack.c.l.b16 %v3306
    %v3459 = vunpack.c.h.b16 %v3306
    %v3460 = vunpack.c.l.b16 %v3307
    %v3461 = vunpack.c.h.b16 %v3307
    %v3462 = vunpack.c.l.b16 %v3308
    %v3463 = vunpack.c.h.b16 %v3308
    %v3464 = vunpack.c.l.b16 %v3309
    %v3465 = vunpack.c.h.b16 %v3309
    %v3466 = vunpack.c.l.b16 %v3310
    %v3467 = vunpack.c.h.b16 %v3310
    %v3468 = vunpack.c.l.b16 %v3311
    %v3469 = vunpack.c.h.b16 %v3311
    %v3470 = vunpack.c.l.b16 %v3312
    %v3471 = vunpack.c.h.b16 %v3312
    %v3472 = vunpack.c.l.b16 %v3313
    %v3473 = vunpack.c.h.b16 %v3313
    %v3474 = vunpack.c.l.b16 %v3314
    %v3475 = vunpack.c.h.b16 %v3314
    %v3476 = vunpack.c.l.b16 %v3315
    %v3477 = vunpack.c.h.b16 %v3315
    %v3478 = vunpack.c.l.b16 %v3316
    %v3479 = vunpack.c.h.b16 %v3316
    %v3480 = vunpack.c.l.b16 %v3317
    %v3481 = vunpack.c.h.b16 %v3317
    %v3482 = vunpack.c.l.b16 %v3318
    %v3483 = vunpack.c.h.b16 %v3318
    %v3484 = vunpack.c.l.b16 %v3319
    %v3485 = vunpack.c.h.b16 %v3319
    %v3486 = vunpack.c.l.b16 %v3320
    %v3487 = vunpack.c.h.b16 %v3320
    %v3488 = vunpack.c.l.b16 %v3321
    %v3489 = vunpack.c.h.b16 %v3321
    %v3490 = vunpack.c.l.b16 %v3322
    %v3491 = vunpack.c.h.b16 %v3322
    %v3492 = vunpack.c.l.b16 %v3323
    %v3493 = vunpack.c.h.b16 %v3323
    %v3494 = vunpack.c.l.b16 %v3324
    %v3495 = vunpack.c.h.b16 %v3324
    %v3496 = vunpack.c.l.b16 %v3325
    %v3497 = vunpack.c.h.b16 %v3325
    %v3498 = vunpack.c.l.b16 %v3326
    %v3499 = vunpack.c.h.b16 %v3326
    %v3500 = vunpack.c.l.b16 %v3327
    %v3501 = vunpack.c.h.b16 %v3327
    %v3502 = vunpack.c.l.b16 %v3328
    %v3503 = vunpack.c.h.b16 %v3328
    %v3504 = vunpack.c.l.b16 %v3329
    %v3505 = vunpack.c.h.b16 %v3329
    %v3506 = vunpack.c.l.b16 %v3330
    %v3507 = vunpack.c.h.b16 %v3330
    %v3508 = vunpack.c.l.b16 %v3331
    %v3509 = vunpack.c.h.b16 %v3331
    %v3510 = vunpack.c.l.b16 %v3332
    %v3511 = vunpack.c.h.b16 %v3332
    %v3512 = vunpack.c.l.b16 %v3333
    %v3513 = vunpack.c.h.b16 %v3333
    %v3514 = vunpack.c.l.b16 %v3334
    %v3515 = vunpack.c.h.b16 %v3334
    %v3516 = vunpack.c.l.b16 %v3335
    %v3517 = vunpack.c.h.b16 %v3335
    %v3518 = vunpack.c.l.b16 %v3336
    %v3519 = vunpack.c.h.b16 %v3336
    %v3520 = vunpack.c.l.b16 %v3337
    %v3521 = vunpack.c.h.b16 %v3337
    %v3522 = vunpack.c.l.b16 %v3338
    %v3523 = vunpack.c.h.b16 %v3338
    %v3524 = vunpack.c.l.b16 %v3339
    %v3525 = vunpack.c.h.b16 %v3339
    %v3526 = vunpack.c.l.b16 %v3340
    %v3527 = vunpack.c.h.b16 %v3340
    %v3528 = vunpack.c.l.b16 %v3341
    %v3529 = vunpack.c.h.b16 %v3341
    %v3530 = vunpack.c.l.b16 %v3342
    %v3531 = vunpack.c.h.b16 %v3342
    %v3532 = vunpack.c.l.b16 %v3343
    %v3533 = vunpack.c.h.b16 %v3343
    %v3534 = vunpack.c.l.b16 %v3344
    %v3535 = vunpack.c.h.b16 %v3344
    %v3536 = vunpack.c.l.b16 %v3345
    %v3537 = vunpack.c.h.b16 %v3345
    %v3538 = vpack.c.b16 %v3414, %v3410
    %v3539 = vpack.c.b16 %v3415, %v3411
    %v3540 = vpack.c.b16 %v3416, %v3412
    %v3541 = vpack.c.b16 %v3417, %v3413
    %v3542 = vpack.c.b16 %v3422, %v3418
    %v3543 = vpack.c.b16 %v3423, %v3419
    %v3544 = vpack.c.b16 %v3424, %v3420
    %v3545 = vpack.c.b16 %v3425, %v3421
    %v3546 = vpack.c.b16 %v3430, %v3426
    %v3547 = vpack.c.b16 %v3431, %v3427
    %v3548 = vpack.c.b16 %v3432, %v3428
    %v3549 = vpack.c.b16 %v3433, %v3429
    %v3550 = vpack.c.b16 %v3438, %v3434
    %v3551 = vpack.c.b16 %v3439, %v3435
    %v3552 = vpack.c.b16 %v3440, %v3436
    %v3553 = vpack.c.b16 %v3441, %v3437
    %v3554 = vpack.c.b16 %v3446, %v3442
    %v3555 = vpack.c.b16 %v3447, %v3443
    %v3556 = vpack.c.b16 %v3448, %v3444
    %v3557 = vpack.c.b16 %v3449, %v3445
    %v3558 = vpack.c.b16 %v3454, %v3450
    %v3559 = vpack.c.b16 %v3455, %v3451
    %v3560 = vpack.c.b16 %v3456, %v3452
    %v3561 = vpack.c.b16 %v3457, %v3453
    %v3562 = vpack.c.b16 %v3462, %v3458
    %v3563 = vpack.c.b16 %v3463, %v3459
    %v3564 = vpack.c.b16 %v3464, %v3460
    %v3565 = vpack.c.b16 %v3465, %v3461
    %v3566 = vpack.c.b16 %v3470, %v3466
    %v3567 = vpack.c.b16 %v3471, %v3467
    %v3568 = vpack.c.b16 %v3472, %v3468
    %v3569 = vpack.c.b16 %v3473, %v3469
    %v3570 = vpack.c.b16 %v3478, %v3474
    %v3571 = vpack.c.b16 %v3479, %v3475
    %v3572 = vpack.c.b16 %v3480, %v3476
    %v3573 = vpack.c.b16 %v3481, %v3477
    %v3574 = vpack.c.b16 %v3486, %v3482
    %v3575 = vpack.c.b16 %v3487, %v3483
    %v3576 = vpack.c.b16 %v3488, %v3484
    %v3577 = vpack.c.b16 %v3489, %v3485
    %v3578 = vpack.c.b16 %v3494, %v3490
    %v3579 = vpack.c.b16 %v3495, %v3491
    %v3580 = vpack.c.b16 %v3496, %v3492
    %v3581 = vpack.c.b16 %v3497, %v3493
    %v3582 = vpack.c.b16 %v3502, %v3498
    %v3583 = vpack.c.b16 %v3503, %v3499
    %v3584 = vpack.c.b16 %v3504, %v3500
    %v3585 = vpack.c.b16 %v3505, %v3501
    %v3586 = vpack.c.b16 %v3510, %v3506
    %v3587 = vpack.c.b16 %v3511, %v3507
    %v3588 = vpack.c.b16 %v3512, %v3508
    %v3589 = vpack.c.b16 %v3513, %v3509
    %v3590 = vpack.c.b16 %v3518, %v3514
    %v3591 = vpack.c.b16 %v3519, %v3515
    %v3592 = vpack.c.b16 %v3520, %v3516
    %v3593 = vpack.c.b16 %v3521, %v3517
    %v3594 = vpack.c.b16 %v3526, %v3522
    %v3595 = vpack.c.b16 %v3527, %v3523
    %v3596 = vpack.c.b16 %v3528, %v3524
    %v3597 = vpack.c.b16 %v3529, %v3525
    %v3598 = vpack.c.b16 %v3534, %v3530
    %v3599 = vpack.c.b16 %v3535, %v3531
    %v3600 = vpack.c.b16 %v3536, %v3532
    %v3601 = vpack.c.b16 %v3537, %v3533
    %3666 = vmatprep.subr.bf16.mxu0 %v3539
    %3667 = vmatpush1.bf16.msra.mxu0 %v3538
    %3668 = vmatprep.subr.bf16.mxu0 %v3543
    %3669 = vmatpush1.bf16.msra.mxu0 %v3542
    %3670 = vmatprep.subr.bf16.mxu0 %v3547
    %3671 = vmatpush1.bf16.msra.mxu0 %v3546
    %3672 = vmatprep.subr.bf16.mxu0 %v3551
    %3673 = vmatpush1.bf16.msra.mxu0 %v3550
    %3674 = vmatprep.subr.bf16.mxu0 %v3555
    %3675 = vmatpush1.bf16.msra.mxu0 %v3554
    %3676 = vmatprep.subr.bf16.mxu0 %v3559
    %3677 = vmatpush1.bf16.msra.mxu0 %v3558
    %3678 = vmatprep.subr.bf16.mxu0 %v3563
    %3679 = vmatpush1.bf16.msra.mxu0 %v3562
    %3680 = vmatprep.subr.bf16.mxu0 %v3567
    %3681 = vmatpush1.bf16.msra.mxu0 %v3566
    %3682 = vmatprep.subr.bf16.mxu0 %v3571
    %3683 = vmatpush1.bf16.msra.mxu0 %v3570
    %3684 = vmatprep.subr.bf16.mxu0 %v3575
    %3685 = vmatpush1.bf16.msra.mxu0 %v3574
    %3686 = vmatprep.subr.bf16.mxu0 %v3579
    %3687 = vmatpush1.bf16.msra.mxu0 %v3578
    %3688 = vmatprep.subr.bf16.mxu0 %v3583
    %3689 = vmatpush1.bf16.msra.mxu0 %v3582
    %3690 = vmatprep.subr.bf16.mxu0 %v3587
    %3691 = vmatpush1.bf16.msra.mxu0 %v3586
    %3692 = vmatprep.subr.bf16.mxu0 %v3591
    %3693 = vmatpush1.bf16.msra.mxu0 %v3590
    %3694 = vmatprep.subr.bf16.mxu0 %v3595
    %3695 = vmatpush1.bf16.msra.mxu0 %v3594
    %3696 = vmatprep.subr.bf16.mxu0 %v3599
    %3697 = vmatpush1.bf16.msra.mxu0 %v3598
    %3698 = vmatprep.mubr.bf16.mxu0 %v3281
    %3699 = vmatmul.mubr.bf16.gmra.mrb[0].mxu0 %v3279
    %v3700 = vpop.f32.mrb[0].mxu0
    %v3701 = vadd.f32 %v517, %v3700
    %v3702 = vpop.f32.mrb[0].mxu0
    %v3703 = vadd.f32 %v521, %v3702
    %v3704 = vpop.f32.mrb[0].mxu0
    %v3705 = vpop.f32.mrb[0].mxu0
    %3706 = vdwg.mxu0
    %3707 = vmatprep.subr.bf16.mxu0 %v3541
    %3708 = vmatpush1.bf16.msra.mxu0 %v3540
    %3709 = vmatprep.subr.bf16.mxu0 %v3545
    %3710 = vmatpush1.bf16.msra.mxu0 %v3544
    %3711 = vmatprep.subr.bf16.mxu0 %v3549
    %3712 = vmatpush1.bf16.msra.mxu0 %v3548
    %3713 = vmatprep.subr.bf16.mxu0 %v3553
    %3714 = vmatpush1.bf16.msra.mxu0 %v3552
    %3715 = vmatprep.subr.bf16.mxu0 %v3557
    %3716 = vmatpush1.bf16.msra.mxu0 %v3556
    %3717 = vmatprep.subr.bf16.mxu0 %v3561
    %3718 = vmatpush1.bf16.msra.mxu0 %v3560
    %3719 = vmatprep.subr.bf16.mxu0 %v3565
    %3720 = vmatpush1.bf16.msra.mxu0 %v3564
    %3721 = vmatprep.subr.bf16.mxu0 %v3569
    %3722 = vmatpush1.bf16.msra.mxu0 %v3568
    %3723 = vmatprep.subr.bf16.mxu0 %v3573
    %3724 = vmatpush1.bf16.msra.mxu0 %v3572
    %3725 = vmatprep.subr.bf16.mxu0 %v3577
    %3726 = vmatpush1.bf16.msra.mxu0 %v3576
    %3727 = vmatprep.subr.bf16.mxu0 %v3581
    %3728 = vmatpush1.bf16.msra.mxu0 %v3580
    %3729 = vmatprep.subr.bf16.mxu0 %v3585
    %3730 = vmatpush1.bf16.msra.mxu0 %v3584
    %3731 = vmatprep.subr.bf16.mxu0 %v3589
    %3732 = vmatpush1.bf16.msra.mxu0 %v3588
    %3733 = vmatprep.subr.bf16.mxu0 %v3593
    %3734 = vmatpush1.bf16.msra.mxu0 %v3592
    %3735 = vmatprep.subr.bf16.mxu0 %v3597
    %3736 = vmatpush1.bf16.msra.mxu0 %v3596
    %3737 = vmatprep.subr.bf16.mxu0 %v3601
    %3738 = vmatpush1.bf16.msra.mxu0 %v3600
    %3739 = vmatprep.mubr.bf16.mxu0 %v3281
    %3740 = vmatmul.mubr.bf16.gmra.mrb[0].mxu0 %v3279
    %v3741 = vpop.f32.mrb[0].mxu0
    %v3742 = vadd.f32 %v525, %v3741
    %v3743 = vpop.f32.mrb[0].mxu0
    %v3744 = vadd.f32 %v529, %v3743
    %v3745 = vpop.f32.mrb[0].mxu0
    %v3746 = vpop.f32.mrb[0].mxu0
    %3747 = vdwg.mxu0
    %v3748 = vld [vmem:[%s1315] sm:$0xff]
    %v3749 = vxor.u32 %v3701, 2147483648
    %v3750 = vxor.u32 %v3703, 2147483648
    %v3751 = vxor.u32 %v3742, 2147483648
    %v3752 = vmul.f32 %v3749, 1.442695
    %v3753 = vpow.pop %v3752
    %v3754 = vmul.f32 %v3750, 1.442695
    %v3755 = vpow.pop %v3754
    %v3756 = vmul.f32 %v3751, 1.442695
    %v3757 = vpow.pop %v3756
    %v3758 = vadd.f32 %v3753, 1.0
    %v3759 = vadd.f32 %v3755, 1.0
    %v3760 = vadd.f32 %v3757, 1.0
    %v3761 = vrcp.pop %v3758
    %v3762 = vmul.f32 1.0, %v3761
    %v3763 = vrcp.pop %v3759
    %v3764 = vmul.f32 1.0, %v3763
    %v3765 = vrcp.pop %v3760
    %v3766 = vmul.f32 1.0, %v3765
    %v3767 = vtanh.pop %v3744
    %v3768 = vmul.f32 %v3764, %v3748
    %v3769 = vmul.f32 %v3762, %v3767
    %v3770 = vadd.f32 %v3768, %v3769
    %v3771 = vtanh.pop %v3770
    %v3772 = vmul.f32 %v3766, %v3771
    %3773 = vst [vmem:[%s846] sm:$0xff] %v3772
    %3774 = vst [vmem:[%s1315] sm:$0xff] %v3770
    %v3775 = vpack.c.bf16 %v3772, %v3772
    %s3776 = scalar_lea.vmem [#allocation13], 12
    %3777 = vst [vmem:[%s3776] sm:$0xf] %v3775
    %s3778 = scalar_lea.vmem [#allocation4], 128
    %v3779 = vld [vmem:[%s3778] sm:$0xff]
    %v3780 = vld [vmem:[%s3778 + $0x8] sm:$0xff]
    %v3781 = vld [vmem:[%s3778 + $0x10] sm:$0xff]
    %v3782 = vld [vmem:[%s3778 + $0x18] sm:$0xff]
    %v3783 = vld [vmem:[#allocation2] sm:$0xff]
    %v3784 = vpack.c.bf16 %v3783, %v3783
    %v3785 = vld [vmem:[#allocation10] sm:$0xff]
    %v3786 = vld [vmem:[#allocation10 + $0x8] sm:$0xff]
    %v3787 = vld [vmem:[#allocation10 + $0x10] sm:$0xff]
    %v3788 = vld [vmem:[#allocation10 + $0x18] sm:$0xff]
    %v3789 = vld [vmem:[#allocation10 + $0x20] sm:$0xff]
    %v3790 = vld [vmem:[#allocation10 + $0x28] sm:$0xff]
    %v3791 = vld [vmem:[#allocation10 + $0x30] sm:$0xff]
    %v3792 = vld [vmem:[#allocation10 + $0x38] sm:$0xff]
    %v3793 = vld [vmem:[#allocation10 + $0x40] sm:$0xff]
    %v3794 = vld [vmem:[#allocation10 + $0x48] sm:$0xff]
    %v3795 = vld [vmem:[#allocation10 + $0x50] sm:$0xff]
    %v3796 = vld [vmem:[#allocation10 + $0x58] sm:$0xff]
    %v3797 = vld [vmem:[#allocation10 + $0x60] sm:$0xff]
    %v3798 = vld [vmem:[#allocation10 + $0x68] sm:$0xff]
    %v3799 = vld [vmem:[#allocation10 + $0x70] sm:$0xff]
    %v3800 = vld [vmem:[#allocation10 + $0x78] sm:$0xff]
    %v3801 = vld [vmem:[#allocation10 + $0x80] sm:$0xff]
    %v3802 = vld [vmem:[#allocation10 + $0x88] sm:$0xff]
    %v3803 = vld [vmem:[#allocation10 + $0x90] sm:$0xff]
    %v3804 = vld [vmem:[#allocation10 + $0x98] sm:$0xff]
    %v3805 = vld [vmem:[#allocation10 + $0xa0] sm:$0xff]
    %v3806 = vld [vmem:[#allocation10 + $0xa8] sm:$0xff]
    %v3807 = vld [vmem:[#allocation10 + $0xb0] sm:$0xff]
    %v3808 = vld [vmem:[#allocation10 + $0xb8] sm:$0xff]
    %v3809 = vld [vmem:[#allocation10 + $0xc0] sm:$0xff]
    %v3810 = vld [vmem:[#allocation10 + $0xc8] sm:$0xff]
    %v3811 = vld [vmem:[#allocation10 + $0xd0] sm:$0xff]
    %v3812 = vld [vmem:[#allocation10 + $0xd8] sm:$0xff]
    %v3813 = vld [vmem:[#allocation10 + $0xe0] sm:$0xff]
    %v3814 = vld [vmem:[#allocation10 + $0xe8] sm:$0xff]
    %v3815 = vld [vmem:[#allocation10 + $0xf0] sm:$0xff]
    %v3816 = vld [vmem:[#allocation10 + $0xf8] sm:$0xff]
    %v3849 = vunpack.c.l.b16 %v3785
    %v3850 = vunpack.c.h.b16 %v3785
    %v3851 = vunpack.c.l.b16 %v3786
    %v3852 = vunpack.c.h.b16 %v3786
    %v3853 = vunpack.c.l.b16 %v3787
    %v3854 = vunpack.c.h.b16 %v3787
    %v3855 = vunpack.c.l.b16 %v3788
    %v3856 = vunpack.c.h.b16 %v3788
    %v3857 = vunpack.c.l.b16 %v3789
    %v3858 = vunpack.c.h.b16 %v3789
    %v3859 = vunpack.c.l.b16 %v3790
    %v3860 = vunpack.c.h.b16 %v3790
    %v3861 = vunpack.c.l.b16 %v3791
    %v3862 = vunpack.c.h.b16 %v3791
    %v3863 = vunpack.c.l.b16 %v3792
    %v3864 = vunpack.c.h.b16 %v3792
    %v3865 = vunpack.c.l.b16 %v3793
    %v3866 = vunpack.c.h.b16 %v3793
    %v3867 = vunpack.c.l.b16 %v3794
    %v3868 = vunpack.c.h.b16 %v3794
    %v3869 = vunpack.c.l.b16 %v3795
    %v3870 = vunpack.c.h.b16 %v3795
    %v3871 = vunpack.c.l.b16 %v3796
    %v3872 = vunpack.c.h.b16 %v3796
    %v3873 = vunpack.c.l.b16 %v3797
    %v3874 = vunpack.c.h.b16 %v3797
    %v3875 = vunpack.c.l.b16 %v3798
    %v3876 = vunpack.c.h.b16 %v3798
    %v3877 = vunpack.c.l.b16 %v3799
    %v3878 = vunpack.c.h.b16 %v3799
    %v3879 = vunpack.c.l.b16 %v3800
    %v3880 = vunpack.c.h.b16 %v3800
    %v3881 = vunpack.c.l.b16 %v3801
    %v3882 = vunpack.c.h.b16 %v3801
    %v3883 = vunpack.c.l.b16 %v3802
    %v3884 = vunpack.c.h.b16 %v3802
    %v3885 = vunpack.c.l.b16 %v3803
    %v3886 = vunpack.c.h.b16 %v3803
    %v3887 = vunpack.c.l.b16 %v3804
    %v3888 = vunpack.c.h.b16 %v3804
    %v3889 = vunpack.c.l.b16 %v3805
    %v3890 = vunpack.c.h.b16 %v3805
    %v3891 = vunpack.c.l.b16 %v3806
    %v3892 = vunpack.c.h.b16 %v3806
    %v3893 = vunpack.c.l.b16 %v3807
    %v3894 = vunpack.c.h.b16 %v3807
    %v3895 = vunpack.c.l.b16 %v3808
    %v3896 = vunpack.c.h.b16 %v3808
    %v3897 = vunpack.c.l.b16 %v3809
    %v3898 = vunpack.c.h.b16 %v3809
    %v3899 = vunpack.c.l.b16 %v3810
    %v3900 = vunpack.c.h.b16 %v3810
    %v3901 = vunpack.c.l.b16 %v3811
    %v3902 = vunpack.c.h.b16 %v3811
    %v3903 = vunpack.c.l.b16 %v3812
    %v3904 = vunpack.c.h.b16 %v3812
    %v3905 = vunpack.c.l.b16 %v3813
    %v3906 = vunpack.c.h.b16 %v3813
    %v3907 = vunpack.c.l.b16 %v3814
    %v3908 = vunpack.c.h.b16 %v3814
    %v3909 = vunpack.c.l.b16 %v3815
    %v3910 = vunpack.c.h.b16 %v3815
    %v3911 = vunpack.c.l.b16 %v3816
    %v3912 = vunpack.c.h.b16 %v3816
    %v3913 = vpack.c.b16 %v3853, %v3849
    %v3914 = vpack.c.b16 %v3854, %v3850
    %v3915 = vpack.c.b16 %v3855, %v3851
    %v3916 = vpack.c.b16 %v3856, %v3852
    %v3917 = vpack.c.b16 %v3861, %v3857
    %v3918 = vpack.c.b16 %v3862, %v3858
    %v3919 = vpack.c.b16 %v3863, %v3859
    %v3920 = vpack.c.b16 %v3864, %v3860
    %v3921 = vpack.c.b16 %v3869, %v3865
    %v3922 = vpack.c.b16 %v3870, %v3866
    %v3923 = vpack.c.b16 %v3871, %v3867
    %v3924 = vpack.c.b16 %v3872, %v3868
    %v3925 = vpack.c.b16 %v3877, %v3873
    %v3926 = vpack.c.b16 %v3878, %v3874
    %v3927 = vpack.c.b16 %v3879, %v3875
    %v3928 = vpack.c.b16 %v3880, %v3876
    %v3929 = vpack.c.b16 %v3885, %v3881
    %v3930 = vpack.c.b16 %v3886, %v3882
    %v3931 = vpack.c.b16 %v3887, %v3883
    %v3932 = vpack.c.b16 %v3888, %v3884
    %v3933 = vpack.c.b16 %v3893, %v3889
    %v3934 = vpack.c.b16 %v3894, %v3890
    %v3935 = vpack.c.b16 %v3895, %v3891
    %v3936 = vpack.c.b16 %v3896, %v3892
    %v3937 = vpack.c.b16 %v3901, %v3897
    %v3938 = vpack.c.b16 %v3902, %v3898
    %v3939 = vpack.c.b16 %v3903, %v3899
    %v3940 = vpack.c.b16 %v3904, %v3900
    %v3941 = vpack.c.b16 %v3909, %v3905
    %v3942 = vpack.c.b16 %v3910, %v3906
    %v3943 = vpack.c.b16 %v3911, %v3907
    %v3944 = vpack.c.b16 %v3912, %v3908
    %3977 = vmatprep.subr.bf16.mxu0 %v3914
    %3978 = vmatpush1.bf16.msra.mxu0 %v3913
    %3979 = vmatprep.subr.bf16.mxu0 %v3918
    %3980 = vmatpush1.bf16.msra.mxu0 %v3917
    %3981 = vmatprep.subr.bf16.mxu0 %v3922
    %3982 = vmatpush1.bf16.msra.mxu0 %v3921
    %3983 = vmatprep.subr.bf16.mxu0 %v3926
    %3984 = vmatpush1.bf16.msra.mxu0 %v3925
    %3985 = vmatprep.subr.bf16.mxu0 %v3930
    %3986 = vmatpush1.bf16.msra.mxu0 %v3929
    %3987 = vmatprep.subr.bf16.mxu0 %v3934
    %3988 = vmatpush1.bf16.msra.mxu0 %v3933
    %3989 = vmatprep.subr.bf16.mxu0 %v3938
    %3990 = vmatpush1.bf16.msra.mxu0 %v3937
    %3991 = vmatprep.subr.bf16.mxu0 %v3942
    %3992 = vmatpush1.bf16.msra.mxu0 %v3941
    %3993 = vmatprep.subr.bf16.mxu0 0
    %3994 = vmatpush1.bf16.msra.mxu0 0
    %3995 = vmatprep.subr.bf16.mxu0 0
    %3996 = vmatpush1.bf16.msra.mxu0 0
    %3997 = vmatprep.subr.bf16.mxu0 0
    %3998 = vmatpush1.bf16.msra.mxu0 0
    %3999 = vmatprep.subr.bf16.mxu0 0
    %4000 = vmatpush1.bf16.msra.mxu0 0
    %4001 = vmatprep.subr.bf16.mxu0 0
    %4002 = vmatpush1.bf16.msra.mxu0 0
    %4003 = vmatprep.subr.bf16.mxu0 0
    %4004 = vmatpush1.bf16.msra.mxu0 0
    %4005 = vmatprep.subr.bf16.mxu0 0
    %4006 = vmatpush1.bf16.msra.mxu0 0
    %4007 = vmatprep.subr.bf16.mxu0 0
    %4008 = vmatpush1.bf16.msra.mxu0 0
    %4009 = vmatprep.mubr.bf16.mxu0 0
    %4010 = vmatmul.mubr.bf16.gmra.mrb[0].mxu0 %v3784
    %v4011 = vpop.f32.mrb[0].mxu0
    %v4012 = vadd.f32 0.0, %v4011
    %v4013 = vpop.f32.mrb[0].mxu0
    %v4014 = vadd.f32 0.0, %v4013
    %v4015 = vpop.f32.mrb[0].mxu0
    %v4016 = vpop.f32.mrb[0].mxu0
    %4017 = vdwg.mxu0
    %4018 = vmatprep.subr.bf16.mxu0 %v3916
    %4019 = vmatpush1.bf16.msra.mxu0 %v3915
    %4020 = vmatprep.subr.bf16.mxu0 %v3920
    %4021 = vmatpush1.bf16.msra.mxu0 %v3919
    %4022 = vmatprep.subr.bf16.mxu0 %v3924
    %4023 = vmatpush1.bf16.msra.mxu0 %v3923
    %4024 = vmatprep.subr.bf16.mxu0 %v3928
    %4025 = vmatpush1.bf16.msra.mxu0 %v3927
    %4026 = vmatprep.subr.bf16.mxu0 %v3932
    %4027 = vmatpush1.bf16.msra.mxu0 %v3931
    %4028 = vmatprep.subr.bf16.mxu0 %v3936
    %4029 = vmatpush1.bf16.msra.mxu0 %v3935
    %4030 = vmatprep.subr.bf16.mxu0 %v3940
    %4031 = vmatpush1.bf16.msra.mxu0 %v3939
    %4032 = vmatprep.subr.bf16.mxu0 %v3944
    %4033 = vmatpush1.bf16.msra.mxu0 %v3943
    %4034 = vmatprep.subr.bf16.mxu0 0
    %4035 = vmatpush1.bf16.msra.mxu0 0
    %4036 = vmatprep.subr.bf16.mxu0 0
    %4037 = vmatpush1.bf16.msra.mxu0 0
    %4038 = vmatprep.subr.bf16.mxu0 0
    %4039 = vmatpush1.bf16.msra.mxu0 0
    %4040 = vmatprep.subr.bf16.mxu0 0
    %4041 = vmatpush1.bf16.msra.mxu0 0
    %4042 = vmatprep.subr.bf16.mxu0 0
    %4043 = vmatpush1.bf16.msra.mxu0 0
    %4044 = vmatprep.subr.bf16.mxu0 0
    %4045 = vmatpush1.bf16.msra.mxu0 0
    %4046 = vmatprep.subr.bf16.mxu0 0
    %4047 = vmatpush1.bf16.msra.mxu0 0
    %4048 = vmatprep.subr.bf16.mxu0 0
    %4049 = vmatpush1.bf16.msra.mxu0 0
    %4050 = vmatprep.mubr.bf16.mxu0 0
    %4051 = vmatmul.mubr.bf16.gmra.mrb[0].mxu0 %v3784
    %v4052 = vpop.f32.mrb[0].mxu0
    %v4053 = vadd.f32 0.0, %v4052
    %v4054 = vpop.f32.mrb[0].mxu0
    %v4055 = vadd.f32 0.0, %v4054
    %v4056 = vpop.f32.mrb[0].mxu0
    %v4057 = vpop.f32.mrb[0].mxu0
    %4058 = vdwg.mxu0
    %v4059 = vadd.f32 %v3779, %v4012
    %v4060 = vadd.f32 %v3780, %v4014
    %v4061 = vadd.f32 %v3781, %v4053
    %v4062 = vadd.f32 %v3782, %v4055
    %v4063 = vld [vmem:[#allocation3] sm:$0xff]
    %v4064 = vxor.u32 %v4059, 2147483648
    %v4065 = vxor.u32 %v4060, 2147483648
    %v4066 = vxor.u32 %v4061, 2147483648
    %v4067 = vmul.f32 %v4064, 1.442695
    %v4068 = vpow.pop %v4067
    %v4069 = vmul.f32 %v4065, 1.442695
    %v4070 = vpow.pop %v4069
    %v4071 = vmul.f32 %v4066, 1.442695
    %v4072 = vpow.pop %v4071
    %v4073 = vadd.f32 %v4068, 1.0
    %v4074 = vadd.f32 %v4070, 1.0
    %v4075 = vadd.f32 %v4072, 1.0
    %v4076 = vrcp.pop %v4073
    %v4077 = vmul.f32 1.0, %v4076
    %v4078 = vrcp.pop %v4074
    %v4079 = vmul.f32 1.0, %v4078
    %v4080 = vrcp.pop %v4075
    %v4081 = vmul.f32 1.0, %v4080
    %v4082 = vtanh.pop %v4062
    %v4083 = vmul.f32 %v4079, %v4063
    %v4084 = vmul.f32 %v4077, %v4082
    %v4085 = vadd.f32 %v4083, %v4084
    %v4086 = vtanh.pop %v4085
    %v4087 = vmul.f32 %v4081, %v4086
    %4088 = vst [vmem:[#allocation2] sm:$0xff] %v4087
    %4089 = vst [vmem:[#allocation3] sm:$0xff] %v4085
    %v4090 = vpack.c.bf16 %v4087, %v4087
    %v4091 = vld [vmem:[%s846] sm:$0xff]
    %v4092 = vpack.c.bf16 %v4091, %v4091
    %v4093 = vld [vmem:[#allocation11] sm:$0xff]
    %v4094 = vld [vmem:[#allocation11 + $0x8] sm:$0xff]
    %v4095 = vld [vmem:[#allocation11 + $0x10] sm:$0xff]
    %v4096 = vld [vmem:[#allocation11 + $0x18] sm:$0xff]
    %v4097 = vld [vmem:[#allocation11 + $0x20] sm:$0xff]
    %v4098 = vld [vmem:[#allocation11 + $0x28] sm:$0xff]
    %v4099 = vld [vmem:[#allocation11 + $0x30] sm:$0xff]
    %v4100 = vld [vmem:[#allocation11 + $0x38] sm:$0xff]
    %v4101 = vld [vmem:[#allocation11 + $0x40] sm:$0xff]
    %v4102 = vld [vmem:[#allocation11 + $0x48] sm:$0xff]
    %v4103 = vld [vmem:[#allocation11 + $0x50] sm:$0xff]
    %v4104 = vld [vmem:[#allocation11 + $0x58] sm:$0xff]
    %v4105 = vld [vmem:[#allocation11 + $0x60] sm:$0xff]
    %v4106 = vld [vmem:[#allocation11 + $0x68] sm:$0xff]
    %v4107 = vld [vmem:[#allocation11 + $0x70] sm:$0xff]
    %v4108 = vld [vmem:[#allocation11 + $0x78] sm:$0xff]
    %v4109 = vld [vmem:[#allocation11 + $0x80] sm:$0xff]
    %v4110 = vld [vmem:[#allocation11 + $0x88] sm:$0xff]
    %v4111 = vld [vmem:[#allocation11 + $0x90] sm:$0xff]
    %v4112 = vld [vmem:[#allocation11 + $0x98] sm:$0xff]
    %v4113 = vld [vmem:[#allocation11 + $0xa0] sm:$0xff]
    %v4114 = vld [vmem:[#allocation11 + $0xa8] sm:$0xff]
    %v4115 = vld [vmem:[#allocation11 + $0xb0] sm:$0xff]
    %v4116 = vld [vmem:[#allocation11 + $0xb8] sm:$0xff]
    %v4117 = vld [vmem:[#allocation11 + $0xc0] sm:$0xff]
    %v4118 = vld [vmem:[#allocation11 + $0xc8] sm:$0xff]
    %v4119 = vld [vmem:[#allocation11 + $0xd0] sm:$0xff]
    %v4120 = vld [vmem:[#allocation11 + $0xd8] sm:$0xff]
    %v4121 = vld [vmem:[#allocation11 + $0xe0] sm:$0xff]
    %v4122 = vld [vmem:[#allocation11 + $0xe8] sm:$0xff]
    %v4123 = vld [vmem:[#allocation11 + $0xf0] sm:$0xff]
    %v4124 = vld [vmem:[#allocation11 + $0xf8] sm:$0xff]
    %v4125 = vld [vmem:[#allocation11 + $0x100] sm:$0xff]
    %v4126 = vld [vmem:[#allocation11 + $0x108] sm:$0xff]
    %v4127 = vld [vmem:[#allocation11 + $0x110] sm:$0xff]
    %v4128 = vld [vmem:[#allocation11 + $0x118] sm:$0xff]
    %v4129 = vld [vmem:[#allocation11 + $0x120] sm:$0xff]
    %v4130 = vld [vmem:[#allocation11 + $0x128] sm:$0xff]
    %v4131 = vld [vmem:[#allocation11 + $0x130] sm:$0xff]
    %v4132 = vld [vmem:[#allocation11 + $0x138] sm:$0xff]
    %v4133 = vld [vmem:[#allocation11 + $0x140] sm:$0xff]
    %v4134 = vld [vmem:[#allocation11 + $0x148] sm:$0xff]
    %v4135 = vld [vmem:[#allocation11 + $0x150] sm:$0xff]
    %v4136 = vld [vmem:[#allocation11 + $0x158] sm:$0xff]
    %v4137 = vld [vmem:[#allocation11 + $0x160] sm:$0xff]
    %v4138 = vld [vmem:[#allocation11 + $0x168] sm:$0xff]
    %v4139 = vld [vmem:[#allocation11 + $0x170] sm:$0xff]
    %v4140 = vld [vmem:[#allocation11 + $0x178] sm:$0xff]
    %v4141 = vld [vmem:[#allocation11 + $0x180] sm:$0xff]
    %v4142 = vld [vmem:[#allocation11 + $0x188] sm:$0xff]
    %v4143 = vld [vmem:[#allocation11 + $0x190] sm:$0xff]
    %v4144 = vld [vmem:[#allocation11 + $0x198] sm:$0xff]
    %v4145 = vld [vmem:[#allocation11 + $0x1a0] sm:$0xff]
    %v4146 = vld [vmem:[#allocation11 + $0x1a8] sm:$0xff]
    %v4147 = vld [vmem:[#allocation11 + $0x1b0] sm:$0xff]
    %v4148 = vld [vmem:[#allocation11 + $0x1b8] sm:$0xff]
    %v4149 = vld [vmem:[#allocation11 + $0x1c0] sm:$0xff]
    %v4150 = vld [vmem:[#allocation11 + $0x1c8] sm:$0xff]
    %v4151 = vld [vmem:[#allocation11 + $0x1d0] sm:$0xff]
    %v4152 = vld [vmem:[#allocation11 + $0x1d8] sm:$0xff]
    %v4153 = vld [vmem:[#allocation11 + $0x1e0] sm:$0xff]
    %v4154 = vld [vmem:[#allocation11 + $0x1e8] sm:$0xff]
    %v4155 = vld [vmem:[#allocation11 + $0x1f0] sm:$0xff]
    %v4156 = vld [vmem:[#allocation11 + $0x1f8] sm:$0xff]
    %v4221 = vunpack.c.l.b16 %v4093
    %v4222 = vunpack.c.h.b16 %v4093
    %v4223 = vunpack.c.l.b16 %v4094
    %v4224 = vunpack.c.h.b16 %v4094
    %v4225 = vunpack.c.l.b16 %v4095
    %v4226 = vunpack.c.h.b16 %v4095
    %v4227 = vunpack.c.l.b16 %v4096
    %v4228 = vunpack.c.h.b16 %v4096
    %v4229 = vunpack.c.l.b16 %v4097
    %v4230 = vunpack.c.h.b16 %v4097
    %v4231 = vunpack.c.l.b16 %v4098
    %v4232 = vunpack.c.h.b16 %v4098
    %v4233 = vunpack.c.l.b16 %v4099
    %v4234 = vunpack.c.h.b16 %v4099
    %v4235 = vunpack.c.l.b16 %v4100
    %v4236 = vunpack.c.h.b16 %v4100
    %v4237 = vunpack.c.l.b16 %v4101
    %v4238 = vunpack.c.h.b16 %v4101
    %v4239 = vunpack.c.l.b16 %v4102
    %v4240 = vunpack.c.h.b16 %v4102
    %v4241 = vunpack.c.l.b16 %v4103
    %v4242 = vunpack.c.h.b16 %v4103
    %v4243 = vunpack.c.l.b16 %v4104
    %v4244 = vunpack.c.h.b16 %v4104
    %v4245 = vunpack.c.l.b16 %v4105
    %v4246 = vunpack.c.h.b16 %v4105
    %v4247 = vunpack.c.l.b16 %v4106
    %v4248 = vunpack.c.h.b16 %v4106
    %v4249 = vunpack.c.l.b16 %v4107
    %v4250 = vunpack.c.h.b16 %v4107
    %v4251 = vunpack.c.l.b16 %v4108
    %v4252 = vunpack.c.h.b16 %v4108
    %v4253 = vunpack.c.l.b16 %v4109
    %v4254 = vunpack.c.h.b16 %v4109
    %v4255 = vunpack.c.l.b16 %v4110
    %v4256 = vunpack.c.h.b16 %v4110
    %v4257 = vunpack.c.l.b16 %v4111
    %v4258 = vunpack.c.h.b16 %v4111
    %v4259 = vunpack.c.l.b16 %v4112
    %v4260 = vunpack.c.h.b16 %v4112
    %v4261 = vunpack.c.l.b16 %v4113
    %v4262 = vunpack.c.h.b16 %v4113
    %v4263 = vunpack.c.l.b16 %v4114
    %v4264 = vunpack.c.h.b16 %v4114
    %v4265 = vunpack.c.l.b16 %v4115
    %v4266 = vunpack.c.h.b16 %v4115
    %v4267 = vunpack.c.l.b16 %v4116
    %v4268 = vunpack.c.h.b16 %v4116
    %v4269 = vunpack.c.l.b16 %v4117
    %v4270 = vunpack.c.h.b16 %v4117
    %v4271 = vunpack.c.l.b16 %v4118
    %v4272 = vunpack.c.h.b16 %v4118
    %v4273 = vunpack.c.l.b16 %v4119
    %v4274 = vunpack.c.h.b16 %v4119
    %v4275 = vunpack.c.l.b16 %v4120
    %v4276 = vunpack.c.h.b16 %v4120
    %v4277 = vunpack.c.l.b16 %v4121
    %v4278 = vunpack.c.h.b16 %v4121
    %v4279 = vunpack.c.l.b16 %v4122
    %v4280 = vunpack.c.h.b16 %v4122
    %v4281 = vunpack.c.l.b16 %v4123
    %v4282 = vunpack.c.h.b16 %v4123
    %v4283 = vunpack.c.l.b16 %v4124
    %v4284 = vunpack.c.h.b16 %v4124
    %v4285 = vunpack.c.l.b16 %v4125
    %v4286 = vunpack.c.h.b16 %v4125
    %v4287 = vunpack.c.l.b16 %v4126
    %v4288 = vunpack.c.h.b16 %v4126
    %v4289 = vunpack.c.l.b16 %v4127
    %v4290 = vunpack.c.h.b16 %v4127
    %v4291 = vunpack.c.l.b16 %v4128
    %v4292 = vunpack.c.h.b16 %v4128
    %v4293 = vunpack.c.l.b16 %v4129
    %v4294 = vunpack.c.h.b16 %v4129
    %v4295 = vunpack.c.l.b16 %v4130
    %v4296 = vunpack.c.h.b16 %v4130
    %v4297 = vunpack.c.l.b16 %v4131
    %v4298 = vunpack.c.h.b16 %v4131
    %v4299 = vunpack.c.l.b16 %v4132
    %v4300 = vunpack.c.h.b16 %v4132
    %v4301 = vunpack.c.l.b16 %v4133
    %v4302 = vunpack.c.h.b16 %v4133
    %v4303 = vunpack.c.l.b16 %v4134
    %v4304 = vunpack.c.h.b16 %v4134
    %v4305 = vunpack.c.l.b16 %v4135
    %v4306 = vunpack.c.h.b16 %v4135
    %v4307 = vunpack.c.l.b16 %v4136
    %v4308 = vunpack.c.h.b16 %v4136
    %v4309 = vunpack.c.l.b16 %v4137
    %v4310 = vunpack.c.h.b16 %v4137
    %v4311 = vunpack.c.l.b16 %v4138
    %v4312 = vunpack.c.h.b16 %v4138
    %v4313 = vunpack.c.l.b16 %v4139
    %v4314 = vunpack.c.h.b16 %v4139
    %v4315 = vunpack.c.l.b16 %v4140
    %v4316 = vunpack.c.h.b16 %v4140
    %v4317 = vunpack.c.l.b16 %v4141
    %v4318 = vunpack.c.h.b16 %v4141
    %v4319 = vunpack.c.l.b16 %v4142
    %v4320 = vunpack.c.h.b16 %v4142
    %v4321 = vunpack.c.l.b16 %v4143
    %v4322 = vunpack.c.h.b16 %v4143
    %v4323 = vunpack.c.l.b16 %v4144
    %v4324 = vunpack.c.h.b16 %v4144
    %v4325 = vunpack.c.l.b16 %v4145
    %v4326 = vunpack.c.h.b16 %v4145
    %v4327 = vunpack.c.l.b16 %v4146
    %v4328 = vunpack.c.h.b16 %v4146
    %v4329 = vunpack.c.l.b16 %v4147
    %v4330 = vunpack.c.h.b16 %v4147
    %v4331 = vunpack.c.l.b16 %v4148
    %v4332 = vunpack.c.h.b16 %v4148
    %v4333 = vunpack.c.l.b16 %v4149
    %v4334 = vunpack.c.h.b16 %v4149
    %v4335 = vunpack.c.l.b16 %v4150
    %v4336 = vunpack.c.h.b16 %v4150
    %v4337 = vunpack.c.l.b16 %v4151
    %v4338 = vunpack.c.h.b16 %v4151
    %v4339 = vunpack.c.l.b16 %v4152
    %v4340 = vunpack.c.h.b16 %v4152
    %v4341 = vunpack.c.l.b16 %v4153
    %v4342 = vunpack.c.h.b16 %v4153
    %v4343 = vunpack.c.l.b16 %v4154
    %v4344 = vunpack.c.h.b16 %v4154
    %v4345 = vunpack.c.l.b16 %v4155
    %v4346 = vunpack.c.h.b16 %v4155
    %v4347 = vunpack.c.l.b16 %v4156
    %v4348 = vunpack.c.h.b16 %v4156
    %v4349 = vpack.c.b16 %v4225, %v4221
    %v4350 = vpack.c.b16 %v4226, %v4222
    %v4351 = vpack.c.b16 %v4227, %v4223
    %v4352 = vpack.c.b16 %v4228, %v4224
    %v4353 = vpack.c.b16 %v4233, %v4229
    %v4354 = vpack.c.b16 %v4234, %v4230
    %v4355 = vpack.c.b16 %v4235, %v4231
    %v4356 = vpack.c.b16 %v4236, %v4232
    %v4357 = vpack.c.b16 %v4241, %v4237
    %v4358 = vpack.c.b16 %v4242, %v4238
    %v4359 = vpack.c.b16 %v4243, %v4239
    %v4360 = vpack.c.b16 %v4244, %v4240
    %v4361 = vpack.c.b16 %v4249, %v4245
    %v4362 = vpack.c.b16 %v4250, %v4246
    %v4363 = vpack.c.b16 %v4251, %v4247
    %v4364 = vpack.c.b16 %v4252, %v4248
    %v4365 = vpack.c.b16 %v4257, %v4253
    %v4366 = vpack.c.b16 %v4258, %v4254
    %v4367 = vpack.c.b16 %v4259, %v4255
    %v4368 = vpack.c.b16 %v4260, %v4256
    %v4369 = vpack.c.b16 %v4265, %v4261
    %v4370 = vpack.c.b16 %v4266, %v4262
    %v4371 = vpack.c.b16 %v4267, %v4263
    %v4372 = vpack.c.b16 %v4268, %v4264
    %v4373 = vpack.c.b16 %v4273, %v4269
    %v4374 = vpack.c.b16 %v4274, %v4270
    %v4375 = vpack.c.b16 %v4275, %v4271
    %v4376 = vpack.c.b16 %v4276, %v4272
    %v4377 = vpack.c.b16 %v4281, %v4277
    %v4378 = vpack.c.b16 %v4282, %v4278
    %v4379 = vpack.c.b16 %v4283, %v4279
    %v4380 = vpack.c.b16 %v4284, %v4280
    %v4381 = vpack.c.b16 %v4289, %v4285
    %v4382 = vpack.c.b16 %v4290, %v4286
    %v4383 = vpack.c.b16 %v4291, %v4287
    %v4384 = vpack.c.b16 %v4292, %v4288
    %v4385 = vpack.c.b16 %v4297, %v4293
    %v4386 = vpack.c.b16 %v4298, %v4294
    %v4387 = vpack.c.b16 %v4299, %v4295
    %v4388 = vpack.c.b16 %v4300, %v4296
    %v4389 = vpack.c.b16 %v4305, %v4301
    %v4390 = vpack.c.b16 %v4306, %v4302
    %v4391 = vpack.c.b16 %v4307, %v4303
    %v4392 = vpack.c.b16 %v4308, %v4304
    %v4393 = vpack.c.b16 %v4313, %v4309
    %v4394 = vpack.c.b16 %v4314, %v4310
    %v4395 = vpack.c.b16 %v4315, %v4311
    %v4396 = vpack.c.b16 %v4316, %v4312
    %v4397 = vpack.c.b16 %v4321, %v4317
    %v4398 = vpack.c.b16 %v4322, %v4318
    %v4399 = vpack.c.b16 %v4323, %v4319
    %v4400 = vpack.c.b16 %v4324, %v4320
    %v4401 = vpack.c.b16 %v4329, %v4325
    %v4402 = vpack.c.b16 %v4330, %v4326
    %v4403 = vpack.c.b16 %v4331, %v4327
    %v4404 = vpack.c.b16 %v4332, %v4328
    %v4405 = vpack.c.b16 %v4337, %v4333
    %v4406 = vpack.c.b16 %v4338, %v4334
    %v4407 = vpack.c.b16 %v4339, %v4335
    %v4408 = vpack.c.b16 %v4340, %v4336
    %v4409 = vpack.c.b16 %v4345, %v4341
    %v4410 = vpack.c.b16 %v4346, %v4342
    %v4411 = vpack.c.b16 %v4347, %v4343
    %v4412 = vpack.c.b16 %v4348, %v4344
    %4477 = vmatprep.subr.bf16.mxu0 %v4350
    %4478 = vmatpush1.bf16.msra.mxu0 %v4349
    %4479 = vmatprep.subr.bf16.mxu0 %v4354
    %4480 = vmatpush1.bf16.msra.mxu0 %v4353
    %4481 = vmatprep.subr.bf16.mxu0 %v4358
    %4482 = vmatpush1.bf16.msra.mxu0 %v4357
    %4483 = vmatprep.subr.bf16.mxu0 %v4362
    %4484 = vmatpush1.bf16.msra.mxu0 %v4361
    %4485 = vmatprep.subr.bf16.mxu0 %v4366
    %4486 = vmatpush1.bf16.msra.mxu0 %v4365
    %4487 = vmatprep.subr.bf16.mxu0 %v4370
    %4488 = vmatpush1.bf16.msra.mxu0 %v4369
    %4489 = vmatprep.subr.bf16.mxu0 %v4374
    %4490 = vmatpush1.bf16.msra.mxu0 %v4373
    %4491 = vmatprep.subr.bf16.mxu0 %v4378
    %4492 = vmatpush1.bf16.msra.mxu0 %v4377
    %4493 = vmatprep.subr.bf16.mxu0 %v4382
    %4494 = vmatpush1.bf16.msra.mxu0 %v4381
    %4495 = vmatprep.subr.bf16.mxu0 %v4386
    %4496 = vmatpush1.bf16.msra.mxu0 %v4385
    %4497 = vmatprep.subr.bf16.mxu0 %v4390
    %4498 = vmatpush1.bf16.msra.mxu0 %v4389
    %4499 = vmatprep.subr.bf16.mxu0 %v4394
    %4500 = vmatpush1.bf16.msra.mxu0 %v4393
    %4501 = vmatprep.subr.bf16.mxu0 %v4398
    %4502 = vmatpush1.bf16.msra.mxu0 %v4397
    %4503 = vmatprep.subr.bf16.mxu0 %v4402
    %4504 = vmatpush1.bf16.msra.mxu0 %v4401
    %4505 = vmatprep.subr.bf16.mxu0 %v4406
    %4506 = vmatpush1.bf16.msra.mxu0 %v4405
    %4507 = vmatprep.subr.bf16.mxu0 %v4410
    %4508 = vmatpush1.bf16.msra.mxu0 %v4409
    %4509 = vmatprep.mubr.bf16.mxu0 %v4092
    %4510 = vmatmul.mubr.bf16.gmra.mrb[0].mxu0 %v4090
    %v4511 = vpop.f32.mrb[0].mxu0
    %v4512 = vadd.f32 %v517, %v4511
    %v4513 = vpop.f32.mrb[0].mxu0
    %v4514 = vadd.f32 %v521, %v4513
    %v4515 = vpop.f32.mrb[0].mxu0
    %v4516 = vpop.f32.mrb[0].mxu0
    %4517 = vdwg.mxu0
    %4518 = vmatprep.subr.bf16.mxu0 %v4352
    %4519 = vmatpush1.bf16.msra.mxu0 %v4351
    %4520 = vmatprep.subr.bf16.mxu0 %v4356
    %4521 = vmatpush1.bf16.msra.mxu0 %v4355
    %4522 = vmatprep.subr.bf16.mxu0 %v4360
    %4523 = vmatpush1.bf16.msra.mxu0 %v4359
    %4524 = vmatprep.subr.bf16.mxu0 %v4364
    %4525 = vmatpush1.bf16.msra.mxu0 %v4363
    %4526 = vmatprep.subr.bf16.mxu0 %v4368
    %4527 = vmatpush1.bf16.msra.mxu0 %v4367
    %4528 = vmatprep.subr.bf16.mxu0 %v4372
    %4529 = vmatpush1.bf16.msra.mxu0 %v4371
    %4530 = vmatprep.subr.bf16.mxu0 %v4376
    %4531 = vmatpush1.bf16.msra.mxu0 %v4375
    %4532 = vmatprep.subr.bf16.mxu0 %v4380
    %4533 = vmatpush1.bf16.msra.mxu0 %v4379
    %4534 = vmatprep.subr.bf16.mxu0 %v4384
    %4535 = vmatpush1.bf16.msra.mxu0 %v4383
    %4536 = vmatprep.subr.bf16.mxu0 %v4388
    %4537 = vmatpush1.bf16.msra.mxu0 %v4387
    %4538 = vmatprep.subr.bf16.mxu0 %v4392
    %4539 = vmatpush1.bf16.msra.mxu0 %v4391
    %4540 = vmatprep.subr.bf16.mxu0 %v4396
    %4541 = vmatpush1.bf16.msra.mxu0 %v4395
    %4542 = vmatprep.subr.bf16.mxu0 %v4400
    %4543 = vmatpush1.bf16.msra.mxu0 %v4399
    %4544 = vmatprep.subr.bf16.mxu0 %v4404
    %4545 = vmatpush1.bf16.msra.mxu0 %v4403
    %4546 = vmatprep.subr.bf16.mxu0 %v4408
    %4547 = vmatpush1.bf16.msra.mxu0 %v4407
    %4548 = vmatprep.subr.bf16.mxu0 %v4412
    %4549 = vmatpush1.bf16.msra.mxu0 %v4411
    %4550 = vmatprep.mubr.bf16.mxu0 %v4092
    %4551 = vmatmul.mubr.bf16.gmra.mrb[0].mxu0 %v4090
    %v4552 = vpop.f32.mrb[0].mxu0
    %v4553 = vadd.f32 %v525, %v4552
    %v4554 = vpop.f32.mrb[0].mxu0
    %v4555 = vadd.f32 %v529, %v4554
    %v4556 = vpop.f32.mrb[0].mxu0
    %v4557 = vpop.f32.mrb[0].mxu0
    %4558 = vdwg.mxu0
    %v4559 = vld [vmem:[%s1315] sm:$0xff]
    %v4560 = vxor.u32 %v4512, 2147483648
    %v4561 = vxor.u32 %v4514, 2147483648
    %v4562 = vxor.u32 %v4553, 2147483648
    %v4563 = vmul.f32 %v4560, 1.442695
    %v4564 = vpow.pop %v4563
    %v4565 = vmul.f32 %v4561, 1.442695
    %v4566 = vpow.pop %v4565
    %v4567 = vmul.f32 %v4562, 1.442695
    %v4568 = vpow.pop %v4567
    %v4569 = vadd.f32 %v4564, 1.0
    %v4570 = vadd.f32 %v4566, 1.0
    %v4571 = vadd.f32 %v4568, 1.0
    %v4572 = vrcp.pop %v4569
    %v4573 = vmul.f32 1.0, %v4572
    %v4574 = vrcp.pop %v4570
    %v4575 = vmul.f32 1.0, %v4574
    %v4576 = vrcp.pop %v4571
    %v4577 = vmul.f32 1.0, %v4576
    %v4578 = vtanh.pop %v4555
    %v4579 = vmul.f32 %v4575, %v4559
    %v4580 = vmul.f32 %v4573, %v4578
    %v4581 = vadd.f32 %v4579, %v4580
    %v4582 = vtanh.pop %v4581
    %v4583 = vmul.f32 %v4577, %v4582
    %4584 = vst [vmem:[%s846] sm:$0xff] %v4583
    %4585 = vst [vmem:[%s1315] sm:$0xff] %v4581
    %v4586 = vpack.c.bf16 %v4583, %v4583
    %s4587 = scalar_lea.vmem [#allocation13], 16
    %4588 = vst [vmem:[%s4587] sm:$0xf] %v4586
    %s4589 = scalar_lea.vmem [#allocation4], 160
    %v4590 = vld [vmem:[%s4589] sm:$0xff]
    %v4591 = vld [vmem:[%s4589 + $0x8] sm:$0xff]
    %v4592 = vld [vmem:[%s4589 + $0x10] sm:$0xff]
    %v4593 = vld [vmem:[%s4589 + $0x18] sm:$0xff]
    %v4594 = vld [vmem:[#allocation2] sm:$0xff]
    %v4595 = vpack.c.bf16 %v4594, %v4594
    %v4596 = vld [vmem:[#allocation10] sm:$0xff]
    %v4597 = vld [vmem:[#allocation10 + $0x8] sm:$0xff]
    %v4598 = vld [vmem:[#allocation10 + $0x10] sm:$0xff]
    %v4599 = vld [vmem:[#allocation10 + $0x18] sm:$0xff]
    %v4600 = vld [vmem:[#allocation10 + $0x20] sm:$0xff]
    %v4601 = vld [vmem:[#allocation10 + $0x28] sm:$0xff]
    %v4602 = vld [vmem:[#allocation10 + $0x30] sm:$0xff]
    %v4603 = vld [vmem:[#allocation10 + $0x38] sm:$0xff]
    %v4604 = vld [vmem:[#allocation10 + $0x40] sm:$0xff]
    %v4605 = vld [vmem:[#allocation10 + $0x48] sm:$0xff]
    %v4606 = vld [vmem:[#allocation10 + $0x50] sm:$0xff]
    %v4607 = vld [vmem:[#allocation10 + $0x58] sm:$0xff]
    %v4608 = vld [vmem:[#allocation10 + $0x60] sm:$0xff]
    %v4609 = vld [vmem:[#allocation10 + $0x68] sm:$0xff]
    %v4610 = vld [vmem:[#allocation10 + $0x70] sm:$0xff]
    %v4611 = vld [vmem:[#allocation10 + $0x78] sm:$0xff]
    %v4612 = vld [vmem:[#allocation10 + $0x80] sm:$0xff]
    %v4613 = vld [vmem:[#allocation10 + $0x88] sm:$0xff]
    %v4614 = vld [vmem:[#allocation10 + $0x90] sm:$0xff]
    %v4615 = vld [vmem:[#allocation10 + $0x98] sm:$0xff]
    %v4616 = vld [vmem:[#allocation10 + $0xa0] sm:$0xff]
    %v4617 = vld [vmem:[#allocation10 + $0xa8] sm:$0xff]
    %v4618 = vld [vmem:[#allocation10 + $0xb0] sm:$0xff]
    %v4619 = vld [vmem:[#allocation10 + $0xb8] sm:$0xff]
    %v4620 = vld [vmem:[#allocation10 + $0xc0] sm:$0xff]
    %v4621 = vld [vmem:[#allocation10 + $0xc8] sm:$0xff]
    %v4622 = vld [vmem:[#allocation10 + $0xd0] sm:$0xff]
    %v4623 = vld [vmem:[#allocation10 + $0xd8] sm:$0xff]
    %v4624 = vld [vmem:[#allocation10 + $0xe0] sm:$0xff]
    %v4625 = vld [vmem:[#allocation10 + $0xe8] sm:$0xff]
    %v4626 = vld [vmem:[#allocation10 + $0xf0] sm:$0xff]
    %v4627 = vld [vmem:[#allocation10 + $0xf8] sm:$0xff]
    %v4660 = vunpack.c.l.b16 %v4596
    %v4661 = vunpack.c.h.b16 %v4596
    %v4662 = vunpack.c.l.b16 %v4597
    %v4663 = vunpack.c.h.b16 %v4597
    %v4664 = vunpack.c.l.b16 %v4598
    %v4665 = vunpack.c.h.b16 %v4598
    %v4666 = vunpack.c.l.b16 %v4599
    %v4667 = vunpack.c.h.b16 %v4599
    %v4668 = vunpack.c.l.b16 %v4600
    %v4669 = vunpack.c.h.b16 %v4600
    %v4670 = vunpack.c.l.b16 %v4601
    %v4671 = vunpack.c.h.b16 %v4601
    %v4672 = vunpack.c.l.b16 %v4602
    %v4673 = vunpack.c.h.b16 %v4602
    %v4674 = vunpack.c.l.b16 %v4603
    %v4675 = vunpack.c.h.b16 %v4603
    %v4676 = vunpack.c.l.b16 %v4604
    %v4677 = vunpack.c.h.b16 %v4604
    %v4678 = vunpack.c.l.b16 %v4605
    %v4679 = vunpack.c.h.b16 %v4605
    %v4680 = vunpack.c.l.b16 %v4606
    %v4681 = vunpack.c.h.b16 %v4606
    %v4682 = vunpack.c.l.b16 %v4607
    %v4683 = vunpack.c.h.b16 %v4607
    %v4684 = vunpack.c.l.b16 %v4608
    %v4685 = vunpack.c.h.b16 %v4608
    %v4686 = vunpack.c.l.b16 %v4609
    %v4687 = vunpack.c.h.b16 %v4609
    %v4688 = vunpack.c.l.b16 %v4610
    %v4689 = vunpack.c.h.b16 %v4610
    %v4690 = vunpack.c.l.b16 %v4611
    %v4691 = vunpack.c.h.b16 %v4611
    %v4692 = vunpack.c.l.b16 %v4612
    %v4693 = vunpack.c.h.b16 %v4612
    %v4694 = vunpack.c.l.b16 %v4613
    %v4695 = vunpack.c.h.b16 %v4613
    %v4696 = vunpack.c.l.b16 %v4614
    %v4697 = vunpack.c.h.b16 %v4614
    %v4698 = vunpack.c.l.b16 %v4615
    %v4699 = vunpack.c.h.b16 %v4615
    %v4700 = vunpack.c.l.b16 %v4616
    %v4701 = vunpack.c.h.b16 %v4616
    %v4702 = vunpack.c.l.b16 %v4617
    %v4703 = vunpack.c.h.b16 %v4617
    %v4704 = vunpack.c.l.b16 %v4618
    %v4705 = vunpack.c.h.b16 %v4618
    %v4706 = vunpack.c.l.b16 %v4619
    %v4707 = vunpack.c.h.b16 %v4619
    %v4708 = vunpack.c.l.b16 %v4620
    %v4709 = vunpack.c.h.b16 %v4620
    %v4710 = vunpack.c.l.b16 %v4621
    %v4711 = vunpack.c.h.b16 %v4621
    %v4712 = vunpack.c.l.b16 %v4622
    %v4713 = vunpack.c.h.b16 %v4622
    %v4714 = vunpack.c.l.b16 %v4623
    %v4715 = vunpack.c.h.b16 %v4623
    %v4716 = vunpack.c.l.b16 %v4624
    %v4717 = vunpack.c.h.b16 %v4624
    %v4718 = vunpack.c.l.b16 %v4625
    %v4719 = vunpack.c.h.b16 %v4625
    %v4720 = vunpack.c.l.b16 %v4626
    %v4721 = vunpack.c.h.b16 %v4626
    %v4722 = vunpack.c.l.b16 %v4627
    %v4723 = vunpack.c.h.b16 %v4627
    %v4724 = vpack.c.b16 %v4664, %v4660
    %v4725 = vpack.c.b16 %v4665, %v4661
    %v4726 = vpack.c.b16 %v4666, %v4662
    %v4727 = vpack.c.b16 %v4667, %v4663
    %v4728 = vpack.c.b16 %v4672, %v4668
    %v4729 = vpack.c.b16 %v4673, %v4669
    %v4730 = vpack.c.b16 %v4674, %v4670
    %v4731 = vpack.c.b16 %v4675, %v4671
    %v4732 = vpack.c.b16 %v4680, %v4676
    %v4733 = vpack.c.b16 %v4681, %v4677
    %v4734 = vpack.c.b16 %v4682, %v4678
    %v4735 = vpack.c.b16 %v4683, %v4679
    %v4736 = vpack.c.b16 %v4688, %v4684
    %v4737 = vpack.c.b16 %v4689, %v4685
    %v4738 = vpack.c.b16 %v4690, %v4686
    %v4739 = vpack.c.b16 %v4691, %v4687
    %v4740 = vpack.c.b16 %v4696, %v4692
    %v4741 = vpack.c.b16 %v4697, %v4693
    %v4742 = vpack.c.b16 %v4698, %v4694
    %v4743 = vpack.c.b16 %v4699, %v4695
    %v4744 = vpack.c.b16 %v4704, %v4700
    %v4745 = vpack.c.b16 %v4705, %v4701
    %v4746 = vpack.c.b16 %v4706, %v4702
    %v4747 = vpack.c.b16 %v4707, %v4703
    %v4748 = vpack.c.b16 %v4712, %v4708
    %v4749 = vpack.c.b16 %v4713, %v4709
    %v4750 = vpack.c.b16 %v4714, %v4710
    %v4751 = vpack.c.b16 %v4715, %v4711
    %v4752 = vpack.c.b16 %v4720, %v4716
    %v4753 = vpack.c.b16 %v4721, %v4717
    %v4754 = vpack.c.b16 %v4722, %v4718
    %v4755 = vpack.c.b16 %v4723, %v4719
    %4788 = vmatprep.subr.bf16.mxu0 %v4725
    %4789 = vmatpush1.bf16.msra.mxu0 %v4724
    %4790 = vmatprep.subr.bf16.mxu0 %v4729
    %4791 = vmatpush1.bf16.msra.mxu0 %v4728
    %4792 = vmatprep.subr.bf16.mxu0 %v4733
    %4793 = vmatpush1.bf16.msra.mxu0 %v4732
    %4794 = vmatprep.subr.bf16.mxu0 %v4737
    %4795 = vmatpush1.bf16.msra.mxu0 %v4736
    %4796 = vmatprep.subr.bf16.mxu0 %v4741
    %4797 = vmatpush1.bf16.msra.mxu0 %v4740
    %4798 = vmatprep.subr.bf16.mxu0 %v4745
    %4799 = vmatpush1.bf16.msra.mxu0 %v4744
    %4800 = vmatprep.subr.bf16.mxu0 %v4749
    %4801 = vmatpush1.bf16.msra.mxu0 %v4748
    %4802 = vmatprep.subr.bf16.mxu0 %v4753
    %4803 = vmatpush1.bf16.msra.mxu0 %v4752
    %4804 = vmatprep.subr.bf16.mxu0 0
    %4805 = vmatpush1.bf16.msra.mxu0 0
    %4806 = vmatprep.subr.bf16.mxu0 0
    %4807 = vmatpush1.bf16.msra.mxu0 0
    %4808 = vmatprep.subr.bf16.mxu0 0
    %4809 = vmatpush1.bf16.msra.mxu0 0
    %4810 = vmatprep.subr.bf16.mxu0 0
    %4811 = vmatpush1.bf16.msra.mxu0 0
    %4812 = vmatprep.subr.bf16.mxu0 0
    %4813 = vmatpush1.bf16.msra.mxu0 0
    %4814 = vmatprep.subr.bf16.mxu0 0
    %4815 = vmatpush1.bf16.msra.mxu0 0
    %4816 = vmatprep.subr.bf16.mxu0 0
    %4817 = vmatpush1.bf16.msra.mxu0 0
    %4818 = vmatprep.subr.bf16.mxu0 0
    %4819 = vmatpush1.bf16.msra.mxu0 0
    %4820 = vmatprep.mubr.bf16.mxu0 0
    %4821 = vmatmul.mubr.bf16.gmra.mrb[0].mxu0 %v4595
    %v4822 = vpop.f32.mrb[0].mxu0
    %v4823 = vadd.f32 0.0, %v4822
    %v4824 = vpop.f32.mrb[0].mxu0
    %v4825 = vadd.f32 0.0, %v4824
    %v4826 = vpop.f32.mrb[0].mxu0
    %v4827 = vpop.f32.mrb[0].mxu0
    %4828 = vdwg.mxu0
    %4829 = vmatprep.subr.bf16.mxu0 %v4727
    %4830 = vmatpush1.bf16.msra.mxu0 %v4726
    %4831 = vmatprep.subr.bf16.mxu0 %v4731
    %4832 = vmatpush1.bf16.msra.mxu0 %v4730
    %4833 = vmatprep.subr.bf16.mxu0 %v4735
    %4834 = vmatpush1.bf16.msra.mxu0 %v4734
    %4835 = vmatprep.subr.bf16.mxu0 %v4739
    %4836 = vmatpush1.bf16.msra.mxu0 %v4738
    %4837 = vmatprep.subr.bf16.mxu0 %v4743
    %4838 = vmatpush1.bf16.msra.mxu0 %v4742
    %4839 = vmatprep.subr.bf16.mxu0 %v4747
    %4840 = vmatpush1.bf16.msra.mxu0 %v4746
    %4841 = vmatprep.subr.bf16.mxu0 %v4751
    %4842 = vmatpush1.bf16.msra.mxu0 %v4750
    %4843 = vmatprep.subr.bf16.mxu0 %v4755
    %4844 = vmatpush1.bf16.msra.mxu0 %v4754
    %4845 = vmatprep.subr.bf16.mxu0 0
    %4846 = vmatpush1.bf16.msra.mxu0 0
    %4847 = vmatprep.subr.bf16.mxu0 0
    %4848 = vmatpush1.bf16.msra.mxu0 0
    %4849 = vmatprep.subr.bf16.mxu0 0
    %4850 = vmatpush1.bf16.msra.mxu0 0
    %4851 = vmatprep.subr.bf16.mxu0 0
    %4852 = vmatpush1.bf16.msra.mxu0 0
    %4853 = vmatprep.subr.bf16.mxu0 0
    %4854 = vmatpush1.bf16.msra.mxu0 0
    %4855 = vmatprep.subr.bf16.mxu0 0
    %4856 = vmatpush1.bf16.msra.mxu0 0
    %4857 = vmatprep.subr.bf16.mxu0 0
    %4858 = vmatpush1.bf16.msra.mxu0 0
    %4859 = vmatprep.subr.bf16.mxu0 0
    %4860 = vmatpush1.bf16.msra.mxu0 0
    %4861 = vmatprep.mubr.bf16.mxu0 0
    %4862 = vmatmul.mubr.bf16.gmra.mrb[0].mxu0 %v4595
    %v4863 = vpop.f32.mrb[0].mxu0
    %v4864 = vadd.f32 0.0, %v4863
    %v4865 = vpop.f32.mrb[0].mxu0
    %v4866 = vadd.f32 0.0, %v4865
    %v4867 = vpop.f32.mrb[0].mxu0
    %v4868 = vpop.f32.mrb[0].mxu0
    %4869 = vdwg.mxu0
    %v4870 = vadd.f32 %v4590, %v4823
    %v4871 = vadd.f32 %v4591, %v4825
    %v4872 = vadd.f32 %v4592, %v4864
    %v4873 = vadd.f32 %v4593, %v4866
    %v4874 = vld [vmem:[#allocation3] sm:$0xff]
    %v4875 = vxor.u32 %v4870, 2147483648
    %v4876 = vxor.u32 %v4871, 2147483648
    %v4877 = vxor.u32 %v4872, 2147483648
    %v4878 = vmul.f32 %v4875, 1.442695
    %v4879 = vpow.pop %v4878
    %v4880 = vmul.f32 %v4876, 1.442695
    %v4881 = vpow.pop %v4880
    %v4882 = vmul.f32 %v4877, 1.442695
    %v4883 = vpow.pop %v4882
    %v4884 = vadd.f32 %v4879, 1.0
    %v4885 = vadd.f32 %v4881, 1.0
    %v4886 = vadd.f32 %v4883, 1.0
    %v4887 = vrcp.pop %v4884
    %v4888 = vmul.f32 1.0, %v4887
    %v4889 = vrcp.pop %v4885
    %v4890 = vmul.f32 1.0, %v4889
    %v4891 = vrcp.pop %v4886
    %v4892 = vmul.f32 1.0, %v4891
    %v4893 = vtanh.pop %v4873
    %v4894 = vmul.f32 %v4890, %v4874
    %v4895 = vmul.f32 %v4888, %v4893
    %v4896 = vadd.f32 %v4894, %v4895
    %v4897 = vtanh.pop %v4896
    %v4898 = vmul.f32 %v4892, %v4897
    %4899 = vst [vmem:[#allocation2] sm:$0xff] %v4898
    %4900 = vst [vmem:[#allocation3] sm:$0xff] %v4896
    %v4901 = vpack.c.bf16 %v4898, %v4898
    %v4902 = vld [vmem:[%s846] sm:$0xff]
    %v4903 = vpack.c.bf16 %v4902, %v4902
    %v4904 = vld [vmem:[#allocation11] sm:$0xff]
    %v4905 = vld [vmem:[#allocation11 + $0x8] sm:$0xff]
    %v4906 = vld [vmem:[#allocation11 + $0x10] sm:$0xff]
    %v4907 = vld [vmem:[#allocation11 + $0x18] sm:$0xff]
    %v4908 = vld [vmem:[#allocation11 + $0x20] sm:$0xff]
    %v4909 = vld [vmem:[#allocation11 + $0x28] sm:$0xff]
    %v4910 = vld [vmem:[#allocation11 + $0x30] sm:$0xff]
    %v4911 = vld [vmem:[#allocation11 + $0x38] sm:$0xff]
    %v4912 = vld [vmem:[#allocation11 + $0x40] sm:$0xff]
    %v4913 = vld [vmem:[#allocation11 + $0x48] sm:$0xff]
    %v4914 = vld [vmem:[#allocation11 + $0x50] sm:$0xff]
    %v4915 = vld [vmem:[#allocation11 + $0x58] sm:$0xff]
    %v4916 = vld [vmem:[#allocation11 + $0x60] sm:$0xff]
    %v4917 = vld [vmem:[#allocation11 + $0x68] sm:$0xff]
    %v4918 = vld [vmem:[#allocation11 + $0x70] sm:$0xff]
    %v4919 = vld [vmem:[#allocation11 + $0x78] sm:$0xff]
    %v4920 = vld [vmem:[#allocation11 + $0x80] sm:$0xff]
    %v4921 = vld [vmem:[#allocation11 + $0x88] sm:$0xff]
    %v4922 = vld [vmem:[#allocation11 + $0x90] sm:$0xff]
    %v4923 = vld [vmem:[#allocation11 + $0x98] sm:$0xff]
    %v4924 = vld [vmem:[#allocation11 + $0xa0] sm:$0xff]
    %v4925 = vld [vmem:[#allocation11 + $0xa8] sm:$0xff]
    %v4926 = vld [vmem:[#allocation11 + $0xb0] sm:$0xff]
    %v4927 = vld [vmem:[#allocation11 + $0xb8] sm:$0xff]
    %v4928 = vld [vmem:[#allocation11 + $0xc0] sm:$0xff]
    %v4929 = vld [vmem:[#allocation11 + $0xc8] sm:$0xff]
    %v4930 = vld [vmem:[#allocation11 + $0xd0] sm:$0xff]
    %v4931 = vld [vmem:[#allocation11 + $0xd8] sm:$0xff]
    %v4932 = vld [vmem:[#allocation11 + $0xe0] sm:$0xff]
    %v4933 = vld [vmem:[#allocation11 + $0xe8] sm:$0xff]
    %v4934 = vld [vmem:[#allocation11 + $0xf0] sm:$0xff]
    %v4935 = vld [vmem:[#allocation11 + $0xf8] sm:$0xff]
    %v4936 = vld [vmem:[#allocation11 + $0x100] sm:$0xff]
    %v4937 = vld [vmem:[#allocation11 + $0x108] sm:$0xff]
    %v4938 = vld [vmem:[#allocation11 + $0x110] sm:$0xff]
    %v4939 = vld [vmem:[#allocation11 + $0x118] sm:$0xff]
    %v4940 = vld [vmem:[#allocation11 + $0x120] sm:$0xff]
    %v4941 = vld [vmem:[#allocation11 + $0x128] sm:$0xff]
    %v4942 = vld [vmem:[#allocation11 + $0x130] sm:$0xff]
    %v4943 = vld [vmem:[#allocation11 + $0x138] sm:$0xff]
    %v4944 = vld [vmem:[#allocation11 + $0x140] sm:$0xff]
    %v4945 = vld [vmem:[#allocation11 + $0x148] sm:$0xff]
    %v4946 = vld [vmem:[#allocation11 + $0x150] sm:$0xff]
    %v4947 = vld [vmem:[#allocation11 + $0x158] sm:$0xff]
    %v4948 = vld [vmem:[#allocation11 + $0x160] sm:$0xff]
    %v4949 = vld [vmem:[#allocation11 + $0x168] sm:$0xff]
    %v4950 = vld [vmem:[#allocation11 + $0x170] sm:$0xff]
    %v4951 = vld [vmem:[#allocation11 + $0x178] sm:$0xff]
    %v4952 = vld [vmem:[#allocation11 + $0x180] sm:$0xff]
    %v4953 = vld [vmem:[#allocation11 + $0x188] sm:$0xff]
    %v4954 = vld [vmem:[#allocation11 + $0x190] sm:$0xff]
    %v4955 = vld [vmem:[#allocation11 + $0x198] sm:$0xff]
    %v4956 = vld [vmem:[#allocation11 + $0x1a0] sm:$0xff]
    %v4957 = vld [vmem:[#allocation11 + $0x1a8] sm:$0xff]
    %v4958 = vld [vmem:[#allocation11 + $0x1b0] sm:$0xff]
    %v4959 = vld [vmem:[#allocation11 + $0x1b8] sm:$0xff]
    %v4960 = vld [vmem:[#allocation11 + $0x1c0] sm:$0xff]
    %v4961 = vld [vmem:[#allocation11 + $0x1c8] sm:$0xff]
    %v4962 = vld [vmem:[#allocation11 + $0x1d0] sm:$0xff]
    %v4963 = vld [vmem:[#allocation11 + $0x1d8] sm:$0xff]
    %v4964 = vld [vmem:[#allocation11 + $0x1e0] sm:$0xff]
    %v4965 = vld [vmem:[#allocation11 + $0x1e8] sm:$0xff]
    %v4966 = vld [vmem:[#allocation11 + $0x1f0] sm:$0xff]
    %v4967 = vld [vmem:[#allocation11 + $0x1f8] sm:$0xff]
    %v5032 = vunpack.c.l.b16 %v4904
    %v5033 = vunpack.c.h.b16 %v4904
    %v5034 = vunpack.c.l.b16 %v4905
    %v5035 = vunpack.c.h.b16 %v4905
    %v5036 = vunpack.c.l.b16 %v4906
    %v5037 = vunpack.c.h.b16 %v4906
    %v5038 = vunpack.c.l.b16 %v4907
    %v5039 = vunpack.c.h.b16 %v4907
    %v5040 = vunpack.c.l.b16 %v4908
    %v5041 = vunpack.c.h.b16 %v4908
    %v5042 = vunpack.c.l.b16 %v4909
    %v5043 = vunpack.c.h.b16 %v4909
    %v5044 = vunpack.c.l.b16 %v4910
    %v5045 = vunpack.c.h.b16 %v4910
    %v5046 = vunpack.c.l.b16 %v4911
    %v5047 = vunpack.c.h.b16 %v4911
    %v5048 = vunpack.c.l.b16 %v4912
    %v5049 = vunpack.c.h.b16 %v4912
    %v5050 = vunpack.c.l.b16 %v4913
    %v5051 = vunpack.c.h.b16 %v4913
    %v5052 = vunpack.c.l.b16 %v4914
    %v5053 = vunpack.c.h.b16 %v4914
    %v5054 = vunpack.c.l.b16 %v4915
    %v5055 = vunpack.c.h.b16 %v4915
    %v5056 = vunpack.c.l.b16 %v4916
    %v5057 = vunpack.c.h.b16 %v4916
    %v5058 = vunpack.c.l.b16 %v4917
    %v5059 = vunpack.c.h.b16 %v4917
    %v5060 = vunpack.c.l.b16 %v4918
    %v5061 = vunpack.c.h.b16 %v4918
    %v5062 = vunpack.c.l.b16 %v4919
    %v5063 = vunpack.c.h.b16 %v4919
    %v5064 = vunpack.c.l.b16 %v4920
    %v5065 = vunpack.c.h.b16 %v4920
    %v5066 = vunpack.c.l.b16 %v4921
    %v5067 = vunpack.c.h.b16 %v4921
    %v5068 = vunpack.c.l.b16 %v4922
    %v5069 = vunpack.c.h.b16 %v4922
    %v5070 = vunpack.c.l.b16 %v4923
    %v5071 = vunpack.c.h.b16 %v4923
    %v5072 = vunpack.c.l.b16 %v4924
    %v5073 = vunpack.c.h.b16 %v4924
    %v5074 = vunpack.c.l.b16 %v4925
    %v5075 = vunpack.c.h.b16 %v4925
    %v5076 = vunpack.c.l.b16 %v4926
    %v5077 = vunpack.c.h.b16 %v4926
    %v5078 = vunpack.c.l.b16 %v4927
    %v5079 = vunpack.c.h.b16 %v4927
    %v5080 = vunpack.c.l.b16 %v4928
    %v5081 = vunpack.c.h.b16 %v4928
    %v5082 = vunpack.c.l.b16 %v4929
    %v5083 = vunpack.c.h.b16 %v4929
    %v5084 = vunpack.c.l.b16 %v4930
    %v5085 = vunpack.c.h.b16 %v4930
    %v5086 = vunpack.c.l.b16 %v4931
    %v5087 = vunpack.c.h.b16 %v4931
    %v5088 = vunpack.c.l.b16 %v4932
    %v5089 = vunpack.c.h.b16 %v4932
    %v5090 = vunpack.c.l.b16 %v4933
    %v5091 = vunpack.c.h.b16 %v4933
    %v5092 = vunpack.c.l.b16 %v4934
    %v5093 = vunpack.c.h.b16 %v4934
    %v5094 = vunpack.c.l.b16 %v4935
    %v5095 = vunpack.c.h.b16 %v4935
    %v5096 = vunpack.c.l.b16 %v4936
    %v5097 = vunpack.c.h.b16 %v4936
    %v5098 = vunpack.c.l.b16 %v4937
    %v5099 = vunpack.c.h.b16 %v4937
    %v5100 = vunpack.c.l.b16 %v4938
    %v5101 = vunpack.c.h.b16 %v4938
    %v5102 = vunpack.c.l.b16 %v4939
    %v5103 = vunpack.c.h.b16 %v4939
    %v5104 = vunpack.c.l.b16 %v4940
    %v5105 = vunpack.c.h.b16 %v4940
    %v5106 = vunpack.c.l.b16 %v4941
    %v5107 = vunpack.c.h.b16 %v4941
    %v5108 = vunpack.c.l.b16 %v4942
    %v5109 = vunpack.c.h.b16 %v4942
    %v5110 = vunpack.c.l.b16 %v4943
    %v5111 = vunpack.c.h.b16 %v4943
    %v5112 = vunpack.c.l.b16 %v4944
    %v5113 = vunpack.c.h.b16 %v4944
    %v5114 = vunpack.c.l.b16 %v4945
    %v5115 = vunpack.c.h.b16 %v4945
    %v5116 = vunpack.c.l.b16 %v4946
    %v5117 = vunpack.c.h.b16 %v4946
    %v5118 = vunpack.c.l.b16 %v4947
    %v5119 = vunpack.c.h.b16 %v4947
    %v5120 = vunpack.c.l.b16 %v4948
    %v5121 = vunpack.c.h.b16 %v4948
    %v5122 = vunpack.c.l.b16 %v4949
    %v5123 = vunpack.c.h.b16 %v4949
    %v5124 = vunpack.c.l.b16 %v4950
    %v5125 = vunpack.c.h.b16 %v4950
    %v5126 = vunpack.c.l.b16 %v4951
    %v5127 = vunpack.c.h.b16 %v4951
    %v5128 = vunpack.c.l.b16 %v4952
    %v5129 = vunpack.c.h.b16 %v4952
    %v5130 = vunpack.c.l.b16 %v4953
    %v5131 = vunpack.c.h.b16 %v4953
    %v5132 = vunpack.c.l.b16 %v4954
    %v5133 = vunpack.c.h.b16 %v4954
    %v5134 = vunpack.c.l.b16 %v4955
    %v5135 = vunpack.c.h.b16 %v4955
    %v5136 = vunpack.c.l.b16 %v4956
    %v5137 = vunpack.c.h.b16 %v4956
    %v5138 = vunpack.c.l.b16 %v4957
    %v5139 = vunpack.c.h.b16 %v4957
    %v5140 = vunpack.c.l.b16 %v4958
    %v5141 = vunpack.c.h.b16 %v4958
    %v5142 = vunpack.c.l.b16 %v4959
    %v5143 = vunpack.c.h.b16 %v4959
    %v5144 = vunpack.c.l.b16 %v4960
    %v5145 = vunpack.c.h.b16 %v4960
    %v5146 = vunpack.c.l.b16 %v4961
    %v5147 = vunpack.c.h.b16 %v4961
    %v5148 = vunpack.c.l.b16 %v4962
    %v5149 = vunpack.c.h.b16 %v4962
    %v5150 = vunpack.c.l.b16 %v4963
    %v5151 = vunpack.c.h.b16 %v4963
    %v5152 = vunpack.c.l.b16 %v4964
    %v5153 = vunpack.c.h.b16 %v4964
    %v5154 = vunpack.c.l.b16 %v4965
    %v5155 = vunpack.c.h.b16 %v4965
    %v5156 = vunpack.c.l.b16 %v4966
    %v5157 = vunpack.c.h.b16 %v4966
    %v5158 = vunpack.c.l.b16 %v4967
    %v5159 = vunpack.c.h.b16 %v4967
    %v5160 = vpack.c.b16 %v5036, %v5032
    %v5161 = vpack.c.b16 %v5037, %v5033
    %v5162 = vpack.c.b16 %v5038, %v5034
    %v5163 = vpack.c.b16 %v5039, %v5035
    %v5164 = vpack.c.b16 %v5044, %v5040
    %v5165 = vpack.c.b16 %v5045, %v5041
    %v5166 = vpack.c.b16 %v5046, %v5042
    %v5167 = vpack.c.b16 %v5047, %v5043
    %v5168 = vpack.c.b16 %v5052, %v5048
    %v5169 = vpack.c.b16 %v5053, %v5049
    %v5170 = vpack.c.b16 %v5054, %v5050
    %v5171 = vpack.c.b16 %v5055, %v5051
    %v5172 = vpack.c.b16 %v5060, %v5056
    %v5173 = vpack.c.b16 %v5061, %v5057
    %v5174 = vpack.c.b16 %v5062, %v5058
    %v5175 = vpack.c.b16 %v5063, %v5059
    %v5176 = vpack.c.b16 %v5068, %v5064
    %v5177 = vpack.c.b16 %v5069, %v5065
    %v5178 = vpack.c.b16 %v5070, %v5066
    %v5179 = vpack.c.b16 %v5071, %v5067
    %v5180 = vpack.c.b16 %v5076, %v5072
    %v5181 = vpack.c.b16 %v5077, %v5073
    %v5182 = vpack.c.b16 %v5078, %v5074
    %v5183 = vpack.c.b16 %v5079, %v5075
    %v5184 = vpack.c.b16 %v5084, %v5080
    %v5185 = vpack.c.b16 %v5085, %v5081
    %v5186 = vpack.c.b16 %v5086, %v5082
    %v5187 = vpack.c.b16 %v5087, %v5083
    %v5188 = vpack.c.b16 %v5092, %v5088
    %v5189 = vpack.c.b16 %v5093, %v5089
    %v5190 = vpack.c.b16 %v5094, %v5090
    %v5191 = vpack.c.b16 %v5095, %v5091
    %v5192 = vpack.c.b16 %v5100, %v5096
    %v5193 = vpack.c.b16 %v5101, %v5097
    %v5194 = vpack.c.b16 %v5102, %v5098
    %v5195 = vpack.c.b16 %v5103, %v5099
    %v5196 = vpack.c.b16 %v5108, %v5104
    %v5197 = vpack.c.b16 %v5109, %v5105
    %v5198 = vpack.c.b16 %v5110, %v5106
    %v5199 = vpack.c.b16 %v5111, %v5107
    %v5200 = vpack.c.b16 %v5116, %v5112
    %v5201 = vpack.c.b16 %v5117, %v5113
    %v5202 = vpack.c.b16 %v5118, %v5114
    %v5203 = vpack.c.b16 %v5119, %v5115
    %v5204 = vpack.c.b16 %v5124, %v5120
    %v5205 = vpack.c.b16 %v5125, %v5121
    %v5206 = vpack.c.b16 %v5126, %v5122
    %v5207 = vpack.c.b16 %v5127, %v5123
    %v5208 = vpack.c.b16 %v5132, %v5128
    %v5209 = vpack.c.b16 %v5133, %v5129
    %v5210 = vpack.c.b16 %v5134, %v5130
    %v5211 = vpack.c.b16 %v5135, %v5131
    %v5212 = vpack.c.b16 %v5140, %v5136
    %v5213 = vpack.c.b16 %v5141, %v5137
    %v5214 = vpack.c.b16 %v5142, %v5138
    %v5215 = vpack.c.b16 %v5143, %v5139
    %v5216 = vpack.c.b16 %v5148, %v5144
    %v5217 = vpack.c.b16 %v5149, %v5145
    %v5218 = vpack.c.b16 %v5150, %v5146
    %v5219 = vpack.c.b16 %v5151, %v5147
    %v5220 = vpack.c.b16 %v5156, %v5152
    %v5221 = vpack.c.b16 %v5157, %v5153
    %v5222 = vpack.c.b16 %v5158, %v5154
    %v5223 = vpack.c.b16 %v5159, %v5155
    %5288 = vmatprep.subr.bf16.mxu0 %v5161
    %5289 = vmatpush1.bf16.msra.mxu0 %v5160
    %5290 = vmatprep.subr.bf16.mxu0 %v5165
    %5291 = vmatpush1.bf16.msra.mxu0 %v5164
    %5292 = vmatprep.subr.bf16.mxu0 %v5169
    %5293 = vmatpush1.bf16.msra.mxu0 %v5168
    %5294 = vmatprep.subr.bf16.mxu0 %v5173
    %5295 = vmatpush1.bf16.msra.mxu0 %v5172
    %5296 = vmatprep.subr.bf16.mxu0 %v5177
    %5297 = vmatpush1.bf16.msra.mxu0 %v5176
    %5298 = vmatprep.subr.bf16.mxu0 %v5181
    %5299 = vmatpush1.bf16.msra.mxu0 %v5180
    %5300 = vmatprep.subr.bf16.mxu0 %v5185
    %5301 = vmatpush1.bf16.msra.mxu0 %v5184
    %5302 = vmatprep.subr.bf16.mxu0 %v5189
    %5303 = vmatpush1.bf16.msra.mxu0 %v5188
    %5304 = vmatprep.subr.bf16.mxu0 %v5193
    %5305 = vmatpush1.bf16.msra.mxu0 %v5192
    %5306 = vmatprep.subr.bf16.mxu0 %v5197
    %5307 = vmatpush1.bf16.msra.mxu0 %v5196
    %5308 = vmatprep.subr.bf16.mxu0 %v5201
    %5309 = vmatpush1.bf16.msra.mxu0 %v5200
    %5310 = vmatprep.subr.bf16.mxu0 %v5205
    %5311 = vmatpush1.bf16.msra.mxu0 %v5204
    %5312 = vmatprep.subr.bf16.mxu0 %v5209
    %5313 = vmatpush1.bf16.msra.mxu0 %v5208
    %5314 = vmatprep.subr.bf16.mxu0 %v5213
    %5315 = vmatpush1.bf16.msra.mxu0 %v5212
    %5316 = vmatprep.subr.bf16.mxu0 %v5217
    %5317 = vmatpush1.bf16.msra.mxu0 %v5216
    %5318 = vmatprep.subr.bf16.mxu0 %v5221
    %5319 = vmatpush1.bf16.msra.mxu0 %v5220
    %5320 = vmatprep.mubr.bf16.mxu0 %v4903
    %5321 = vmatmul.mubr.bf16.gmra.mrb[0].mxu0 %v4901
    %v5322 = vpop.f32.mrb[0].mxu0
    %v5323 = vadd.f32 %v517, %v5322
    %v5324 = vpop.f32.mrb[0].mxu0
    %v5325 = vadd.f32 %v521, %v5324
    %v5326 = vpop.f32.mrb[0].mxu0
    %v5327 = vpop.f32.mrb[0].mxu0
    %5328 = vdwg.mxu0
    %5329 = vmatprep.subr.bf16.mxu0 %v5163
    %5330 = vmatpush1.bf16.msra.mxu0 %v5162
    %5331 = vmatprep.subr.bf16.mxu0 %v5167
    %5332 = vmatpush1.bf16.msra.mxu0 %v5166
    %5333 = vmatprep.subr.bf16.mxu0 %v5171
    %5334 = vmatpush1.bf16.msra.mxu0 %v5170
    %5335 = vmatprep.subr.bf16.mxu0 %v5175
    %5336 = vmatpush1.bf16.msra.mxu0 %v5174
    %5337 = vmatprep.subr.bf16.mxu0 %v5179
    %5338 = vmatpush1.bf16.msra.mxu0 %v5178
    %5339 = vmatprep.subr.bf16.mxu0 %v5183
    %5340 = vmatpush1.bf16.msra.mxu0 %v5182
    %5341 = vmatprep.subr.bf16.mxu0 %v5187
    %5342 = vmatpush1.bf16.msra.mxu0 %v5186
    %5343 = vmatprep.subr.bf16.mxu0 %v5191
    %5344 = vmatpush1.bf16.msra.mxu0 %v5190
    %5345 = vmatprep.subr.bf16.mxu0 %v5195
    %5346 = vmatpush1.bf16.msra.mxu0 %v5194
    %5347 = vmatprep.subr.bf16.mxu0 %v5199
    %5348 = vmatpush1.bf16.msra.mxu0 %v5198
    %5349 = vmatprep.subr.bf16.mxu0 %v5203
    %5350 = vmatpush1.bf16.msra.mxu0 %v5202
    %5351 = vmatprep.subr.bf16.mxu0 %v5207
    %5352 = vmatpush1.bf16.msra.mxu0 %v5206
    %5353 = vmatprep.subr.bf16.mxu0 %v5211
    %5354 = vmatpush1.bf16.msra.mxu0 %v5210
    %5355 = vmatprep.subr.bf16.mxu0 %v5215
    %5356 = vmatpush1.bf16.msra.mxu0 %v5214
    %5357 = vmatprep.subr.bf16.mxu0 %v5219
    %5358 = vmatpush1.bf16.msra.mxu0 %v5218
    %5359 = vmatprep.subr.bf16.mxu0 %v5223
    %5360 = vmatpush1.bf16.msra.mxu0 %v5222
    %5361 = vmatprep.mubr.bf16.mxu0 %v4903
    %5362 = vmatmul.mubr.bf16.gmra.mrb[0].mxu0 %v4901
    %v5363 = vpop.f32.mrb[0].mxu0
    %v5364 = vadd.f32 %v525, %v5363
    %v5365 = vpop.f32.mrb[0].mxu0
    %v5366 = vadd.f32 %v529, %v5365
    %v5367 = vpop.f32.mrb[0].mxu0
    %v5368 = vpop.f32.mrb[0].mxu0
    %5369 = vdwg.mxu0
    %v5370 = vld [vmem:[%s1315] sm:$0xff]
    %v5371 = vxor.u32 %v5323, 2147483648
    %v5372 = vxor.u32 %v5325, 2147483648
    %v5373 = vxor.u32 %v5364, 2147483648
    %v5374 = vmul.f32 %v5371, 1.442695
    %v5375 = vpow.pop %v5374
    %v5376 = vmul.f32 %v5372, 1.442695
    %v5377 = vpow.pop %v5376
    %v5378 = vmul.f32 %v5373, 1.442695
    %v5379 = vpow.pop %v5378
    %v5380 = vadd.f32 %v5375, 1.0
    %v5381 = vadd.f32 %v5377, 1.0
    %v5382 = vadd.f32 %v5379, 1.0
    %v5383 = vrcp.pop %v5380
    %v5384 = vmul.f32 1.0, %v5383
    %v5385 = vrcp.pop %v5381
    %v5386 = vmul.f32 1.0, %v5385
    %v5387 = vrcp.pop %v5382
    %v5388 = vmul.f32 1.0, %v5387
    %v5389 = vtanh.pop %v5366
    %v5390 = vmul.f32 %v5386, %v5370
    %v5391 = vmul.f32 %v5384, %v5389
    %v5392 = vadd.f32 %v5390, %v5391
    %v5393 = vtanh.pop %v5392
    %v5394 = vmul.f32 %v5388, %v5393
    %5395 = vst [vmem:[%s846] sm:$0xff] %v5394
    %5396 = vst [vmem:[%s1315] sm:$0xff] %v5392
    %v5397 = vpack.c.bf16 %v5394, %v5394
    %s5398 = scalar_lea.vmem [#allocation13], 20
    %5399 = vst [vmem:[%s5398] sm:$0xf] %v5397
    %s5400 = scalar_lea.vmem [#allocation4], 192
    %v5401 = vld [vmem:[%s5400] sm:$0xff]
    %v5402 = vld [vmem:[%s5400 + $0x8] sm:$0xff]
    %v5403 = vld [vmem:[%s5400 + $0x10] sm:$0xff]
    %v5404 = vld [vmem:[%s5400 + $0x18] sm:$0xff]
    %v5405 = vld [vmem:[#allocation2] sm:$0xff]
    %v5406 = vpack.c.bf16 %v5405, %v5405
    %v5407 = vld [vmem:[#allocation10] sm:$0xff]
    %v5408 = vld [vmem:[#allocation10 + $0x8] sm:$0xff]
    %v5409 = vld [vmem:[#allocation10 + $0x10] sm:$0xff]
    %v5410 = vld [vmem:[#allocation10 + $0x18] sm:$0xff]
    %v5411 = vld [vmem:[#allocation10 + $0x20] sm:$0xff]
    %v5412 = vld [vmem:[#allocation10 + $0x28] sm:$0xff]
    %v5413 = vld [vmem:[#allocation10 + $0x30] sm:$0xff]
    %v5414 = vld [vmem:[#allocation10 + $0x38] sm:$0xff]
    %v5415 = vld [vmem:[#allocation10 + $0x40] sm:$0xff]
    %v5416 = vld [vmem:[#allocation10 + $0x48] sm:$0xff]
    %v5417 = vld [vmem:[#allocation10 + $0x50] sm:$0xff]
    %v5418 = vld [vmem:[#allocation10 + $0x58] sm:$0xff]
    %v5419 = vld [vmem:[#allocation10 + $0x60] sm:$0xff]
    %v5420 = vld [vmem:[#allocation10 + $0x68] sm:$0xff]
    %v5421 = vld [vmem:[#allocation10 + $0x70] sm:$0xff]
    %v5422 = vld [vmem:[#allocation10 + $0x78] sm:$0xff]
    %v5423 = vld [vmem:[#allocation10 + $0x80] sm:$0xff]
    %v5424 = vld [vmem:[#allocation10 + $0x88] sm:$0xff]
    %v5425 = vld [vmem:[#allocation10 + $0x90] sm:$0xff]
    %v5426 = vld [vmem:[#allocation10 + $0x98] sm:$0xff]
    %v5427 = vld [vmem:[#allocation10 + $0xa0] sm:$0xff]
    %v5428 = vld [vmem:[#allocation10 + $0xa8] sm:$0xff]
    %v5429 = vld [vmem:[#allocation10 + $0xb0] sm:$0xff]
    %v5430 = vld [vmem:[#allocation10 + $0xb8] sm:$0xff]
    %v5431 = vld [vmem:[#allocation10 + $0xc0] sm:$0xff]
    %v5432 = vld [vmem:[#allocation10 + $0xc8] sm:$0xff]
    %v5433 = vld [vmem:[#allocation10 + $0xd0] sm:$0xff]
    %v5434 = vld [vmem:[#allocation10 + $0xd8] sm:$0xff]
    %v5435 = vld [vmem:[#allocation10 + $0xe0] sm:$0xff]
    %v5436 = vld [vmem:[#allocation10 + $0xe8] sm:$0xff]
    %v5437 = vld [vmem:[#allocation10 + $0xf0] sm:$0xff]
    %v5438 = vld [vmem:[#allocation10 + $0xf8] sm:$0xff]
    %v5471 = vunpack.c.l.b16 %v5407
    %v5472 = vunpack.c.h.b16 %v5407
    %v5473 = vunpack.c.l.b16 %v5408
    %v5474 = vunpack.c.h.b16 %v5408
    %v5475 = vunpack.c.l.b16 %v5409
    %v5476 = vunpack.c.h.b16 %v5409
    %v5477 = vunpack.c.l.b16 %v5410
    %v5478 = vunpack.c.h.b16 %v5410
    %v5479 = vunpack.c.l.b16 %v5411
    %v5480 = vunpack.c.h.b16 %v5411
    %v5481 = vunpack.c.l.b16 %v5412
    %v5482 = vunpack.c.h.b16 %v5412
    %v5483 = vunpack.c.l.b16 %v5413
    %v5484 = vunpack.c.h.b16 %v5413
    %v5485 = vunpack.c.l.b16 %v5414
    %v5486 = vunpack.c.h.b16 %v5414
    %v5487 = vunpack.c.l.b16 %v5415
    %v5488 = vunpack.c.h.b16 %v5415
    %v5489 = vunpack.c.l.b16 %v5416
    %v5490 = vunpack.c.h.b16 %v5416
    %v5491 = vunpack.c.l.b16 %v5417
    %v5492 = vunpack.c.h.b16 %v5417
    %v5493 = vunpack.c.l.b16 %v5418
    %v5494 = vunpack.c.h.b16 %v5418
    %v5495 = vunpack.c.l.b16 %v5419
    %v5496 = vunpack.c.h.b16 %v5419
    %v5497 = vunpack.c.l.b16 %v5420
    %v5498 = vunpack.c.h.b16 %v5420
    %v5499 = vunpack.c.l.b16 %v5421
    %v5500 = vunpack.c.h.b16 %v5421
    %v5501 = vunpack.c.l.b16 %v5422
    %v5502 = vunpack.c.h.b16 %v5422
    %v5503 = vunpack.c.l.b16 %v5423
    %v5504 = vunpack.c.h.b16 %v5423
    %v5505 = vunpack.c.l.b16 %v5424
    %v5506 = vunpack.c.h.b16 %v5424
    %v5507 = vunpack.c.l.b16 %v5425
    %v5508 = vunpack.c.h.b16 %v5425
    %v5509 = vunpack.c.l.b16 %v5426
    %v5510 = vunpack.c.h.b16 %v5426
    %v5511 = vunpack.c.l.b16 %v5427
    %v5512 = vunpack.c.h.b16 %v5427
    %v5513 = vunpack.c.l.b16 %v5428
    %v5514 = vunpack.c.h.b16 %v5428
    %v5515 = vunpack.c.l.b16 %v5429
    %v5516 = vunpack.c.h.b16 %v5429
    %v5517 = vunpack.c.l.b16 %v5430
    %v5518 = vunpack.c.h.b16 %v5430
    %v5519 = vunpack.c.l.b16 %v5431
    %v5520 = vunpack.c.h.b16 %v5431
    %v5521 = vunpack.c.l.b16 %v5432
    %v5522 = vunpack.c.h.b16 %v5432
    %v5523 = vunpack.c.l.b16 %v5433
    %v5524 = vunpack.c.h.b16 %v5433
    %v5525 = vunpack.c.l.b16 %v5434
    %v5526 = vunpack.c.h.b16 %v5434
    %v5527 = vunpack.c.l.b16 %v5435
    %v5528 = vunpack.c.h.b16 %v5435
    %v5529 = vunpack.c.l.b16 %v5436
    %v5530 = vunpack.c.h.b16 %v5436
    %v5531 = vunpack.c.l.b16 %v5437
    %v5532 = vunpack.c.h.b16 %v5437
    %v5533 = vunpack.c.l.b16 %v5438
    %v5534 = vunpack.c.h.b16 %v5438
    %v5535 = vpack.c.b16 %v5475, %v5471
    %v5536 = vpack.c.b16 %v5476, %v5472
    %v5537 = vpack.c.b16 %v5477, %v5473
    %v5538 = vpack.c.b16 %v5478, %v5474
    %v5539 = vpack.c.b16 %v5483, %v5479
    %v5540 = vpack.c.b16 %v5484, %v5480
    %v5541 = vpack.c.b16 %v5485, %v5481
    %v5542 = vpack.c.b16 %v5486, %v5482
    %v5543 = vpack.c.b16 %v5491, %v5487
    %v5544 = vpack.c.b16 %v5492, %v5488
    %v5545 = vpack.c.b16 %v5493, %v5489
    %v5546 = vpack.c.b16 %v5494, %v5490
    %v5547 = vpack.c.b16 %v5499, %v5495
    %v5548 = vpack.c.b16 %v5500, %v5496
    %v5549 = vpack.c.b16 %v5501, %v5497
    %v5550 = vpack.c.b16 %v5502, %v5498
    %v5551 = vpack.c.b16 %v5507, %v5503
    %v5552 = vpack.c.b16 %v5508, %v5504
    %v5553 = vpack.c.b16 %v5509, %v5505
    %v5554 = vpack.c.b16 %v5510, %v5506
    %v5555 = vpack.c.b16 %v5515, %v5511
    %v5556 = vpack.c.b16 %v5516, %v5512
    %v5557 = vpack.c.b16 %v5517, %v5513
    %v5558 = vpack.c.b16 %v5518, %v5514
    %v5559 = vpack.c.b16 %v5523, %v5519
    %v5560 = vpack.c.b16 %v5524, %v5520
    %v5561 = vpack.c.b16 %v5525, %v5521
    %v5562 = vpack.c.b16 %v5526, %v5522
    %v5563 = vpack.c.b16 %v5531, %v5527
    %v5564 = vpack.c.b16 %v5532, %v5528
    %v5565 = vpack.c.b16 %v5533, %v5529
    %v5566 = vpack.c.b16 %v5534, %v5530
    %5599 = vmatprep.subr.bf16.mxu0 %v5536
    %5600 = vmatpush1.bf16.msra.mxu0 %v5535
    %5601 = vmatprep.subr.bf16.mxu0 %v5540
    %5602 = vmatpush1.bf16.msra.mxu0 %v5539
    %5603 = vmatprep.subr.bf16.mxu0 %v5544
    %5604 = vmatpush1.bf16.msra.mxu0 %v5543
    %5605 = vmatprep.subr.bf16.mxu0 %v5548
    %5606 = vmatpush1.bf16.msra.mxu0 %v5547
    %5607 = vmatprep.subr.bf16.mxu0 %v5552
    %5608 = vmatpush1.bf16.msra.mxu0 %v5551
    %5609 = vmatprep.subr.bf16.mxu0 %v5556
    %5610 = vmatpush1.bf16.msra.mxu0 %v5555
    %5611 = vmatprep.subr.bf16.mxu0 %v5560
    %5612 = vmatpush1.bf16.msra.mxu0 %v5559
    %5613 = vmatprep.subr.bf16.mxu0 %v5564
    %5614 = vmatpush1.bf16.msra.mxu0 %v5563
    %5615 = vmatprep.subr.bf16.mxu0 0
    %5616 = vmatpush1.bf16.msra.mxu0 0
    %5617 = vmatprep.subr.bf16.mxu0 0
    %5618 = vmatpush1.bf16.msra.mxu0 0
    %5619 = vmatprep.subr.bf16.mxu0 0
    %5620 = vmatpush1.bf16.msra.mxu0 0
    %5621 = vmatprep.subr.bf16.mxu0 0
    %5622 = vmatpush1.bf16.msra.mxu0 0
    %5623 = vmatprep.subr.bf16.mxu0 0
    %5624 = vmatpush1.bf16.msra.mxu0 0
    %5625 = vmatprep.subr.bf16.mxu0 0
    %5626 = vmatpush1.bf16.msra.mxu0 0
    %5627 = vmatprep.subr.bf16.mxu0 0
    %5628 = vmatpush1.bf16.msra.mxu0 0
    %5629 = vmatprep.subr.bf16.mxu0 0
    %5630 = vmatpush1.bf16.msra.mxu0 0
    %5631 = vmatprep.mubr.bf16.mxu0 0
    %5632 = vmatmul.mubr.bf16.gmra.mrb[0].mxu0 %v5406
    %v5633 = vpop.f32.mrb[0].mxu0
    %v5634 = vadd.f32 0.0, %v5633
    %v5635 = vpop.f32.mrb[0].mxu0
    %v5636 = vadd.f32 0.0, %v5635
    %v5637 = vpop.f32.mrb[0].mxu0
    %v5638 = vpop.f32.mrb[0].mxu0
    %5639 = vdwg.mxu0
    %5640 = vmatprep.subr.bf16.mxu0 %v5538
    %5641 = vmatpush1.bf16.msra.mxu0 %v5537
    %5642 = vmatprep.subr.bf16.mxu0 %v5542
    %5643 = vmatpush1.bf16.msra.mxu0 %v5541
    %5644 = vmatprep.subr.bf16.mxu0 %v5546
    %5645 = vmatpush1.bf16.msra.mxu0 %v5545
    %5646 = vmatprep.subr.bf16.mxu0 %v5550
    %5647 = vmatpush1.bf16.msra.mxu0 %v5549
    %5648 = vmatprep.subr.bf16.mxu0 %v5554
    %5649 = vmatpush1.bf16.msra.mxu0 %v5553
    %5650 = vmatprep.subr.bf16.mxu0 %v5558
    %5651 = vmatpush1.bf16.msra.mxu0 %v5557
    %5652 = vmatprep.subr.bf16.mxu0 %v5562
    %5653 = vmatpush1.bf16.msra.mxu0 %v5561
    %5654 = vmatprep.subr.bf16.mxu0 %v5566
    %5655 = vmatpush1.bf16.msra.mxu0 %v5565
    %5656 = vmatprep.subr.bf16.mxu0 0
    %5657 = vmatpush1.bf16.msra.mxu0 0
    %5658 = vmatprep.subr.bf16.mxu0 0
    %5659 = vmatpush1.bf16.msra.mxu0 0
    %5660 = vmatprep.subr.bf16.mxu0 0
    %5661 = vmatpush1.bf16.msra.mxu0 0
    %5662 = vmatprep.subr.bf16.mxu0 0
    %5663 = vmatpush1.bf16.msra.mxu0 0
    %5664 = vmatprep.subr.bf16.mxu0 0
    %5665 = vmatpush1.bf16.msra.mxu0 0
    %5666 = vmatprep.subr.bf16.mxu0 0
    %5667 = vmatpush1.bf16.msra.mxu0 0
    %5668 = vmatprep.subr.bf16.mxu0 0
    %5669 = vmatpush1.bf16.msra.mxu0 0
    %5670 = vmatprep.subr.bf16.mxu0 0
    %5671 = vmatpush1.bf16.msra.mxu0 0
    %5672 = vmatprep.mubr.bf16.mxu0 0
    %5673 = vmatmul.mubr.bf16.gmra.mrb[0].mxu0 %v5406
    %v5674 = vpop.f32.mrb[0].mxu0
    %v5675 = vadd.f32 0.0, %v5674
    %v5676 = vpop.f32.mrb[0].mxu0
    %v5677 = vadd.f32 0.0, %v5676
    %v5678 = vpop.f32.mrb[0].mxu0
    %v5679 = vpop.f32.mrb[0].mxu0
    %5680 = vdwg.mxu0
    %v5681 = vadd.f32 %v5401, %v5634
    %v5682 = vadd.f32 %v5402, %v5636
    %v5683 = vadd.f32 %v5403, %v5675
    %v5684 = vadd.f32 %v5404, %v5677
    %v5685 = vld [vmem:[#allocation3] sm:$0xff]
    %v5686 = vxor.u32 %v5681, 2147483648
    %v5687 = vxor.u32 %v5682, 2147483648
    %v5688 = vxor.u32 %v5683, 2147483648
    %v5689 = vmul.f32 %v5686, 1.442695
    %v5690 = vpow.pop %v5689
    %v5691 = vmul.f32 %v5687, 1.442695
    %v5692 = vpow.pop %v5691
    %v5693 = vmul.f32 %v5688, 1.442695
    %v5694 = vpow.pop %v5693
    %v5695 = vadd.f32 %v5690, 1.0
    %v5696 = vadd.f32 %v5692, 1.0
    %v5697 = vadd.f32 %v5694, 1.0
    %v5698 = vrcp.pop %v5695
    %v5699 = vmul.f32 1.0, %v5698
    %v5700 = vrcp.pop %v5696
    %v5701 = vmul.f32 1.0, %v5700
    %v5702 = vrcp.pop %v5697
    %v5703 = vmul.f32 1.0, %v5702
    %v5704 = vtanh.pop %v5684
    %v5705 = vmul.f32 %v5701, %v5685
    %v5706 = vmul.f32 %v5699, %v5704
    %v5707 = vadd.f32 %v5705, %v5706
    %v5708 = vtanh.pop %v5707
    %v5709 = vmul.f32 %v5703, %v5708
    %5710 = vst [vmem:[#allocation2] sm:$0xff] %v5709
    %5711 = vst [vmem:[#allocation3] sm:$0xff] %v5707
    %v5712 = vpack.c.bf16 %v5709, %v5709
    %v5713 = vld [vmem:[%s846] sm:$0xff]
    %v5714 = vpack.c.bf16 %v5713, %v5713
    %v5715 = vld [vmem:[#allocation11] sm:$0xff]
    %v5716 = vld [vmem:[#allocation11 + $0x8] sm:$0xff]
    %v5717 = vld [vmem:[#allocation11 + $0x10] sm:$0xff]
    %v5718 = vld [vmem:[#allocation11 + $0x18] sm:$0xff]
    %v5719 = vld [vmem:[#allocation11 + $0x20] sm:$0xff]
    %v5720 = vld [vmem:[#allocation11 + $0x28] sm:$0xff]
    %v5721 = vld [vmem:[#allocation11 + $0x30] sm:$0xff]
    %v5722 = vld [vmem:[#allocation11 + $0x38] sm:$0xff]
    %v5723 = vld [vmem:[#allocation11 + $0x40] sm:$0xff]
    %v5724 = vld [vmem:[#allocation11 + $0x48] sm:$0xff]
    %v5725 = vld [vmem:[#allocation11 + $0x50] sm:$0xff]
    %v5726 = vld [vmem:[#allocation11 + $0x58] sm:$0xff]
    %v5727 = vld [vmem:[#allocation11 + $0x60] sm:$0xff]
    %v5728 = vld [vmem:[#allocation11 + $0x68] sm:$0xff]
    %v5729 = vld [vmem:[#allocation11 + $0x70] sm:$0xff]
    %v5730 = vld [vmem:[#allocation11 + $0x78] sm:$0xff]
    %v5731 = vld [vmem:[#allocation11 + $0x80] sm:$0xff]
    %v5732 = vld [vmem:[#allocation11 + $0x88] sm:$0xff]
    %v5733 = vld [vmem:[#allocation11 + $0x90] sm:$0xff]
    %v5734 = vld [vmem:[#allocation11 + $0x98] sm:$0xff]
    %v5735 = vld [vmem:[#allocation11 + $0xa0] sm:$0xff]
    %v5736 = vld [vmem:[#allocation11 + $0xa8] sm:$0xff]
    %v5737 = vld [vmem:[#allocation11 + $0xb0] sm:$0xff]
    %v5738 = vld [vmem:[#allocation11 + $0xb8] sm:$0xff]
    %v5739 = vld [vmem:[#allocation11 + $0xc0] sm:$0xff]
    %v5740 = vld [vmem:[#allocation11 + $0xc8] sm:$0xff]
    %v5741 = vld [vmem:[#allocation11 + $0xd0] sm:$0xff]
    %v5742 = vld [vmem:[#allocation11 + $0xd8] sm:$0xff]
    %v5743 = vld [vmem:[#allocation11 + $0xe0] sm:$0xff]
    %v5744 = vld [vmem:[#allocation11 + $0xe8] sm:$0xff]
    %v5745 = vld [vmem:[#allocation11 + $0xf0] sm:$0xff]
    %v5746 = vld [vmem:[#allocation11 + $0xf8] sm:$0xff]
    %v5747 = vld [vmem:[#allocation11 + $0x100] sm:$0xff]
    %v5748 = vld [vmem:[#allocation11 + $0x108] sm:$0xff]
    %v5749 = vld [vmem:[#allocation11 + $0x110] sm:$0xff]
    %v5750 = vld [vmem:[#allocation11 + $0x118] sm:$0xff]
    %v5751 = vld [vmem:[#allocation11 + $0x120] sm:$0xff]
    %v5752 = vld [vmem:[#allocation11 + $0x128] sm:$0xff]
    %v5753 = vld [vmem:[#allocation11 + $0x130] sm:$0xff]
    %v5754 = vld [vmem:[#allocation11 + $0x138] sm:$0xff]
    %v5755 = vld [vmem:[#allocation11 + $0x140] sm:$0xff]
    %v5756 = vld [vmem:[#allocation11 + $0x148] sm:$0xff]
    %v5757 = vld [vmem:[#allocation11 + $0x150] sm:$0xff]
    %v5758 = vld [vmem:[#allocation11 + $0x158] sm:$0xff]
    %v5759 = vld [vmem:[#allocation11 + $0x160] sm:$0xff]
    %v5760 = vld [vmem:[#allocation11 + $0x168] sm:$0xff]
    %v5761 = vld [vmem:[#allocation11 + $0x170] sm:$0xff]
    %v5762 = vld [vmem:[#allocation11 + $0x178] sm:$0xff]
    %v5763 = vld [vmem:[#allocation11 + $0x180] sm:$0xff]
    %v5764 = vld [vmem:[#allocation11 + $0x188] sm:$0xff]
    %v5765 = vld [vmem:[#allocation11 + $0x190] sm:$0xff]
    %v5766 = vld [vmem:[#allocation11 + $0x198] sm:$0xff]
    %v5767 = vld [vmem:[#allocation11 + $0x1a0] sm:$0xff]
    %v5768 = vld [vmem:[#allocation11 + $0x1a8] sm:$0xff]
    %v5769 = vld [vmem:[#allocation11 + $0x1b0] sm:$0xff]
    %v5770 = vld [vmem:[#allocation11 + $0x1b8] sm:$0xff]
    %v5771 = vld [vmem:[#allocation11 + $0x1c0] sm:$0xff]
    %v5772 = vld [vmem:[#allocation11 + $0x1c8] sm:$0xff]
    %v5773 = vld [vmem:[#allocation11 + $0x1d0] sm:$0xff]
    %v5774 = vld [vmem:[#allocation11 + $0x1d8] sm:$0xff]
    %v5775 = vld [vmem:[#allocation11 + $0x1e0] sm:$0xff]
    %v5776 = vld [vmem:[#allocation11 + $0x1e8] sm:$0xff]
    %v5777 = vld [vmem:[#allocation11 + $0x1f0] sm:$0xff]
    %v5778 = vld [vmem:[#allocation11 + $0x1f8] sm:$0xff]
    %v5843 = vunpack.c.l.b16 %v5715
    %v5844 = vunpack.c.h.b16 %v5715
    %v5845 = vunpack.c.l.b16 %v5716
    %v5846 = vunpack.c.h.b16 %v5716
    %v5847 = vunpack.c.l.b16 %v5717
    %v5848 = vunpack.c.h.b16 %v5717
    %v5849 = vunpack.c.l.b16 %v5718
    %v5850 = vunpack.c.h.b16 %v5718
    %v5851 = vunpack.c.l.b16 %v5719
    %v5852 = vunpack.c.h.b16 %v5719
    %v5853 = vunpack.c.l.b16 %v5720
    %v5854 = vunpack.c.h.b16 %v5720
    %v5855 = vunpack.c.l.b16 %v5721
    %v5856 = vunpack.c.h.b16 %v5721
    %v5857 = vunpack.c.l.b16 %v5722
    %v5858 = vunpack.c.h.b16 %v5722
    %v5859 = vunpack.c.l.b16 %v5723
    %v5860 = vunpack.c.h.b16 %v5723
    %v5861 = vunpack.c.l.b16 %v5724
    %v5862 = vunpack.c.h.b16 %v5724
    %v5863 = vunpack.c.l.b16 %v5725
    %v5864 = vunpack.c.h.b16 %v5725
    %v5865 = vunpack.c.l.b16 %v5726
    %v5866 = vunpack.c.h.b16 %v5726
    %v5867 = vunpack.c.l.b16 %v5727
    %v5868 = vunpack.c.h.b16 %v5727
    %v5869 = vunpack.c.l.b16 %v5728
    %v5870 = vunpack.c.h.b16 %v5728
    %v5871 = vunpack.c.l.b16 %v5729
    %v5872 = vunpack.c.h.b16 %v5729
    %v5873 = vunpack.c.l.b16 %v5730
    %v5874 = vunpack.c.h.b16 %v5730
    %v5875 = vunpack.c.l.b16 %v5731
    %v5876 = vunpack.c.h.b16 %v5731
    %v5877 = vunpack.c.l.b16 %v5732
    %v5878 = vunpack.c.h.b16 %v5732
    %v5879 = vunpack.c.l.b16 %v5733
    %v5880 = vunpack.c.h.b16 %v5733
    %v5881 = vunpack.c.l.b16 %v5734
    %v5882 = vunpack.c.h.b16 %v5734
    %v5883 = vunpack.c.l.b16 %v5735
    %v5884 = vunpack.c.h.b16 %v5735
    %v5885 = vunpack.c.l.b16 %v5736
    %v5886 = vunpack.c.h.b16 %v5736
    %v5887 = vunpack.c.l.b16 %v5737
    %v5888 = vunpack.c.h.b16 %v5737
    %v5889 = vunpack.c.l.b16 %v5738
    %v5890 = vunpack.c.h.b16 %v5738
    %v5891 = vunpack.c.l.b16 %v5739
    %v5892 = vunpack.c.h.b16 %v5739
    %v5893 = vunpack.c.l.b16 %v5740
    %v5894 = vunpack.c.h.b16 %v5740
    %v5895 = vunpack.c.l.b16 %v5741
    %v5896 = vunpack.c.h.b16 %v5741
    %v5897 = vunpack.c.l.b16 %v5742
    %v5898 = vunpack.c.h.b16 %v5742
    %v5899 = vunpack.c.l.b16 %v5743
    %v5900 = vunpack.c.h.b16 %v5743
    %v5901 = vunpack.c.l.b16 %v5744
    %v5902 = vunpack.c.h.b16 %v5744
    %v5903 = vunpack.c.l.b16 %v5745
    %v5904 = vunpack.c.h.b16 %v5745
    %v5905 = vunpack.c.l.b16 %v5746
    %v5906 = vunpack.c.h.b16 %v5746
    %v5907 = vunpack.c.l.b16 %v5747
    %v5908 = vunpack.c.h.b16 %v5747
    %v5909 = vunpack.c.l.b16 %v5748
    %v5910 = vunpack.c.h.b16 %v5748
    %v5911 = vunpack.c.l.b16 %v5749
    %v5912 = vunpack.c.h.b16 %v5749
    %v5913 = vunpack.c.l.b16 %v5750
    %v5914 = vunpack.c.h.b16 %v5750
    %v5915 = vunpack.c.l.b16 %v5751
    %v5916 = vunpack.c.h.b16 %v5751
    %v5917 = vunpack.c.l.b16 %v5752
    %v5918 = vunpack.c.h.b16 %v5752
    %v5919 = vunpack.c.l.b16 %v5753
    %v5920 = vunpack.c.h.b16 %v5753
    %v5921 = vunpack.c.l.b16 %v5754
    %v5922 = vunpack.c.h.b16 %v5754
    %v5923 = vunpack.c.l.b16 %v5755
    %v5924 = vunpack.c.h.b16 %v5755
    %v5925 = vunpack.c.l.b16 %v5756
    %v5926 = vunpack.c.h.b16 %v5756
    %v5927 = vunpack.c.l.b16 %v5757
    %v5928 = vunpack.c.h.b16 %v5757
    %v5929 = vunpack.c.l.b16 %v5758
    %v5930 = vunpack.c.h.b16 %v5758
    %v5931 = vunpack.c.l.b16 %v5759
    %v5932 = vunpack.c.h.b16 %v5759
    %v5933 = vunpack.c.l.b16 %v5760
    %v5934 = vunpack.c.h.b16 %v5760
    %v5935 = vunpack.c.l.b16 %v5761
    %v5936 = vunpack.c.h.b16 %v5761
    %v5937 = vunpack.c.l.b16 %v5762
    %v5938 = vunpack.c.h.b16 %v5762
    %v5939 = vunpack.c.l.b16 %v5763
    %v5940 = vunpack.c.h.b16 %v5763
    %v5941 = vunpack.c.l.b16 %v5764
    %v5942 = vunpack.c.h.b16 %v5764
    %v5943 = vunpack.c.l.b16 %v5765
    %v5944 = vunpack.c.h.b16 %v5765
    %v5945 = vunpack.c.l.b16 %v5766
    %v5946 = vunpack.c.h.b16 %v5766
    %v5947 = vunpack.c.l.b16 %v5767
    %v5948 = vunpack.c.h.b16 %v5767
    %v5949 = vunpack.c.l.b16 %v5768
    %v5950 = vunpack.c.h.b16 %v5768
    %v5951 = vunpack.c.l.b16 %v5769
    %v5952 = vunpack.c.h.b16 %v5769
    %v5953 = vunpack.c.l.b16 %v5770
    %v5954 = vunpack.c.h.b16 %v5770
    %v5955 = vunpack.c.l.b16 %v5771
    %v5956 = vunpack.c.h.b16 %v5771
    %v5957 = vunpack.c.l.b16 %v5772
    %v5958 = vunpack.c.h.b16 %v5772
    %v5959 = vunpack.c.l.b16 %v5773
    %v5960 = vunpack.c.h.b16 %v5773
    %v5961 = vunpack.c.l.b16 %v5774
    %v5962 = vunpack.c.h.b16 %v5774
    %v5963 = vunpack.c.l.b16 %v5775
    %v5964 = vunpack.c.h.b16 %v5775
    %v5965 = vunpack.c.l.b16 %v5776
    %v5966 = vunpack.c.h.b16 %v5776
    %v5967 = vunpack.c.l.b16 %v5777
    %v5968 = vunpack.c.h.b16 %v5777
    %v5969 = vunpack.c.l.b16 %v5778
    %v5970 = vunpack.c.h.b16 %v5778
    %v5971 = vpack.c.b16 %v5847, %v5843
    %v5972 = vpack.c.b16 %v5848, %v5844
    %v5973 = vpack.c.b16 %v5849, %v5845
    %v5974 = vpack.c.b16 %v5850, %v5846
    %v5975 = vpack.c.b16 %v5855, %v5851
    %v5976 = vpack.c.b16 %v5856, %v5852
    %v5977 = vpack.c.b16 %v5857, %v5853
    %v5978 = vpack.c.b16 %v5858, %v5854
    %v5979 = vpack.c.b16 %v5863, %v5859
    %v5980 = vpack.c.b16 %v5864, %v5860
    %v5981 = vpack.c.b16 %v5865, %v5861
    %v5982 = vpack.c.b16 %v5866, %v5862
    %v5983 = vpack.c.b16 %v5871, %v5867
    %v5984 = vpack.c.b16 %v5872, %v5868
    %v5985 = vpack.c.b16 %v5873, %v5869
    %v5986 = vpack.c.b16 %v5874, %v5870
    %v5987 = vpack.c.b16 %v5879, %v5875
    %v5988 = vpack.c.b16 %v5880, %v5876
    %v5989 = vpack.c.b16 %v5881, %v5877
    %v5990 = vpack.c.b16 %v5882, %v5878
    %v5991 = vpack.c.b16 %v5887, %v5883
    %v5992 = vpack.c.b16 %v5888, %v5884
    %v5993 = vpack.c.b16 %v5889, %v5885
    %v5994 = vpack.c.b16 %v5890, %v5886
    %v5995 = vpack.c.b16 %v5895, %v5891
    %v5996 = vpack.c.b16 %v5896, %v5892
    %v5997 = vpack.c.b16 %v5897, %v5893
    %v5998 = vpack.c.b16 %v5898, %v5894
    %v5999 = vpack.c.b16 %v5903, %v5899
    %v6000 = vpack.c.b16 %v5904, %v5900
    %v6001 = vpack.c.b16 %v5905, %v5901
    %v6002 = vpack.c.b16 %v5906, %v5902
    %v6003 = vpack.c.b16 %v5911, %v5907
    %v6004 = vpack.c.b16 %v5912, %v5908
    %v6005 = vpack.c.b16 %v5913, %v5909
    %v6006 = vpack.c.b16 %v5914, %v5910
    %v6007 = vpack.c.b16 %v5919, %v5915
    %v6008 = vpack.c.b16 %v5920, %v5916
    %v6009 = vpack.c.b16 %v5921, %v5917
    %v6010 = vpack.c.b16 %v5922, %v5918
    %v6011 = vpack.c.b16 %v5927, %v5923
    %v6012 = vpack.c.b16 %v5928, %v5924
    %v6013 = vpack.c.b16 %v5929, %v5925
    %v6014 = vpack.c.b16 %v5930, %v5926
    %v6015 = vpack.c.b16 %v5935, %v5931
    %v6016 = vpack.c.b16 %v5936, %v5932
    %v6017 = vpack.c.b16 %v5937, %v5933
    %v6018 = vpack.c.b16 %v5938, %v5934
    %v6019 = vpack.c.b16 %v5943, %v5939
    %v6020 = vpack.c.b16 %v5944, %v5940
    %v6021 = vpack.c.b16 %v5945, %v5941
    %v6022 = vpack.c.b16 %v5946, %v5942
    %v6023 = vpack.c.b16 %v5951, %v5947
    %v6024 = vpack.c.b16 %v5952, %v5948
    %v6025 = vpack.c.b16 %v5953, %v5949
    %v6026 = vpack.c.b16 %v5954, %v5950
    %v6027 = vpack.c.b16 %v5959, %v5955
    %v6028 = vpack.c.b16 %v5960, %v5956
    %v6029 = vpack.c.b16 %v5961, %v5957
    %v6030 = vpack.c.b16 %v5962, %v5958
    %v6031 = vpack.c.b16 %v5967, %v5963
    %v6032 = vpack.c.b16 %v5968, %v5964
    %v6033 = vpack.c.b16 %v5969, %v5965
    %v6034 = vpack.c.b16 %v5970, %v5966
    %6099 = vmatprep.subr.bf16.mxu0 %v5972
    %6100 = vmatpush1.bf16.msra.mxu0 %v5971
    %6101 = vmatprep.subr.bf16.mxu0 %v5976
    %6102 = vmatpush1.bf16.msra.mxu0 %v5975
    %6103 = vmatprep.subr.bf16.mxu0 %v5980
    %6104 = vmatpush1.bf16.msra.mxu0 %v5979
    %6105 = vmatprep.subr.bf16.mxu0 %v5984
    %6106 = vmatpush1.bf16.msra.mxu0 %v5983
    %6107 = vmatprep.subr.bf16.mxu0 %v5988
    %6108 = vmatpush1.bf16.msra.mxu0 %v5987
    %6109 = vmatprep.subr.bf16.mxu0 %v5992
    %6110 = vmatpush1.bf16.msra.mxu0 %v5991
    %6111 = vmatprep.subr.bf16.mxu0 %v5996
    %6112 = vmatpush1.bf16.msra.mxu0 %v5995
    %6113 = vmatprep.subr.bf16.mxu0 %v6000
    %6114 = vmatpush1.bf16.msra.mxu0 %v5999
    %6115 = vmatprep.subr.bf16.mxu0 %v6004
    %6116 = vmatpush1.bf16.msra.mxu0 %v6003
    %6117 = vmatprep.subr.bf16.mxu0 %v6008
    %6118 = vmatpush1.bf16.msra.mxu0 %v6007
    %6119 = vmatprep.subr.bf16.mxu0 %v6012
    %6120 = vmatpush1.bf16.msra.mxu0 %v6011
    %6121 = vmatprep.subr.bf16.mxu0 %v6016
    %6122 = vmatpush1.bf16.msra.mxu0 %v6015
    %6123 = vmatprep.subr.bf16.mxu0 %v6020
    %6124 = vmatpush1.bf16.msra.mxu0 %v6019
    %6125 = vmatprep.subr.bf16.mxu0 %v6024
    %6126 = vmatpush1.bf16.msra.mxu0 %v6023
    %6127 = vmatprep.subr.bf16.mxu0 %v6028
    %6128 = vmatpush1.bf16.msra.mxu0 %v6027
    %6129 = vmatprep.subr.bf16.mxu0 %v6032
    %6130 = vmatpush1.bf16.msra.mxu0 %v6031
    %6131 = vmatprep.mubr.bf16.mxu0 %v5714
    %6132 = vmatmul.mubr.bf16.gmra.mrb[0].mxu0 %v5712
    %v6133 = vpop.f32.mrb[0].mxu0
    %v6134 = vadd.f32 %v517, %v6133
    %v6135 = vpop.f32.mrb[0].mxu0
    %v6136 = vadd.f32 %v521, %v6135
    %v6137 = vpop.f32.mrb[0].mxu0
    %v6138 = vpop.f32.mrb[0].mxu0
    %6139 = vdwg.mxu0
    %6140 = vmatprep.subr.bf16.mxu0 %v5974
    %6141 = vmatpush1.bf16.msra.mxu0 %v5973
    %6142 = vmatprep.subr.bf16.mxu0 %v5978
    %6143 = vmatpush1.bf16.msra.mxu0 %v5977
    %6144 = vmatprep.subr.bf16.mxu0 %v5982
    %6145 = vmatpush1.bf16.msra.mxu0 %v5981
    %6146 = vmatprep.subr.bf16.mxu0 %v5986
    %6147 = vmatpush1.bf16.msra.mxu0 %v5985
    %6148 = vmatprep.subr.bf16.mxu0 %v5990
    %6149 = vmatpush1.bf16.msra.mxu0 %v5989
    %6150 = vmatprep.subr.bf16.mxu0 %v5994
    %6151 = vmatpush1.bf16.msra.mxu0 %v5993
    %6152 = vmatprep.subr.bf16.mxu0 %v5998
    %6153 = vmatpush1.bf16.msra.mxu0 %v5997
    %6154 = vmatprep.subr.bf16.mxu0 %v6002
    %6155 = vmatpush1.bf16.msra.mxu0 %v6001
    %6156 = vmatprep.subr.bf16.mxu0 %v6006
    %6157 = vmatpush1.bf16.msra.mxu0 %v6005
    %6158 = vmatprep.subr.bf16.mxu0 %v6010
    %6159 = vmatpush1.bf16.msra.mxu0 %v6009
    %6160 = vmatprep.subr.bf16.mxu0 %v6014
    %6161 = vmatpush1.bf16.msra.mxu0 %v6013
    %6162 = vmatprep.subr.bf16.mxu0 %v6018
    %6163 = vmatpush1.bf16.msra.mxu0 %v6017
    %6164 = vmatprep.subr.bf16.mxu0 %v6022
    %6165 = vmatpush1.bf16.msra.mxu0 %v6021
    %6166 = vmatprep.subr.bf16.mxu0 %v6026
    %6167 = vmatpush1.bf16.msra.mxu0 %v6025
    %6168 = vmatprep.subr.bf16.mxu0 %v6030
    %6169 = vmatpush1.bf16.msra.mxu0 %v6029
    %6170 = vmatprep.subr.bf16.mxu0 %v6034
    %6171 = vmatpush1.bf16.msra.mxu0 %v6033
    %6172 = vmatprep.mubr.bf16.mxu0 %v5714
    %6173 = vmatmul.mubr.bf16.gmra.mrb[0].mxu0 %v5712
    %v6174 = vpop.f32.mrb[0].mxu0
    %v6175 = vadd.f32 %v525, %v6174
    %v6176 = vpop.f32.mrb[0].mxu0
    %v6177 = vadd.f32 %v529, %v6176
    %v6178 = vpop.f32.mrb[0].mxu0
    %v6179 = vpop.f32.mrb[0].mxu0
    %6180 = vdwg.mxu0
    %v6181 = vld [vmem:[%s1315] sm:$0xff]
    %v6182 = vxor.u32 %v6134, 2147483648
    %v6183 = vxor.u32 %v6136, 2147483648
    %v6184 = vxor.u32 %v6175, 2147483648
    %v6185 = vmul.f32 %v6182, 1.442695
    %v6186 = vpow.pop %v6185
    %v6187 = vmul.f32 %v6183, 1.442695
    %v6188 = vpow.pop %v6187
    %v6189 = vmul.f32 %v6184, 1.442695
    %v6190 = vpow.pop %v6189
    %v6191 = vadd.f32 %v6186, 1.0
    %v6192 = vadd.f32 %v6188, 1.0
    %v6193 = vadd.f32 %v6190, 1.0
    %v6194 = vrcp.pop %v6191
    %v6195 = vmul.f32 1.0, %v6194
    %v6196 = vrcp.pop %v6192
    %v6197 = vmul.f32 1.0, %v6196
    %v6198 = vrcp.pop %v6193
    %v6199 = vmul.f32 1.0, %v6198
    %v6200 = vtanh.pop %v6177
    %v6201 = vmul.f32 %v6197, %v6181
    %v6202 = vmul.f32 %v6195, %v6200
    %v6203 = vadd.f32 %v6201, %v6202
    %v6204 = vtanh.pop %v6203
    %v6205 = vmul.f32 %v6199, %v6204
    %6206 = vst [vmem:[%s846] sm:$0xff] %v6205
    %6207 = vst [vmem:[%s1315] sm:$0xff] %v6203
    %v6208 = vpack.c.bf16 %v6205, %v6205
    %s6209 = scalar_lea.vmem [#allocation13], 24
    %6210 = vst [vmem:[%s6209] sm:$0xf] %v6208
    %s6211 = scalar_lea.vmem [#allocation4], 224
    %v6212 = vld [vmem:[%s6211] sm:$0xff]
    %v6213 = vld [vmem:[%s6211 + $0x8] sm:$0xff]
    %v6214 = vld [vmem:[%s6211 + $0x10] sm:$0xff]
    %v6215 = vld [vmem:[%s6211 + $0x18] sm:$0xff]
    %v6216 = vld [vmem:[#allocation2] sm:$0xff]
    %v6217 = vpack.c.bf16 %v6216, %v6216
    %v6218 = vld [vmem:[#allocation10] sm:$0xff]
    %v6219 = vld [vmem:[#allocation10 + $0x8] sm:$0xff]
    %v6220 = vld [vmem:[#allocation10 + $0x10] sm:$0xff]
    %v6221 = vld [vmem:[#allocation10 + $0x18] sm:$0xff]
    %v6222 = vld [vmem:[#allocation10 + $0x20] sm:$0xff]
    %v6223 = vld [vmem:[#allocation10 + $0x28] sm:$0xff]
    %v6224 = vld [vmem:[#allocation10 + $0x30] sm:$0xff]
    %v6225 = vld [vmem:[#allocation10 + $0x38] sm:$0xff]
    %v6226 = vld [vmem:[#allocation10 + $0x40] sm:$0xff]
    %v6227 = vld [vmem:[#allocation10 + $0x48] sm:$0xff]
    %v6228 = vld [vmem:[#allocation10 + $0x50] sm:$0xff]
    %v6229 = vld [vmem:[#allocation10 + $0x58] sm:$0xff]
    %v6230 = vld [vmem:[#allocation10 + $0x60] sm:$0xff]
    %v6231 = vld [vmem:[#allocation10 + $0x68] sm:$0xff]
    %v6232 = vld [vmem:[#allocation10 + $0x70] sm:$0xff]
    %v6233 = vld [vmem:[#allocation10 + $0x78] sm:$0xff]
    %v6234 = vld [vmem:[#allocation10 + $0x80] sm:$0xff]
    %v6235 = vld [vmem:[#allocation10 + $0x88] sm:$0xff]
    %v6236 = vld [vmem:[#allocation10 + $0x90] sm:$0xff]
    %v6237 = vld [vmem:[#allocation10 + $0x98] sm:$0xff]
    %v6238 = vld [vmem:[#allocation10 + $0xa0] sm:$0xff]
    %v6239 = vld [vmem:[#allocation10 + $0xa8] sm:$0xff]
    %v6240 = vld [vmem:[#allocation10 + $0xb0] sm:$0xff]
    %v6241 = vld [vmem:[#allocation10 + $0xb8] sm:$0xff]
    %v6242 = vld [vmem:[#allocation10 + $0xc0] sm:$0xff]
    %v6243 = vld [vmem:[#allocation10 + $0xc8] sm:$0xff]
    %v6244 = vld [vmem:[#allocation10 + $0xd0] sm:$0xff]
    %v6245 = vld [vmem:[#allocation10 + $0xd8] sm:$0xff]
    %v6246 = vld [vmem:[#allocation10 + $0xe0] sm:$0xff]
    %v6247 = vld [vmem:[#allocation10 + $0xe8] sm:$0xff]
    %v6248 = vld [vmem:[#allocation10 + $0xf0] sm:$0xff]
    %v6249 = vld [vmem:[#allocation10 + $0xf8] sm:$0xff]
    %v6282 = vunpack.c.l.b16 %v6218
    %v6283 = vunpack.c.h.b16 %v6218
    %v6284 = vunpack.c.l.b16 %v6219
    %v6285 = vunpack.c.h.b16 %v6219
    %v6286 = vunpack.c.l.b16 %v6220
    %v6287 = vunpack.c.h.b16 %v6220
    %v6288 = vunpack.c.l.b16 %v6221
    %v6289 = vunpack.c.h.b16 %v6221
    %v6290 = vunpack.c.l.b16 %v6222
    %v6291 = vunpack.c.h.b16 %v6222
    %v6292 = vunpack.c.l.b16 %v6223
    %v6293 = vunpack.c.h.b16 %v6223
    %v6294 = vunpack.c.l.b16 %v6224
    %v6295 = vunpack.c.h.b16 %v6224
    %v6296 = vunpack.c.l.b16 %v6225
    %v6297 = vunpack.c.h.b16 %v6225
    %v6298 = vunpack.c.l.b16 %v6226
    %v6299 = vunpack.c.h.b16 %v6226
    %v6300 = vunpack.c.l.b16 %v6227
    %v6301 = vunpack.c.h.b16 %v6227
    %v6302 = vunpack.c.l.b16 %v6228
    %v6303 = vunpack.c.h.b16 %v6228
    %v6304 = vunpack.c.l.b16 %v6229
    %v6305 = vunpack.c.h.b16 %v6229
    %v6306 = vunpack.c.l.b16 %v6230
    %v6307 = vunpack.c.h.b16 %v6230
    %v6308 = vunpack.c.l.b16 %v6231
    %v6309 = vunpack.c.h.b16 %v6231
    %v6310 = vunpack.c.l.b16 %v6232
    %v6311 = vunpack.c.h.b16 %v6232
    %v6312 = vunpack.c.l.b16 %v6233
    %v6313 = vunpack.c.h.b16 %v6233
    %v6314 = vunpack.c.l.b16 %v6234
    %v6315 = vunpack.c.h.b16 %v6234
    %v6316 = vunpack.c.l.b16 %v6235
    %v6317 = vunpack.c.h.b16 %v6235
    %v6318 = vunpack.c.l.b16 %v6236
    %v6319 = vunpack.c.h.b16 %v6236
    %v6320 = vunpack.c.l.b16 %v6237
    %v6321 = vunpack.c.h.b16 %v6237
    %v6322 = vunpack.c.l.b16 %v6238
    %v6323 = vunpack.c.h.b16 %v6238
    %v6324 = vunpack.c.l.b16 %v6239
    %v6325 = vunpack.c.h.b16 %v6239
    %v6326 = vunpack.c.l.b16 %v6240
    %v6327 = vunpack.c.h.b16 %v6240
    %v6328 = vunpack.c.l.b16 %v6241
    %v6329 = vunpack.c.h.b16 %v6241
    %v6330 = vunpack.c.l.b16 %v6242
    %v6331 = vunpack.c.h.b16 %v6242
    %v6332 = vunpack.c.l.b16 %v6243
    %v6333 = vunpack.c.h.b16 %v6243
    %v6334 = vunpack.c.l.b16 %v6244
    %v6335 = vunpack.c.h.b16 %v6244
    %v6336 = vunpack.c.l.b16 %v6245
    %v6337 = vunpack.c.h.b16 %v6245
    %v6338 = vunpack.c.l.b16 %v6246
    %v6339 = vunpack.c.h.b16 %v6246
    %v6340 = vunpack.c.l.b16 %v6247
    %v6341 = vunpack.c.h.b16 %v6247
    %v6342 = vunpack.c.l.b16 %v6248
    %v6343 = vunpack.c.h.b16 %v6248
    %v6344 = vunpack.c.l.b16 %v6249
    %v6345 = vunpack.c.h.b16 %v6249
    %v6346 = vpack.c.b16 %v6286, %v6282
    %v6347 = vpack.c.b16 %v6287, %v6283
    %v6348 = vpack.c.b16 %v6288, %v6284
    %v6349 = vpack.c.b16 %v6289, %v6285
    %v6350 = vpack.c.b16 %v6294, %v6290
    %v6351 = vpack.c.b16 %v6295, %v6291
    %v6352 = vpack.c.b16 %v6296, %v6292
    %v6353 = vpack.c.b16 %v6297, %v6293
    %v6354 = vpack.c.b16 %v6302, %v6298
    %v6355 = vpack.c.b16 %v6303, %v6299
    %v6356 = vpack.c.b16 %v6304, %v6300
    %v6357 = vpack.c.b16 %v6305, %v6301
    %v6358 = vpack.c.b16 %v6310, %v6306
    %v6359 = vpack.c.b16 %v6311, %v6307
    %v6360 = vpack.c.b16 %v6312, %v6308
    %v6361 = vpack.c.b16 %v6313, %v6309
    %v6362 = vpack.c.b16 %v6318, %v6314
    %v6363 = vpack.c.b16 %v6319, %v6315
    %v6364 = vpack.c.b16 %v6320, %v6316
    %v6365 = vpack.c.b16 %v6321, %v6317
    %v6366 = vpack.c.b16 %v6326, %v6322
    %v6367 = vpack.c.b16 %v6327, %v6323
    %v6368 = vpack.c.b16 %v6328, %v6324
    %v6369 = vpack.c.b16 %v6329, %v6325
    %v6370 = vpack.c.b16 %v6334, %v6330
    %v6371 = vpack.c.b16 %v6335, %v6331
    %v6372 = vpack.c.b16 %v6336, %v6332
    %v6373 = vpack.c.b16 %v6337, %v6333
    %v6374 = vpack.c.b16 %v6342, %v6338
    %v6375 = vpack.c.b16 %v6343, %v6339
    %v6376 = vpack.c.b16 %v6344, %v6340
    %v6377 = vpack.c.b16 %v6345, %v6341
    %6410 = vmatprep.subr.bf16.mxu0 %v6347
    %6411 = vmatpush1.bf16.msra.mxu0 %v6346
    %6412 = vmatprep.subr.bf16.mxu0 %v6351
    %6413 = vmatpush1.bf16.msra.mxu0 %v6350
    %6414 = vmatprep.subr.bf16.mxu0 %v6355
    %6415 = vmatpush1.bf16.msra.mxu0 %v6354
    %6416 = vmatprep.subr.bf16.mxu0 %v6359
    %6417 = vmatpush1.bf16.msra.mxu0 %v6358
    %6418 = vmatprep.subr.bf16.mxu0 %v6363
    %6419 = vmatpush1.bf16.msra.mxu0 %v6362
    %6420 = vmatprep.subr.bf16.mxu0 %v6367
    %6421 = vmatpush1.bf16.msra.mxu0 %v6366
    %6422 = vmatprep.subr.bf16.mxu0 %v6371
    %6423 = vmatpush1.bf16.msra.mxu0 %v6370
    %6424 = vmatprep.subr.bf16.mxu0 %v6375
    %6425 = vmatpush1.bf16.msra.mxu0 %v6374
    %6426 = vmatprep.subr.bf16.mxu0 0
    %6427 = vmatpush1.bf16.msra.mxu0 0
    %6428 = vmatprep.subr.bf16.mxu0 0
    %6429 = vmatpush1.bf16.msra.mxu0 0
    %6430 = vmatprep.subr.bf16.mxu0 0
    %6431 = vmatpush1.bf16.msra.mxu0 0
    %6432 = vmatprep.subr.bf16.mxu0 0
    %6433 = vmatpush1.bf16.msra.mxu0 0
    %6434 = vmatprep.subr.bf16.mxu0 0
    %6435 = vmatpush1.bf16.msra.mxu0 0
    %6436 = vmatprep.subr.bf16.mxu0 0
    %6437 = vmatpush1.bf16.msra.mxu0 0
    %6438 = vmatprep.subr.bf16.mxu0 0
    %6439 = vmatpush1.bf16.msra.mxu0 0
    %6440 = vmatprep.subr.bf16.mxu0 0
    %6441 = vmatpush1.bf16.msra.mxu0 0
    %6442 = vmatprep.mubr.bf16.mxu0 0
    %6443 = vmatmul.mubr.bf16.gmra.mrb[0].mxu0 %v6217
    %v6444 = vpop.f32.mrb[0].mxu0
    %v6445 = vadd.f32 0.0, %v6444
    %v6446 = vpop.f32.mrb[0].mxu0
    %v6447 = vadd.f32 0.0, %v6446
    %v6448 = vpop.f32.mrb[0].mxu0
    %v6449 = vpop.f32.mrb[0].mxu0
    %6450 = vdwg.mxu0
    %6451 = vmatprep.subr.bf16.mxu0 %v6349
    %6452 = vmatpush1.bf16.msra.mxu0 %v6348
    %6453 = vmatprep.subr.bf16.mxu0 %v6353
    %6454 = vmatpush1.bf16.msra.mxu0 %v6352
    %6455 = vmatprep.subr.bf16.mxu0 %v6357
    %6456 = vmatpush1.bf16.msra.mxu0 %v6356
    %6457 = vmatprep.subr.bf16.mxu0 %v6361
    %6458 = vmatpush1.bf16.msra.mxu0 %v6360
    %6459 = vmatprep.subr.bf16.mxu0 %v6365
    %6460 = vmatpush1.bf16.msra.mxu0 %v6364
    %6461 = vmatprep.subr.bf16.mxu0 %v6369
    %6462 = vmatpush1.bf16.msra.mxu0 %v6368
    %6463 = vmatprep.subr.bf16.mxu0 %v6373
    %6464 = vmatpush1.bf16.msra.mxu0 %v6372
    %6465 = vmatprep.subr.bf16.mxu0 %v6377
    %6466 = vmatpush1.bf16.msra.mxu0 %v6376
    %6467 = vmatprep.subr.bf16.mxu0 0
    %6468 = vmatpush1.bf16.msra.mxu0 0
    %6469 = vmatprep.subr.bf16.mxu0 0
    %6470 = vmatpush1.bf16.msra.mxu0 0
    %6471 = vmatprep.subr.bf16.mxu0 0
    %6472 = vmatpush1.bf16.msra.mxu0 0
    %6473 = vmatprep.subr.bf16.mxu0 0
    %6474 = vmatpush1.bf16.msra.mxu0 0
    %6475 = vmatprep.subr.bf16.mxu0 0
    %6476 = vmatpush1.bf16.msra.mxu0 0
    %6477 = vmatprep.subr.bf16.mxu0 0
    %6478 = vmatpush1.bf16.msra.mxu0 0
    %6479 = vmatprep.subr.bf16.mxu0 0
    %6480 = vmatpush1.bf16.msra.mxu0 0
    %6481 = vmatprep.subr.bf16.mxu0 0
    %6482 = vmatpush1.bf16.msra.mxu0 0
    %6483 = vmatprep.mubr.bf16.mxu0 0
    %6484 = vmatmul.mubr.bf16.gmra.mrb[0].mxu0 %v6217
    %v6485 = vpop.f32.mrb[0].mxu0
    %v6486 = vadd.f32 0.0, %v6485
    %v6487 = vpop.f32.mrb[0].mxu0
    %v6488 = vadd.f32 0.0, %v6487
    %v6489 = vpop.f32.mrb[0].mxu0
    %v6490 = vpop.f32.mrb[0].mxu0
    %6491 = vdwg.mxu0
    %v6492 = vadd.f32 %v6212, %v6445
    %v6493 = vadd.f32 %v6213, %v6447
    %v6494 = vadd.f32 %v6214, %v6486
    %v6495 = vadd.f32 %v6215, %v6488
    %v6496 = vld [vmem:[#allocation3] sm:$0xff]
    %v6497 = vxor.u32 %v6492, 2147483648
    %v6498 = vxor.u32 %v6493, 2147483648
    %v6499 = vxor.u32 %v6494, 2147483648
    %v6500 = vmul.f32 %v6497, 1.442695
    %v6501 = vpow.pop %v6500
    %v6502 = vmul.f32 %v6498, 1.442695
    %v6503 = vpow.pop %v6502
    %v6504 = vmul.f32 %v6499, 1.442695
    %v6505 = vpow.pop %v6504
    %v6506 = vadd.f32 %v6501, 1.0
    %v6507 = vadd.f32 %v6503, 1.0
    %v6508 = vadd.f32 %v6505, 1.0
    %v6509 = vrcp.pop %v6506
    %v6510 = vmul.f32 1.0, %v6509
    %v6511 = vrcp.pop %v6507
    %v6512 = vmul.f32 1.0, %v6511
    %v6513 = vrcp.pop %v6508
    %v6514 = vmul.f32 1.0, %v6513
    %v6515 = vtanh.pop %v6495
    %v6516 = vmul.f32 %v6512, %v6496
    %v6517 = vmul.f32 %v6510, %v6515
    %v6518 = vadd.f32 %v6516, %v6517
    %v6519 = vtanh.pop %v6518
    %v6520 = vmul.f32 %v6514, %v6519
    %6521 = vst [vmem:[#allocation2] sm:$0xff] %v6520
    %6522 = vst [vmem:[#allocation3] sm:$0xff] %v6518
    %v6523 = vpack.c.bf16 %v6520, %v6520
    %v6524 = vld [vmem:[%s846] sm:$0xff]
    %v6525 = vpack.c.bf16 %v6524, %v6524
    %v6526 = vld [vmem:[#allocation11] sm:$0xff]
    %v6527 = vld [vmem:[#allocation11 + $0x8] sm:$0xff]
    %v6528 = vld [vmem:[#allocation11 + $0x10] sm:$0xff]
    %v6529 = vld [vmem:[#allocation11 + $0x18] sm:$0xff]
    %v6530 = vld [vmem:[#allocation11 + $0x20] sm:$0xff]
    %v6531 = vld [vmem:[#allocation11 + $0x28] sm:$0xff]
    %v6532 = vld [vmem:[#allocation11 + $0x30] sm:$0xff]
    %v6533 = vld [vmem:[#allocation11 + $0x38] sm:$0xff]
    %v6534 = vld [vmem:[#allocation11 + $0x40] sm:$0xff]
    %v6535 = vld [vmem:[#allocation11 + $0x48] sm:$0xff]
    %v6536 = vld [vmem:[#allocation11 + $0x50] sm:$0xff]
    %v6537 = vld [vmem:[#allocation11 + $0x58] sm:$0xff]
    %v6538 = vld [vmem:[#allocation11 + $0x60] sm:$0xff]
    %v6539 = vld [vmem:[#allocation11 + $0x68] sm:$0xff]
    %v6540 = vld [vmem:[#allocation11 + $0x70] sm:$0xff]
    %v6541 = vld [vmem:[#allocation11 + $0x78] sm:$0xff]
    %v6542 = vld [vmem:[#allocation11 + $0x80] sm:$0xff]
    %v6543 = vld [vmem:[#allocation11 + $0x88] sm:$0xff]
    %v6544 = vld [vmem:[#allocation11 + $0x90] sm:$0xff]
    %v6545 = vld [vmem:[#allocation11 + $0x98] sm:$0xff]
    %v6546 = vld [vmem:[#allocation11 + $0xa0] sm:$0xff]
    %v6547 = vld [vmem:[#allocation11 + $0xa8] sm:$0xff]
    %v6548 = vld [vmem:[#allocation11 + $0xb0] sm:$0xff]
    %v6549 = vld [vmem:[#allocation11 + $0xb8] sm:$0xff]
    %v6550 = vld [vmem:[#allocation11 + $0xc0] sm:$0xff]
    %v6551 = vld [vmem:[#allocation11 + $0xc8] sm:$0xff]
    %v6552 = vld [vmem:[#allocation11 + $0xd0] sm:$0xff]
    %v6553 = vld [vmem:[#allocation11 + $0xd8] sm:$0xff]
    %v6554 = vld [vmem:[#allocation11 + $0xe0] sm:$0xff]
    %v6555 = vld [vmem:[#allocation11 + $0xe8] sm:$0xff]
    %v6556 = vld [vmem:[#allocation11 + $0xf0] sm:$0xff]
    %v6557 = vld [vmem:[#allocation11 + $0xf8] sm:$0xff]
    %v6558 = vld [vmem:[#allocation11 + $0x100] sm:$0xff]
    %v6559 = vld [vmem:[#allocation11 + $0x108] sm:$0xff]
    %v6560 = vld [vmem:[#allocation11 + $0x110] sm:$0xff]
    %v6561 = vld [vmem:[#allocation11 + $0x118] sm:$0xff]
    %v6562 = vld [vmem:[#allocation11 + $0x120] sm:$0xff]
    %v6563 = vld [vmem:[#allocation11 + $0x128] sm:$0xff]
    %v6564 = vld [vmem:[#allocation11 + $0x130] sm:$0xff]
    %v6565 = vld [vmem:[#allocation11 + $0x138] sm:$0xff]
    %v6566 = vld [vmem:[#allocation11 + $0x140] sm:$0xff]
    %v6567 = vld [vmem:[#allocation11 + $0x148] sm:$0xff]
    %v6568 = vld [vmem:[#allocation11 + $0x150] sm:$0xff]
    %v6569 = vld [vmem:[#allocation11 + $0x158] sm:$0xff]
    %v6570 = vld [vmem:[#allocation11 + $0x160] sm:$0xff]
    %v6571 = vld [vmem:[#allocation11 + $0x168] sm:$0xff]
    %v6572 = vld [vmem:[#allocation11 + $0x170] sm:$0xff]
    %v6573 = vld [vmem:[#allocation11 + $0x178] sm:$0xff]
    %v6574 = vld [vmem:[#allocation11 + $0x180] sm:$0xff]
    %v6575 = vld [vmem:[#allocation11 + $0x188] sm:$0xff]
    %v6576 = vld [vmem:[#allocation11 + $0x190] sm:$0xff]
    %v6577 = vld [vmem:[#allocation11 + $0x198] sm:$0xff]
    %v6578 = vld [vmem:[#allocation11 + $0x1a0] sm:$0xff]
    %v6579 = vld [vmem:[#allocation11 + $0x1a8] sm:$0xff]
    %v6580 = vld [vmem:[#allocation11 + $0x1b0] sm:$0xff]
    %v6581 = vld [vmem:[#allocation11 + $0x1b8] sm:$0xff]
    %v6582 = vld [vmem:[#allocation11 + $0x1c0] sm:$0xff]
    %v6583 = vld [vmem:[#allocation11 + $0x1c8] sm:$0xff]
    %v6584 = vld [vmem:[#allocation11 + $0x1d0] sm:$0xff]
    %v6585 = vld [vmem:[#allocation11 + $0x1d8] sm:$0xff]
    %v6586 = vld [vmem:[#allocation11 + $0x1e0] sm:$0xff]
    %v6587 = vld [vmem:[#allocation11 + $0x1e8] sm:$0xff]
    %v6588 = vld [vmem:[#allocation11 + $0x1f0] sm:$0xff]
    %v6589 = vld [vmem:[#allocation11 + $0x1f8] sm:$0xff]
    %v6654 = vunpack.c.l.b16 %v6526
    %v6655 = vunpack.c.h.b16 %v6526
    %v6656 = vunpack.c.l.b16 %v6527
    %v6657 = vunpack.c.h.b16 %v6527
    %v6658 = vunpack.c.l.b16 %v6528
    %v6659 = vunpack.c.h.b16 %v6528
    %v6660 = vunpack.c.l.b16 %v6529
    %v6661 = vunpack.c.h.b16 %v6529
    %v6662 = vunpack.c.l.b16 %v6530
    %v6663 = vunpack.c.h.b16 %v6530
    %v6664 = vunpack.c.l.b16 %v6531
    %v6665 = vunpack.c.h.b16 %v6531
    %v6666 = vunpack.c.l.b16 %v6532
    %v6667 = vunpack.c.h.b16 %v6532
    %v6668 = vunpack.c.l.b16 %v6533
    %v6669 = vunpack.c.h.b16 %v6533
    %v6670 = vunpack.c.l.b16 %v6534
    %v6671 = vunpack.c.h.b16 %v6534
    %v6672 = vunpack.c.l.b16 %v6535
    %v6673 = vunpack.c.h.b16 %v6535
    %v6674 = vunpack.c.l.b16 %v6536
    %v6675 = vunpack.c.h.b16 %v6536
    %v6676 = vunpack.c.l.b16 %v6537
    %v6677 = vunpack.c.h.b16 %v6537
    %v6678 = vunpack.c.l.b16 %v6538
    %v6679 = vunpack.c.h.b16 %v6538
    %v6680 = vunpack.c.l.b16 %v6539
    %v6681 = vunpack.c.h.b16 %v6539
    %v6682 = vunpack.c.l.b16 %v6540
    %v6683 = vunpack.c.h.b16 %v6540
    %v6684 = vunpack.c.l.b16 %v6541
    %v6685 = vunpack.c.h.b16 %v6541
    %v6686 = vunpack.c.l.b16 %v6542
    %v6687 = vunpack.c.h.b16 %v6542
    %v6688 = vunpack.c.l.b16 %v6543
    %v6689 = vunpack.c.h.b16 %v6543
    %v6690 = vunpack.c.l.b16 %v6544
    %v6691 = vunpack.c.h.b16 %v6544
    %v6692 = vunpack.c.l.b16 %v6545
    %v6693 = vunpack.c.h.b16 %v6545
    %v6694 = vunpack.c.l.b16 %v6546
    %v6695 = vunpack.c.h.b16 %v6546
    %v6696 = vunpack.c.l.b16 %v6547
    %v6697 = vunpack.c.h.b16 %v6547
    %v6698 = vunpack.c.l.b16 %v6548
    %v6699 = vunpack.c.h.b16 %v6548
    %v6700 = vunpack.c.l.b16 %v6549
    %v6701 = vunpack.c.h.b16 %v6549
    %v6702 = vunpack.c.l.b16 %v6550
    %v6703 = vunpack.c.h.b16 %v6550
    %v6704 = vunpack.c.l.b16 %v6551
    %v6705 = vunpack.c.h.b16 %v6551
    %v6706 = vunpack.c.l.b16 %v6552
    %v6707 = vunpack.c.h.b16 %v6552
    %v6708 = vunpack.c.l.b16 %v6553
    %v6709 = vunpack.c.h.b16 %v6553
    %v6710 = vunpack.c.l.b16 %v6554
    %v6711 = vunpack.c.h.b16 %v6554
    %v6712 = vunpack.c.l.b16 %v6555
    %v6713 = vunpack.c.h.b16 %v6555
    %v6714 = vunpack.c.l.b16 %v6556
    %v6715 = vunpack.c.h.b16 %v6556
    %v6716 = vunpack.c.l.b16 %v6557
    %v6717 = vunpack.c.h.b16 %v6557
    %v6718 = vunpack.c.l.b16 %v6558
    %v6719 = vunpack.c.h.b16 %v6558
    %v6720 = vunpack.c.l.b16 %v6559
    %v6721 = vunpack.c.h.b16 %v6559
    %v6722 = vunpack.c.l.b16 %v6560
    %v6723 = vunpack.c.h.b16 %v6560
    %v6724 = vunpack.c.l.b16 %v6561
    %v6725 = vunpack.c.h.b16 %v6561
    %v6726 = vunpack.c.l.b16 %v6562
    %v6727 = vunpack.c.h.b16 %v6562
    %v6728 = vunpack.c.l.b16 %v6563
    %v6729 = vunpack.c.h.b16 %v6563
    %v6730 = vunpack.c.l.b16 %v6564
    %v6731 = vunpack.c.h.b16 %v6564
    %v6732 = vunpack.c.l.b16 %v6565
    %v6733 = vunpack.c.h.b16 %v6565
    %v6734 = vunpack.c.l.b16 %v6566
    %v6735 = vunpack.c.h.b16 %v6566
    %v6736 = vunpack.c.l.b16 %v6567
    %v6737 = vunpack.c.h.b16 %v6567
    %v6738 = vunpack.c.l.b16 %v6568
    %v6739 = vunpack.c.h.b16 %v6568
    %v6740 = vunpack.c.l.b16 %v6569
    %v6741 = vunpack.c.h.b16 %v6569
    %v6742 = vunpack.c.l.b16 %v6570
    %v6743 = vunpack.c.h.b16 %v6570
    %v6744 = vunpack.c.l.b16 %v6571
    %v6745 = vunpack.c.h.b16 %v6571
    %v6746 = vunpack.c.l.b16 %v6572
    %v6747 = vunpack.c.h.b16 %v6572
    %v6748 = vunpack.c.l.b16 %v6573
    %v6749 = vunpack.c.h.b16 %v6573
    %v6750 = vunpack.c.l.b16 %v6574
    %v6751 = vunpack.c.h.b16 %v6574
    %v6752 = vunpack.c.l.b16 %v6575
    %v6753 = vunpack.c.h.b16 %v6575
    %v6754 = vunpack.c.l.b16 %v6576
    %v6755 = vunpack.c.h.b16 %v6576
    %v6756 = vunpack.c.l.b16 %v6577
    %v6757 = vunpack.c.h.b16 %v6577
    %v6758 = vunpack.c.l.b16 %v6578
    %v6759 = vunpack.c.h.b16 %v6578
    %v6760 = vunpack.c.l.b16 %v6579
    %v6761 = vunpack.c.h.b16 %v6579
    %v6762 = vunpack.c.l.b16 %v6580
    %v6763 = vunpack.c.h.b16 %v6580
    %v6764 = vunpack.c.l.b16 %v6581
    %v6765 = vunpack.c.h.b16 %v6581
    %v6766 = vunpack.c.l.b16 %v6582
    %v6767 = vunpack.c.h.b16 %v6582
    %v6768 = vunpack.c.l.b16 %v6583
    %v6769 = vunpack.c.h.b16 %v6583
    %v6770 = vunpack.c.l.b16 %v6584
    %v6771 = vunpack.c.h.b16 %v6584
    %v6772 = vunpack.c.l.b16 %v6585
    %v6773 = vunpack.c.h.b16 %v6585
    %v6774 = vunpack.c.l.b16 %v6586
    %v6775 = vunpack.c.h.b16 %v6586
    %v6776 = vunpack.c.l.b16 %v6587
    %v6777 = vunpack.c.h.b16 %v6587
    %v6778 = vunpack.c.l.b16 %v6588
    %v6779 = vunpack.c.h.b16 %v6588
    %v6780 = vunpack.c.l.b16 %v6589
    %v6781 = vunpack.c.h.b16 %v6589
    %v6782 = vpack.c.b16 %v6658, %v6654
    %v6783 = vpack.c.b16 %v6659, %v6655
    %v6784 = vpack.c.b16 %v6660, %v6656
    %v6785 = vpack.c.b16 %v6661, %v6657
    %v6786 = vpack.c.b16 %v6666, %v6662
    %v6787 = vpack.c.b16 %v6667, %v6663
    %v6788 = vpack.c.b16 %v6668, %v6664
    %v6789 = vpack.c.b16 %v6669, %v6665
    %v6790 = vpack.c.b16 %v6674, %v6670
    %v6791 = vpack.c.b16 %v6675, %v6671
    %v6792 = vpack.c.b16 %v6676, %v6672
    %v6793 = vpack.c.b16 %v6677, %v6673
    %v6794 = vpack.c.b16 %v6682, %v6678
    %v6795 = vpack.c.b16 %v6683, %v6679
    %v6796 = vpack.c.b16 %v6684, %v6680
    %v6797 = vpack.c.b16 %v6685, %v6681
    %v6798 = vpack.c.b16 %v6690, %v6686
    %v6799 = vpack.c.b16 %v6691, %v6687
    %v6800 = vpack.c.b16 %v6692, %v6688
    %v6801 = vpack.c.b16 %v6693, %v6689
    %v6802 = vpack.c.b16 %v6698, %v6694
    %v6803 = vpack.c.b16 %v6699, %v6695
    %v6804 = vpack.c.b16 %v6700, %v6696
    %v6805 = vpack.c.b16 %v6701, %v6697
    %v6806 = vpack.c.b16 %v6706, %v6702
    %v6807 = vpack.c.b16 %v6707, %v6703
    %v6808 = vpack.c.b16 %v6708, %v6704
    %v6809 = vpack.c.b16 %v6709, %v6705
    %v6810 = vpack.c.b16 %v6714, %v6710
    %v6811 = vpack.c.b16 %v6715, %v6711
    %v6812 = vpack.c.b16 %v6716, %v6712
    %v6813 = vpack.c.b16 %v6717, %v6713
    %v6814 = vpack.c.b16 %v6722, %v6718
    %v6815 = vpack.c.b16 %v6723, %v6719
    %v6816 = vpack.c.b16 %v6724, %v6720
    %v6817 = vpack.c.b16 %v6725, %v6721
    %v6818 = vpack.c.b16 %v6730, %v6726
    %v6819 = vpack.c.b16 %v6731, %v6727
    %v6820 = vpack.c.b16 %v6732, %v6728
    %v6821 = vpack.c.b16 %v6733, %v6729
    %v6822 = vpack.c.b16 %v6738, %v6734
    %v6823 = vpack.c.b16 %v6739, %v6735
    %v6824 = vpack.c.b16 %v6740, %v6736
    %v6825 = vpack.c.b16 %v6741, %v6737
    %v6826 = vpack.c.b16 %v6746, %v6742
    %v6827 = vpack.c.b16 %v6747, %v6743
    %v6828 = vpack.c.b16 %v6748, %v6744
    %v6829 = vpack.c.b16 %v6749, %v6745
    %v6830 = vpack.c.b16 %v6754, %v6750
    %v6831 = vpack.c.b16 %v6755, %v6751
    %v6832 = vpack.c.b16 %v6756, %v6752
    %v6833 = vpack.c.b16 %v6757, %v6753
    %v6834 = vpack.c.b16 %v6762, %v6758
    %v6835 = vpack.c.b16 %v6763, %v6759
    %v6836 = vpack.c.b16 %v6764, %v6760
    %v6837 = vpack.c.b16 %v6765, %v6761
    %v6838 = vpack.c.b16 %v6770, %v6766
    %v6839 = vpack.c.b16 %v6771, %v6767
    %v6840 = vpack.c.b16 %v6772, %v6768
    %v6841 = vpack.c.b16 %v6773, %v6769
    %v6842 = vpack.c.b16 %v6778, %v6774
    %v6843 = vpack.c.b16 %v6779, %v6775
    %v6844 = vpack.c.b16 %v6780, %v6776
    %v6845 = vpack.c.b16 %v6781, %v6777
    %6910 = vmatprep.subr.bf16.mxu0 %v6783
    %6911 = vmatpush1.bf16.msra.mxu0 %v6782
    %6912 = vmatprep.subr.bf16.mxu0 %v6787
    %6913 = vmatpush1.bf16.msra.mxu0 %v6786
    %6914 = vmatprep.subr.bf16.mxu0 %v6791
    %6915 = vmatpush1.bf16.msra.mxu0 %v6790
    %6916 = vmatprep.subr.bf16.mxu0 %v6795
    %6917 = vmatpush1.bf16.msra.mxu0 %v6794
    %6918 = vmatprep.subr.bf16.mxu0 %v6799
    %6919 = vmatpush1.bf16.msra.mxu0 %v6798
    %6920 = vmatprep.subr.bf16.mxu0 %v6803
    %6921 = vmatpush1.bf16.msra.mxu0 %v6802
    %6922 = vmatprep.subr.bf16.mxu0 %v6807
    %6923 = vmatpush1.bf16.msra.mxu0 %v6806
    %6924 = vmatprep.subr.bf16.mxu0 %v6811
    %6925 = vmatpush1.bf16.msra.mxu0 %v6810
    %6926 = vmatprep.subr.bf16.mxu0 %v6815
    %6927 = vmatpush1.bf16.msra.mxu0 %v6814
    %6928 = vmatprep.subr.bf16.mxu0 %v6819
    %6929 = vmatpush1.bf16.msra.mxu0 %v6818
    %6930 = vmatprep.subr.bf16.mxu0 %v6823
    %6931 = vmatpush1.bf16.msra.mxu0 %v6822
    %6932 = vmatprep.subr.bf16.mxu0 %v6827
    %6933 = vmatpush1.bf16.msra.mxu0 %v6826
    %6934 = vmatprep.subr.bf16.mxu0 %v6831
    %6935 = vmatpush1.bf16.msra.mxu0 %v6830
    %6936 = vmatprep.subr.bf16.mxu0 %v6835
    %6937 = vmatpush1.bf16.msra.mxu0 %v6834
    %6938 = vmatprep.subr.bf16.mxu0 %v6839
    %6939 = vmatpush1.bf16.msra.mxu0 %v6838
    %6940 = vmatprep.subr.bf16.mxu0 %v6843
    %6941 = vmatpush1.bf16.msra.mxu0 %v6842
    %6942 = vmatprep.mubr.bf16.mxu0 %v6525
    %6943 = vmatmul.mubr.bf16.gmra.mrb[0].mxu0 %v6523
    %v6944 = vpop.f32.mrb[0].mxu0
    %v6945 = vadd.f32 %v517, %v6944
    %v6946 = vpop.f32.mrb[0].mxu0
    %v6947 = vadd.f32 %v521, %v6946
    %v6948 = vpop.f32.mrb[0].mxu0
    %v6949 = vpop.f32.mrb[0].mxu0
    %6950 = vdwg.mxu0
    %6951 = vmatprep.subr.bf16.mxu0 %v6785
    %6952 = vmatpush1.bf16.msra.mxu0 %v6784
    %6953 = vmatprep.subr.bf16.mxu0 %v6789
    %6954 = vmatpush1.bf16.msra.mxu0 %v6788
    %6955 = vmatprep.subr.bf16.mxu0 %v6793
    %6956 = vmatpush1.bf16.msra.mxu0 %v6792
    %6957 = vmatprep.subr.bf16.mxu0 %v6797
    %6958 = vmatpush1.bf16.msra.mxu0 %v6796
    %6959 = vmatprep.subr.bf16.mxu0 %v6801
    %6960 = vmatpush1.bf16.msra.mxu0 %v6800
    %6961 = vmatprep.subr.bf16.mxu0 %v6805
    %6962 = vmatpush1.bf16.msra.mxu0 %v6804
    %6963 = vmatprep.subr.bf16.mxu0 %v6809
    %6964 = vmatpush1.bf16.msra.mxu0 %v6808
    %6965 = vmatprep.subr.bf16.mxu0 %v6813
    %6966 = vmatpush1.bf16.msra.mxu0 %v6812
    %6967 = vmatprep.subr.bf16.mxu0 %v6817
    %6968 = vmatpush1.bf16.msra.mxu0 %v6816
    %6969 = vmatprep.subr.bf16.mxu0 %v6821
    %6970 = vmatpush1.bf16.msra.mxu0 %v6820
    %6971 = vmatprep.subr.bf16.mxu0 %v6825
    %6972 = vmatpush1.bf16.msra.mxu0 %v6824
    %6973 = vmatprep.subr.bf16.mxu0 %v6829
    %6974 = vmatpush1.bf16.msra.mxu0 %v6828
    %6975 = vmatprep.subr.bf16.mxu0 %v6833
    %6976 = vmatpush1.bf16.msra.mxu0 %v6832
    %6977 = vmatprep.subr.bf16.mxu0 %v6837
    %6978 = vmatpush1.bf16.msra.mxu0 %v6836
    %6979 = vmatprep.subr.bf16.mxu0 %v6841
    %6980 = vmatpush1.bf16.msra.mxu0 %v6840
    %6981 = vmatprep.subr.bf16.mxu0 %v6845
    %6982 = vmatpush1.bf16.msra.mxu0 %v6844
    %6983 = vmatprep.mubr.bf16.mxu0 %v6525
    %6984 = vmatmul.mubr.bf16.gmra.mrb[0].mxu0 %v6523
    %v6985 = vpop.f32.mrb[0].mxu0
    %v6986 = vadd.f32 %v525, %v6985
    %v6987 = vpop.f32.mrb[0].mxu0
    %v6988 = vadd.f32 %v529, %v6987
    %v6989 = vpop.f32.mrb[0].mxu0
    %v6990 = vpop.f32.mrb[0].mxu0
    %6991 = vdwg.mxu0
    %v6992 = vld [vmem:[%s1315] sm:$0xff]
    %v6993 = vxor.u32 %v6945, 2147483648
    %v6994 = vxor.u32 %v6947, 2147483648
    %v6995 = vxor.u32 %v6986, 2147483648
    %v6996 = vmul.f32 %v6993, 1.442695
    %v6997 = vpow.pop %v6996
    %v6998 = vmul.f32 %v6994, 1.442695
    %v6999 = vpow.pop %v6998
    %v7000 = vmul.f32 %v6995, 1.442695
    %v7001 = vpow.pop %v7000
    %v7002 = vadd.f32 %v6997, 1.0
    %v7003 = vadd.f32 %v6999, 1.0
    %v7004 = vadd.f32 %v7001, 1.0
    %v7005 = vrcp.pop %v7002
    %v7006 = vmul.f32 1.0, %v7005
    %v7007 = vrcp.pop %v7003
    %v7008 = vmul.f32 1.0, %v7007
    %v7009 = vrcp.pop %v7004
    %v7010 = vmul.f32 1.0, %v7009
    %v7011 = vtanh.pop %v6988
    %v7012 = vmul.f32 %v7008, %v6992
    %v7013 = vmul.f32 %v7006, %v7011
    %v7014 = vadd.f32 %v7012, %v7013
    %v7015 = vtanh.pop %v7014
    %v7016 = vmul.f32 %v7010, %v7015
    %7017 = vst [vmem:[%s846] sm:$0xff] %v7016
    %7018 = vst [vmem:[%s1315] sm:$0xff] %v7014
    %v7019 = vpack.c.bf16 %v7016, %v7016
    %s7020 = scalar_lea.vmem [#allocation13], 28
    %7021 = vst [vmem:[%s7020] sm:$0xf] %v7019
    // Predicated region
    $region46: #{tpu_custom_call.1} parent=1 // pred_check
      _
    $region47: #{tpu_custom_call.1} parent=1 // pred_check_branch
      %7023 = sbr.rel (0) target = $region49
    $region48: #{tpu_custom_call.1} parent=1 // pred_region
      %s7025 = ssub.s32 512, 512
      %7026 = vsyncadd [#allocation7], %s7025
      %s7027 = sshll.u32 [#allocation13], 4
      %s7028 = int_to_ptr.vmem [resolvable:$true] %s7027
      %7033 = dma.vmem_to_hbm [thread:$0]  %s7028, 512, %s6, [#allocation7], 64, 64, 4
    $region49: #{tpu_custom_call.1} parent=1 // pred_fallthru
      _
    // Predicated region
    $region50: #{tpu_custom_call.1} parent=1 // pred_check
      _
    $region51: #{tpu_custom_call.1} parent=1 // pred_check_branch
      %7035 = sbr.rel (0) target = $region53
    $region52: #{tpu_custom_call.1} parent=1 // pred_region
      %7036 = dma.done [#allocation7], 512
    $region53: #{tpu_custom_call.1} parent=1 // pred_fallthru
      _
    %7037 = vsyncpa [#allocation6], 1
    %7038 = vsyncpa [#allocation9], 1
    %7039 = vsyncpa [#allocation12], 1
    %7040 = vsyncpa [#allocation7], 1

</llo_original>
